<compile_context>
chip_gen: v6e
topology: v6e:2x2x1
jax: 0.10.0
libtpu: 0.0.40
codegen_flags: <defaults>
</compile_context>

<pallas_src>
import functools

import jax
import jax.numpy as jnp
from jax.experimental import pallas as pl
from jax.experimental.pallas import tpu as pltpu


def _leaky_relu(x, slope=0.2):
    return jnp.where(x > 0, x, slope * x)


def _round_up(x, m):
    return ((x + m - 1) // m) * m


def rrdb_kernel(x_ref, w1_ref, b1_ref, w2_ref, b2_ref, w3_ref, b3_ref,
                o_ref, *, H, W, Hp, Wp, Cp):
    f32 = jnp.float32
    n_int = H * Wp            # flattened interior rows (padded rows 1..H)
    n_all = Hp * Wp           # flattened padded rows

    # Column-validity mask over interior rows: padded column x is real iff
    # 1 <= x <= W.  Built once, reused for conv1/conv2 outputs.
    col = jax.lax.broadcasted_iota(jnp.int32, (n_int, Cp), 0) % Wp
    col_mask = (col >= 1) & (col <= W)

    zrow = jnp.zeros((1, Cp), f32)
    zband = jnp.zeros((Wp, Cp), f32)

    def conv3x3(a, w_ref, b_ref):
        # a: (Hp*Wp, Cp) flattened, zero-ringed activation.
        # dx taps: one +/-1 row shift of the whole array.  Row wrap-around at
        # image-row boundaries lands in the zero padding columns, so these are
        # exactly the zero-padded SAME-conv taps.
        a_l = jnp.concatenate([zrow, a[:n_all - 1, :]], axis=0)  # a_l[j] = a[j-1]
        a_r = jnp.concatenate([a[1:, :], zrow], axis=0)          # a_r[j] = a[j+1]
        a_cat = jnp.concatenate([a_l, a, a_r], axis=-1)          # (Hp*Wp, 3*Cp)

        acc = jnp.zeros((n_int, Cp), f32)
        for dy in range(3):                       # dy offsets are multiples of 8
            acc = acc + jnp.dot(a_cat[dy * Wp:dy * Wp + n_int, :], w_ref[dy],
                                preferred_element_type=f32)
        return acc + b_ref[...]                   # (1, Cp) broadcasts

    def repad_rows(t):
        # (H*Wp, Cp) interior -> (Hp*Wp, Cp) with zero top/bottom row bands
        # (all placements are sublane-aligned since Wp % 8 == 0).
        return jnp.concatenate([zband, t, zband], axis=0)

    x = x_ref[0]                                  # (Hp*Wp, Cp), f32

    t1 = conv3x3(x, w1_ref, b1_ref)
    t1 = jnp.where(col_mask, _leaky_relu(t1), 0.0)

    t2 = conv3x3(repad_rows(t1), w2_ref, b2_ref)
    t2 = jnp.where(col_mask, _leaky_relu(t2), 0.0)

    t3 = conv3x3(repad_rows(t2), w3_ref, b3_ref)

    residual = x[Wp:Wp + n_int, :]                # interior rows; aligned slice
    o_ref[0] = (t3 + residual).astype(o_ref.dtype)


def rrdb_forward(x_nchw, params):
    """x_nchw: (B, C, H, W) float32; params: (w1, b1, w2, b2, w3, b3) with
    PyTorch shapes w: (Cout, Cin, 3, 3), b: (C,)."""
    w1, b1, w2, b2, w3, b3 = params
    B, C, H, W = x_nchw.shape

    Cp = _round_up(C, 128)        # lane-dense channels
    Wp = _round_up(W + 2, 8)      # sublane-dense padded width (>= W + 2)
    Hp = H + 2

    # NCHW -> NHWC, zero-pad H by (1,1), W by (1, Wp-W-1), C by (0, Cp-C),
    # then flatten (H, W) into one sublane-dense axis.
    x = jnp.transpose(x_nchw, (0, 2, 3, 1))
    xp = jnp.pad(x, ((0, 0), (1, 1), (1, Wp - W - 1), (0, Cp - C)))
    xf = xp.reshape(B, Hp * Wp, Cp)

    def prep_w(w):
        # OIHW -> (ky, kx, Cin, Cout), zero-pad channels, fold (kx, Cin) into
        # the contraction dim: (3, 3*Cp, Cp).  Row index = kx*Cp + cin, which
        # matches the [a_l | a | a_r] lane concatenation in the kernel.
        w_hwio = jnp.transpose(w, (2, 3, 1, 0))
        w_pad = jnp.pad(w_hwio, ((0, 0), (0, 0), (0, Cp - C), (0, Cp - C)))
        return w_pad.reshape(3, 3 * Cp, Cp)

    def prep_b(b):
        return jnp.pad(b, (0, Cp - C)).reshape(1, Cp)

    kernel = functools.partial(rrdb_kernel, H=H, W=W, Hp=Hp, Wp=Wp, Cp=Cp)

    w_spec = pl.BlockSpec((3, 3 * Cp, Cp), lambda b: (0, 0, 0))
    b_spec = pl.BlockSpec((1, Cp), lambda b: (0, 0))

    out_flat = pl.pallas_call(
        kernel,
        out_shape=jax.ShapeDtypeStruct((B, H * Wp, Cp), x.dtype),
        grid_spec=pltpu.PrefetchScalarGridSpec(
            num_scalar_prefetch=0,
            grid=(B,),
            in_specs=[
                pl.BlockSpec((1, Hp * Wp, Cp), lambda b: (b, 0, 0)),
                w_spec, b_spec,   # conv1
                w_spec, b_spec,   # conv2
                w_spec, b_spec,   # conv3
            ],
            out_specs=pl.BlockSpec((1, H * Wp, Cp), lambda b: (b, 0, 0)),
        ),
        compiler_params=pltpu.CompilerParams(
            dimension_semantics=("parallel",)),
    )(xf, prep_w(w1), prep_b(b1), prep_w(w2), prep_b(b2), prep_w(w3), prep_b(b3))

    # Strip spatial / channel padding and go back to NCHW.
    out = out_flat.reshape(B, H, Wp, Cp)[:, :, 1:W + 1, :C]
    return jnp.transpose(out, (0, 3, 1, 2))


# ---------------- pure-JAX reference (for correctness check) ----------------
def _conv_ref(x_nchw, w, b):
    y = jax.lax.conv_general_dilated(
        x_nchw, w, window_strides=(1, 1), padding="SAME",
        dimension_numbers=("NCHW", "OIHW", "NCHW"))
    return y + b[None, :, None, None]


def rrdb_ref(x, params):
    w1, b1, w2, b2, w3, b3 = params
    lrelu = lambda t: jnp.where(t > 0, t, 0.2 * t)
    residual = x
    t = lrelu(_conv_ref(x, w1, b1))
    t = lrelu(_conv_ref(t, w2, b2))
    t = _conv_ref(t, w3, b3)
    return t + residual


if __name__ == "__main__":
    B, C, H, W = 2, 4, 16, 16
    key = jax.random.PRNGKey(0)
    ks = jax.random.split(key, 7)

    x = jax.random.normal(ks[0], (B, C, H, W), jnp.float32)
    # Deterministic synthetic parameters (PyTorch Conv2d shapes: OIHW + bias).
    w1 = jax.random.normal(ks[1], (C, C, 3, 3), jnp.float32) * 0.1
    b1 = jax.random.normal(ks[2], (C,), jnp.float32) * 0.1
    w2 = jax.random.normal(ks[3], (C, C, 3, 3), jnp.float32) * 0.1
    b2 = jax.random.normal(ks[4], (C,), jnp.float32) * 0.1
    w3 = jax.random.normal(ks[5], (C, C, 3, 3), jnp.float32) * 0.1
    b3 = jax.random.normal(ks[6], (C,), jnp.float32) * 0.1
    params = (w1, b1, w2, b2, w3, b3)

    out = rrdb_forward(x, params)
    out = jax.block_until_ready(out)

    ref = rrdb_ref(x, params)
    assert out.shape == ref.shape and out.dtype == ref.dtype
    assert jnp.allclose(out, ref, atol=1e-4, rtol=1e-4), "mismatch vs reference"

    print("KERNEL_OK")
</pallas_src>

<mosaic_0001>
module attributes {stable_mosaic.version = 11 : i64} {
  func.func @rrdb_kernel(%arg0: i32, %arg1: memref<1x432x128xf32, #tpu.memory_space<vmem>>, %arg2: memref<3x384x128xf32, #tpu.memory_space<vmem>>, %arg3: memref<1x128xf32, #tpu.memory_space<vmem>>, %arg4: memref<3x384x128xf32, #tpu.memory_space<vmem>>, %arg5: memref<1x128xf32, #tpu.memory_space<vmem>>, %arg6: memref<3x384x128xf32, #tpu.memory_space<vmem>>, %arg7: memref<1x128xf32, #tpu.memory_space<vmem>>, %arg8: memref<1x384x128xf32, #tpu.memory_space<vmem>>) attributes {dimension_semantics = [#tpu.dimension_semantics<parallel>], iteration_bounds = array<i64: 2>, scalar_prefetch = 0 : i64, scratch_operands = 0 : i64, tpu.core_type = #tpu.core_type<tc>, window_params = [{transform_indices = @transform_0, window_bounds = array<i64: 1, 432, 128>}, {pipeline_mode = #tpu.pipeline_mode<synchronous>, transform_indices = @transform_1, window_bounds = array<i64: 3, 384, 128>}, {pipeline_mode = #tpu.pipeline_mode<synchronous>, transform_indices = @transform_2, window_bounds = array<i64: 1, 128>}, {pipeline_mode = #tpu.pipeline_mode<synchronous>, transform_indices = @transform_3, window_bounds = array<i64: 3, 384, 128>}, {pipeline_mode = #tpu.pipeline_mode<synchronous>, transform_indices = @transform_4, window_bounds = array<i64: 1, 128>}, {pipeline_mode = #tpu.pipeline_mode<synchronous>, transform_indices = @transform_5, window_bounds = array<i64: 3, 384, 128>}, {pipeline_mode = #tpu.pipeline_mode<synchronous>, transform_indices = @transform_6, window_bounds = array<i64: 1, 128>}, {transform_indices = @transform_7, window_bounds = array<i64: 1, 384, 128>}]} {
    %0 = tpu.iota {dimensions = array<i32: 0>} : vector<384x128xi32>
    %c24_i32 = arith.constant 24 : i32
    %c0_i32 = arith.constant 0 : i32
    %1 = arith.cmpi eq, %c24_i32, %c0_i32 : i32
    %c1_i32 = arith.constant 1 : i32
    %2 = arith.select %1, %c1_i32, %c24_i32 : i32
    %3 = vector.broadcast %2 : i32 to vector<384x128xi32>
    %4 = arith.remsi %0, %3 : vector<384x128xi32>
    %c0_i32_0 = arith.constant 0 : i32
    %5 = vector.broadcast %c0_i32_0 : i32 to vector<384x128xi32>
    %6 = arith.cmpi ne, %4, %5 : vector<384x128xi32>
    %c0_i32_1 = arith.constant 0 : i32
    %7 = vector.broadcast %c0_i32_1 : i32 to vector<384x128xi32>
    %8 = arith.cmpi slt, %4, %7 : vector<384x128xi32>
    %c0_i32_2 = arith.constant 0 : i32
    %9 = arith.cmpi slt, %2, %c0_i32_2 : i32
    %10 = vector.broadcast %9 : i1 to vector<384x128xi1>
    %11 = vector.broadcast %10 : vector<384x128xi1> to vector<384x128xi1>
    %12 = arith.xori %8, %11 : vector<384x128xi1>
    %13 = arith.andi %12, %6 : vector<384x128xi1>
    %14 = vector.broadcast %2 : i32 to vector<384x128xi32>
    %15 = arith.addi %4, %14 : vector<384x128xi32>
    %16 = arith.select %13, %15, %4 : vector<384x128xi1>, vector<384x128xi32>
    %c1_i32_3 = arith.constant 1 : i32
    %17 = vector.broadcast %c1_i32_3 : i32 to vector<384x128xi32>
    %18 = arith.cmpi sge, %16, %17 : vector<384x128xi32>
    %c16_i32 = arith.constant 16 : i32
    %19 = vector.broadcast %c16_i32 : i32 to vector<384x128xi32>
    %20 = arith.cmpi sle, %16, %19 : vector<384x128xi32>
    %21 = arith.andi %18, %20 : vector<384x128xi1>
    %cst = arith.constant 0.000000e+00 : f32
    %22 = vector.broadcast %cst : f32 to vector<1x128xf32>
    %cst_4 = arith.constant 0.000000e+00 : f32
    %23 = vector.broadcast %cst_4 : f32 to vector<24x128xf32>
    %c0 = arith.constant 0 : index
    %c0_5 = arith.constant 0 : index
    %c0_6 = arith.constant 0 : index
    %24 = vector.load %arg1[%c0, %c0_5, %c0_6] : memref<1x432x128xf32, #tpu.memory_space<vmem>>, vector<1x432x128xf32>
    %25 = vector.shape_cast %24 : vector<1x432x128xf32> to vector<432x128xf32>
    %26 = vector.extract_strided_slice %25 {offsets = [0, 0], sizes = [431, 128], strides = [1, 1]} : vector<432x128xf32> to vector<431x128xf32>
    %27 = tpu.concatenate %22, %26 in 0 : vector<1x128xf32>, vector<431x128xf32> -> vector<432x128xf32>
    %28 = vector.extract_strided_slice %25 {offsets = [1, 0], sizes = [431, 128], strides = [1, 1]} : vector<432x128xf32> to vector<431x128xf32>
    %29 = tpu.concatenate %28, %22 in 0 : vector<431x128xf32>, vector<1x128xf32> -> vector<432x128xf32>
    %30 = tpu.concatenate %27, %25, %29 in 1 : vector<432x128xf32>, vector<432x128xf32>, vector<432x128xf32> -> vector<432x384xf32>
    %cst_7 = arith.constant 0.000000e+00 : f32
    %31 = vector.broadcast %cst_7 : f32 to vector<384x128xf32>
    %32 = vector.extract_strided_slice %30 {offsets = [0, 0], sizes = [384, 384], strides = [1, 1]} : vector<432x384xf32> to vector<384x384xf32>
    %c0_8 = arith.constant 0 : index
    %c0_9 = arith.constant 0 : index
    %c0_10 = arith.constant 0 : index
    %33 = vector.load %arg2[%c0_8, %c0_9, %c0_10] : memref<3x384x128xf32, #tpu.memory_space<vmem>>, vector<1x384x128xf32>
    %34 = vector.shape_cast %33 : vector<1x384x128xf32> to vector<384x128xf32>
    %cst_11 = arith.constant dense<0.000000e+00> : vector<384x128xf32>
    %35 = tpu.matmul %32, %34, %cst_11 {dimension_numbers = #tpu.dot_dimension_numbers<[1], [0], [0], [1], [0, 0, 1, 1], [], []>} : vector<384x384xf32>, vector<384x128xf32>, vector<384x128xf32> -> vector<384x128xf32>
    %36 = arith.addf %31, %35 : vector<384x128xf32>
    %37 = vector.extract_strided_slice %30 {offsets = [24, 0], sizes = [384, 384], strides = [1, 1]} : vector<432x384xf32> to vector<384x384xf32>
    %c1 = arith.constant 1 : index
    %c0_12 = arith.constant 0 : index
    %c0_13 = arith.constant 0 : index
    %38 = vector.load %arg2[%c1, %c0_12, %c0_13] : memref<3x384x128xf32, #tpu.memory_space<vmem>>, vector<1x384x128xf32>
    %39 = vector.shape_cast %38 : vector<1x384x128xf32> to vector<384x128xf32>
    %cst_14 = arith.constant dense<0.000000e+00> : vector<384x128xf32>
    %40 = tpu.matmul %37, %39, %cst_14 {dimension_numbers = #tpu.dot_dimension_numbers<[1], [0], [0], [1], [0, 0, 1, 1], [], []>} : vector<384x384xf32>, vector<384x128xf32>, vector<384x128xf32> -> vector<384x128xf32>
    %41 = arith.addf %36, %40 : vector<384x128xf32>
    %42 = vector.extract_strided_slice %30 {offsets = [48, 0], sizes = [384, 384], strides = [1, 1]} : vector<432x384xf32> to vector<384x384xf32>
    %c2 = arith.constant 2 : index
    %c0_15 = arith.constant 0 : index
    %c0_16 = arith.constant 0 : index
    %43 = vector.load %arg2[%c2, %c0_15, %c0_16] : memref<3x384x128xf32, #tpu.memory_space<vmem>>, vector<1x384x128xf32>
    %44 = vector.shape_cast %43 : vector<1x384x128xf32> to vector<384x128xf32>
    %cst_17 = arith.constant dense<0.000000e+00> : vector<384x128xf32>
    %45 = tpu.matmul %42, %44, %cst_17 {dimension_numbers = #tpu.dot_dimension_numbers<[1], [0], [0], [1], [0, 0, 1, 1], [], []>} : vector<384x384xf32>, vector<384x128xf32>, vector<384x128xf32> -> vector<384x128xf32>
    %46 = arith.addf %41, %45 : vector<384x128xf32>
    %c0_18 = arith.constant 0 : index
    %c0_19 = arith.constant 0 : index
    %47 = vector.load %arg3[%c0_18, %c0_19] : memref<1x128xf32, #tpu.memory_space<vmem>>, vector<1x128xf32>
    %48 = vector.broadcast %47 : vector<1x128xf32> to vector<384x128xf32>
    %49 = arith.addf %46, %48 : vector<384x128xf32>
    %cst_20 = arith.constant 0.000000e+00 : f32
    %50 = vector.broadcast %cst_20 : f32 to vector<384x128xf32>
    %51 = arith.cmpf ogt, %49, %50 : vector<384x128xf32>
    %cst_21 = arith.constant 2.000000e-01 : f32
    %52 = vector.broadcast %cst_21 : f32 to vector<384x128xf32>
    %53 = arith.mulf %52, %49 : vector<384x128xf32>
    %54 = arith.select %51, %49, %53 : vector<384x128xi1>, vector<384x128xf32>
    %cst_22 = arith.constant 0.000000e+00 : f32
    %55 = vector.broadcast %cst_22 : f32 to vector<384x128xf32>
    %56 = arith.select %21, %54, %55 : vector<384x128xi1>, vector<384x128xf32>
    %57 = tpu.concatenate %23, %56, %23 in 0 : vector<24x128xf32>, vector<384x128xf32>, vector<24x128xf32> -> vector<432x128xf32>
    %58 = vector.extract_strided_slice %57 {offsets = [0, 0], sizes = [431, 128], strides = [1, 1]} : vector<432x128xf32> to vector<431x128xf32>
    %59 = tpu.concatenate %22, %58 in 0 : vector<1x128xf32>, vector<431x128xf32> -> vector<432x128xf32>
    %60 = vector.extract_strided_slice %57 {offsets = [1, 0], sizes = [431, 128], strides = [1, 1]} : vector<432x128xf32> to vector<431x128xf32>
    %61 = tpu.concatenate %60, %22 in 0 : vector<431x128xf32>, vector<1x128xf32> -> vector<432x128xf32>
    %62 = tpu.concatenate %59, %57, %61 in 1 : vector<432x128xf32>, vector<432x128xf32>, vector<432x128xf32> -> vector<432x384xf32>
    %cst_23 = arith.constant 0.000000e+00 : f32
    %63 = vector.broadcast %cst_23 : f32 to vector<384x128xf32>
    %64 = vector.extract_strided_slice %62 {offsets = [0, 0], sizes = [384, 384], strides = [1, 1]} : vector<432x384xf32> to vector<384x384xf32>
    %c0_24 = arith.constant 0 : index
    %c0_25 = arith.constant 0 : index
    %c0_26 = arith.constant 0 : index
    %65 = vector.load %arg4[%c0_24, %c0_25, %c0_26] : memref<3x384x128xf32, #tpu.memory_space<vmem>>, vector<1x384x128xf32>
    %66 = vector.shape_cast %65 : vector<1x384x128xf32> to vector<384x128xf32>
    %cst_27 = arith.constant dense<0.000000e+00> : vector<384x128xf32>
    %67 = tpu.matmul %64, %66, %cst_27 {dimension_numbers = #tpu.dot_dimension_numbers<[1], [0], [0], [1], [0, 0, 1, 1], [], []>} : vector<384x384xf32>, vector<384x128xf32>, vector<384x128xf32> -> vector<384x128xf32>
    %68 = arith.addf %63, %67 : vector<384x128xf32>
    %69 = vector.extract_strided_slice %62 {offsets = [24, 0], sizes = [384, 384], strides = [1, 1]} : vector<432x384xf32> to vector<384x384xf32>
    %c1_28 = arith.constant 1 : index
    %c0_29 = arith.constant 0 : index
    %c0_30 = arith.constant 0 : index
    %70 = vector.load %arg4[%c1_28, %c0_29, %c0_30] : memref<3x384x128xf32, #tpu.memory_space<vmem>>, vector<1x384x128xf32>
    %71 = vector.shape_cast %70 : vector<1x384x128xf32> to vector<384x128xf32>
    %cst_31 = arith.constant dense<0.000000e+00> : vector<384x128xf32>
    %72 = tpu.matmul %69, %71, %cst_31 {dimension_numbers = #tpu.dot_dimension_numbers<[1], [0], [0], [1], [0, 0, 1, 1], [], []>} : vector<384x384xf32>, vector<384x128xf32>, vector<384x128xf32> -> vector<384x128xf32>
    %73 = arith.addf %68, %72 : vector<384x128xf32>
    %74 = vector.extract_strided_slice %62 {offsets = [48, 0], sizes = [384, 384], strides = [1, 1]} : vector<432x384xf32> to vector<384x384xf32>
    %c2_32 = arith.constant 2 : index
    %c0_33 = arith.constant 0 : index
    %c0_34 = arith.constant 0 : index
    %75 = vector.load %arg4[%c2_32, %c0_33, %c0_34] : memref<3x384x128xf32, #tpu.memory_space<vmem>>, vector<1x384x128xf32>
    %76 = vector.shape_cast %75 : vector<1x384x128xf32> to vector<384x128xf32>
    %cst_35 = arith.constant dense<0.000000e+00> : vector<384x128xf32>
    %77 = tpu.matmul %74, %76, %cst_35 {dimension_numbers = #tpu.dot_dimension_numbers<[1], [0], [0], [1], [0, 0, 1, 1], [], []>} : vector<384x384xf32>, vector<384x128xf32>, vector<384x128xf32> -> vector<384x128xf32>
    %78 = arith.addf %73, %77 : vector<384x128xf32>
    %c0_36 = arith.constant 0 : index
    %c0_37 = arith.constant 0 : index
    %79 = vector.load %arg5[%c0_36, %c0_37] : memref<1x128xf32, #tpu.memory_space<vmem>>, vector<1x128xf32>
    %80 = vector.broadcast %79 : vector<1x128xf32> to vector<384x128xf32>
    %81 = arith.addf %78, %80 : vector<384x128xf32>
    %cst_38 = arith.constant 0.000000e+00 : f32
    %82 = vector.broadcast %cst_38 : f32 to vector<384x128xf32>
    %83 = arith.cmpf ogt, %81, %82 : vector<384x128xf32>
    %cst_39 = arith.constant 2.000000e-01 : f32
    %84 = vector.broadcast %cst_39 : f32 to vector<384x128xf32>
    %85 = arith.mulf %84, %81 : vector<384x128xf32>
    %86 = arith.select %83, %81, %85 : vector<384x128xi1>, vector<384x128xf32>
    %cst_40 = arith.constant 0.000000e+00 : f32
    %87 = vector.broadcast %cst_40 : f32 to vector<384x128xf32>
    %88 = arith.select %21, %86, %87 : vector<384x128xi1>, vector<384x128xf32>
    %89 = tpu.concatenate %23, %88, %23 in 0 : vector<24x128xf32>, vector<384x128xf32>, vector<24x128xf32> -> vector<432x128xf32>
    %90 = vector.extract_strided_slice %89 {offsets = [0, 0], sizes = [431, 128], strides = [1, 1]} : vector<432x128xf32> to vector<431x128xf32>
    %91 = tpu.concatenate %22, %90 in 0 : vector<1x128xf32>, vector<431x128xf32> -> vector<432x128xf32>
    %92 = vector.extract_strided_slice %89 {offsets = [1, 0], sizes = [431, 128], strides = [1, 1]} : vector<432x128xf32> to vector<431x128xf32>
    %93 = tpu.concatenate %92, %22 in 0 : vector<431x128xf32>, vector<1x128xf32> -> vector<432x128xf32>
    %94 = tpu.concatenate %91, %89, %93 in 1 : vector<432x128xf32>, vector<432x128xf32>, vector<432x128xf32> -> vector<432x384xf32>
    %cst_41 = arith.constant 0.000000e+00 : f32
    %95 = vector.broadcast %cst_41 : f32 to vector<384x128xf32>
    %96 = vector.extract_strided_slice %94 {offsets = [0, 0], sizes = [384, 384], strides = [1, 1]} : vector<432x384xf32> to vector<384x384xf32>
    %c0_42 = arith.constant 0 : index
    %c0_43 = arith.constant 0 : index
    %c0_44 = arith.constant 0 : index
    %97 = vector.load %arg6[%c0_42, %c0_43, %c0_44] : memref<3x384x128xf32, #tpu.memory_space<vmem>>, vector<1x384x128xf32>
    %98 = vector.shape_cast %97 : vector<1x384x128xf32> to vector<384x128xf32>
    %cst_45 = arith.constant dense<0.000000e+00> : vector<384x128xf32>
    %99 = tpu.matmul %96, %98, %cst_45 {dimension_numbers = #tpu.dot_dimension_numbers<[1], [0], [0], [1], [0, 0, 1, 1], [], []>} : vector<384x384xf32>, vector<384x128xf32>, vector<384x128xf32> -> vector<384x128xf32>
    %100 = arith.addf %95, %99 : vector<384x128xf32>
    %101 = vector.extract_strided_slice %94 {offsets = [24, 0], sizes = [384, 384], strides = [1, 1]} : vector<432x384xf32> to vector<384x384xf32>
    %c1_46 = arith.constant 1 : index
    %c0_47 = arith.constant 0 : index
    %c0_48 = arith.constant 0 : index
    %102 = vector.load %arg6[%c1_46, %c0_47, %c0_48] : memref<3x384x128xf32, #tpu.memory_space<vmem>>, vector<1x384x128xf32>
    %103 = vector.shape_cast %102 : vector<1x384x128xf32> to vector<384x128xf32>
    %cst_49 = arith.constant dense<0.000000e+00> : vector<384x128xf32>
    %104 = tpu.matmul %101, %103, %cst_49 {dimension_numbers = #tpu.dot_dimension_numbers<[1], [0], [0], [1], [0, 0, 1, 1], [], []>} : vector<384x384xf32>, vector<384x128xf32>, vector<384x128xf32> -> vector<384x128xf32>
    %105 = arith.addf %100, %104 : vector<384x128xf32>
    %106 = vector.extract_strided_slice %94 {offsets = [48, 0], sizes = [384, 384], strides = [1, 1]} : vector<432x384xf32> to vector<384x384xf32>
    %c2_50 = arith.constant 2 : index
    %c0_51 = arith.constant 0 : index
    %c0_52 = arith.constant 0 : index
    %107 = vector.load %arg6[%c2_50, %c0_51, %c0_52] : memref<3x384x128xf32, #tpu.memory_space<vmem>>, vector<1x384x128xf32>
    %108 = vector.shape_cast %107 : vector<1x384x128xf32> to vector<384x128xf32>
    %cst_53 = arith.constant dense<0.000000e+00> : vector<384x128xf32>
    %109 = tpu.matmul %106, %108, %cst_53 {dimension_numbers = #tpu.dot_dimension_numbers<[1], [0], [0], [1], [0, 0, 1, 1], [], []>} : vector<384x384xf32>, vector<384x128xf32>, vector<384x128xf32> -> vector<384x128xf32>
    %110 = arith.addf %105, %109 : vector<384x128xf32>
    %c0_54 = arith.constant 0 : index
    %c0_55 = arith.constant 0 : index
    %111 = vector.load %arg7[%c0_54, %c0_55] : memref<1x128xf32, #tpu.memory_space<vmem>>, vector<1x128xf32>
    %112 = vector.broadcast %111 : vector<1x128xf32> to vector<384x128xf32>
    %113 = arith.addf %110, %112 : vector<384x128xf32>
    %114 = vector.extract_strided_slice %25 {offsets = [24, 0], sizes = [384, 128], strides = [1, 1]} : vector<432x128xf32> to vector<384x128xf32>
    %115 = arith.addf %113, %114 : vector<384x128xf32>
    %c0_56 = arith.constant 0 : index
    %c0_57 = arith.constant 0 : index
    %c0_58 = arith.constant 0 : index
    %116 = vector.load %arg8[%c0_56, %c0_57, %c0_58] : memref<1x384x128xf32, #tpu.memory_space<vmem>>, vector<1x384x128xf32>
    %117 = vector.shape_cast %116 : vector<1x384x128xf32> to vector<384x128xf32>
    %118 = vector.shape_cast %115 : vector<384x128xf32> to vector<1x384x128xf32>
    tpu.vector_store %arg8[%c0_56, %c0_57, %c0_58], %118 {strides = array<i32>} : memref<1x384x128xf32, #tpu.memory_space<vmem>>, vector<1x384x128xf32>,
    return
  }
  func.func @transform_0(%arg0: i32) -> (i32, i32, i32) {
    %c0_i32 = arith.constant 0 : i32
    %c0_i32_0 = arith.constant 0 : i32
    %c0_i32_1 = arith.constant 0 : i32
    return %arg0, %c0_i32, %c0_i32_0 : i32, i32, i32
  }
  func.func @transform_1(%arg0: i32) -> (i32, i32, i32) {
    %c0_i32 = arith.constant 0 : i32
    %c0_i32_0 = arith.constant 0 : i32
    %c0_i32_1 = arith.constant 0 : i32
    %c0_i32_2 = arith.constant 0 : i32
    return %c0_i32, %c0_i32_0, %c0_i32_1 : i32, i32, i32
  }
  func.func @transform_2(%arg0: i32) -> (i32, i32) {
    %c0_i32 = arith.constant 0 : i32
    %c0_i32_0 = arith.constant 0 : i32
    %c0_i32_1 = arith.constant 0 : i32
    return %c0_i32, %c0_i32_0 : i32, i32
  }
  func.func @transform_3(%arg0: i32) -> (i32, i32, i32) {
    %c0_i32 = arith.constant 0 : i32
    %c0_i32_0 = arith.constant 0 : i32
    %c0_i32_1 = arith.constant 0 : i32
    %c0_i32_2 = arith.constant 0 : i32
    return %c0_i32, %c0_i32_0, %c0_i32_1 : i32, i32, i32
  }
  func.func @transform_4(%arg0: i32) -> (i32, i32) {
    %c0_i32 = arith.constant 0 : i32
    %c0_i32_0 = arith.constant 0 : i32
    %c0_i32_1 = arith.constant 0 : i32
    return %c0_i32, %c0_i32_0 : i32, i32
  }
  func.func @transform_5(%arg0: i32) -> (i32, i32, i32) {
    %c0_i32 = arith.constant 0 : i32
    %c0_i32_0 = arith.constant 0 : i32
    %c0_i32_1 = arith.constant 0 : i32
    %c0_i32_2 = arith.constant 0 : i32
    return %c0_i32, %c0_i32_0, %c0_i32_1 : i32, i32, i32
  }
  func.func @transform_6(%arg0: i32) -> (i32, i32) {
    %c0_i32 = arith.constant 0 : i32
    %c0_i32_0 = arith.constant 0 : i32
    %c0_i32_1 = arith.constant 0 : i32
    return %c0_i32, %c0_i32_0 : i32, i32
  }
  func.func @transform_7(%arg0: i32) -> (i32, i32, i32) {
    %c0_i32 = arith.constant 0 : i32
    %c0_i32_0 = arith.constant 0 : i32
    %c0_i32_1 = arith.constant 0 : i32
    return %arg0, %c0_i32, %c0_i32_0 : i32, i32, i32
  }
}

</mosaic_0001>

<llo_original>
// kernel: tpu_custom_call.1
$region0: #{tpu_custom_call.1}
  #allocation0 [shape = 'u32[]', space=smem, size = 0x4, offset = 0x4, fixed_abs, tag = 'smem constant byte address 0x4 - core index']
  #allocation1 [shape = 'u32[144,128]{1,0:T(1,128)}', space=vmem, size = 0x12000, scoped, tag = 'internal scratch']
  %s0 = inlined_call_operand.hbm [shape: f32[2,432,128], index: 0, kind: input, shape index: {}]
  %s1 = inlined_call_operand.hbm [shape: f32[3,384,128], index: 1, kind: input, shape index: {}]
  %s2 = inlined_call_operand.vmem [shape: f32[1,128], index: 2, kind: input, shape index: {}]
  %s3 = inlined_call_operand.hbm [shape: f32[3,384,128], index: 3, kind: input, shape index: {}]
  %s4 = inlined_call_operand.vmem [shape: f32[1,128], index: 4, kind: input, shape index: {}]
  %s5 = inlined_call_operand.hbm [shape: f32[3,384,128], index: 5, kind: input, shape index: {}]
  %s6 = inlined_call_operand.vmem [shape: f32[1,128], index: 6, kind: input, shape index: {}]
  %s7 = inlined_call_operand.hbm [shape: f32[2,384,128], index: 7, kind: output, shape index: {}]
  %s8 = sld [smem:[#allocation0]]
  $region77: #{tpu_custom_call.1} parent=0
    _
  %s10 = ssub.s32 1, %s8
  %s11 = scalar_select 0, %s10, %s8
  $region1: #{tpu_custom_call.1} parent=0
    #allocation2 [shape = 'u8[442368]{0}', space=vmem, size = 0x6c000, scoped, tag = 'input window, operand 0']
    #allocation3 [shape = 's32[2]{0}', space=sflag, size = 0x8, scoped, tag = 'scoped memory for tpu_custom_call.1']
    #allocation4 [shape = 's32[2]{0}', space=sflag, size = 0x8, scoped, tag = 'scoped memory for tpu_custom_call.1']
    #allocation5 [shape = 'u8[589824]{0}', space=vmem, size = 0x90000, scoped, tag = 'input window, operand 1, single buffered']
    #allocation6 [shape = 's32[1]{0}', space=sflag, size = 0x4, scoped, tag = 'scoped memory for tpu_custom_call.1']
    #allocation7 [shape = 'u8[589824]{0}', space=vmem, size = 0x90000, scoped, tag = 'input window, operand 3, single buffered']
    #allocation8 [shape = 'u8[589824]{0}', space=vmem, size = 0x90000, scoped, tag = 'input window, operand 5, single buffered']
    #allocation9 [shape = 's32[1]{0}', space=sflag, size = 0x4, scoped, tag = 'scoped memory for tpu_custom_call.1']
    #allocation10 [shape = 'u8[393216]{0}', space=vmem, size = 0x60000, scoped, tag = 'output window, operand 0']
    %12 = vsyncpa [#allocation3], 0
    %s13 = scalar_lea.sflag [#allocation3], 1
    %14 = vsyncpa %s13, 0
    %15 = vsyncpa [#allocation6], 0
    %16 = vsyncpa [#allocation9], 0
    %17 = vsyncpa [#allocation4], 0
    %s18 = scalar_lea.sflag [#allocation4], 1
    %19 = vsyncpa %s18, 0
    loop: start=0, step=1, limit=4
    $region2: #{tpu_custom_call.1} parent=1 // loop_pre_header
      _
    $region3: #{tpu_custom_call.1} parent=1 // loop_header
      %s21 = sphi 0, %s25
      %p22 = scmp.ge.s32.totalorder %s21, 4
      %s31 = sphi 0, %s33
      %s34 = sphi 0, %s31
      %s35 = sphi 0, %s34
      %s51 = sphi 0, %s35
      %s55 = sphi 0, %s55
      %s57 = sphi 0, %s55
      %s58 = sphi 0, %s57
      %s72 = sphi 0, %s58
      %s76 = sphi 0, %s76
      %s78 = sphi 0, %s76
      %s79 = sphi 0, %s78
      %s93 = sphi 0, %s79
      %s97 = sphi 0, %s97
      %s99 = sphi 0, %s97
      %s100 = sphi 0, %s99
      %s114 = sphi 0, %s100
      %s118 = sphi 0, %s118
      %s120 = sphi 0, %s118
      %s121 = sphi 0, %s120
      %s135 = sphi 0, %s121
      %s139 = sphi 0, %s139
      %s141 = sphi 0, %s139
      %s142 = sphi 0, %s141
      %s156 = sphi 0, %s142
      %s160 = sphi 0, %s160
      %s162 = sphi 0, %s160
      %s163 = sphi 0, %s162
      %s177 = sphi 0, %s163
      %s183 = sphi 0, %s185
      %s186 = sphi 0, %s183
      %s187 = sphi 0, %s186
      %s203 = sphi 0, %s187
    $region4: #{tpu_custom_call.1} parent=1 // loop_header_branch
      %24 = sbr.rel (%p22) target = $region8
    $region5: #{tpu_custom_call.1} parent=1 // loop_body
      %s26 = ssub.s32 %s21, 1
      %s27 = ssub.s32 %s21, 2
      %s28 = sadd.s32 %s21, 1
      %s29 = ssub.s32 %s21, %s28
      %p30 = scmp.eq.s32.totalorder %s29, 0
      %s32 = sadd.s32 %s31, 1
      %s33 = scalar_select %p30, %s31, %s32
      %p36 = pneg %p30
      %p37 = scmp.eq.s32.totalorder %s21, 1
      %p38 = por %p36, %p37
      %p39 = scmp.ne.s32.totalorder %s31, %s34
      %p40 = scmp.eq.s32.totalorder %s21, 0
      %p41 = por %p39, %p40
      %p42 = scmp.ne.s32.totalorder %s31, %s34
      %p43 = scmp.eq.s32.totalorder %s26, 1
      %p44 = por %p42, %p43
      %p45 = scmp.ne.s32.totalorder %s34, %s35
      %p46 = scmp.eq.s32.totalorder %s26, 0
      %p47 = por %p45, %p46
      %p48 = scmp.ne.s32.totalorder %s34, %s35
      %p49 = scmp.eq.s32.totalorder %s27, 1
      %p50 = por %p48, %p49
      %p52 = scmp.ne.s32.totalorder %s35, %s51
      %p53 = scmp.eq.s32.totalorder %s27, 0
      %p54 = por %p52, %p53
      %s56 = sadd.s32 %s55, 1
      %p59 = scmp.eq.s32.totalorder %s21, 1
      %p60 = scmp.ne.s32.totalorder %s55, %s57
      %p61 = scmp.eq.s32.totalorder %s21, 0
      %p62 = por %p60, %p61
      %p63 = scmp.ne.s32.totalorder %s55, %s57
      %p64 = scmp.eq.s32.totalorder %s26, 1
      %p65 = por %p63, %p64
      %p66 = scmp.ne.s32.totalorder %s57, %s58
      %p67 = scmp.eq.s32.totalorder %s26, 0
      %p68 = por %p66, %p67
      %p69 = scmp.ne.s32.totalorder %s57, %s58
      %p70 = scmp.eq.s32.totalorder %s27, 1
      %p71 = por %p69, %p70
      %p73 = scmp.ne.s32.totalorder %s58, %s72
      %p74 = scmp.eq.s32.totalorder %s27, 0
      %p75 = por %p73, %p74
      %s77 = sadd.s32 %s76, 1
      %p80 = scmp.eq.s32.totalorder %s21, 1
      %p81 = scmp.ne.s32.totalorder %s76, %s78
      %p82 = scmp.eq.s32.totalorder %s21, 0
      %p83 = por %p81, %p82
      %p84 = scmp.ne.s32.totalorder %s76, %s78
      %p85 = scmp.eq.s32.totalorder %s26, 1
      %p86 = por %p84, %p85
      %p87 = scmp.ne.s32.totalorder %s78, %s79
      %p88 = scmp.eq.s32.totalorder %s26, 0
      %p89 = por %p87, %p88
      %p90 = scmp.ne.s32.totalorder %s78, %s79
      %p91 = scmp.eq.s32.totalorder %s27, 1
      %p92 = por %p90, %p91
      %p94 = scmp.ne.s32.totalorder %s79, %s93
      %p95 = scmp.eq.s32.totalorder %s27, 0
      %p96 = por %p94, %p95
      %s98 = sadd.s32 %s97, 1
      %p101 = scmp.eq.s32.totalorder %s21, 1
      %p102 = scmp.ne.s32.totalorder %s97, %s99
      %p103 = scmp.eq.s32.totalorder %s21, 0
      %p104 = por %p102, %p103
      %p105 = scmp.ne.s32.totalorder %s97, %s99
      %p106 = scmp.eq.s32.totalorder %s26, 1
      %p107 = por %p105, %p106
      %p108 = scmp.ne.s32.totalorder %s99, %s100
      %p109 = scmp.eq.s32.totalorder %s26, 0
      %p110 = por %p108, %p109
      %p111 = scmp.ne.s32.totalorder %s99, %s100
      %p112 = scmp.eq.s32.totalorder %s27, 1
      %p113 = por %p111, %p112
      %p115 = scmp.ne.s32.totalorder %s100, %s114
      %p116 = scmp.eq.s32.totalorder %s27, 0
      %p117 = por %p115, %p116
      %s119 = sadd.s32 %s118, 1
      %p122 = scmp.eq.s32.totalorder %s21, 1
      %p123 = scmp.ne.s32.totalorder %s118, %s120
      %p124 = scmp.eq.s32.totalorder %s21, 0
      %p125 = por %p123, %p124
      %p126 = scmp.ne.s32.totalorder %s118, %s120
      %p127 = scmp.eq.s32.totalorder %s26, 1
      %p128 = por %p126, %p127
      %p129 = scmp.ne.s32.totalorder %s120, %s121
      %p130 = scmp.eq.s32.totalorder %s26, 0
      %p131 = por %p129, %p130
      %p132 = scmp.ne.s32.totalorder %s120, %s121
      %p133 = scmp.eq.s32.totalorder %s27, 1
      %p134 = por %p132, %p133
      %p136 = scmp.ne.s32.totalorder %s121, %s135
      %p137 = scmp.eq.s32.totalorder %s27, 0
      %p138 = por %p136, %p137
      %s140 = sadd.s32 %s139, 1
      %p143 = scmp.eq.s32.totalorder %s21, 1
      %p144 = scmp.ne.s32.totalorder %s139, %s141
      %p145 = scmp.eq.s32.totalorder %s21, 0
      %p146 = por %p144, %p145
      %p147 = scmp.ne.s32.totalorder %s139, %s141
      %p148 = scmp.eq.s32.totalorder %s26, 1
      %p149 = por %p147, %p148
      %p150 = scmp.ne.s32.totalorder %s141, %s142
      %p151 = scmp.eq.s32.totalorder %s26, 0
      %p152 = por %p150, %p151
      %p153 = scmp.ne.s32.totalorder %s141, %s142
      %p154 = scmp.eq.s32.totalorder %s27, 1
      %p155 = por %p153, %p154
      %p157 = scmp.ne.s32.totalorder %s142, %s156
      %p158 = scmp.eq.s32.totalorder %s27, 0
      %p159 = por %p157, %p158
      %s161 = sadd.s32 %s160, 1
      %p164 = scmp.eq.s32.totalorder %s21, 1
      %p165 = scmp.ne.s32.totalorder %s160, %s162
      %p166 = scmp.eq.s32.totalorder %s21, 0
      %p167 = por %p165, %p166
      %p168 = scmp.ne.s32.totalorder %s160, %s162
      %p169 = scmp.eq.s32.totalorder %s26, 1
      %p170 = por %p168, %p169
      %p171 = scmp.ne.s32.totalorder %s162, %s163
      %p172 = scmp.eq.s32.totalorder %s26, 0
      %p173 = por %p171, %p172
      %p174 = scmp.ne.s32.totalorder %s162, %s163
      %p175 = scmp.eq.s32.totalorder %s27, 1
      %p176 = por %p174, %p175
      %p178 = scmp.ne.s32.totalorder %s163, %s177
      %p179 = scmp.eq.s32.totalorder %s27, 0
      %p180 = por %p178, %p179
      %s181 = ssub.s32 %s21, %s28
      %p182 = scmp.eq.s32.totalorder %s181, 0
      %s184 = sadd.s32 %s183, 1
      %s185 = scalar_select %p182, %s183, %s184
      %p188 = pneg %p182
      %p189 = scmp.eq.s32.totalorder %s21, 1
      %p190 = por %p188, %p189
      %p191 = scmp.ne.s32.totalorder %s183, %s186
      %p192 = scmp.eq.s32.totalorder %s21, 0
      %p193 = por %p191, %p192
      %p194 = scmp.ne.s32.totalorder %s183, %s186
      %p195 = scmp.eq.s32.totalorder %s26, 1
      %p196 = por %p194, %p195
      %p197 = scmp.ne.s32.totalorder %s186, %s187
      %p198 = scmp.eq.s32.totalorder %s26, 0
      %p199 = por %p197, %p198
      %p200 = scmp.ne.s32.totalorder %s186, %s187
      %p201 = scmp.eq.s32.totalorder %s27, 1
      %p202 = por %p200, %p201
      %p204 = scmp.ne.s32.totalorder %s187, %s203
      %p205 = scmp.eq.s32.totalorder %s27, 0
      %p206 = por %p204, %p205
      %p207 = scmp.le.s32.totalorder 1, %s21
      %p208 = scmp.lt.s32.totalorder %s21, 3
      %p209 = pnand %p207, %p208
      %p210 = pneg %p209
      // Predicated region
      $region9: #{tpu_custom_call.1} parent=5 // pred_check
        _
      $region10: #{tpu_custom_call.1} parent=5 // pred_check_branch
        %212 = sbr.rel (%p209) target = $region12
      $region11: #{tpu_custom_call.1} parent=5 // pred_region
        %s213 = ssub.s32 %s21, 1
        // Predicated region
        $region13: #{tpu_custom_call.1} parent=11 // pred_check
          %p214 = pneg %p68
        $region14: #{tpu_custom_call.1} parent=11 // pred_check_branch
          %216 = sbr.rel (%p214) target = $region16
        $region15: #{tpu_custom_call.1} parent=11 // pred_region
          %s218 = ssub.s32 18432, 18432
          %219 = vsyncadd [#allocation6], %s218
          %s220 = sshll.u32 [#allocation5], 4
          %s221 = int_to_ptr.vmem [resolvable:$true] %s220
          %226 = dma.hbm_to_vmem [thread:$0]  %s1, 18432, %s221, [#allocation6], 128, 128, 8
        $region16: #{tpu_custom_call.1} parent=11 // pred_fallthru
          _
        // Predicated region
        $region17: #{tpu_custom_call.1} parent=11 // pred_check
          %p227 = pneg %p89
        $region18: #{tpu_custom_call.1} parent=11 // pred_check_branch
          %229 = sbr.rel (%p227) target = $region20
        $region19: #{tpu_custom_call.1} parent=11 // pred_region
          _
        $region20: #{tpu_custom_call.1} parent=11 // pred_fallthru
          _
        // Predicated region
        $region21: #{tpu_custom_call.1} parent=11 // pred_check
          %p230 = pneg %p110
        $region22: #{tpu_custom_call.1} parent=11 // pred_check_branch
          %232 = sbr.rel (%p230) target = $region24
        $region23: #{tpu_custom_call.1} parent=11 // pred_region
          %s234 = ssub.s32 18432, 18432
          %235 = vsyncadd [#allocation6], %s234
          %s236 = sshll.u32 [#allocation7], 4
          %s237 = int_to_ptr.vmem [resolvable:$true] %s236
          %242 = dma.hbm_to_vmem [thread:$0]  %s3, 18432, %s237, [#allocation6], 128, 128, 8
        $region24: #{tpu_custom_call.1} parent=11 // pred_fallthru
          _
        // Predicated region
        $region25: #{tpu_custom_call.1} parent=11 // pred_check
          %p243 = pneg %p131
        $region26: #{tpu_custom_call.1} parent=11 // pred_check_branch
          %245 = sbr.rel (%p243) target = $region28
        $region27: #{tpu_custom_call.1} parent=11 // pred_region
          _
        $region28: #{tpu_custom_call.1} parent=11 // pred_fallthru
          _
        // Predicated region
        $region29: #{tpu_custom_call.1} parent=11 // pred_check
          %p246 = pneg %p152
        $region30: #{tpu_custom_call.1} parent=11 // pred_check_branch
          %248 = sbr.rel (%p246) target = $region32
        $region31: #{tpu_custom_call.1} parent=11 // pred_region
          %s250 = ssub.s32 18432, 18432
          %251 = vsyncadd [#allocation9], %s250
          %s252 = sshll.u32 [#allocation8], 4
          %s253 = int_to_ptr.vmem [resolvable:$true] %s252
          %258 = dma.hbm_to_vmem [thread:$0]  %s5, 18432, %s253, [#allocation9], 128, 128, 8
        $region32: #{tpu_custom_call.1} parent=11 // pred_fallthru
          _
        // Predicated region
        $region33: #{tpu_custom_call.1} parent=11 // pred_check
          %p259 = pneg %p173
        $region34: #{tpu_custom_call.1} parent=11 // pred_check_branch
          %261 = sbr.rel (%p259) target = $region36
        $region35: #{tpu_custom_call.1} parent=11 // pred_region
          _
        $region36: #{tpu_custom_call.1} parent=11 // pred_fallthru
          _
      $region12: #{tpu_custom_call.1} parent=5 // pred_fallthru
        _
      %p262 = scmp.lt.s32.totalorder %s21, 2
      // Predicated region
      $region37: #{tpu_custom_call.1} parent=5 // pred_check
        %p263 = pneg %p262
      $region38: #{tpu_custom_call.1} parent=5 // pred_check_branch
        %265 = sbr.rel (%p263) target = $region40
      $region39: #{tpu_custom_call.1} parent=5 // pred_region
        // Predicated region
        $region41: #{tpu_custom_call.1} parent=39 // pred_check
          %p266 = pneg %p41
        $region42: #{tpu_custom_call.1} parent=39 // pred_check_branch
          %268 = sbr.rel (%p266) target = $region44
        $region43: #{tpu_custom_call.1} parent=39 // pred_region
          %s269 = sand.u32 %s31, 1
          %s270 = scalar_lea.sflag [#allocation3], %s269
          %s271 = sand.u32 %s31, 1
          %s272 = smul.addr %s271, 432
          %s273 = scalar_lea.vmem [#allocation2], %s272
          %s275 = ssub.s32 6912, 6912
          %276 = vsyncadd %s270, %s275
          %s277 = smul.addr %s21, 54
          %s278 = smul.addr %s277, 128
          %s279 = scalar_lea.hbm %s0, %s278
          %s280 = sshll.u32 %s273, 4
          %s281 = int_to_ptr.vmem [resolvable:$true] %s280
          %286 = dma.hbm_to_vmem [thread:$0]  %s279, 6912, %s281, %s270, 128, 128, 8
        $region44: #{tpu_custom_call.1} parent=39 // pred_fallthru
          _
      $region40: #{tpu_custom_call.1} parent=5 // pred_fallthru
        _
      %p287 = scmp.le.s32.totalorder 1, %s21
      %p288 = scmp.lt.s32.totalorder %s21, 3
      %p289 = pnand %p287, %p288
      %p290 = pneg %p289
      // Predicated region
      $region45: #{tpu_custom_call.1} parent=5 // pred_check
        _
      $region46: #{tpu_custom_call.1} parent=5 // pred_check_branch
        %292 = sbr.rel (%p289) target = $region48
      $region47: #{tpu_custom_call.1} parent=5 // pred_region
        %s293 = ssub.s32 %s21, 1
        %s294 = sand.u32 %s34, 1
        %s295 = scalar_lea.sflag [#allocation3], %s294
        %s296 = sand.u32 %s34, 1
        %s297 = smul.addr %s296, 432
        %s298 = scalar_lea.vmem [#allocation2], %s297
        // Predicated region
        $region49: #{tpu_custom_call.1} parent=47 // pred_check
          %p299 = pneg %p47
        $region50: #{tpu_custom_call.1} parent=47 // pred_check_branch
          %301 = sbr.rel (%p299) target = $region52
        $region51: #{tpu_custom_call.1} parent=47 // pred_region
          %302 = dma.done %s295, 6912
        $region52: #{tpu_custom_call.1} parent=47 // pred_fallthru
          _
        // Predicated region
        $region53: #{tpu_custom_call.1} parent=47 // pred_check
          %p303 = pneg %p68
        $region54: #{tpu_custom_call.1} parent=47 // pred_check_branch
          %305 = sbr.rel (%p303) target = $region56
        $region55: #{tpu_custom_call.1} parent=47 // pred_region
          %306 = dma.done [#allocation6], 18432
        $region56: #{tpu_custom_call.1} parent=47 // pred_fallthru
          _
        // Predicated region
        $region57: #{tpu_custom_call.1} parent=47 // pred_check
          %p307 = pneg %p110
        $region58: #{tpu_custom_call.1} parent=47 // pred_check_branch
          %309 = sbr.rel (%p307) target = $region60
        $region59: #{tpu_custom_call.1} parent=47 // pred_region
          %310 = dma.done [#allocation6], 18432
        $region60: #{tpu_custom_call.1} parent=47 // pred_fallthru
          _
        // Predicated region
        $region61: #{tpu_custom_call.1} parent=47 // pred_check
          %p311 = pneg %p152
        $region62: #{tpu_custom_call.1} parent=47 // pred_check_branch
          %313 = sbr.rel (%p311) target = $region64
        $region63: #{tpu_custom_call.1} parent=47 // pred_region
          %314 = dma.done [#allocation9], 18432
        $region64: #{tpu_custom_call.1} parent=47 // pred_fallthru
          _
        %s315 = sand.u32 %s34, 1
        %s316 = scalar_lea.sflag [#allocation3], %s315
        %s317 = sand.u32 %s34, 1
        %s318 = smul.addr %s317, 432
        %s319 = scalar_lea.vmem [#allocation2], %s318
        %p320 = pneg %p47
        %p321 = pneg %p44
        %p322 = pneg %p68
        %p323 = pneg %p65
        %p324 = pneg %p89
        %p325 = pneg %p86
        %p326 = pneg %p110
        %p327 = pneg %p107
        %p328 = pneg %p131
        %p329 = pneg %p128
        %p330 = pneg %p152
        %p331 = pneg %p149
        %p332 = pneg %p173
        %p333 = pneg %p170
        %p334 = pneg %p199
        %p335 = pneg %p196
        %s336 = sand.u32 %s186, 1
        %s337 = scalar_lea.sflag [#allocation4], %s336
        %s338 = sand.u32 %s186, 1
        %s339 = smul.addr %s338, 384
        %s340 = scalar_lea.vmem [#allocation10], %s339
        %v341 = vlaneseq
        %v342 = vshrl.u32 %v341, 7
        %v343 = vadd.s32 %v342, 8
        %v344 = vadd.s32 %v342, 16
        %v345 = vadd.s32 %v342, 24
        %v346 = vadd.s32 %v342, 32
        %v347 = vadd.s32 %v342, 40
        %v348 = vadd.s32 %v342, 48
        %v349 = vadd.s32 %v342, 56
        %v350 = vadd.s32 %v342, 64
        %v351 = vadd.s32 %v342, 72
        %v352 = vadd.s32 %v342, 80
        %v353 = vadd.s32 %v342, 88
        %v354 = vadd.s32 %v342, 96
        %v355 = vadd.s32 %v342, 104
        %v356 = vadd.s32 %v342, 112
        %v357 = vadd.s32 %v342, 120
        %v358 = vadd.s32 %v342, 128
        %v359 = vadd.s32 %v342, 136
        %v360 = vadd.s32 %v342, 144
        %v361 = vadd.s32 %v342, 152
        %v362 = vadd.s32 %v342, 160
        %v363 = vadd.s32 %v342, 168
        %v364 = vadd.s32 %v342, 176
        %v365 = vadd.s32 %v342, 184
        %v366 = vadd.s32 %v342, 192
        %v367 = vadd.s32 %v342, 200
        %v368 = vadd.s32 %v342, 208
        %v369 = vadd.s32 %v342, 216
        %v370 = vadd.s32 %v342, 224
        %v371 = vadd.s32 %v342, 232
        %v372 = vadd.s32 %v342, 240
        %v373 = vadd.s32 %v342, 248
        %v374 = vadd.s32 %v342, 256
        %v375 = vadd.s32 %v342, 264
        %v376 = vadd.s32 %v342, 272
        %v377 = vadd.s32 %v342, 280
        %v378 = vadd.s32 %v342, 288
        %v379 = vadd.s32 %v342, 296
        %v380 = vadd.s32 %v342, 304
        %v381 = vadd.s32 %v342, 312
        %v382 = vadd.s32 %v342, 320
        %v383 = vadd.s32 %v342, 328
        %v384 = vadd.s32 %v342, 336
        %v385 = vadd.s32 %v342, 344
        %v386 = vadd.s32 %v342, 352
        %v387 = vadd.s32 %v342, 360
        %v388 = vadd.s32 %v342, 368
        %v389 = vadd.s32 %v342, 376
        %vm390 = vcmp.lt.s32.totalorder %v342, 0
        %v391 = vsub.s32 0, %v342
        %v392 = vsel %vm390, %v391, %v342
        %v393 = vmul.u32.u64.compose %v392, 2863311531
        %v394 = vextract.low.u32 %v393
        %v395 = vextract.high.u32 %v393
        %v396 = vshrl.u32 %v395, 4
        %v397 = vmul.u32 %v396, 24
        %v398 = vsub.s32 %v392, %v397
        %v399 = vsub.s32 0, %v398
        %v400 = vsel %vm390, %v399, %v398
        %vm401 = vcmp.lt.s32.totalorder %v343, 0
        %v402 = vsub.s32 0, %v343
        %v403 = vsel %vm401, %v402, %v343
        %v404 = vmul.u32.u64.compose %v403, 2863311531
        %v405 = vextract.low.u32 %v404
        %v406 = vextract.high.u32 %v404
        %v407 = vshrl.u32 %v406, 4
        %v408 = vmul.u32 %v407, 24
        %v409 = vsub.s32 %v403, %v408
        %v410 = vsub.s32 0, %v409
        %v411 = vsel %vm401, %v410, %v409
        %vm412 = vcmp.lt.s32.totalorder %v344, 0
        %v413 = vsub.s32 0, %v344
        %v414 = vsel %vm412, %v413, %v344
        %v415 = vmul.u32.u64.compose %v414, 2863311531
        %v416 = vextract.low.u32 %v415
        %v417 = vextract.high.u32 %v415
        %v418 = vshrl.u32 %v417, 4
        %v419 = vmul.u32 %v418, 24
        %v420 = vsub.s32 %v414, %v419
        %v421 = vsub.s32 0, %v420
        %v422 = vsel %vm412, %v421, %v420
        %vm423 = vcmp.lt.s32.totalorder %v345, 0
        %v424 = vsub.s32 0, %v345
        %v425 = vsel %vm423, %v424, %v345
        %v426 = vmul.u32.u64.compose %v425, 2863311531
        %v427 = vextract.low.u32 %v426
        %v428 = vextract.high.u32 %v426
        %v429 = vshrl.u32 %v428, 4
        %v430 = vmul.u32 %v429, 24
        %v431 = vsub.s32 %v425, %v430
        %v432 = vsub.s32 0, %v431
        %v433 = vsel %vm423, %v432, %v431
        %vm434 = vcmp.lt.s32.totalorder %v346, 0
        %v435 = vsub.s32 0, %v346
        %v436 = vsel %vm434, %v435, %v346
        %v437 = vmul.u32.u64.compose %v436, 2863311531
        %v438 = vextract.low.u32 %v437
        %v439 = vextract.high.u32 %v437
        %v440 = vshrl.u32 %v439, 4
        %v441 = vmul.u32 %v440, 24
        %v442 = vsub.s32 %v436, %v441
        %v443 = vsub.s32 0, %v442
        %v444 = vsel %vm434, %v443, %v442
        %vm445 = vcmp.lt.s32.totalorder %v347, 0
        %v446 = vsub.s32 0, %v347
        %v447 = vsel %vm445, %v446, %v347
        %v448 = vmul.u32.u64.compose %v447, 2863311531
        %v449 = vextract.low.u32 %v448
        %v450 = vextract.high.u32 %v448
        %v451 = vshrl.u32 %v450, 4
        %v452 = vmul.u32 %v451, 24
        %v453 = vsub.s32 %v447, %v452
        %v454 = vsub.s32 0, %v453
        %v455 = vsel %vm445, %v454, %v453
        %vm456 = vcmp.lt.s32.totalorder %v348, 0
        %v457 = vsub.s32 0, %v348
        %v458 = vsel %vm456, %v457, %v348
        %v459 = vmul.u32.u64.compose %v458, 2863311531
        %v460 = vextract.low.u32 %v459
        %v461 = vextract.high.u32 %v459
        %v462 = vshrl.u32 %v461, 4
        %v463 = vmul.u32 %v462, 24
        %v464 = vsub.s32 %v458, %v463
        %v465 = vsub.s32 0, %v464
        %v466 = vsel %vm456, %v465, %v464
        %vm467 = vcmp.lt.s32.totalorder %v349, 0
        %v468 = vsub.s32 0, %v349
        %v469 = vsel %vm467, %v468, %v349
        %v470 = vmul.u32.u64.compose %v469, 2863311531
        %v471 = vextract.low.u32 %v470
        %v472 = vextract.high.u32 %v470
        %v473 = vshrl.u32 %v472, 4
        %v474 = vmul.u32 %v473, 24
        %v475 = vsub.s32 %v469, %v474
        %v476 = vsub.s32 0, %v475
        %v477 = vsel %vm467, %v476, %v475
        %vm478 = vcmp.lt.s32.totalorder %v350, 0
        %v479 = vsub.s32 0, %v350
        %v480 = vsel %vm478, %v479, %v350
        %v481 = vmul.u32.u64.compose %v480, 2863311531
        %v482 = vextract.low.u32 %v481
        %v483 = vextract.high.u32 %v481
        %v484 = vshrl.u32 %v483, 4
        %v485 = vmul.u32 %v484, 24
        %v486 = vsub.s32 %v480, %v485
        %v487 = vsub.s32 0, %v486
        %v488 = vsel %vm478, %v487, %v486
        %vm489 = vcmp.lt.s32.totalorder %v351, 0
        %v490 = vsub.s32 0, %v351
        %v491 = vsel %vm489, %v490, %v351
        %v492 = vmul.u32.u64.compose %v491, 2863311531
        %v493 = vextract.low.u32 %v492
        %v494 = vextract.high.u32 %v492
        %v495 = vshrl.u32 %v494, 4
        %v496 = vmul.u32 %v495, 24
        %v497 = vsub.s32 %v491, %v496
        %v498 = vsub.s32 0, %v497
        %v499 = vsel %vm489, %v498, %v497
        %vm500 = vcmp.lt.s32.totalorder %v352, 0
        %v501 = vsub.s32 0, %v352
        %v502 = vsel %vm500, %v501, %v352
        %v503 = vmul.u32.u64.compose %v502, 2863311531
        %v504 = vextract.low.u32 %v503
        %v505 = vextract.high.u32 %v503
        %v506 = vshrl.u32 %v505, 4
        %v507 = vmul.u32 %v506, 24
        %v508 = vsub.s32 %v502, %v507
        %v509 = vsub.s32 0, %v508
        %v510 = vsel %vm500, %v509, %v508
        %vm511 = vcmp.lt.s32.totalorder %v353, 0
        %v512 = vsub.s32 0, %v353
        %v513 = vsel %vm511, %v512, %v353
        %v514 = vmul.u32.u64.compose %v513, 2863311531
        %v515 = vextract.low.u32 %v514
        %v516 = vextract.high.u32 %v514
        %v517 = vshrl.u32 %v516, 4
        %v518 = vmul.u32 %v517, 24
        %v519 = vsub.s32 %v513, %v518
        %v520 = vsub.s32 0, %v519
        %v521 = vsel %vm511, %v520, %v519
        %vm522 = vcmp.lt.s32.totalorder %v354, 0
        %v523 = vsub.s32 0, %v354
        %v524 = vsel %vm522, %v523, %v354
        %v525 = vmul.u32.u64.compose %v524, 2863311531
        %v526 = vextract.low.u32 %v525
        %v527 = vextract.high.u32 %v525
        %v528 = vshrl.u32 %v527, 4
        %v529 = vmul.u32 %v528, 24
        %v530 = vsub.s32 %v524, %v529
        %v531 = vsub.s32 0, %v530
        %v532 = vsel %vm522, %v531, %v530
        %vm533 = vcmp.lt.s32.totalorder %v355, 0
        %v534 = vsub.s32 0, %v355
        %v535 = vsel %vm533, %v534, %v355
        %v536 = vmul.u32.u64.compose %v535, 2863311531
        %v537 = vextract.low.u32 %v536
        %v538 = vextract.high.u32 %v536
        %v539 = vshrl.u32 %v538, 4
        %v540 = vmul.u32 %v539, 24
        %v541 = vsub.s32 %v535, %v540
        %v542 = vsub.s32 0, %v541
        %v543 = vsel %vm533, %v542, %v541
        %vm544 = vcmp.lt.s32.totalorder %v356, 0
        %v545 = vsub.s32 0, %v356
        %v546 = vsel %vm544, %v545, %v356
        %v547 = vmul.u32.u64.compose %v546, 2863311531
        %v548 = vextract.low.u32 %v547
        %v549 = vextract.high.u32 %v547
        %v550 = vshrl.u32 %v549, 4
        %v551 = vmul.u32 %v550, 24
        %v552 = vsub.s32 %v546, %v551
        %v553 = vsub.s32 0, %v552
        %v554 = vsel %vm544, %v553, %v552
        %vm555 = vcmp.lt.s32.totalorder %v357, 0
        %v556 = vsub.s32 0, %v357
        %v557 = vsel %vm555, %v556, %v357
        %v558 = vmul.u32.u64.compose %v557, 2863311531
        %v559 = vextract.low.u32 %v558
        %v560 = vextract.high.u32 %v558
        %v561 = vshrl.u32 %v560, 4
        %v562 = vmul.u32 %v561, 24
        %v563 = vsub.s32 %v557, %v562
        %v564 = vsub.s32 0, %v563
        %v565 = vsel %vm555, %v564, %v563
        %vm566 = vcmp.lt.s32.totalorder %v358, 0
        %v567 = vsub.s32 0, %v358
        %v568 = vsel %vm566, %v567, %v358
        %v569 = vmul.u32.u64.compose %v568, 2863311531
        %v570 = vextract.low.u32 %v569
        %v571 = vextract.high.u32 %v569
        %v572 = vshrl.u32 %v571, 4
        %v573 = vmul.u32 %v572, 24
        %v574 = vsub.s32 %v568, %v573
        %v575 = vsub.s32 0, %v574
        %v576 = vsel %vm566, %v575, %v574
        %vm577 = vcmp.lt.s32.totalorder %v359, 0
        %v578 = vsub.s32 0, %v359
        %v579 = vsel %vm577, %v578, %v359
        %v580 = vmul.u32.u64.compose %v579, 2863311531
        %v581 = vextract.low.u32 %v580
        %v582 = vextract.high.u32 %v580
        %v583 = vshrl.u32 %v582, 4
        %v584 = vmul.u32 %v583, 24
        %v585 = vsub.s32 %v579, %v584
        %v586 = vsub.s32 0, %v585
        %v587 = vsel %vm577, %v586, %v585
        %vm588 = vcmp.lt.s32.totalorder %v360, 0
        %v589 = vsub.s32 0, %v360
        %v590 = vsel %vm588, %v589, %v360
        %v591 = vmul.u32.u64.compose %v590, 2863311531
        %v592 = vextract.low.u32 %v591
        %v593 = vextract.high.u32 %v591
        %v594 = vshrl.u32 %v593, 4
        %v595 = vmul.u32 %v594, 24
        %v596 = vsub.s32 %v590, %v595
        %v597 = vsub.s32 0, %v596
        %v598 = vsel %vm588, %v597, %v596
        %vm599 = vcmp.lt.s32.totalorder %v361, 0
        %v600 = vsub.s32 0, %v361
        %v601 = vsel %vm599, %v600, %v361
        %v602 = vmul.u32.u64.compose %v601, 2863311531
        %v603 = vextract.low.u32 %v602
        %v604 = vextract.high.u32 %v602
        %v605 = vshrl.u32 %v604, 4
        %v606 = vmul.u32 %v605, 24
        %v607 = vsub.s32 %v601, %v606
        %v608 = vsub.s32 0, %v607
        %v609 = vsel %vm599, %v608, %v607
        %vm610 = vcmp.lt.s32.totalorder %v362, 0
        %v611 = vsub.s32 0, %v362
        %v612 = vsel %vm610, %v611, %v362
        %v613 = vmul.u32.u64.compose %v612, 2863311531
        %v614 = vextract.low.u32 %v613
        %v615 = vextract.high.u32 %v613
        %v616 = vshrl.u32 %v615, 4
        %v617 = vmul.u32 %v616, 24
        %v618 = vsub.s32 %v612, %v617
        %v619 = vsub.s32 0, %v618
        %v620 = vsel %vm610, %v619, %v618
        %vm621 = vcmp.lt.s32.totalorder %v363, 0
        %v622 = vsub.s32 0, %v363
        %v623 = vsel %vm621, %v622, %v363
        %v624 = vmul.u32.u64.compose %v623, 2863311531
        %v625 = vextract.low.u32 %v624
        %v626 = vextract.high.u32 %v624
        %v627 = vshrl.u32 %v626, 4
        %v628 = vmul.u32 %v627, 24
        %v629 = vsub.s32 %v623, %v628
        %v630 = vsub.s32 0, %v629
        %v631 = vsel %vm621, %v630, %v629
        %vm632 = vcmp.lt.s32.totalorder %v364, 0
        %v633 = vsub.s32 0, %v364
        %v634 = vsel %vm632, %v633, %v364
        %v635 = vmul.u32.u64.compose %v634, 2863311531
        %v636 = vextract.low.u32 %v635
        %v637 = vextract.high.u32 %v635
        %v638 = vshrl.u32 %v637, 4
        %v639 = vmul.u32 %v638, 24
        %v640 = vsub.s32 %v634, %v639
        %v641 = vsub.s32 0, %v640
        %v642 = vsel %vm632, %v641, %v640
        %vm643 = vcmp.lt.s32.totalorder %v365, 0
        %v644 = vsub.s32 0, %v365
        %v645 = vsel %vm643, %v644, %v365
        %v646 = vmul.u32.u64.compose %v645, 2863311531
        %v647 = vextract.low.u32 %v646
        %v648 = vextract.high.u32 %v646
        %v649 = vshrl.u32 %v648, 4
        %v650 = vmul.u32 %v649, 24
        %v651 = vsub.s32 %v645, %v650
        %v652 = vsub.s32 0, %v651
        %v653 = vsel %vm643, %v652, %v651
        %vm654 = vcmp.lt.s32.totalorder %v366, 0
        %v655 = vsub.s32 0, %v366
        %v656 = vsel %vm654, %v655, %v366
        %v657 = vmul.u32.u64.compose %v656, 2863311531
        %v658 = vextract.low.u32 %v657
        %v659 = vextract.high.u32 %v657
        %v660 = vshrl.u32 %v659, 4
        %v661 = vmul.u32 %v660, 24
        %v662 = vsub.s32 %v656, %v661
        %v663 = vsub.s32 0, %v662
        %v664 = vsel %vm654, %v663, %v662
        %vm665 = vcmp.lt.s32.totalorder %v367, 0
        %v666 = vsub.s32 0, %v367
        %v667 = vsel %vm665, %v666, %v367
        %v668 = vmul.u32.u64.compose %v667, 2863311531
        %v669 = vextract.low.u32 %v668
        %v670 = vextract.high.u32 %v668
        %v671 = vshrl.u32 %v670, 4
        %v672 = vmul.u32 %v671, 24
        %v673 = vsub.s32 %v667, %v672
        %v674 = vsub.s32 0, %v673
        %v675 = vsel %vm665, %v674, %v673
        %vm676 = vcmp.lt.s32.totalorder %v368, 0
        %v677 = vsub.s32 0, %v368
        %v678 = vsel %vm676, %v677, %v368
        %v679 = vmul.u32.u64.compose %v678, 2863311531
        %v680 = vextract.low.u32 %v679
        %v681 = vextract.high.u32 %v679
        %v682 = vshrl.u32 %v681, 4
        %v683 = vmul.u32 %v682, 24
        %v684 = vsub.s32 %v678, %v683
        %v685 = vsub.s32 0, %v684
        %v686 = vsel %vm676, %v685, %v684
        %vm687 = vcmp.lt.s32.totalorder %v369, 0
        %v688 = vsub.s32 0, %v369
        %v689 = vsel %vm687, %v688, %v369
        %v690 = vmul.u32.u64.compose %v689, 2863311531
        %v691 = vextract.low.u32 %v690
        %v692 = vextract.high.u32 %v690
        %v693 = vshrl.u32 %v692, 4
        %v694 = vmul.u32 %v693, 24
        %v695 = vsub.s32 %v689, %v694
        %v696 = vsub.s32 0, %v695
        %v697 = vsel %vm687, %v696, %v695
        %vm698 = vcmp.lt.s32.totalorder %v370, 0
        %v699 = vsub.s32 0, %v370
        %v700 = vsel %vm698, %v699, %v370
        %v701 = vmul.u32.u64.compose %v700, 2863311531
        %v702 = vextract.low.u32 %v701
        %v703 = vextract.high.u32 %v701
        %v704 = vshrl.u32 %v703, 4
        %v705 = vmul.u32 %v704, 24
        %v706 = vsub.s32 %v700, %v705
        %v707 = vsub.s32 0, %v706
        %v708 = vsel %vm698, %v707, %v706
        %vm709 = vcmp.lt.s32.totalorder %v371, 0
        %v710 = vsub.s32 0, %v371
        %v711 = vsel %vm709, %v710, %v371
        %v712 = vmul.u32.u64.compose %v711, 2863311531
        %v713 = vextract.low.u32 %v712
        %v714 = vextract.high.u32 %v712
        %v715 = vshrl.u32 %v714, 4
        %v716 = vmul.u32 %v715, 24
        %v717 = vsub.s32 %v711, %v716
        %v718 = vsub.s32 0, %v717
        %v719 = vsel %vm709, %v718, %v717
        %vm720 = vcmp.lt.s32.totalorder %v372, 0
        %v721 = vsub.s32 0, %v372
        %v722 = vsel %vm720, %v721, %v372
        %v723 = vmul.u32.u64.compose %v722, 2863311531
        %v724 = vextract.low.u32 %v723
        %v725 = vextract.high.u32 %v723
        %v726 = vshrl.u32 %v725, 4
        %v727 = vmul.u32 %v726, 24
        %v728 = vsub.s32 %v722, %v727
        %v729 = vsub.s32 0, %v728
        %v730 = vsel %vm720, %v729, %v728
        %vm731 = vcmp.lt.s32.totalorder %v373, 0
        %v732 = vsub.s32 0, %v373
        %v733 = vsel %vm731, %v732, %v373
        %v734 = vmul.u32.u64.compose %v733, 2863311531
        %v735 = vextract.low.u32 %v734
        %v736 = vextract.high.u32 %v734
        %v737 = vshrl.u32 %v736, 4
        %v738 = vmul.u32 %v737, 24
        %v739 = vsub.s32 %v733, %v738
        %v740 = vsub.s32 0, %v739
        %v741 = vsel %vm731, %v740, %v739
        %vm742 = vcmp.lt.s32.totalorder %v374, 0
        %v743 = vsub.s32 0, %v374
        %v744 = vsel %vm742, %v743, %v374
        %v745 = vmul.u32.u64.compose %v744, 2863311531
        %v746 = vextract.low.u32 %v745
        %v747 = vextract.high.u32 %v745
        %v748 = vshrl.u32 %v747, 4
        %v749 = vmul.u32 %v748, 24
        %v750 = vsub.s32 %v744, %v749
        %v751 = vsub.s32 0, %v750
        %v752 = vsel %vm742, %v751, %v750
        %vm753 = vcmp.lt.s32.totalorder %v375, 0
        %v754 = vsub.s32 0, %v375
        %v755 = vsel %vm753, %v754, %v375
        %v756 = vmul.u32.u64.compose %v755, 2863311531
        %v757 = vextract.low.u32 %v756
        %v758 = vextract.high.u32 %v756
        %v759 = vshrl.u32 %v758, 4
        %v760 = vmul.u32 %v759, 24
        %v761 = vsub.s32 %v755, %v760
        %v762 = vsub.s32 0, %v761
        %v763 = vsel %vm753, %v762, %v761
        %vm764 = vcmp.lt.s32.totalorder %v376, 0
        %v765 = vsub.s32 0, %v376
        %v766 = vsel %vm764, %v765, %v376
        %v767 = vmul.u32.u64.compose %v766, 2863311531
        %v768 = vextract.low.u32 %v767
        %v769 = vextract.high.u32 %v767
        %v770 = vshrl.u32 %v769, 4
        %v771 = vmul.u32 %v770, 24
        %v772 = vsub.s32 %v766, %v771
        %v773 = vsub.s32 0, %v772
        %v774 = vsel %vm764, %v773, %v772
        %vm775 = vcmp.lt.s32.totalorder %v377, 0
        %v776 = vsub.s32 0, %v377
        %v777 = vsel %vm775, %v776, %v377
        %v778 = vmul.u32.u64.compose %v777, 2863311531
        %v779 = vextract.low.u32 %v778
        %v780 = vextract.high.u32 %v778
        %v781 = vshrl.u32 %v780, 4
        %v782 = vmul.u32 %v781, 24
        %v783 = vsub.s32 %v777, %v782
        %v784 = vsub.s32 0, %v783
        %v785 = vsel %vm775, %v784, %v783
        %vm786 = vcmp.lt.s32.totalorder %v378, 0
        %v787 = vsub.s32 0, %v378
        %v788 = vsel %vm786, %v787, %v378
        %v789 = vmul.u32.u64.compose %v788, 2863311531
        %v790 = vextract.low.u32 %v789
        %v791 = vextract.high.u32 %v789
        %v792 = vshrl.u32 %v791, 4
        %v793 = vmul.u32 %v792, 24
        %v794 = vsub.s32 %v788, %v793
        %v795 = vsub.s32 0, %v794
        %v796 = vsel %vm786, %v795, %v794
        %vm797 = vcmp.lt.s32.totalorder %v379, 0
        %v798 = vsub.s32 0, %v379
        %v799 = vsel %vm797, %v798, %v379
        %v800 = vmul.u32.u64.compose %v799, 2863311531
        %v801 = vextract.low.u32 %v800
        %v802 = vextract.high.u32 %v800
        %v803 = vshrl.u32 %v802, 4
        %v804 = vmul.u32 %v803, 24
        %v805 = vsub.s32 %v799, %v804
        %v806 = vsub.s32 0, %v805
        %v807 = vsel %vm797, %v806, %v805
        %vm808 = vcmp.lt.s32.totalorder %v380, 0
        %v809 = vsub.s32 0, %v380
        %v810 = vsel %vm808, %v809, %v380
        %v811 = vmul.u32.u64.compose %v810, 2863311531
        %v812 = vextract.low.u32 %v811
        %v813 = vextract.high.u32 %v811
        %v814 = vshrl.u32 %v813, 4
        %v815 = vmul.u32 %v814, 24
        %v816 = vsub.s32 %v810, %v815
        %v817 = vsub.s32 0, %v816
        %v818 = vsel %vm808, %v817, %v816
        %vm819 = vcmp.lt.s32.totalorder %v381, 0
        %v820 = vsub.s32 0, %v381
        %v821 = vsel %vm819, %v820, %v381
        %v822 = vmul.u32.u64.compose %v821, 2863311531
        %v823 = vextract.low.u32 %v822
        %v824 = vextract.high.u32 %v822
        %v825 = vshrl.u32 %v824, 4
        %v826 = vmul.u32 %v825, 24
        %v827 = vsub.s32 %v821, %v826
        %v828 = vsub.s32 0, %v827
        %v829 = vsel %vm819, %v828, %v827
        %vm830 = vcmp.lt.s32.totalorder %v382, 0
        %v831 = vsub.s32 0, %v382
        %v832 = vsel %vm830, %v831, %v382
        %v833 = vmul.u32.u64.compose %v832, 2863311531
        %v834 = vextract.low.u32 %v833
        %v835 = vextract.high.u32 %v833
        %v836 = vshrl.u32 %v835, 4
        %v837 = vmul.u32 %v836, 24
        %v838 = vsub.s32 %v832, %v837
        %v839 = vsub.s32 0, %v838
        %v840 = vsel %vm830, %v839, %v838
        %vm841 = vcmp.lt.s32.totalorder %v383, 0
        %v842 = vsub.s32 0, %v383
        %v843 = vsel %vm841, %v842, %v383
        %v844 = vmul.u32.u64.compose %v843, 2863311531
        %v845 = vextract.low.u32 %v844
        %v846 = vextract.high.u32 %v844
        %v847 = vshrl.u32 %v846, 4
        %v848 = vmul.u32 %v847, 24
        %v849 = vsub.s32 %v843, %v848
        %v850 = vsub.s32 0, %v849
        %v851 = vsel %vm841, %v850, %v849
        %vm852 = vcmp.lt.s32.totalorder %v384, 0
        %v853 = vsub.s32 0, %v384
        %v854 = vsel %vm852, %v853, %v384
        %v855 = vmul.u32.u64.compose %v854, 2863311531
        %v856 = vextract.low.u32 %v855
        %v857 = vextract.high.u32 %v855
        %v858 = vshrl.u32 %v857, 4
        %v859 = vmul.u32 %v858, 24
        %v860 = vsub.s32 %v854, %v859
        %v861 = vsub.s32 0, %v860
        %v862 = vsel %vm852, %v861, %v860
        %vm863 = vcmp.lt.s32.totalorder %v385, 0
        %v864 = vsub.s32 0, %v385
        %v865 = vsel %vm863, %v864, %v385
        %v866 = vmul.u32.u64.compose %v865, 2863311531
        %v867 = vextract.low.u32 %v866
        %v868 = vextract.high.u32 %v866
        %v869 = vshrl.u32 %v868, 4
        %v870 = vmul.u32 %v869, 24
        %v871 = vsub.s32 %v865, %v870
        %v872 = vsub.s32 0, %v871
        %v873 = vsel %vm863, %v872, %v871
        %vm874 = vcmp.lt.s32.totalorder %v386, 0
        %v875 = vsub.s32 0, %v386
        %v876 = vsel %vm874, %v875, %v386
        %v877 = vmul.u32.u64.compose %v876, 2863311531
        %v878 = vextract.low.u32 %v877
        %v879 = vextract.high.u32 %v877
        %v880 = vshrl.u32 %v879, 4
        %v881 = vmul.u32 %v880, 24
        %v882 = vsub.s32 %v876, %v881
        %v883 = vsub.s32 0, %v882
        %v884 = vsel %vm874, %v883, %v882
        %vm885 = vcmp.lt.s32.totalorder %v387, 0
        %v886 = vsub.s32 0, %v387
        %v887 = vsel %vm885, %v886, %v387
        %v888 = vmul.u32.u64.compose %v887, 2863311531
        %v889 = vextract.low.u32 %v888
        %v890 = vextract.high.u32 %v888
        %v891 = vshrl.u32 %v890, 4
        %v892 = vmul.u32 %v891, 24
        %v893 = vsub.s32 %v887, %v892
        %v894 = vsub.s32 0, %v893
        %v895 = vsel %vm885, %v894, %v893
        %vm896 = vcmp.lt.s32.totalorder %v388, 0
        %v897 = vsub.s32 0, %v388
        %v898 = vsel %vm896, %v897, %v388
        %v899 = vmul.u32.u64.compose %v898, 2863311531
        %v900 = vextract.low.u32 %v899
        %v901 = vextract.high.u32 %v899
        %v902 = vshrl.u32 %v901, 4
        %v903 = vmul.u32 %v902, 24
        %v904 = vsub.s32 %v898, %v903
        %v905 = vsub.s32 0, %v904
        %v906 = vsel %vm896, %v905, %v904
        %vm907 = vcmp.lt.s32.totalorder %v389, 0
        %v908 = vsub.s32 0, %v389
        %v909 = vsel %vm907, %v908, %v389
        %v910 = vmul.u32.u64.compose %v909, 2863311531
        %v911 = vextract.low.u32 %v910
        %v912 = vextract.high.u32 %v910
        %v913 = vshrl.u32 %v912, 4
        %v914 = vmul.u32 %v913, 24
        %v915 = vsub.s32 %v909, %v914
        %v916 = vsub.s32 0, %v915
        %v917 = vsel %vm907, %v916, %v915
        %vm918 = vcmp.ne.s32.totalorder %v400, 0
        %vm919 = vcmp.ne.s32.totalorder %v411, 0
        %vm920 = vcmp.ne.s32.totalorder %v422, 0
        %vm921 = vcmp.ne.s32.totalorder %v433, 0
        %vm922 = vcmp.ne.s32.totalorder %v444, 0
        %vm923 = vcmp.ne.s32.totalorder %v455, 0
        %vm924 = vcmp.ne.s32.totalorder %v466, 0
        %vm925 = vcmp.ne.s32.totalorder %v477, 0
        %vm926 = vcmp.ne.s32.totalorder %v488, 0
        %vm927 = vcmp.ne.s32.totalorder %v499, 0
        %vm928 = vcmp.ne.s32.totalorder %v510, 0
        %vm929 = vcmp.ne.s32.totalorder %v521, 0
        %vm930 = vcmp.ne.s32.totalorder %v532, 0
        %vm931 = vcmp.ne.s32.totalorder %v543, 0
        %vm932 = vcmp.ne.s32.totalorder %v554, 0
        %vm933 = vcmp.ne.s32.totalorder %v565, 0
        %vm934 = vcmp.ne.s32.totalorder %v576, 0
        %vm935 = vcmp.ne.s32.totalorder %v587, 0
        %vm936 = vcmp.ne.s32.totalorder %v598, 0
        %vm937 = vcmp.ne.s32.totalorder %v609, 0
        %vm938 = vcmp.ne.s32.totalorder %v620, 0
        %vm939 = vcmp.ne.s32.totalorder %v631, 0
        %vm940 = vcmp.ne.s32.totalorder %v642, 0
        %vm941 = vcmp.ne.s32.totalorder %v653, 0
        %vm942 = vcmp.ne.s32.totalorder %v664, 0
        %vm943 = vcmp.ne.s32.totalorder %v675, 0
        %vm944 = vcmp.ne.s32.totalorder %v686, 0
        %vm945 = vcmp.ne.s32.totalorder %v697, 0
        %vm946 = vcmp.ne.s32.totalorder %v708, 0
        %vm947 = vcmp.ne.s32.totalorder %v719, 0
        %vm948 = vcmp.ne.s32.totalorder %v730, 0
        %vm949 = vcmp.ne.s32.totalorder %v741, 0
        %vm950 = vcmp.ne.s32.totalorder %v752, 0
        %vm951 = vcmp.ne.s32.totalorder %v763, 0
        %vm952 = vcmp.ne.s32.totalorder %v774, 0
        %vm953 = vcmp.ne.s32.totalorder %v785, 0
        %vm954 = vcmp.ne.s32.totalorder %v796, 0
        %vm955 = vcmp.ne.s32.totalorder %v807, 0
        %vm956 = vcmp.ne.s32.totalorder %v818, 0
        %vm957 = vcmp.ne.s32.totalorder %v829, 0
        %vm958 = vcmp.ne.s32.totalorder %v840, 0
        %vm959 = vcmp.ne.s32.totalorder %v851, 0
        %vm960 = vcmp.ne.s32.totalorder %v862, 0
        %vm961 = vcmp.ne.s32.totalorder %v873, 0
        %vm962 = vcmp.ne.s32.totalorder %v884, 0
        %vm963 = vcmp.ne.s32.totalorder %v895, 0
        %vm964 = vcmp.ne.s32.totalorder %v906, 0
        %vm965 = vcmp.ne.s32.totalorder %v917, 0
        %vm966 = vcmp.lt.s32.totalorder %v400, 0
        %vm967 = vcmp.lt.s32.totalorder %v411, 0
        %vm968 = vcmp.lt.s32.totalorder %v422, 0
        %vm969 = vcmp.lt.s32.totalorder %v433, 0
        %vm970 = vcmp.lt.s32.totalorder %v444, 0
        %vm971 = vcmp.lt.s32.totalorder %v455, 0
        %vm972 = vcmp.lt.s32.totalorder %v466, 0
        %vm973 = vcmp.lt.s32.totalorder %v477, 0
        %vm974 = vcmp.lt.s32.totalorder %v488, 0
        %vm975 = vcmp.lt.s32.totalorder %v499, 0
        %vm976 = vcmp.lt.s32.totalorder %v510, 0
        %vm977 = vcmp.lt.s32.totalorder %v521, 0
        %vm978 = vcmp.lt.s32.totalorder %v532, 0
        %vm979 = vcmp.lt.s32.totalorder %v543, 0
        %vm980 = vcmp.lt.s32.totalorder %v554, 0
        %vm981 = vcmp.lt.s32.totalorder %v565, 0
        %vm982 = vcmp.lt.s32.totalorder %v576, 0
        %vm983 = vcmp.lt.s32.totalorder %v587, 0
        %vm984 = vcmp.lt.s32.totalorder %v598, 0
        %vm985 = vcmp.lt.s32.totalorder %v609, 0
        %vm986 = vcmp.lt.s32.totalorder %v620, 0
        %vm987 = vcmp.lt.s32.totalorder %v631, 0
        %vm988 = vcmp.lt.s32.totalorder %v642, 0
        %vm989 = vcmp.lt.s32.totalorder %v653, 0
        %vm990 = vcmp.lt.s32.totalorder %v664, 0
        %vm991 = vcmp.lt.s32.totalorder %v675, 0
        %vm992 = vcmp.lt.s32.totalorder %v686, 0
        %vm993 = vcmp.lt.s32.totalorder %v697, 0
        %vm994 = vcmp.lt.s32.totalorder %v708, 0
        %vm995 = vcmp.lt.s32.totalorder %v719, 0
        %vm996 = vcmp.lt.s32.totalorder %v730, 0
        %vm997 = vcmp.lt.s32.totalorder %v741, 0
        %vm998 = vcmp.lt.s32.totalorder %v752, 0
        %vm999 = vcmp.lt.s32.totalorder %v763, 0
        %vm1000 = vcmp.lt.s32.totalorder %v774, 0
        %vm1001 = vcmp.lt.s32.totalorder %v785, 0
        %vm1002 = vcmp.lt.s32.totalorder %v796, 0
        %vm1003 = vcmp.lt.s32.totalorder %v807, 0
        %vm1004 = vcmp.lt.s32.totalorder %v818, 0
        %vm1005 = vcmp.lt.s32.totalorder %v829, 0
        %vm1006 = vcmp.lt.s32.totalorder %v840, 0
        %vm1007 = vcmp.lt.s32.totalorder %v851, 0
        %vm1008 = vcmp.lt.s32.totalorder %v862, 0
        %vm1009 = vcmp.lt.s32.totalorder %v873, 0
        %vm1010 = vcmp.lt.s32.totalorder %v884, 0
        %vm1011 = vcmp.lt.s32.totalorder %v895, 0
        %vm1012 = vcmp.lt.s32.totalorder %v906, 0
        %vm1013 = vcmp.lt.s32.totalorder %v917, 0
        %vm1014 = vmand %vm966, %vm918
        %vm1015 = vmand %vm967, %vm919
        %vm1016 = vmand %vm968, %vm920
        %vm1017 = vmand %vm969, %vm921
        %vm1018 = vmand %vm970, %vm922
        %vm1019 = vmand %vm971, %vm923
        %vm1020 = vmand %vm972, %vm924
        %vm1021 = vmand %vm973, %vm925
        %vm1022 = vmand %vm974, %vm926
        %vm1023 = vmand %vm975, %vm927
        %vm1024 = vmand %vm976, %vm928
        %vm1025 = vmand %vm977, %vm929
        %vm1026 = vmand %vm978, %vm930
        %vm1027 = vmand %vm979, %vm931
        %vm1028 = vmand %vm980, %vm932
        %vm1029 = vmand %vm981, %vm933
        %vm1030 = vmand %vm982, %vm934
        %vm1031 = vmand %vm983, %vm935
        %vm1032 = vmand %vm984, %vm936
        %vm1033 = vmand %vm985, %vm937
        %vm1034 = vmand %vm986, %vm938
        %vm1035 = vmand %vm987, %vm939
        %vm1036 = vmand %vm988, %vm940
        %vm1037 = vmand %vm989, %vm941
        %vm1038 = vmand %vm990, %vm942
        %vm1039 = vmand %vm991, %vm943
        %vm1040 = vmand %vm992, %vm944
        %vm1041 = vmand %vm993, %vm945
        %vm1042 = vmand %vm994, %vm946
        %vm1043 = vmand %vm995, %vm947
        %vm1044 = vmand %vm996, %vm948
        %vm1045 = vmand %vm997, %vm949
        %vm1046 = vmand %vm998, %vm950
        %vm1047 = vmand %vm999, %vm951
        %vm1048 = vmand %vm1000, %vm952
        %vm1049 = vmand %vm1001, %vm953
        %vm1050 = vmand %vm1002, %vm954
        %vm1051 = vmand %vm1003, %vm955
        %vm1052 = vmand %vm1004, %vm956
        %vm1053 = vmand %vm1005, %vm957
        %vm1054 = vmand %vm1006, %vm958
        %vm1055 = vmand %vm1007, %vm959
        %vm1056 = vmand %vm1008, %vm960
        %vm1057 = vmand %vm1009, %vm961
        %vm1058 = vmand %vm1010, %vm962
        %vm1059 = vmand %vm1011, %vm963
        %vm1060 = vmand %vm1012, %vm964
        %vm1061 = vmand %vm1013, %vm965
        %v1062 = vadd.s32 %v400, 24
        %v1063 = vadd.s32 %v411, 24
        %v1064 = vadd.s32 %v422, 24
        %v1065 = vadd.s32 %v433, 24
        %v1066 = vadd.s32 %v444, 24
        %v1067 = vadd.s32 %v455, 24
        %v1068 = vadd.s32 %v466, 24
        %v1069 = vadd.s32 %v477, 24
        %v1070 = vadd.s32 %v488, 24
        %v1071 = vadd.s32 %v499, 24
        %v1072 = vadd.s32 %v510, 24
        %v1073 = vadd.s32 %v521, 24
        %v1074 = vadd.s32 %v532, 24
        %v1075 = vadd.s32 %v543, 24
        %v1076 = vadd.s32 %v554, 24
        %v1077 = vadd.s32 %v565, 24
        %v1078 = vadd.s32 %v576, 24
        %v1079 = vadd.s32 %v587, 24
        %v1080 = vadd.s32 %v598, 24
        %v1081 = vadd.s32 %v609, 24
        %v1082 = vadd.s32 %v620, 24
        %v1083 = vadd.s32 %v631, 24
        %v1084 = vadd.s32 %v642, 24
        %v1085 = vadd.s32 %v653, 24
        %v1086 = vadd.s32 %v664, 24
        %v1087 = vadd.s32 %v675, 24
        %v1088 = vadd.s32 %v686, 24
        %v1089 = vadd.s32 %v697, 24
        %v1090 = vadd.s32 %v708, 24
        %v1091 = vadd.s32 %v719, 24
        %v1092 = vadd.s32 %v730, 24
        %v1093 = vadd.s32 %v741, 24
        %v1094 = vadd.s32 %v752, 24
        %v1095 = vadd.s32 %v763, 24
        %v1096 = vadd.s32 %v774, 24
        %v1097 = vadd.s32 %v785, 24
        %v1098 = vadd.s32 %v796, 24
        %v1099 = vadd.s32 %v807, 24
        %v1100 = vadd.s32 %v818, 24
        %v1101 = vadd.s32 %v829, 24
        %v1102 = vadd.s32 %v840, 24
        %v1103 = vadd.s32 %v851, 24
        %v1104 = vadd.s32 %v862, 24
        %v1105 = vadd.s32 %v873, 24
        %v1106 = vadd.s32 %v884, 24
        %v1107 = vadd.s32 %v895, 24
        %v1108 = vadd.s32 %v906, 24
        %v1109 = vadd.s32 %v917, 24
        %v1110 = vsel %vm1014, %v1062, %v400
        %v1111 = vsel %vm1015, %v1063, %v411
        %v1112 = vsel %vm1016, %v1064, %v422
        %v1113 = vsel %vm1017, %v1065, %v433
        %v1114 = vsel %vm1018, %v1066, %v444
        %v1115 = vsel %vm1019, %v1067, %v455
        %v1116 = vsel %vm1020, %v1068, %v466
        %v1117 = vsel %vm1021, %v1069, %v477
        %v1118 = vsel %vm1022, %v1070, %v488
        %v1119 = vsel %vm1023, %v1071, %v499
        %v1120 = vsel %vm1024, %v1072, %v510
        %v1121 = vsel %vm1025, %v1073, %v521
        %v1122 = vsel %vm1026, %v1074, %v532
        %v1123 = vsel %vm1027, %v1075, %v543
        %v1124 = vsel %vm1028, %v1076, %v554
        %v1125 = vsel %vm1029, %v1077, %v565
        %v1126 = vsel %vm1030, %v1078, %v576
        %v1127 = vsel %vm1031, %v1079, %v587
        %v1128 = vsel %vm1032, %v1080, %v598
        %v1129 = vsel %vm1033, %v1081, %v609
        %v1130 = vsel %vm1034, %v1082, %v620
        %v1131 = vsel %vm1035, %v1083, %v631
        %v1132 = vsel %vm1036, %v1084, %v642
        %v1133 = vsel %vm1037, %v1085, %v653
        %v1134 = vsel %vm1038, %v1086, %v664
        %v1135 = vsel %vm1039, %v1087, %v675
        %v1136 = vsel %vm1040, %v1088, %v686
        %v1137 = vsel %vm1041, %v1089, %v697
        %v1138 = vsel %vm1042, %v1090, %v708
        %v1139 = vsel %vm1043, %v1091, %v719
        %v1140 = vsel %vm1044, %v1092, %v730
        %v1141 = vsel %vm1045, %v1093, %v741
        %v1142 = vsel %vm1046, %v1094, %v752
        %v1143 = vsel %vm1047, %v1095, %v763
        %v1144 = vsel %vm1048, %v1096, %v774
        %v1145 = vsel %vm1049, %v1097, %v785
        %v1146 = vsel %vm1050, %v1098, %v796
        %v1147 = vsel %vm1051, %v1099, %v807
        %v1148 = vsel %vm1052, %v1100, %v818
        %v1149 = vsel %vm1053, %v1101, %v829
        %v1150 = vsel %vm1054, %v1102, %v840
        %v1151 = vsel %vm1055, %v1103, %v851
        %v1152 = vsel %vm1056, %v1104, %v862
        %v1153 = vsel %vm1057, %v1105, %v873
        %v1154 = vsel %vm1058, %v1106, %v884
        %v1155 = vsel %vm1059, %v1107, %v895
        %v1156 = vsel %vm1060, %v1108, %v906
        %v1157 = vsel %vm1061, %v1109, %v917
        %vm1158 = vcmp.ge.s32.totalorder %v1110, 1
        %vm1159 = vcmp.ge.s32.totalorder %v1111, 1
        %vm1160 = vcmp.ge.s32.totalorder %v1112, 1
        %vm1161 = vcmp.ge.s32.totalorder %v1113, 1
        %vm1162 = vcmp.ge.s32.totalorder %v1114, 1
        %vm1163 = vcmp.ge.s32.totalorder %v1115, 1
        %vm1164 = vcmp.ge.s32.totalorder %v1116, 1
        %vm1165 = vcmp.ge.s32.totalorder %v1117, 1
        %vm1166 = vcmp.ge.s32.totalorder %v1118, 1
        %vm1167 = vcmp.ge.s32.totalorder %v1119, 1
        %vm1168 = vcmp.ge.s32.totalorder %v1120, 1
        %vm1169 = vcmp.ge.s32.totalorder %v1121, 1
        %vm1170 = vcmp.ge.s32.totalorder %v1122, 1
        %vm1171 = vcmp.ge.s32.totalorder %v1123, 1
        %vm1172 = vcmp.ge.s32.totalorder %v1124, 1
        %vm1173 = vcmp.ge.s32.totalorder %v1125, 1
        %vm1174 = vcmp.ge.s32.totalorder %v1126, 1
        %vm1175 = vcmp.ge.s32.totalorder %v1127, 1
        %vm1176 = vcmp.ge.s32.totalorder %v1128, 1
        %vm1177 = vcmp.ge.s32.totalorder %v1129, 1
        %vm1178 = vcmp.ge.s32.totalorder %v1130, 1
        %vm1179 = vcmp.ge.s32.totalorder %v1131, 1
        %vm1180 = vcmp.ge.s32.totalorder %v1132, 1
        %vm1181 = vcmp.ge.s32.totalorder %v1133, 1
        %vm1182 = vcmp.ge.s32.totalorder %v1134, 1
        %vm1183 = vcmp.ge.s32.totalorder %v1135, 1
        %vm1184 = vcmp.ge.s32.totalorder %v1136, 1
        %vm1185 = vcmp.ge.s32.totalorder %v1137, 1
        %vm1186 = vcmp.ge.s32.totalorder %v1138, 1
        %vm1187 = vcmp.ge.s32.totalorder %v1139, 1
        %vm1188 = vcmp.ge.s32.totalorder %v1140, 1
        %vm1189 = vcmp.ge.s32.totalorder %v1141, 1
        %vm1190 = vcmp.ge.s32.totalorder %v1142, 1
        %vm1191 = vcmp.ge.s32.totalorder %v1143, 1
        %vm1192 = vcmp.ge.s32.totalorder %v1144, 1
        %vm1193 = vcmp.ge.s32.totalorder %v1145, 1
        %vm1194 = vcmp.ge.s32.totalorder %v1146, 1
        %vm1195 = vcmp.ge.s32.totalorder %v1147, 1
        %vm1196 = vcmp.ge.s32.totalorder %v1148, 1
        %vm1197 = vcmp.ge.s32.totalorder %v1149, 1
        %vm1198 = vcmp.ge.s32.totalorder %v1150, 1
        %vm1199 = vcmp.ge.s32.totalorder %v1151, 1
        %vm1200 = vcmp.ge.s32.totalorder %v1152, 1
        %vm1201 = vcmp.ge.s32.totalorder %v1153, 1
        %vm1202 = vcmp.ge.s32.totalorder %v1154, 1
        %vm1203 = vcmp.ge.s32.totalorder %v1155, 1
        %vm1204 = vcmp.ge.s32.totalorder %v1156, 1
        %vm1205 = vcmp.ge.s32.totalorder %v1157, 1
        %vm1206 = vcmp.le.s32.totalorder %v1110, 16
        %vm1207 = vcmp.le.s32.totalorder %v1111, 16
        %vm1208 = vcmp.le.s32.totalorder %v1112, 16
        %vm1209 = vcmp.le.s32.totalorder %v1113, 16
        %vm1210 = vcmp.le.s32.totalorder %v1114, 16
        %vm1211 = vcmp.le.s32.totalorder %v1115, 16
        %vm1212 = vcmp.le.s32.totalorder %v1116, 16
        %vm1213 = vcmp.le.s32.totalorder %v1117, 16
        %vm1214 = vcmp.le.s32.totalorder %v1118, 16
        %vm1215 = vcmp.le.s32.totalorder %v1119, 16
        %vm1216 = vcmp.le.s32.totalorder %v1120, 16
        %vm1217 = vcmp.le.s32.totalorder %v1121, 16
        %vm1218 = vcmp.le.s32.totalorder %v1122, 16
        %vm1219 = vcmp.le.s32.totalorder %v1123, 16
        %vm1220 = vcmp.le.s32.totalorder %v1124, 16
        %vm1221 = vcmp.le.s32.totalorder %v1125, 16
        %vm1222 = vcmp.le.s32.totalorder %v1126, 16
        %vm1223 = vcmp.le.s32.totalorder %v1127, 16
        %vm1224 = vcmp.le.s32.totalorder %v1128, 16
        %vm1225 = vcmp.le.s32.totalorder %v1129, 16
        %vm1226 = vcmp.le.s32.totalorder %v1130, 16
        %vm1227 = vcmp.le.s32.totalorder %v1131, 16
        %vm1228 = vcmp.le.s32.totalorder %v1132, 16
        %vm1229 = vcmp.le.s32.totalorder %v1133, 16
        %vm1230 = vcmp.le.s32.totalorder %v1134, 16
        %vm1231 = vcmp.le.s32.totalorder %v1135, 16
        %vm1232 = vcmp.le.s32.totalorder %v1136, 16
        %vm1233 = vcmp.le.s32.totalorder %v1137, 16
        %vm1234 = vcmp.le.s32.totalorder %v1138, 16
        %vm1235 = vcmp.le.s32.totalorder %v1139, 16
        %vm1236 = vcmp.le.s32.totalorder %v1140, 16
        %vm1237 = vcmp.le.s32.totalorder %v1141, 16
        %vm1238 = vcmp.le.s32.totalorder %v1142, 16
        %vm1239 = vcmp.le.s32.totalorder %v1143, 16
        %vm1240 = vcmp.le.s32.totalorder %v1144, 16
        %vm1241 = vcmp.le.s32.totalorder %v1145, 16
        %vm1242 = vcmp.le.s32.totalorder %v1146, 16
        %vm1243 = vcmp.le.s32.totalorder %v1147, 16
        %vm1244 = vcmp.le.s32.totalorder %v1148, 16
        %vm1245 = vcmp.le.s32.totalorder %v1149, 16
        %vm1246 = vcmp.le.s32.totalorder %v1150, 16
        %vm1247 = vcmp.le.s32.totalorder %v1151, 16
        %vm1248 = vcmp.le.s32.totalorder %v1152, 16
        %vm1249 = vcmp.le.s32.totalorder %v1153, 16
        %vm1250 = vcmp.le.s32.totalorder %v1154, 16
        %vm1251 = vcmp.le.s32.totalorder %v1155, 16
        %vm1252 = vcmp.le.s32.totalorder %v1156, 16
        %vm1253 = vcmp.le.s32.totalorder %v1157, 16
        %vm1254 = vmand %vm1158, %vm1206
        %vm1255 = vmand %vm1159, %vm1207
        %vm1256 = vmand %vm1160, %vm1208
        %vm1257 = vmand %vm1161, %vm1209
        %vm1258 = vmand %vm1162, %vm1210
        %vm1259 = vmand %vm1163, %vm1211
        %vm1260 = vmand %vm1164, %vm1212
        %vm1261 = vmand %vm1165, %vm1213
        %vm1262 = vmand %vm1166, %vm1214
        %vm1263 = vmand %vm1167, %vm1215
        %vm1264 = vmand %vm1168, %vm1216
        %vm1265 = vmand %vm1169, %vm1217
        %vm1266 = vmand %vm1170, %vm1218
        %vm1267 = vmand %vm1171, %vm1219
        %vm1268 = vmand %vm1172, %vm1220
        %vm1269 = vmand %vm1173, %vm1221
        %vm1270 = vmand %vm1174, %vm1222
        %vm1271 = vmand %vm1175, %vm1223
        %vm1272 = vmand %vm1176, %vm1224
        %vm1273 = vmand %vm1177, %vm1225
        %vm1274 = vmand %vm1178, %vm1226
        %vm1275 = vmand %vm1179, %vm1227
        %vm1276 = vmand %vm1180, %vm1228
        %vm1277 = vmand %vm1181, %vm1229
        %vm1278 = vmand %vm1182, %vm1230
        %vm1279 = vmand %vm1183, %vm1231
        %vm1280 = vmand %vm1184, %vm1232
        %vm1281 = vmand %vm1185, %vm1233
        %vm1282 = vmand %vm1186, %vm1234
        %vm1283 = vmand %vm1187, %vm1235
        %vm1284 = vmand %vm1188, %vm1236
        %vm1285 = vmand %vm1189, %vm1237
        %vm1286 = vmand %vm1190, %vm1238
        %vm1287 = vmand %vm1191, %vm1239
        %vm1288 = vmand %vm1192, %vm1240
        %vm1289 = vmand %vm1193, %vm1241
        %vm1290 = vmand %vm1194, %vm1242
        %vm1291 = vmand %vm1195, %vm1243
        %vm1292 = vmand %vm1196, %vm1244
        %vm1293 = vmand %vm1197, %vm1245
        %vm1294 = vmand %vm1198, %vm1246
        %vm1295 = vmand %vm1199, %vm1247
        %vm1296 = vmand %vm1200, %vm1248
        %vm1297 = vmand %vm1201, %vm1249
        %vm1298 = vmand %vm1202, %vm1250
        %vm1299 = vmand %vm1203, %vm1251
        %vm1300 = vmand %vm1204, %vm1252
        %vm1301 = vmand %vm1205, %vm1253
        %v1302 = vld [vmem:[%s298] sm:$0xff]
        %v1303 = vld [vmem:[%s298 + $0x8] sm:$0xff]
        %v1304 = vld [vmem:[%s298 + $0x10] sm:$0xff]
        %v1305 = vld [vmem:[%s298 + $0x18] sm:$0xff]
        %v1306 = vld [vmem:[%s298 + $0x20] sm:$0xff]
        %v1307 = vld [vmem:[%s298 + $0x28] sm:$0xff]
        %v1308 = vld [vmem:[%s298 + $0x30] sm:$0xff]
        %v1309 = vld [vmem:[%s298 + $0x38] sm:$0xff]
        %v1310 = vld [vmem:[%s298 + $0x40] sm:$0xff]
        %v1311 = vld [vmem:[%s298 + $0x48] sm:$0xff]
        %v1312 = vld [vmem:[%s298 + $0x50] sm:$0xff]
        %v1313 = vld [vmem:[%s298 + $0x58] sm:$0xff]
        %v1314 = vld [vmem:[%s298 + $0x60] sm:$0xff]
        %v1315 = vld [vmem:[%s298 + $0x68] sm:$0xff]
        %v1316 = vld [vmem:[%s298 + $0x70] sm:$0xff]
        %v1317 = vld [vmem:[%s298 + $0x78] sm:$0xff]
        %v1318 = vld [vmem:[%s298 + $0x80] sm:$0xff]
        %v1319 = vld [vmem:[%s298 + $0x88] sm:$0xff]
        %v1320 = vld [vmem:[%s298 + $0x90] sm:$0xff]
        %v1321 = vld [vmem:[%s298 + $0x98] sm:$0xff]
        %v1322 = vld [vmem:[%s298 + $0xa0] sm:$0xff]
        %v1323 = vld [vmem:[%s298 + $0xa8] sm:$0xff]
        %v1324 = vld [vmem:[%s298 + $0xb0] sm:$0xff]
        %v1325 = vld [vmem:[%s298 + $0xb8] sm:$0xff]
        %v1326 = vld [vmem:[%s298 + $0xc0] sm:$0xff]
        %v1327 = vld [vmem:[%s298 + $0xc8] sm:$0xff]
        %v1328 = vld [vmem:[%s298 + $0xd0] sm:$0xff]
        %v1329 = vld [vmem:[%s298 + $0xd8] sm:$0xff]
        %v1330 = vld [vmem:[%s298 + $0xe0] sm:$0xff]
        %v1331 = vld [vmem:[%s298 + $0xe8] sm:$0xff]
        %v1332 = vld [vmem:[%s298 + $0xf0] sm:$0xff]
        %v1333 = vld [vmem:[%s298 + $0xf8] sm:$0xff]
        %v1334 = vld [vmem:[%s298 + $0x100] sm:$0xff]
        %v1335 = vld [vmem:[%s298 + $0x108] sm:$0xff]
        %v1336 = vld [vmem:[%s298 + $0x110] sm:$0xff]
        %v1337 = vld [vmem:[%s298 + $0x118] sm:$0xff]
        %v1338 = vld [vmem:[%s298 + $0x120] sm:$0xff]
        %v1339 = vld [vmem:[%s298 + $0x128] sm:$0xff]
        %v1340 = vld [vmem:[%s298 + $0x130] sm:$0xff]
        %v1341 = vld [vmem:[%s298 + $0x138] sm:$0xff]
        %v1342 = vld [vmem:[%s298 + $0x140] sm:$0xff]
        %v1343 = vld [vmem:[%s298 + $0x148] sm:$0xff]
        %v1344 = vld [vmem:[%s298 + $0x150] sm:$0xff]
        %v1345 = vld [vmem:[%s298 + $0x158] sm:$0xff]
        %v1346 = vld [vmem:[%s298 + $0x160] sm:$0xff]
        %v1347 = vld [vmem:[%s298 + $0x168] sm:$0xff]
        %v1348 = vld [vmem:[%s298 + $0x170] sm:$0xff]
        %v1349 = vld [vmem:[%s298 + $0x178] sm:$0xff]
        %v1350 = vld [vmem:[%s298 + $0x180] sm:$0xff]
        %v1351 = vld [vmem:[%s298 + $0x188] sm:$0xff]
        %v1352 = vld [vmem:[%s298 + $0x190] sm:$0xff]
        %v1353 = vld [vmem:[%s298 + $0x198] sm:$0xff]
        %v1354 = vld [vmem:[%s298 + $0x1a0] sm:$0xff]
        %v1355 = vld [vmem:[%s298 + $0x1a8] sm:$0xff]
        %vm1410 = vcmask 1040384
        %v1411 = vrot.slane %v1302, 7
        %v1412 = vrot.slane %v1303, 7
        %v1413 = vsel %vm1410, %v1411, %v1412
        %v1414 = vrot.slane %v1304, 7
        %v1415 = vsel %vm1410, %v1412, %v1414
        %v1416 = vrot.slane %v1305, 7
        %v1417 = vsel %vm1410, %v1414, %v1416
        %v1418 = vrot.slane %v1306, 7
        %v1419 = vsel %vm1410, %v1416, %v1418
        %v1420 = vrot.slane %v1307, 7
        %v1421 = vsel %vm1410, %v1418, %v1420
        %v1422 = vrot.slane %v1308, 7
        %v1423 = vsel %vm1410, %v1420, %v1422
        %v1424 = vrot.slane %v1309, 7
        %v1425 = vsel %vm1410, %v1422, %v1424
        %v1426 = vrot.slane %v1310, 7
        %v1427 = vsel %vm1410, %v1424, %v1426
        %v1428 = vrot.slane %v1311, 7
        %v1429 = vsel %vm1410, %v1426, %v1428
        %v1430 = vrot.slane %v1312, 7
        %v1431 = vsel %vm1410, %v1428, %v1430
        %v1432 = vrot.slane %v1313, 7
        %v1433 = vsel %vm1410, %v1430, %v1432
        %v1434 = vrot.slane %v1314, 7
        %v1435 = vsel %vm1410, %v1432, %v1434
        %v1436 = vrot.slane %v1315, 7
        %v1437 = vsel %vm1410, %v1434, %v1436
        %v1438 = vrot.slane %v1316, 7
        %v1439 = vsel %vm1410, %v1436, %v1438
        %v1440 = vrot.slane %v1317, 7
        %v1441 = vsel %vm1410, %v1438, %v1440
        %v1442 = vrot.slane %v1318, 7
        %v1443 = vsel %vm1410, %v1440, %v1442
        %v1444 = vrot.slane %v1319, 7
        %v1445 = vsel %vm1410, %v1442, %v1444
        %v1446 = vrot.slane %v1320, 7
        %v1447 = vsel %vm1410, %v1444, %v1446
        %v1448 = vrot.slane %v1321, 7
        %v1449 = vsel %vm1410, %v1446, %v1448
        %v1450 = vrot.slane %v1322, 7
        %v1451 = vsel %vm1410, %v1448, %v1450
        %v1452 = vrot.slane %v1323, 7
        %v1453 = vsel %vm1410, %v1450, %v1452
        %v1454 = vrot.slane %v1324, 7
        %v1455 = vsel %vm1410, %v1452, %v1454
        %v1456 = vrot.slane %v1325, 7
        %v1457 = vsel %vm1410, %v1454, %v1456
        %v1458 = vrot.slane %v1326, 7
        %v1459 = vsel %vm1410, %v1456, %v1458
        %v1460 = vrot.slane %v1327, 7
        %v1461 = vsel %vm1410, %v1458, %v1460
        %v1462 = vrot.slane %v1328, 7
        %v1463 = vsel %vm1410, %v1460, %v1462
        %v1464 = vrot.slane %v1329, 7
        %v1465 = vsel %vm1410, %v1462, %v1464
        %v1466 = vrot.slane %v1330, 7
        %v1467 = vsel %vm1410, %v1464, %v1466
        %v1468 = vrot.slane %v1331, 7
        %v1469 = vsel %vm1410, %v1466, %v1468
        %v1470 = vrot.slane %v1332, 7
        %v1471 = vsel %vm1410, %v1468, %v1470
        %v1472 = vrot.slane %v1333, 7
        %v1473 = vsel %vm1410, %v1470, %v1472
        %v1474 = vrot.slane %v1334, 7
        %v1475 = vsel %vm1410, %v1472, %v1474
        %v1476 = vrot.slane %v1335, 7
        %v1477 = vsel %vm1410, %v1474, %v1476
        %v1478 = vrot.slane %v1336, 7
        %v1479 = vsel %vm1410, %v1476, %v1478
        %v1480 = vrot.slane %v1337, 7
        %v1481 = vsel %vm1410, %v1478, %v1480
        %v1482 = vrot.slane %v1338, 7
        %v1483 = vsel %vm1410, %v1480, %v1482
        %v1484 = vrot.slane %v1339, 7
        %v1485 = vsel %vm1410, %v1482, %v1484
        %v1486 = vrot.slane %v1340, 7
        %v1487 = vsel %vm1410, %v1484, %v1486
        %v1488 = vrot.slane %v1341, 7
        %v1489 = vsel %vm1410, %v1486, %v1488
        %v1490 = vrot.slane %v1342, 7
        %v1491 = vsel %vm1410, %v1488, %v1490
        %v1492 = vrot.slane %v1343, 7
        %v1493 = vsel %vm1410, %v1490, %v1492
        %v1494 = vrot.slane %v1344, 7
        %v1495 = vsel %vm1410, %v1492, %v1494
        %v1496 = vrot.slane %v1345, 7
        %v1497 = vsel %vm1410, %v1494, %v1496
        %v1498 = vrot.slane %v1346, 7
        %v1499 = vsel %vm1410, %v1496, %v1498
        %v1500 = vrot.slane %v1347, 7
        %v1501 = vsel %vm1410, %v1498, %v1500
        %v1502 = vrot.slane %v1348, 7
        %v1503 = vsel %vm1410, %v1500, %v1502
        %v1504 = vrot.slane %v1349, 7
        %v1505 = vsel %vm1410, %v1502, %v1504
        %v1506 = vrot.slane %v1350, 7
        %v1507 = vsel %vm1410, %v1504, %v1506
        %v1508 = vrot.slane %v1351, 7
        %v1509 = vsel %vm1410, %v1506, %v1508
        %v1510 = vrot.slane %v1352, 7
        %v1511 = vsel %vm1410, %v1508, %v1510
        %v1512 = vrot.slane %v1353, 7
        %v1513 = vsel %vm1410, %v1510, %v1512
        %v1514 = vrot.slane %v1354, 7
        %v1515 = vsel %vm1410, %v1512, %v1514
        %v1516 = vrot.slane %v1355, 7
        %v1517 = vsel %vm1410, %v1514, %v1516
        %v1572 = vsel %vm1410, 0.0, %v1411
        %vm1573 = vcmask 1046528
        %v1574 = vrot.slane %v1302, 1
        %v1575 = vrot.slane %v1303, 1
        %v1576 = vsel %vm1573, %v1574, %v1575
        %v1577 = vrot.slane %v1304, 1
        %v1578 = vsel %vm1573, %v1575, %v1577
        %v1579 = vrot.slane %v1305, 1
        %v1580 = vsel %vm1573, %v1577, %v1579
        %v1581 = vrot.slane %v1306, 1
        %v1582 = vsel %vm1573, %v1579, %v1581
        %v1583 = vrot.slane %v1307, 1
        %v1584 = vsel %vm1573, %v1581, %v1583
        %v1585 = vrot.slane %v1308, 1
        %v1586 = vsel %vm1573, %v1583, %v1585
        %v1587 = vrot.slane %v1309, 1
        %v1588 = vsel %vm1573, %v1585, %v1587
        %v1589 = vrot.slane %v1310, 1
        %v1590 = vsel %vm1573, %v1587, %v1589
        %v1591 = vrot.slane %v1311, 1
        %v1592 = vsel %vm1573, %v1589, %v1591
        %v1593 = vrot.slane %v1312, 1
        %v1594 = vsel %vm1573, %v1591, %v1593
        %v1595 = vrot.slane %v1313, 1
        %v1596 = vsel %vm1573, %v1593, %v1595
        %v1597 = vrot.slane %v1314, 1
        %v1598 = vsel %vm1573, %v1595, %v1597
        %v1599 = vrot.slane %v1315, 1
        %v1600 = vsel %vm1573, %v1597, %v1599
        %v1601 = vrot.slane %v1316, 1
        %v1602 = vsel %vm1573, %v1599, %v1601
        %v1603 = vrot.slane %v1317, 1
        %v1604 = vsel %vm1573, %v1601, %v1603
        %v1605 = vrot.slane %v1318, 1
        %v1606 = vsel %vm1573, %v1603, %v1605
        %v1607 = vrot.slane %v1319, 1
        %v1608 = vsel %vm1573, %v1605, %v1607
        %v1609 = vrot.slane %v1320, 1
        %v1610 = vsel %vm1573, %v1607, %v1609
        %v1611 = vrot.slane %v1321, 1
        %v1612 = vsel %vm1573, %v1609, %v1611
        %v1613 = vrot.slane %v1322, 1
        %v1614 = vsel %vm1573, %v1611, %v1613
        %v1615 = vrot.slane %v1323, 1
        %v1616 = vsel %vm1573, %v1613, %v1615
        %v1617 = vrot.slane %v1324, 1
        %v1618 = vsel %vm1573, %v1615, %v1617
        %v1619 = vrot.slane %v1325, 1
        %v1620 = vsel %vm1573, %v1617, %v1619
        %v1621 = vrot.slane %v1326, 1
        %v1622 = vsel %vm1573, %v1619, %v1621
        %v1623 = vrot.slane %v1327, 1
        %v1624 = vsel %vm1573, %v1621, %v1623
        %v1625 = vrot.slane %v1328, 1
        %v1626 = vsel %vm1573, %v1623, %v1625
        %v1627 = vrot.slane %v1329, 1
        %v1628 = vsel %vm1573, %v1625, %v1627
        %v1629 = vrot.slane %v1330, 1
        %v1630 = vsel %vm1573, %v1627, %v1629
        %v1631 = vrot.slane %v1331, 1
        %v1632 = vsel %vm1573, %v1629, %v1631
        %v1633 = vrot.slane %v1332, 1
        %v1634 = vsel %vm1573, %v1631, %v1633
        %v1635 = vrot.slane %v1333, 1
        %v1636 = vsel %vm1573, %v1633, %v1635
        %v1637 = vrot.slane %v1334, 1
        %v1638 = vsel %vm1573, %v1635, %v1637
        %v1639 = vrot.slane %v1335, 1
        %v1640 = vsel %vm1573, %v1637, %v1639
        %v1641 = vrot.slane %v1336, 1
        %v1642 = vsel %vm1573, %v1639, %v1641
        %v1643 = vrot.slane %v1337, 1
        %v1644 = vsel %vm1573, %v1641, %v1643
        %v1645 = vrot.slane %v1338, 1
        %v1646 = vsel %vm1573, %v1643, %v1645
        %v1647 = vrot.slane %v1339, 1
        %v1648 = vsel %vm1573, %v1645, %v1647
        %v1649 = vrot.slane %v1340, 1
        %v1650 = vsel %vm1573, %v1647, %v1649
        %v1651 = vrot.slane %v1341, 1
        %v1652 = vsel %vm1573, %v1649, %v1651
        %v1653 = vrot.slane %v1342, 1
        %v1654 = vsel %vm1573, %v1651, %v1653
        %v1655 = vrot.slane %v1343, 1
        %v1656 = vsel %vm1573, %v1653, %v1655
        %v1657 = vrot.slane %v1344, 1
        %v1658 = vsel %vm1573, %v1655, %v1657
        %v1659 = vrot.slane %v1345, 1
        %v1660 = vsel %vm1573, %v1657, %v1659
        %v1661 = vrot.slane %v1346, 1
        %v1662 = vsel %vm1573, %v1659, %v1661
        %v1663 = vrot.slane %v1347, 1
        %v1664 = vsel %vm1573, %v1661, %v1663
        %v1665 = vrot.slane %v1348, 1
        %v1666 = vsel %vm1573, %v1663, %v1665
        %v1667 = vrot.slane %v1349, 1
        %v1668 = vsel %vm1573, %v1665, %v1667
        %v1669 = vrot.slane %v1350, 1
        %v1670 = vsel %vm1573, %v1667, %v1669
        %v1671 = vrot.slane %v1351, 1
        %v1672 = vsel %vm1573, %v1669, %v1671
        %v1673 = vrot.slane %v1352, 1
        %v1674 = vsel %vm1573, %v1671, %v1673
        %v1675 = vrot.slane %v1353, 1
        %v1676 = vsel %vm1573, %v1673, %v1675
        %v1677 = vrot.slane %v1354, 1
        %v1678 = vsel %vm1573, %v1675, %v1677
        %v1679 = vrot.slane %v1355, 1
        %v1680 = vsel %vm1573, %v1677, %v1679
        %v1735 = vsel %vm1573, %v1679, 0.0
        %v1736 = vld [vmem:[#allocation5] sm:$0xff]
        %v1737 = vld [vmem:[#allocation5 + $0x8] sm:$0xff]
        %v1738 = vld [vmem:[#allocation5 + $0x10] sm:$0xff]
        %v1739 = vld [vmem:[#allocation5 + $0x18] sm:$0xff]
        %v1740 = vld [vmem:[#allocation5 + $0x20] sm:$0xff]
        %v1741 = vld [vmem:[#allocation5 + $0x28] sm:$0xff]
        %v1742 = vld [vmem:[#allocation5 + $0x30] sm:$0xff]
        %v1743 = vld [vmem:[#allocation5 + $0x38] sm:$0xff]
        %v1744 = vld [vmem:[#allocation5 + $0x40] sm:$0xff]
        %v1745 = vld [vmem:[#allocation5 + $0x48] sm:$0xff]
        %v1746 = vld [vmem:[#allocation5 + $0x50] sm:$0xff]
        %v1747 = vld [vmem:[#allocation5 + $0x58] sm:$0xff]
        %v1748 = vld [vmem:[#allocation5 + $0x60] sm:$0xff]
        %v1749 = vld [vmem:[#allocation5 + $0x68] sm:$0xff]
        %v1750 = vld [vmem:[#allocation5 + $0x70] sm:$0xff]
        %v1751 = vld [vmem:[#allocation5 + $0x78] sm:$0xff]
        %v1752 = vld [vmem:[#allocation5 + $0x80] sm:$0xff]
        %v1753 = vld [vmem:[#allocation5 + $0x88] sm:$0xff]
        %v1754 = vld [vmem:[#allocation5 + $0x90] sm:$0xff]
        %v1755 = vld [vmem:[#allocation5 + $0x98] sm:$0xff]
        %v1756 = vld [vmem:[#allocation5 + $0xa0] sm:$0xff]
        %v1757 = vld [vmem:[#allocation5 + $0xa8] sm:$0xff]
        %v1758 = vld [vmem:[#allocation5 + $0xb0] sm:$0xff]
        %v1759 = vld [vmem:[#allocation5 + $0xb8] sm:$0xff]
        %v1760 = vld [vmem:[#allocation5 + $0xc0] sm:$0xff]
        %v1761 = vld [vmem:[#allocation5 + $0xc8] sm:$0xff]
        %v1762 = vld [vmem:[#allocation5 + $0xd0] sm:$0xff]
        %v1763 = vld [vmem:[#allocation5 + $0xd8] sm:$0xff]
        %v1764 = vld [vmem:[#allocation5 + $0xe0] sm:$0xff]
        %v1765 = vld [vmem:[#allocation5 + $0xe8] sm:$0xff]
        %v1766 = vld [vmem:[#allocation5 + $0xf0] sm:$0xff]
        %v1767 = vld [vmem:[#allocation5 + $0xf8] sm:$0xff]
        %v1768 = vld [vmem:[#allocation5 + $0x100] sm:$0xff]
        %v1769 = vld [vmem:[#allocation5 + $0x108] sm:$0xff]
        %v1770 = vld [vmem:[#allocation5 + $0x110] sm:$0xff]
        %v1771 = vld [vmem:[#allocation5 + $0x118] sm:$0xff]
        %v1772 = vld [vmem:[#allocation5 + $0x120] sm:$0xff]
        %v1773 = vld [vmem:[#allocation5 + $0x128] sm:$0xff]
        %v1774 = vld [vmem:[#allocation5 + $0x130] sm:$0xff]
        %v1775 = vld [vmem:[#allocation5 + $0x138] sm:$0xff]
        %v1776 = vld [vmem:[#allocation5 + $0x140] sm:$0xff]
        %v1777 = vld [vmem:[#allocation5 + $0x148] sm:$0xff]
        %v1778 = vld [vmem:[#allocation5 + $0x150] sm:$0xff]
        %v1779 = vld [vmem:[#allocation5 + $0x158] sm:$0xff]
        %v1780 = vld [vmem:[#allocation5 + $0x160] sm:$0xff]
        %v1781 = vld [vmem:[#allocation5 + $0x168] sm:$0xff]
        %v1782 = vld [vmem:[#allocation5 + $0x170] sm:$0xff]
        %v1783 = vld [vmem:[#allocation5 + $0x178] sm:$0xff]
        %s1784 = scalar_lea.vmem [#allocation5], 384
        %v1785 = vld [vmem:[%s1784] sm:$0xff]
        %v1786 = vld [vmem:[%s1784 + $0x8] sm:$0xff]
        %v1787 = vld [vmem:[%s1784 + $0x10] sm:$0xff]
        %v1788 = vld [vmem:[%s1784 + $0x18] sm:$0xff]
        %v1789 = vld [vmem:[%s1784 + $0x20] sm:$0xff]
        %v1790 = vld [vmem:[%s1784 + $0x28] sm:$0xff]
        %v1791 = vld [vmem:[%s1784 + $0x30] sm:$0xff]
        %v1792 = vld [vmem:[%s1784 + $0x38] sm:$0xff]
        %v1793 = vld [vmem:[%s1784 + $0x40] sm:$0xff]
        %v1794 = vld [vmem:[%s1784 + $0x48] sm:$0xff]
        %v1795 = vld [vmem:[%s1784 + $0x50] sm:$0xff]
        %v1796 = vld [vmem:[%s1784 + $0x58] sm:$0xff]
        %v1797 = vld [vmem:[%s1784 + $0x60] sm:$0xff]
        %v1798 = vld [vmem:[%s1784 + $0x68] sm:$0xff]
        %v1799 = vld [vmem:[%s1784 + $0x70] sm:$0xff]
        %v1800 = vld [vmem:[%s1784 + $0x78] sm:$0xff]
        %v1801 = vld [vmem:[%s1784 + $0x80] sm:$0xff]
        %v1802 = vld [vmem:[%s1784 + $0x88] sm:$0xff]
        %v1803 = vld [vmem:[%s1784 + $0x90] sm:$0xff]
        %v1804 = vld [vmem:[%s1784 + $0x98] sm:$0xff]
        %v1805 = vld [vmem:[%s1784 + $0xa0] sm:$0xff]
        %v1806 = vld [vmem:[%s1784 + $0xa8] sm:$0xff]
        %v1807 = vld [vmem:[%s1784 + $0xb0] sm:$0xff]
        %v1808 = vld [vmem:[%s1784 + $0xb8] sm:$0xff]
        %v1809 = vld [vmem:[%s1784 + $0xc0] sm:$0xff]
        %v1810 = vld [vmem:[%s1784 + $0xc8] sm:$0xff]
        %v1811 = vld [vmem:[%s1784 + $0xd0] sm:$0xff]
        %v1812 = vld [vmem:[%s1784 + $0xd8] sm:$0xff]
        %v1813 = vld [vmem:[%s1784 + $0xe0] sm:$0xff]
        %v1814 = vld [vmem:[%s1784 + $0xe8] sm:$0xff]
        %v1815 = vld [vmem:[%s1784 + $0xf0] sm:$0xff]
        %v1816 = vld [vmem:[%s1784 + $0xf8] sm:$0xff]
        %v1817 = vld [vmem:[%s1784 + $0x100] sm:$0xff]
        %v1818 = vld [vmem:[%s1784 + $0x108] sm:$0xff]
        %v1819 = vld [vmem:[%s1784 + $0x110] sm:$0xff]
        %v1820 = vld [vmem:[%s1784 + $0x118] sm:$0xff]
        %v1821 = vld [vmem:[%s1784 + $0x120] sm:$0xff]
        %v1822 = vld [vmem:[%s1784 + $0x128] sm:$0xff]
        %v1823 = vld [vmem:[%s1784 + $0x130] sm:$0xff]
        %v1824 = vld [vmem:[%s1784 + $0x138] sm:$0xff]
        %v1825 = vld [vmem:[%s1784 + $0x140] sm:$0xff]
        %v1826 = vld [vmem:[%s1784 + $0x148] sm:$0xff]
        %v1827 = vld [vmem:[%s1784 + $0x150] sm:$0xff]
        %v1828 = vld [vmem:[%s1784 + $0x158] sm:$0xff]
        %v1829 = vld [vmem:[%s1784 + $0x160] sm:$0xff]
        %v1830 = vld [vmem:[%s1784 + $0x168] sm:$0xff]
        %v1831 = vld [vmem:[%s1784 + $0x170] sm:$0xff]
        %v1832 = vld [vmem:[%s1784 + $0x178] sm:$0xff]
        %1833 = vmatprep.subr.mxu0 0.0
        %1834 = vmatpush1.msra.mxu0 %v1800
        %1835 = vmatprep.subr.mxu0 0.0
        %1836 = vmatpush1.msra.mxu0 %v1799
        %1837 = vmatprep.subr.mxu0 0.0
        %1838 = vmatpush1.msra.mxu0 %v1798
        %1839 = vmatprep.subr.mxu0 0.0
        %1840 = vmatpush1.msra.mxu0 %v1797
        %1841 = vmatprep.subr.mxu0 0.0
        %1842 = vmatpush1.msra.mxu0 %v1796
        %1843 = vmatprep.subr.mxu0 0.0
        %1844 = vmatpush1.msra.mxu0 %v1795
        %1845 = vmatprep.subr.mxu0 0.0
        %1846 = vmatpush1.msra.mxu0 %v1794
        %1847 = vmatprep.subr.mxu0 0.0
        %1848 = vmatpush1.msra.mxu0 %v1793
        %1849 = vmatprep.subr.mxu0 0.0
        %1850 = vmatpush1.msra.mxu0 %v1792
        %1851 = vmatprep.subr.mxu0 0.0
        %1852 = vmatpush1.msra.mxu0 %v1791
        %1853 = vmatprep.subr.mxu0 0.0
        %1854 = vmatpush1.msra.mxu0 %v1790
        %1855 = vmatprep.subr.mxu0 0.0
        %1856 = vmatpush1.msra.mxu0 %v1789
        %1857 = vmatprep.subr.mxu0 0.0
        %1858 = vmatpush1.msra.mxu0 %v1788
        %1859 = vmatprep.subr.mxu0 0.0
        %1860 = vmatpush1.msra.mxu0 %v1787
        %1861 = vmatprep.subr.mxu0 0.0
        %1862 = vmatpush1.msra.mxu0 %v1786
        %1863 = vmatprep.subr.mxu0 0.0
        %1864 = vmatpush1.msra.mxu0 %v1785
        %1865 = vmatprep.subr.mxu0 0.0
        %1866 = vmatpush2.msra.mxu0 %v1816
        %1867 = vmatprep.subr.mxu0 0.0
        %1868 = vmatpush2.msra.mxu0 %v1815
        %1869 = vmatprep.subr.mxu0 0.0
        %1870 = vmatpush2.msra.mxu0 %v1814
        %1871 = vmatprep.subr.mxu0 0.0
        %1872 = vmatpush2.msra.mxu0 %v1813
        %1873 = vmatprep.subr.mxu0 0.0
        %1874 = vmatpush2.msra.mxu0 %v1812
        %1875 = vmatprep.subr.mxu0 0.0
        %1876 = vmatpush2.msra.mxu0 %v1811
        %1877 = vmatprep.subr.mxu0 0.0
        %1878 = vmatpush2.msra.mxu0 %v1810
        %1879 = vmatprep.subr.mxu0 0.0
        %1880 = vmatpush2.msra.mxu0 %v1809
        %1881 = vmatprep.subr.mxu0 0.0
        %1882 = vmatpush2.msra.mxu0 %v1808
        %1883 = vmatprep.subr.mxu0 0.0
        %1884 = vmatpush2.msra.mxu0 %v1807
        %1885 = vmatprep.subr.mxu0 0.0
        %1886 = vmatpush2.msra.mxu0 %v1806
        %1887 = vmatprep.subr.mxu0 0.0
        %1888 = vmatpush2.msra.mxu0 %v1805
        %1889 = vmatprep.subr.mxu0 0.0
        %1890 = vmatpush2.msra.mxu0 %v1804
        %1891 = vmatprep.subr.mxu0 0.0
        %1892 = vmatpush2.msra.mxu0 %v1803
        %1893 = vmatprep.subr.mxu0 0.0
        %1894 = vmatpush2.msra.mxu0 %v1802
        %1895 = vmatprep.subr.mxu0 0.0
        %1896 = vmatpush2.msra.mxu0 %v1801
        %1897 = vmatprep.mubr.f32.mxu0 %v1305
        %1898 = vmatmul.mubr.f32.gmra.mxu0 %v1417
        %v1899 = vpop.f32.mrf.mxu0
        %v1900 = vadd.f32 0.0, %v1899
        %v1901 = vpop.f32.mrf.mxu0
        %1902 = vmatprep.mubr.f32.mxu0 %v1306
        %1903 = vmatmul.mubr.f32.gmra.mxu0 %v1419
        %v1904 = vpop.f32.mrf.mxu0
        %v1905 = vadd.f32 0.0, %v1904
        %v1906 = vpop.f32.mrf.mxu0
        %1907 = vmatprep.mubr.f32.mxu0 %v1307
        %1908 = vmatmul.mubr.f32.gmra.mxu0 %v1421
        %v1909 = vpop.f32.mrf.mxu0
        %v1910 = vadd.f32 0.0, %v1909
        %v1911 = vpop.f32.mrf.mxu0
        %1912 = vmatprep.mubr.f32.mxu0 %v1308
        %1913 = vmatmul.mubr.f32.gmra.mxu0 %v1423
        %v1914 = vpop.f32.mrf.mxu0
        %v1915 = vadd.f32 0.0, %v1914
        %v1916 = vpop.f32.mrf.mxu0
        %1917 = vmatprep.mubr.f32.mxu0 %v1309
        %1918 = vmatmul.mubr.f32.gmra.mxu0 %v1425
        %v1919 = vpop.f32.mrf.mxu0
        %v1920 = vadd.f32 0.0, %v1919
        %v1921 = vpop.f32.mrf.mxu0
        %1922 = vmatprep.mubr.f32.mxu0 %v1310
        %1923 = vmatmul.mubr.f32.gmra.mxu0 %v1427
        %v1924 = vpop.f32.mrf.mxu0
        %v1925 = vadd.f32 0.0, %v1924
        %v1926 = vpop.f32.mrf.mxu0
        %1927 = vmatprep.mubr.f32.mxu0 %v1311
        %1928 = vmatmul.mubr.f32.gmra.mxu0 %v1429
        %v1929 = vpop.f32.mrf.mxu0
        %v1930 = vadd.f32 0.0, %v1929
        %v1931 = vpop.f32.mrf.mxu0
        %1932 = vmatprep.mubr.f32.mxu0 %v1312
        %1933 = vmatmul.mubr.f32.gmra.mxu0 %v1431
        %v1934 = vpop.f32.mrf.mxu0
        %v1935 = vadd.f32 0.0, %v1934
        %v1936 = vpop.f32.mrf.mxu0
        %1937 = vmatprep.mubr.f32.mxu0 %v1313
        %1938 = vmatmul.mubr.f32.gmra.mxu0 %v1433
        %v1939 = vpop.f32.mrf.mxu0
        %v1940 = vadd.f32 0.0, %v1939
        %v1941 = vpop.f32.mrf.mxu0
        %1942 = vmatprep.mubr.f32.mxu0 %v1314
        %1943 = vmatmul.mubr.f32.gmra.mxu0 %v1435
        %v1944 = vpop.f32.mrf.mxu0
        %v1945 = vadd.f32 0.0, %v1944
        %v1946 = vpop.f32.mrf.mxu0
        %1947 = vmatprep.mubr.f32.mxu0 %v1315
        %1948 = vmatmul.mubr.f32.gmra.mxu0 %v1437
        %v1949 = vpop.f32.mrf.mxu0
        %v1950 = vadd.f32 0.0, %v1949
        %v1951 = vpop.f32.mrf.mxu0
        %1952 = vmatprep.mubr.f32.mxu0 %v1316
        %1953 = vmatmul.mubr.f32.gmra.mxu0 %v1439
        %v1954 = vpop.f32.mrf.mxu0
        %v1955 = vadd.f32 0.0, %v1954
        %v1956 = vpop.f32.mrf.mxu0
        %1957 = vmatprep.mubr.f32.mxu0 %v1317
        %1958 = vmatmul.mubr.f32.gmra.mxu0 %v1441
        %v1959 = vpop.f32.mrf.mxu0
        %v1960 = vadd.f32 0.0, %v1959
        %v1961 = vpop.f32.mrf.mxu0
        %1962 = vmatprep.mubr.f32.mxu0 %v1318
        %1963 = vmatmul.mubr.f32.gmra.mxu0 %v1443
        %v1964 = vpop.f32.mrf.mxu0
        %v1965 = vadd.f32 0.0, %v1964
        %v1966 = vpop.f32.mrf.mxu0
        %1967 = vmatprep.mubr.f32.mxu0 %v1319
        %1968 = vmatmul.mubr.f32.gmra.mxu0 %v1445
        %v1969 = vpop.f32.mrf.mxu0
        %v1970 = vadd.f32 0.0, %v1969
        %v1971 = vpop.f32.mrf.mxu0
        %1972 = vmatprep.mubr.f32.mxu0 %v1320
        %1973 = vmatmul.mubr.f32.gmra.mxu0 %v1447
        %v1974 = vpop.f32.mrf.mxu0
        %v1975 = vadd.f32 0.0, %v1974
        %v1976 = vpop.f32.mrf.mxu0
        %1977 = vmatprep.mubr.f32.mxu0 %v1321
        %1978 = vmatmul.mubr.f32.gmra.mxu0 %v1449
        %v1979 = vpop.f32.mrf.mxu0
        %v1980 = vadd.f32 0.0, %v1979
        %v1981 = vpop.f32.mrf.mxu0
        %1982 = vmatprep.mubr.f32.mxu0 %v1322
        %1983 = vmatmul.mubr.f32.gmra.mxu0 %v1451
        %v1984 = vpop.f32.mrf.mxu0
        %v1985 = vadd.f32 0.0, %v1984
        %v1986 = vpop.f32.mrf.mxu0
        %1987 = vmatprep.mubr.f32.mxu0 %v1323
        %1988 = vmatmul.mubr.f32.gmra.mxu0 %v1453
        %v1989 = vpop.f32.mrf.mxu0
        %v1990 = vadd.f32 0.0, %v1989
        %v1991 = vpop.f32.mrf.mxu0
        %1992 = vmatprep.mubr.f32.mxu0 %v1324
        %1993 = vmatmul.mubr.f32.gmra.mxu0 %v1455
        %v1994 = vpop.f32.mrf.mxu0
        %v1995 = vadd.f32 0.0, %v1994
        %v1996 = vpop.f32.mrf.mxu0
        %1997 = vmatprep.mubr.f32.mxu0 %v1325
        %1998 = vmatmul.mubr.f32.gmra.mxu0 %v1457
        %v1999 = vpop.f32.mrf.mxu0
        %v2000 = vadd.f32 0.0, %v1999
        %v2001 = vpop.f32.mrf.mxu0
        %2002 = vmatprep.mubr.f32.mxu0 %v1326
        %2003 = vmatmul.mubr.f32.gmra.mxu0 %v1459
        %v2004 = vpop.f32.mrf.mxu0
        %v2005 = vadd.f32 0.0, %v2004
        %v2006 = vpop.f32.mrf.mxu0
        %2007 = vmatprep.mubr.f32.mxu0 %v1327
        %2008 = vmatmul.mubr.f32.gmra.mxu0 %v1461
        %v2009 = vpop.f32.mrf.mxu0
        %v2010 = vadd.f32 0.0, %v2009
        %v2011 = vpop.f32.mrf.mxu0
        %2012 = vmatprep.mubr.f32.mxu0 %v1328
        %2013 = vmatmul.mubr.f32.gmra.mxu0 %v1463
        %v2014 = vpop.f32.mrf.mxu0
        %v2015 = vadd.f32 0.0, %v2014
        %v2016 = vpop.f32.mrf.mxu0
        %2017 = vmatprep.mubr.f32.mxu0 %v1329
        %2018 = vmatmul.mubr.f32.gmra.mxu0 %v1465
        %v2019 = vpop.f32.mrf.mxu0
        %v2020 = vadd.f32 0.0, %v2019
        %v2021 = vpop.f32.mrf.mxu0
        %2022 = vmatprep.mubr.f32.mxu0 %v1330
        %2023 = vmatmul.mubr.f32.gmra.mxu0 %v1467
        %v2024 = vpop.f32.mrf.mxu0
        %v2025 = vadd.f32 0.0, %v2024
        %v2026 = vpop.f32.mrf.mxu0
        %2027 = vmatprep.mubr.f32.mxu0 %v1331
        %2028 = vmatmul.mubr.f32.gmra.mxu0 %v1469
        %v2029 = vpop.f32.mrf.mxu0
        %v2030 = vadd.f32 0.0, %v2029
        %v2031 = vpop.f32.mrf.mxu0
        %2032 = vmatprep.mubr.f32.mxu0 %v1332
        %2033 = vmatmul.mubr.f32.gmra.mxu0 %v1471
        %v2034 = vpop.f32.mrf.mxu0
        %v2035 = vadd.f32 0.0, %v2034
        %v2036 = vpop.f32.mrf.mxu0
        %2037 = vmatprep.mubr.f32.mxu0 %v1333
        %2038 = vmatmul.mubr.f32.gmra.mxu0 %v1473
        %v2039 = vpop.f32.mrf.mxu0
        %v2040 = vadd.f32 0.0, %v2039
        %v2041 = vpop.f32.mrf.mxu0
        %2042 = vmatprep.mubr.f32.mxu0 %v1334
        %2043 = vmatmul.mubr.f32.gmra.mxu0 %v1475
        %v2044 = vpop.f32.mrf.mxu0
        %v2045 = vadd.f32 0.0, %v2044
        %v2046 = vpop.f32.mrf.mxu0
        %2047 = vmatprep.mubr.f32.mxu0 %v1335
        %2048 = vmatmul.mubr.f32.gmra.mxu0 %v1477
        %v2049 = vpop.f32.mrf.mxu0
        %v2050 = vadd.f32 0.0, %v2049
        %v2051 = vpop.f32.mrf.mxu0
        %2052 = vmatprep.mubr.f32.mxu0 %v1336
        %2053 = vmatmul.mubr.f32.gmra.mxu0 %v1479
        %v2054 = vpop.f32.mrf.mxu0
        %v2055 = vadd.f32 0.0, %v2054
        %v2056 = vpop.f32.mrf.mxu0
        %2057 = vmatprep.mubr.f32.mxu0 %v1337
        %2058 = vmatmul.mubr.f32.gmra.mxu0 %v1481
        %v2059 = vpop.f32.mrf.mxu0
        %v2060 = vadd.f32 0.0, %v2059
        %v2061 = vpop.f32.mrf.mxu0
        %2062 = vmatprep.mubr.f32.mxu0 %v1338
        %2063 = vmatmul.mubr.f32.gmra.mxu0 %v1483
        %v2064 = vpop.f32.mrf.mxu0
        %v2065 = vadd.f32 0.0, %v2064
        %v2066 = vpop.f32.mrf.mxu0
        %2067 = vmatprep.mubr.f32.mxu0 %v1339
        %2068 = vmatmul.mubr.f32.gmra.mxu0 %v1485
        %v2069 = vpop.f32.mrf.mxu0
        %v2070 = vadd.f32 0.0, %v2069
        %v2071 = vpop.f32.mrf.mxu0
        %2072 = vmatprep.mubr.f32.mxu0 %v1340
        %2073 = vmatmul.mubr.f32.gmra.mxu0 %v1487
        %v2074 = vpop.f32.mrf.mxu0
        %v2075 = vadd.f32 0.0, %v2074
        %v2076 = vpop.f32.mrf.mxu0
        %2077 = vmatprep.mubr.f32.mxu0 %v1341
        %2078 = vmatmul.mubr.f32.gmra.mxu0 %v1489
        %v2079 = vpop.f32.mrf.mxu0
        %v2080 = vadd.f32 0.0, %v2079
        %v2081 = vpop.f32.mrf.mxu0
        %2082 = vmatprep.mubr.f32.mxu0 %v1342
        %2083 = vmatmul.mubr.f32.gmra.mxu0 %v1491
        %v2084 = vpop.f32.mrf.mxu0
        %v2085 = vadd.f32 0.0, %v2084
        %v2086 = vpop.f32.mrf.mxu0
        %2087 = vmatprep.mubr.f32.mxu0 %v1343
        %2088 = vmatmul.mubr.f32.gmra.mxu0 %v1493
        %v2089 = vpop.f32.mrf.mxu0
        %v2090 = vadd.f32 0.0, %v2089
        %v2091 = vpop.f32.mrf.mxu0
        %2092 = vmatprep.mubr.f32.mxu0 %v1344
        %2093 = vmatmul.mubr.f32.gmra.mxu0 %v1495
        %v2094 = vpop.f32.mrf.mxu0
        %v2095 = vadd.f32 0.0, %v2094
        %v2096 = vpop.f32.mrf.mxu0
        %2097 = vmatprep.mubr.f32.mxu0 %v1345
        %2098 = vmatmul.mubr.f32.gmra.mxu0 %v1497
        %v2099 = vpop.f32.mrf.mxu0
        %v2100 = vadd.f32 0.0, %v2099
        %v2101 = vpop.f32.mrf.mxu0
        %2102 = vmatprep.mubr.f32.mxu0 %v1346
        %2103 = vmatmul.mubr.f32.gmra.mxu0 %v1499
        %v2104 = vpop.f32.mrf.mxu0
        %v2105 = vadd.f32 0.0, %v2104
        %v2106 = vpop.f32.mrf.mxu0
        %2107 = vmatprep.mubr.f32.mxu0 %v1347
        %2108 = vmatmul.mubr.f32.gmra.mxu0 %v1501
        %v2109 = vpop.f32.mrf.mxu0
        %v2110 = vadd.f32 0.0, %v2109
        %v2111 = vpop.f32.mrf.mxu0
        %2112 = vmatprep.mubr.f32.mxu0 %v1348
        %2113 = vmatmul.mubr.f32.gmra.mxu0 %v1503
        %v2114 = vpop.f32.mrf.mxu0
        %v2115 = vadd.f32 0.0, %v2114
        %v2116 = vpop.f32.mrf.mxu0
        %2117 = vmatprep.mubr.f32.mxu0 %v1349
        %2118 = vmatmul.mubr.f32.gmra.mxu0 %v1505
        %v2119 = vpop.f32.mrf.mxu0
        %v2120 = vadd.f32 0.0, %v2119
        %v2121 = vpop.f32.mrf.mxu0
        %2122 = vmatprep.mubr.f32.mxu0 %v1350
        %2123 = vmatmul.mubr.f32.gmra.mxu0 %v1507
        %v2124 = vpop.f32.mrf.mxu0
        %v2125 = vadd.f32 0.0, %v2124
        %v2126 = vpop.f32.mrf.mxu0
        %2127 = vmatprep.mubr.f32.mxu0 %v1351
        %2128 = vmatmul.mubr.f32.gmra.mxu0 %v1509
        %v2129 = vpop.f32.mrf.mxu0
        %v2130 = vadd.f32 0.0, %v2129
        %v2131 = vpop.f32.mrf.mxu0
        %2132 = vmatprep.mubr.f32.mxu0 %v1352
        %2133 = vmatmul.mubr.f32.gmra.mxu0 %v1511
        %v2134 = vpop.f32.mrf.mxu0
        %v2135 = vadd.f32 0.0, %v2134
        %v2136 = vpop.f32.mrf.mxu0
        %2137 = vdwg.mxu0
        %2138 = vmatprep.subr.mxu0 0.0
        %2139 = vmatpush1.msra.mxu0 %v1832
        %2140 = vmatprep.subr.mxu0 0.0
        %2141 = vmatpush1.msra.mxu0 %v1831
        %2142 = vmatprep.subr.mxu0 0.0
        %2143 = vmatpush1.msra.mxu0 %v1830
        %2144 = vmatprep.subr.mxu0 0.0
        %2145 = vmatpush1.msra.mxu0 %v1829
        %2146 = vmatprep.subr.mxu0 0.0
        %2147 = vmatpush1.msra.mxu0 %v1828
        %2148 = vmatprep.subr.mxu0 0.0
        %2149 = vmatpush1.msra.mxu0 %v1827
        %2150 = vmatprep.subr.mxu0 0.0
        %2151 = vmatpush1.msra.mxu0 %v1826
        %2152 = vmatprep.subr.mxu0 0.0
        %2153 = vmatpush1.msra.mxu0 %v1825
        %2154 = vmatprep.subr.mxu0 0.0
        %2155 = vmatpush1.msra.mxu0 %v1824
        %2156 = vmatprep.subr.mxu0 0.0
        %2157 = vmatpush1.msra.mxu0 %v1823
        %2158 = vmatprep.subr.mxu0 0.0
        %2159 = vmatpush1.msra.mxu0 %v1822
        %2160 = vmatprep.subr.mxu0 0.0
        %2161 = vmatpush1.msra.mxu0 %v1821
        %2162 = vmatprep.subr.mxu0 0.0
        %2163 = vmatpush1.msra.mxu0 %v1820
        %2164 = vmatprep.subr.mxu0 0.0
        %2165 = vmatpush1.msra.mxu0 %v1819
        %2166 = vmatprep.subr.mxu0 0.0
        %2167 = vmatpush1.msra.mxu0 %v1818
        %2168 = vmatprep.subr.mxu0 0.0
        %2169 = vmatpush1.msra.mxu0 %v1817
        %2170 = vmatprep.subr.mxu0 0.0
        %2171 = vmatpush2.msra.mxu0 0.0
        %2172 = vmatprep.subr.mxu0 0.0
        %2173 = vmatpush2.msra.mxu0 0.0
        %2174 = vmatprep.subr.mxu0 0.0
        %2175 = vmatpush2.msra.mxu0 0.0
        %2176 = vmatprep.subr.mxu0 0.0
        %2177 = vmatpush2.msra.mxu0 0.0
        %2178 = vmatprep.subr.mxu0 0.0
        %2179 = vmatpush2.msra.mxu0 0.0
        %2180 = vmatprep.subr.mxu0 0.0
        %2181 = vmatpush2.msra.mxu0 0.0
        %2182 = vmatprep.subr.mxu0 0.0
        %2183 = vmatpush2.msra.mxu0 0.0
        %2184 = vmatprep.subr.mxu0 0.0
        %2185 = vmatpush2.msra.mxu0 0.0
        %2186 = vmatprep.subr.mxu0 0.0
        %2187 = vmatpush2.msra.mxu0 0.0
        %2188 = vmatprep.subr.mxu0 0.0
        %2189 = vmatpush2.msra.mxu0 0.0
        %2190 = vmatprep.subr.mxu0 0.0
        %2191 = vmatpush2.msra.mxu0 0.0
        %2192 = vmatprep.subr.mxu0 0.0
        %2193 = vmatpush2.msra.mxu0 0.0
        %2194 = vmatprep.subr.mxu0 0.0
        %2195 = vmatpush2.msra.mxu0 0.0
        %2196 = vmatprep.subr.mxu0 0.0
        %2197 = vmatpush2.msra.mxu0 0.0
        %2198 = vmatprep.subr.mxu0 0.0
        %2199 = vmatpush2.msra.mxu0 0.0
        %2200 = vmatprep.subr.mxu0 0.0
        %2201 = vmatpush2.msra.mxu0 0.0
        %2202 = vmatprep.mubr.f32.mxu0 0.0
        %2203 = vmatmul.mubr.f32.gmra.mxu0 %v1582
        %v2204 = vpop.f32.mrf.mxu0
        %v2205 = vadd.f32 %v1900, %v2204
        %v2206 = vpop.f32.mrf.mxu0
        %2207 = vmatprep.mubr.f32.mxu0 0.0
        %2208 = vmatmul.mubr.f32.gmra.mxu0 %v1584
        %v2209 = vpop.f32.mrf.mxu0
        %v2210 = vadd.f32 %v1905, %v2209
        %v2211 = vpop.f32.mrf.mxu0
        %2212 = vmatprep.mubr.f32.mxu0 0.0
        %2213 = vmatmul.mubr.f32.gmra.mxu0 %v1586
        %v2214 = vpop.f32.mrf.mxu0
        %v2215 = vadd.f32 %v1910, %v2214
        %v2216 = vpop.f32.mrf.mxu0
        %2217 = vmatprep.mubr.f32.mxu0 0.0
        %2218 = vmatmul.mubr.f32.gmra.mxu0 %v1588
        %v2219 = vpop.f32.mrf.mxu0
        %v2220 = vadd.f32 %v1915, %v2219
        %v2221 = vpop.f32.mrf.mxu0
        %2222 = vmatprep.mubr.f32.mxu0 0.0
        %2223 = vmatmul.mubr.f32.gmra.mxu0 %v1590
        %v2224 = vpop.f32.mrf.mxu0
        %v2225 = vadd.f32 %v1920, %v2224
        %v2226 = vpop.f32.mrf.mxu0
        %2227 = vmatprep.mubr.f32.mxu0 0.0
        %2228 = vmatmul.mubr.f32.gmra.mxu0 %v1592
        %v2229 = vpop.f32.mrf.mxu0
        %v2230 = vadd.f32 %v1925, %v2229
        %v2231 = vpop.f32.mrf.mxu0
        %2232 = vmatprep.mubr.f32.mxu0 0.0
        %2233 = vmatmul.mubr.f32.gmra.mxu0 %v1594
        %v2234 = vpop.f32.mrf.mxu0
        %v2235 = vadd.f32 %v1930, %v2234
        %v2236 = vpop.f32.mrf.mxu0
        %2237 = vmatprep.mubr.f32.mxu0 0.0
        %2238 = vmatmul.mubr.f32.gmra.mxu0 %v1596
        %v2239 = vpop.f32.mrf.mxu0
        %v2240 = vadd.f32 %v1935, %v2239
        %v2241 = vpop.f32.mrf.mxu0
        %2242 = vmatprep.mubr.f32.mxu0 0.0
        %2243 = vmatmul.mubr.f32.gmra.mxu0 %v1598
        %v2244 = vpop.f32.mrf.mxu0
        %v2245 = vadd.f32 %v1940, %v2244
        %v2246 = vpop.f32.mrf.mxu0
        %2247 = vmatprep.mubr.f32.mxu0 0.0
        %2248 = vmatmul.mubr.f32.gmra.mxu0 %v1600
        %v2249 = vpop.f32.mrf.mxu0
        %v2250 = vadd.f32 %v1945, %v2249
        %v2251 = vpop.f32.mrf.mxu0
        %2252 = vmatprep.mubr.f32.mxu0 0.0
        %2253 = vmatmul.mubr.f32.gmra.mxu0 %v1602
        %v2254 = vpop.f32.mrf.mxu0
        %v2255 = vadd.f32 %v1950, %v2254
        %v2256 = vpop.f32.mrf.mxu0
        %2257 = vmatprep.mubr.f32.mxu0 0.0
        %2258 = vmatmul.mubr.f32.gmra.mxu0 %v1604
        %v2259 = vpop.f32.mrf.mxu0
        %v2260 = vadd.f32 %v1955, %v2259
        %v2261 = vpop.f32.mrf.mxu0
        %2262 = vmatprep.mubr.f32.mxu0 0.0
        %2263 = vmatmul.mubr.f32.gmra.mxu0 %v1606
        %v2264 = vpop.f32.mrf.mxu0
        %v2265 = vadd.f32 %v1960, %v2264
        %v2266 = vpop.f32.mrf.mxu0
        %2267 = vmatprep.mubr.f32.mxu0 0.0
        %2268 = vmatmul.mubr.f32.gmra.mxu0 %v1608
        %v2269 = vpop.f32.mrf.mxu0
        %v2270 = vadd.f32 %v1965, %v2269
        %v2271 = vpop.f32.mrf.mxu0
        %2272 = vmatprep.mubr.f32.mxu0 0.0
        %2273 = vmatmul.mubr.f32.gmra.mxu0 %v1610
        %v2274 = vpop.f32.mrf.mxu0
        %v2275 = vadd.f32 %v1970, %v2274
        %v2276 = vpop.f32.mrf.mxu0
        %2277 = vmatprep.mubr.f32.mxu0 0.0
        %2278 = vmatmul.mubr.f32.gmra.mxu0 %v1612
        %v2279 = vpop.f32.mrf.mxu0
        %v2280 = vadd.f32 %v1975, %v2279
        %v2281 = vpop.f32.mrf.mxu0
        %2282 = vmatprep.mubr.f32.mxu0 0.0
        %2283 = vmatmul.mubr.f32.gmra.mxu0 %v1614
        %v2284 = vpop.f32.mrf.mxu0
        %v2285 = vadd.f32 %v1980, %v2284
        %v2286 = vpop.f32.mrf.mxu0
        %2287 = vmatprep.mubr.f32.mxu0 0.0
        %2288 = vmatmul.mubr.f32.gmra.mxu0 %v1616
        %v2289 = vpop.f32.mrf.mxu0
        %v2290 = vadd.f32 %v1985, %v2289
        %v2291 = vpop.f32.mrf.mxu0
        %2292 = vmatprep.mubr.f32.mxu0 0.0
        %2293 = vmatmul.mubr.f32.gmra.mxu0 %v1618
        %v2294 = vpop.f32.mrf.mxu0
        %v2295 = vadd.f32 %v1990, %v2294
        %v2296 = vpop.f32.mrf.mxu0
        %2297 = vmatprep.mubr.f32.mxu0 0.0
        %2298 = vmatmul.mubr.f32.gmra.mxu0 %v1620
        %v2299 = vpop.f32.mrf.mxu0
        %v2300 = vadd.f32 %v1995, %v2299
        %v2301 = vpop.f32.mrf.mxu0
        %2302 = vmatprep.mubr.f32.mxu0 0.0
        %2303 = vmatmul.mubr.f32.gmra.mxu0 %v1622
        %v2304 = vpop.f32.mrf.mxu0
        %v2305 = vadd.f32 %v2000, %v2304
        %v2306 = vpop.f32.mrf.mxu0
        %2307 = vmatprep.mubr.f32.mxu0 0.0
        %2308 = vmatmul.mubr.f32.gmra.mxu0 %v1624
        %v2309 = vpop.f32.mrf.mxu0
        %v2310 = vadd.f32 %v2005, %v2309
        %v2311 = vpop.f32.mrf.mxu0
        %2312 = vmatprep.mubr.f32.mxu0 0.0
        %2313 = vmatmul.mubr.f32.gmra.mxu0 %v1626
        %v2314 = vpop.f32.mrf.mxu0
        %v2315 = vadd.f32 %v2010, %v2314
        %v2316 = vpop.f32.mrf.mxu0
        %2317 = vmatprep.mubr.f32.mxu0 0.0
        %2318 = vmatmul.mubr.f32.gmra.mxu0 %v1628
        %v2319 = vpop.f32.mrf.mxu0
        %v2320 = vadd.f32 %v2015, %v2319
        %v2321 = vpop.f32.mrf.mxu0
        %2322 = vmatprep.mubr.f32.mxu0 0.0
        %2323 = vmatmul.mubr.f32.gmra.mxu0 %v1630
        %v2324 = vpop.f32.mrf.mxu0
        %v2325 = vadd.f32 %v2020, %v2324
        %v2326 = vpop.f32.mrf.mxu0
        %2327 = vmatprep.mubr.f32.mxu0 0.0
        %2328 = vmatmul.mubr.f32.gmra.mxu0 %v1632
        %v2329 = vpop.f32.mrf.mxu0
        %v2330 = vadd.f32 %v2025, %v2329
        %v2331 = vpop.f32.mrf.mxu0
        %2332 = vmatprep.mubr.f32.mxu0 0.0
        %2333 = vmatmul.mubr.f32.gmra.mxu0 %v1634
        %v2334 = vpop.f32.mrf.mxu0
        %v2335 = vadd.f32 %v2030, %v2334
        %v2336 = vpop.f32.mrf.mxu0
        %2337 = vmatprep.mubr.f32.mxu0 0.0
        %2338 = vmatmul.mubr.f32.gmra.mxu0 %v1636
        %v2339 = vpop.f32.mrf.mxu0
        %v2340 = vadd.f32 %v2035, %v2339
        %v2341 = vpop.f32.mrf.mxu0
        %2342 = vmatprep.mubr.f32.mxu0 0.0
        %2343 = vmatmul.mubr.f32.gmra.mxu0 %v1638
        %v2344 = vpop.f32.mrf.mxu0
        %v2345 = vadd.f32 %v2040, %v2344
        %v2346 = vpop.f32.mrf.mxu0
        %2347 = vmatprep.mubr.f32.mxu0 0.0
        %2348 = vmatmul.mubr.f32.gmra.mxu0 %v1640
        %v2349 = vpop.f32.mrf.mxu0
        %v2350 = vadd.f32 %v2045, %v2349
        %v2351 = vpop.f32.mrf.mxu0
        %2352 = vmatprep.mubr.f32.mxu0 0.0
        %2353 = vmatmul.mubr.f32.gmra.mxu0 %v1642
        %v2354 = vpop.f32.mrf.mxu0
        %v2355 = vadd.f32 %v2050, %v2354
        %v2356 = vpop.f32.mrf.mxu0
        %2357 = vmatprep.mubr.f32.mxu0 0.0
        %2358 = vmatmul.mubr.f32.gmra.mxu0 %v1644
        %v2359 = vpop.f32.mrf.mxu0
        %v2360 = vadd.f32 %v2055, %v2359
        %v2361 = vpop.f32.mrf.mxu0
        %2362 = vmatprep.mubr.f32.mxu0 0.0
        %2363 = vmatmul.mubr.f32.gmra.mxu0 %v1646
        %v2364 = vpop.f32.mrf.mxu0
        %v2365 = vadd.f32 %v2060, %v2364
        %v2366 = vpop.f32.mrf.mxu0
        %2367 = vmatprep.mubr.f32.mxu0 0.0
        %2368 = vmatmul.mubr.f32.gmra.mxu0 %v1648
        %v2369 = vpop.f32.mrf.mxu0
        %v2370 = vadd.f32 %v2065, %v2369
        %v2371 = vpop.f32.mrf.mxu0
        %2372 = vmatprep.mubr.f32.mxu0 0.0
        %2373 = vmatmul.mubr.f32.gmra.mxu0 %v1650
        %v2374 = vpop.f32.mrf.mxu0
        %v2375 = vadd.f32 %v2070, %v2374
        %v2376 = vpop.f32.mrf.mxu0
        %2377 = vmatprep.mubr.f32.mxu0 0.0
        %2378 = vmatmul.mubr.f32.gmra.mxu0 %v1652
        %v2379 = vpop.f32.mrf.mxu0
        %v2380 = vadd.f32 %v2075, %v2379
        %v2381 = vpop.f32.mrf.mxu0
        %2382 = vmatprep.mubr.f32.mxu0 0.0
        %2383 = vmatmul.mubr.f32.gmra.mxu0 %v1654
        %v2384 = vpop.f32.mrf.mxu0
        %v2385 = vadd.f32 %v2080, %v2384
        %v2386 = vpop.f32.mrf.mxu0
        %2387 = vmatprep.mubr.f32.mxu0 0.0
        %2388 = vmatmul.mubr.f32.gmra.mxu0 %v1656
        %v2389 = vpop.f32.mrf.mxu0
        %v2390 = vadd.f32 %v2085, %v2389
        %v2391 = vpop.f32.mrf.mxu0
        %2392 = vmatprep.mubr.f32.mxu0 0.0
        %2393 = vmatmul.mubr.f32.gmra.mxu0 %v1658
        %v2394 = vpop.f32.mrf.mxu0
        %v2395 = vadd.f32 %v2090, %v2394
        %v2396 = vpop.f32.mrf.mxu0
        %2397 = vmatprep.mubr.f32.mxu0 0.0
        %2398 = vmatmul.mubr.f32.gmra.mxu0 %v1660
        %v2399 = vpop.f32.mrf.mxu0
        %v2400 = vadd.f32 %v2095, %v2399
        %v2401 = vpop.f32.mrf.mxu0
        %2402 = vmatprep.mubr.f32.mxu0 0.0
        %2403 = vmatmul.mubr.f32.gmra.mxu0 %v1662
        %v2404 = vpop.f32.mrf.mxu0
        %v2405 = vadd.f32 %v2100, %v2404
        %v2406 = vpop.f32.mrf.mxu0
        %2407 = vmatprep.mubr.f32.mxu0 0.0
        %2408 = vmatmul.mubr.f32.gmra.mxu0 %v1664
        %v2409 = vpop.f32.mrf.mxu0
        %v2410 = vadd.f32 %v2105, %v2409
        %v2411 = vpop.f32.mrf.mxu0
        %2412 = vmatprep.mubr.f32.mxu0 0.0
        %2413 = vmatmul.mubr.f32.gmra.mxu0 %v1666
        %v2414 = vpop.f32.mrf.mxu0
        %v2415 = vadd.f32 %v2110, %v2414
        %v2416 = vpop.f32.mrf.mxu0
        %2417 = vmatprep.mubr.f32.mxu0 0.0
        %2418 = vmatmul.mubr.f32.gmra.mxu0 %v1668
        %v2419 = vpop.f32.mrf.mxu0
        %v2420 = vadd.f32 %v2115, %v2419
        %v2421 = vpop.f32.mrf.mxu0
        %2422 = vmatprep.mubr.f32.mxu0 0.0
        %2423 = vmatmul.mubr.f32.gmra.mxu0 %v1670
        %v2424 = vpop.f32.mrf.mxu0
        %v2425 = vadd.f32 %v2120, %v2424
        %v2426 = vpop.f32.mrf.mxu0
        %2427 = vmatprep.mubr.f32.mxu0 0.0
        %2428 = vmatmul.mubr.f32.gmra.mxu0 %v1672
        %v2429 = vpop.f32.mrf.mxu0
        %v2430 = vadd.f32 %v2125, %v2429
        %v2431 = vpop.f32.mrf.mxu0
        %2432 = vmatprep.mubr.f32.mxu0 0.0
        %2433 = vmatmul.mubr.f32.gmra.mxu0 %v1674
        %v2434 = vpop.f32.mrf.mxu0
        %v2435 = vadd.f32 %v2130, %v2434
        %v2436 = vpop.f32.mrf.mxu0
        %2437 = vmatprep.mubr.f32.mxu0 0.0
        %2438 = vmatmul.mubr.f32.gmra.mxu0 %v1676
        %v2439 = vpop.f32.mrf.mxu0
        %v2440 = vadd.f32 %v2135, %v2439
        %v2441 = vpop.f32.mrf.mxu0
        %2442 = vdwg.mxu0
        %2443 = vmatprep.subr.mxu0 0.0
        %2444 = vmatpush1.msra.mxu0 %v1751
        %2445 = vmatprep.subr.mxu0 0.0
        %2446 = vmatpush1.msra.mxu0 %v1750
        %2447 = vmatprep.subr.mxu0 0.0
        %2448 = vmatpush1.msra.mxu0 %v1749
        %2449 = vmatprep.subr.mxu0 0.0
        %2450 = vmatpush1.msra.mxu0 %v1748
        %2451 = vmatprep.subr.mxu0 0.0
        %2452 = vmatpush1.msra.mxu0 %v1747
        %2453 = vmatprep.subr.mxu0 0.0
        %2454 = vmatpush1.msra.mxu0 %v1746
        %2455 = vmatprep.subr.mxu0 0.0
        %2456 = vmatpush1.msra.mxu0 %v1745
        %2457 = vmatprep.subr.mxu0 0.0
        %2458 = vmatpush1.msra.mxu0 %v1744
        %2459 = vmatprep.subr.mxu0 0.0
        %2460 = vmatpush1.msra.mxu0 %v1743
        %2461 = vmatprep.subr.mxu0 0.0
        %2462 = vmatpush1.msra.mxu0 %v1742
        %2463 = vmatprep.subr.mxu0 0.0
        %2464 = vmatpush1.msra.mxu0 %v1741
        %2465 = vmatprep.subr.mxu0 0.0
        %2466 = vmatpush1.msra.mxu0 %v1740
        %2467 = vmatprep.subr.mxu0 0.0
        %2468 = vmatpush1.msra.mxu0 %v1739
        %2469 = vmatprep.subr.mxu0 0.0
        %2470 = vmatpush1.msra.mxu0 %v1738
        %2471 = vmatprep.subr.mxu0 0.0
        %2472 = vmatpush1.msra.mxu0 %v1737
        %2473 = vmatprep.subr.mxu0 0.0
        %2474 = vmatpush1.msra.mxu0 %v1736
        %2475 = vmatprep.subr.mxu0 0.0
        %2476 = vmatpush2.msra.mxu0 %v1767
        %2477 = vmatprep.subr.mxu0 0.0
        %2478 = vmatpush2.msra.mxu0 %v1766
        %2479 = vmatprep.subr.mxu0 0.0
        %2480 = vmatpush2.msra.mxu0 %v1765
        %2481 = vmatprep.subr.mxu0 0.0
        %2482 = vmatpush2.msra.mxu0 %v1764
        %2483 = vmatprep.subr.mxu0 0.0
        %2484 = vmatpush2.msra.mxu0 %v1763
        %2485 = vmatprep.subr.mxu0 0.0
        %2486 = vmatpush2.msra.mxu0 %v1762
        %2487 = vmatprep.subr.mxu0 0.0
        %2488 = vmatpush2.msra.mxu0 %v1761
        %2489 = vmatprep.subr.mxu0 0.0
        %2490 = vmatpush2.msra.mxu0 %v1760
        %2491 = vmatprep.subr.mxu0 0.0
        %2492 = vmatpush2.msra.mxu0 %v1759
        %2493 = vmatprep.subr.mxu0 0.0
        %2494 = vmatpush2.msra.mxu0 %v1758
        %2495 = vmatprep.subr.mxu0 0.0
        %2496 = vmatpush2.msra.mxu0 %v1757
        %2497 = vmatprep.subr.mxu0 0.0
        %2498 = vmatpush2.msra.mxu0 %v1756
        %2499 = vmatprep.subr.mxu0 0.0
        %2500 = vmatpush2.msra.mxu0 %v1755
        %2501 = vmatprep.subr.mxu0 0.0
        %2502 = vmatpush2.msra.mxu0 %v1754
        %2503 = vmatprep.subr.mxu0 0.0
        %2504 = vmatpush2.msra.mxu0 %v1753
        %2505 = vmatprep.subr.mxu0 0.0
        %2506 = vmatpush2.msra.mxu0 %v1752
        %2507 = vmatprep.mubr.f32.mxu0 %v1302
        %2508 = vmatmul.mubr.f32.gmra.mxu0 %v1572
        %v2509 = vpop.f32.mrf.mxu0
        %v2510 = vadd.f32 %v2205, %v2509
        %v2511 = vpop.f32.mrf.mxu0
        %2512 = vmatprep.mubr.f32.mxu0 %v1303
        %2513 = vmatmul.mubr.f32.gmra.mxu0 %v1413
        %v2514 = vpop.f32.mrf.mxu0
        %v2515 = vadd.f32 %v2210, %v2514
        %v2516 = vpop.f32.mrf.mxu0
        %2517 = vmatprep.mubr.f32.mxu0 %v1304
        %2518 = vmatmul.mubr.f32.gmra.mxu0 %v1415
        %v2519 = vpop.f32.mrf.mxu0
        %v2520 = vadd.f32 %v2215, %v2519
        %v2521 = vpop.f32.mrf.mxu0
        %2522 = vmatprep.mubr.f32.mxu0 %v1305
        %2523 = vmatmul.mubr.f32.gmra.mxu0 %v1417
        %v2524 = vpop.f32.mrf.mxu0
        %v2525 = vadd.f32 %v2220, %v2524
        %v2526 = vpop.f32.mrf.mxu0
        %2527 = vmatprep.mubr.f32.mxu0 %v1306
        %2528 = vmatmul.mubr.f32.gmra.mxu0 %v1419
        %v2529 = vpop.f32.mrf.mxu0
        %v2530 = vadd.f32 %v2225, %v2529
        %v2531 = vpop.f32.mrf.mxu0
        %2532 = vmatprep.mubr.f32.mxu0 %v1307
        %2533 = vmatmul.mubr.f32.gmra.mxu0 %v1421
        %v2534 = vpop.f32.mrf.mxu0
        %v2535 = vadd.f32 %v2230, %v2534
        %v2536 = vpop.f32.mrf.mxu0
        %2537 = vmatprep.mubr.f32.mxu0 %v1308
        %2538 = vmatmul.mubr.f32.gmra.mxu0 %v1423
        %v2539 = vpop.f32.mrf.mxu0
        %v2540 = vadd.f32 %v2235, %v2539
        %v2541 = vpop.f32.mrf.mxu0
        %2542 = vmatprep.mubr.f32.mxu0 %v1309
        %2543 = vmatmul.mubr.f32.gmra.mxu0 %v1425
        %v2544 = vpop.f32.mrf.mxu0
        %v2545 = vadd.f32 %v2240, %v2544
        %v2546 = vpop.f32.mrf.mxu0
        %2547 = vmatprep.mubr.f32.mxu0 %v1310
        %2548 = vmatmul.mubr.f32.gmra.mxu0 %v1427
        %v2549 = vpop.f32.mrf.mxu0
        %v2550 = vadd.f32 %v2245, %v2549
        %v2551 = vpop.f32.mrf.mxu0
        %2552 = vmatprep.mubr.f32.mxu0 %v1311
        %2553 = vmatmul.mubr.f32.gmra.mxu0 %v1429
        %v2554 = vpop.f32.mrf.mxu0
        %v2555 = vadd.f32 %v2250, %v2554
        %v2556 = vpop.f32.mrf.mxu0
        %2557 = vmatprep.mubr.f32.mxu0 %v1312
        %2558 = vmatmul.mubr.f32.gmra.mxu0 %v1431
        %v2559 = vpop.f32.mrf.mxu0
        %v2560 = vadd.f32 %v2255, %v2559
        %v2561 = vpop.f32.mrf.mxu0
        %2562 = vmatprep.mubr.f32.mxu0 %v1313
        %2563 = vmatmul.mubr.f32.gmra.mxu0 %v1433
        %v2564 = vpop.f32.mrf.mxu0
        %v2565 = vadd.f32 %v2260, %v2564
        %v2566 = vpop.f32.mrf.mxu0
        %2567 = vmatprep.mubr.f32.mxu0 %v1314
        %2568 = vmatmul.mubr.f32.gmra.mxu0 %v1435
        %v2569 = vpop.f32.mrf.mxu0
        %v2570 = vadd.f32 %v2265, %v2569
        %v2571 = vpop.f32.mrf.mxu0
        %2572 = vmatprep.mubr.f32.mxu0 %v1315
        %2573 = vmatmul.mubr.f32.gmra.mxu0 %v1437
        %v2574 = vpop.f32.mrf.mxu0
        %v2575 = vadd.f32 %v2270, %v2574
        %v2576 = vpop.f32.mrf.mxu0
        %2577 = vmatprep.mubr.f32.mxu0 %v1316
        %2578 = vmatmul.mubr.f32.gmra.mxu0 %v1439
        %v2579 = vpop.f32.mrf.mxu0
        %v2580 = vadd.f32 %v2275, %v2579
        %v2581 = vpop.f32.mrf.mxu0
        %2582 = vmatprep.mubr.f32.mxu0 %v1317
        %2583 = vmatmul.mubr.f32.gmra.mxu0 %v1441
        %v2584 = vpop.f32.mrf.mxu0
        %v2585 = vadd.f32 %v2280, %v2584
        %v2586 = vpop.f32.mrf.mxu0
        %2587 = vmatprep.mubr.f32.mxu0 %v1318
        %2588 = vmatmul.mubr.f32.gmra.mxu0 %v1443
        %v2589 = vpop.f32.mrf.mxu0
        %v2590 = vadd.f32 %v2285, %v2589
        %v2591 = vpop.f32.mrf.mxu0
        %2592 = vmatprep.mubr.f32.mxu0 %v1319
        %2593 = vmatmul.mubr.f32.gmra.mxu0 %v1445
        %v2594 = vpop.f32.mrf.mxu0
        %v2595 = vadd.f32 %v2290, %v2594
        %v2596 = vpop.f32.mrf.mxu0
        %2597 = vmatprep.mubr.f32.mxu0 %v1320
        %2598 = vmatmul.mubr.f32.gmra.mxu0 %v1447
        %v2599 = vpop.f32.mrf.mxu0
        %v2600 = vadd.f32 %v2295, %v2599
        %v2601 = vpop.f32.mrf.mxu0
        %2602 = vmatprep.mubr.f32.mxu0 %v1321
        %2603 = vmatmul.mubr.f32.gmra.mxu0 %v1449
        %v2604 = vpop.f32.mrf.mxu0
        %v2605 = vadd.f32 %v2300, %v2604
        %v2606 = vpop.f32.mrf.mxu0
        %2607 = vmatprep.mubr.f32.mxu0 %v1322
        %2608 = vmatmul.mubr.f32.gmra.mxu0 %v1451
        %v2609 = vpop.f32.mrf.mxu0
        %v2610 = vadd.f32 %v2305, %v2609
        %v2611 = vpop.f32.mrf.mxu0
        %2612 = vmatprep.mubr.f32.mxu0 %v1323
        %2613 = vmatmul.mubr.f32.gmra.mxu0 %v1453
        %v2614 = vpop.f32.mrf.mxu0
        %v2615 = vadd.f32 %v2310, %v2614
        %v2616 = vpop.f32.mrf.mxu0
        %2617 = vmatprep.mubr.f32.mxu0 %v1324
        %2618 = vmatmul.mubr.f32.gmra.mxu0 %v1455
        %v2619 = vpop.f32.mrf.mxu0
        %v2620 = vadd.f32 %v2315, %v2619
        %v2621 = vpop.f32.mrf.mxu0
        %2622 = vmatprep.mubr.f32.mxu0 %v1325
        %2623 = vmatmul.mubr.f32.gmra.mxu0 %v1457
        %v2624 = vpop.f32.mrf.mxu0
        %v2625 = vadd.f32 %v2320, %v2624
        %v2626 = vpop.f32.mrf.mxu0
        %2627 = vmatprep.mubr.f32.mxu0 %v1326
        %2628 = vmatmul.mubr.f32.gmra.mxu0 %v1459
        %v2629 = vpop.f32.mrf.mxu0
        %v2630 = vadd.f32 %v2325, %v2629
        %v2631 = vpop.f32.mrf.mxu0
        %2632 = vmatprep.mubr.f32.mxu0 %v1327
        %2633 = vmatmul.mubr.f32.gmra.mxu0 %v1461
        %v2634 = vpop.f32.mrf.mxu0
        %v2635 = vadd.f32 %v2330, %v2634
        %v2636 = vpop.f32.mrf.mxu0
        %2637 = vmatprep.mubr.f32.mxu0 %v1328
        %2638 = vmatmul.mubr.f32.gmra.mxu0 %v1463
        %v2639 = vpop.f32.mrf.mxu0
        %v2640 = vadd.f32 %v2335, %v2639
        %v2641 = vpop.f32.mrf.mxu0
        %2642 = vmatprep.mubr.f32.mxu0 %v1329
        %2643 = vmatmul.mubr.f32.gmra.mxu0 %v1465
        %v2644 = vpop.f32.mrf.mxu0
        %v2645 = vadd.f32 %v2340, %v2644
        %v2646 = vpop.f32.mrf.mxu0
        %2647 = vmatprep.mubr.f32.mxu0 %v1330
        %2648 = vmatmul.mubr.f32.gmra.mxu0 %v1467
        %v2649 = vpop.f32.mrf.mxu0
        %v2650 = vadd.f32 %v2345, %v2649
        %v2651 = vpop.f32.mrf.mxu0
        %2652 = vmatprep.mubr.f32.mxu0 %v1331
        %2653 = vmatmul.mubr.f32.gmra.mxu0 %v1469
        %v2654 = vpop.f32.mrf.mxu0
        %v2655 = vadd.f32 %v2350, %v2654
        %v2656 = vpop.f32.mrf.mxu0
        %2657 = vmatprep.mubr.f32.mxu0 %v1332
        %2658 = vmatmul.mubr.f32.gmra.mxu0 %v1471
        %v2659 = vpop.f32.mrf.mxu0
        %v2660 = vadd.f32 %v2355, %v2659
        %v2661 = vpop.f32.mrf.mxu0
        %2662 = vmatprep.mubr.f32.mxu0 %v1333
        %2663 = vmatmul.mubr.f32.gmra.mxu0 %v1473
        %v2664 = vpop.f32.mrf.mxu0
        %v2665 = vadd.f32 %v2360, %v2664
        %v2666 = vpop.f32.mrf.mxu0
        %2667 = vmatprep.mubr.f32.mxu0 %v1334
        %2668 = vmatmul.mubr.f32.gmra.mxu0 %v1475
        %v2669 = vpop.f32.mrf.mxu0
        %v2670 = vadd.f32 %v2365, %v2669
        %v2671 = vpop.f32.mrf.mxu0
        %2672 = vmatprep.mubr.f32.mxu0 %v1335
        %2673 = vmatmul.mubr.f32.gmra.mxu0 %v1477
        %v2674 = vpop.f32.mrf.mxu0
        %v2675 = vadd.f32 %v2370, %v2674
        %v2676 = vpop.f32.mrf.mxu0
        %2677 = vmatprep.mubr.f32.mxu0 %v1336
        %2678 = vmatmul.mubr.f32.gmra.mxu0 %v1479
        %v2679 = vpop.f32.mrf.mxu0
        %v2680 = vadd.f32 %v2375, %v2679
        %v2681 = vpop.f32.mrf.mxu0
        %2682 = vmatprep.mubr.f32.mxu0 %v1337
        %2683 = vmatmul.mubr.f32.gmra.mxu0 %v1481
        %v2684 = vpop.f32.mrf.mxu0
        %v2685 = vadd.f32 %v2380, %v2684
        %v2686 = vpop.f32.mrf.mxu0
        %2687 = vmatprep.mubr.f32.mxu0 %v1338
        %2688 = vmatmul.mubr.f32.gmra.mxu0 %v1483
        %v2689 = vpop.f32.mrf.mxu0
        %v2690 = vadd.f32 %v2385, %v2689
        %v2691 = vpop.f32.mrf.mxu0
        %2692 = vmatprep.mubr.f32.mxu0 %v1339
        %2693 = vmatmul.mubr.f32.gmra.mxu0 %v1485
        %v2694 = vpop.f32.mrf.mxu0
        %v2695 = vadd.f32 %v2390, %v2694
        %v2696 = vpop.f32.mrf.mxu0
        %2697 = vmatprep.mubr.f32.mxu0 %v1340
        %2698 = vmatmul.mubr.f32.gmra.mxu0 %v1487
        %v2699 = vpop.f32.mrf.mxu0
        %v2700 = vadd.f32 %v2395, %v2699
        %v2701 = vpop.f32.mrf.mxu0
        %2702 = vmatprep.mubr.f32.mxu0 %v1341
        %2703 = vmatmul.mubr.f32.gmra.mxu0 %v1489
        %v2704 = vpop.f32.mrf.mxu0
        %v2705 = vadd.f32 %v2400, %v2704
        %v2706 = vpop.f32.mrf.mxu0
        %2707 = vmatprep.mubr.f32.mxu0 %v1342
        %2708 = vmatmul.mubr.f32.gmra.mxu0 %v1491
        %v2709 = vpop.f32.mrf.mxu0
        %v2710 = vadd.f32 %v2405, %v2709
        %v2711 = vpop.f32.mrf.mxu0
        %2712 = vmatprep.mubr.f32.mxu0 %v1343
        %2713 = vmatmul.mubr.f32.gmra.mxu0 %v1493
        %v2714 = vpop.f32.mrf.mxu0
        %v2715 = vadd.f32 %v2410, %v2714
        %v2716 = vpop.f32.mrf.mxu0
        %2717 = vmatprep.mubr.f32.mxu0 %v1344
        %2718 = vmatmul.mubr.f32.gmra.mxu0 %v1495
        %v2719 = vpop.f32.mrf.mxu0
        %v2720 = vadd.f32 %v2415, %v2719
        %v2721 = vpop.f32.mrf.mxu0
        %2722 = vmatprep.mubr.f32.mxu0 %v1345
        %2723 = vmatmul.mubr.f32.gmra.mxu0 %v1497
        %v2724 = vpop.f32.mrf.mxu0
        %v2725 = vadd.f32 %v2420, %v2724
        %v2726 = vpop.f32.mrf.mxu0
        %2727 = vmatprep.mubr.f32.mxu0 %v1346
        %2728 = vmatmul.mubr.f32.gmra.mxu0 %v1499
        %v2729 = vpop.f32.mrf.mxu0
        %v2730 = vadd.f32 %v2425, %v2729
        %v2731 = vpop.f32.mrf.mxu0
        %2732 = vmatprep.mubr.f32.mxu0 %v1347
        %2733 = vmatmul.mubr.f32.gmra.mxu0 %v1501
        %v2734 = vpop.f32.mrf.mxu0
        %v2735 = vadd.f32 %v2430, %v2734
        %v2736 = vpop.f32.mrf.mxu0
        %2737 = vmatprep.mubr.f32.mxu0 %v1348
        %2738 = vmatmul.mubr.f32.gmra.mxu0 %v1503
        %v2739 = vpop.f32.mrf.mxu0
        %v2740 = vadd.f32 %v2435, %v2739
        %v2741 = vpop.f32.mrf.mxu0
        %2742 = vmatprep.mubr.f32.mxu0 %v1349
        %2743 = vmatmul.mubr.f32.gmra.mxu0 %v1505
        %v2744 = vpop.f32.mrf.mxu0
        %v2745 = vadd.f32 %v2440, %v2744
        %v2746 = vpop.f32.mrf.mxu0
        %2747 = vdwg.mxu0
        %2748 = vmatprep.subr.mxu0 0.0
        %2749 = vmatpush1.msra.mxu0 %v1783
        %2750 = vmatprep.subr.mxu0 0.0
        %2751 = vmatpush1.msra.mxu0 %v1782
        %2752 = vmatprep.subr.mxu0 0.0
        %2753 = vmatpush1.msra.mxu0 %v1781
        %2754 = vmatprep.subr.mxu0 0.0
        %2755 = vmatpush1.msra.mxu0 %v1780
        %2756 = vmatprep.subr.mxu0 0.0
        %2757 = vmatpush1.msra.mxu0 %v1779
        %2758 = vmatprep.subr.mxu0 0.0
        %2759 = vmatpush1.msra.mxu0 %v1778
        %2760 = vmatprep.subr.mxu0 0.0
        %2761 = vmatpush1.msra.mxu0 %v1777
        %2762 = vmatprep.subr.mxu0 0.0
        %2763 = vmatpush1.msra.mxu0 %v1776
        %2764 = vmatprep.subr.mxu0 0.0
        %2765 = vmatpush1.msra.mxu0 %v1775
        %2766 = vmatprep.subr.mxu0 0.0
        %2767 = vmatpush1.msra.mxu0 %v1774
        %2768 = vmatprep.subr.mxu0 0.0
        %2769 = vmatpush1.msra.mxu0 %v1773
        %2770 = vmatprep.subr.mxu0 0.0
        %2771 = vmatpush1.msra.mxu0 %v1772
        %2772 = vmatprep.subr.mxu0 0.0
        %2773 = vmatpush1.msra.mxu0 %v1771
        %2774 = vmatprep.subr.mxu0 0.0
        %2775 = vmatpush1.msra.mxu0 %v1770
        %2776 = vmatprep.subr.mxu0 0.0
        %2777 = vmatpush1.msra.mxu0 %v1769
        %2778 = vmatprep.subr.mxu0 0.0
        %2779 = vmatpush1.msra.mxu0 %v1768
        %2780 = vmatprep.subr.mxu0 0.0
        %2781 = vmatpush2.msra.mxu0 0.0
        %2782 = vmatprep.subr.mxu0 0.0
        %2783 = vmatpush2.msra.mxu0 0.0
        %2784 = vmatprep.subr.mxu0 0.0
        %2785 = vmatpush2.msra.mxu0 0.0
        %2786 = vmatprep.subr.mxu0 0.0
        %2787 = vmatpush2.msra.mxu0 0.0
        %2788 = vmatprep.subr.mxu0 0.0
        %2789 = vmatpush2.msra.mxu0 0.0
        %2790 = vmatprep.subr.mxu0 0.0
        %2791 = vmatpush2.msra.mxu0 0.0
        %2792 = vmatprep.subr.mxu0 0.0
        %2793 = vmatpush2.msra.mxu0 0.0
        %2794 = vmatprep.subr.mxu0 0.0
        %2795 = vmatpush2.msra.mxu0 0.0
        %2796 = vmatprep.subr.mxu0 0.0
        %2797 = vmatpush2.msra.mxu0 0.0
        %2798 = vmatprep.subr.mxu0 0.0
        %2799 = vmatpush2.msra.mxu0 0.0
        %2800 = vmatprep.subr.mxu0 0.0
        %2801 = vmatpush2.msra.mxu0 0.0
        %2802 = vmatprep.subr.mxu0 0.0
        %2803 = vmatpush2.msra.mxu0 0.0
        %2804 = vmatprep.subr.mxu0 0.0
        %2805 = vmatpush2.msra.mxu0 0.0
        %2806 = vmatprep.subr.mxu0 0.0
        %2807 = vmatpush2.msra.mxu0 0.0
        %2808 = vmatprep.subr.mxu0 0.0
        %2809 = vmatpush2.msra.mxu0 0.0
        %2810 = vmatprep.subr.mxu0 0.0
        %2811 = vmatpush2.msra.mxu0 0.0
        %2812 = vmatprep.mubr.f32.mxu0 0.0
        %2813 = vmatmul.mubr.f32.gmra.mxu0 %v1576
        %v2814 = vpop.f32.mrf.mxu0
        %v2815 = vadd.f32 %v2510, %v2814
        %v2816 = vpop.f32.mrf.mxu0
        %2817 = vmatprep.mubr.f32.mxu0 0.0
        %2818 = vmatmul.mubr.f32.gmra.mxu0 %v1578
        %v2819 = vpop.f32.mrf.mxu0
        %v2820 = vadd.f32 %v2515, %v2819
        %v2821 = vpop.f32.mrf.mxu0
        %2822 = vmatprep.mubr.f32.mxu0 0.0
        %2823 = vmatmul.mubr.f32.gmra.mxu0 %v1580
        %v2824 = vpop.f32.mrf.mxu0
        %v2825 = vadd.f32 %v2520, %v2824
        %v2826 = vpop.f32.mrf.mxu0
        %2827 = vmatprep.mubr.f32.mxu0 0.0
        %2828 = vmatmul.mubr.f32.gmra.mxu0 %v1582
        %v2829 = vpop.f32.mrf.mxu0
        %v2830 = vadd.f32 %v2525, %v2829
        %v2831 = vpop.f32.mrf.mxu0
        %2832 = vmatprep.mubr.f32.mxu0 0.0
        %2833 = vmatmul.mubr.f32.gmra.mxu0 %v1584
        %v2834 = vpop.f32.mrf.mxu0
        %v2835 = vadd.f32 %v2530, %v2834
        %v2836 = vpop.f32.mrf.mxu0
        %2837 = vmatprep.mubr.f32.mxu0 0.0
        %2838 = vmatmul.mubr.f32.gmra.mxu0 %v1586
        %v2839 = vpop.f32.mrf.mxu0
        %v2840 = vadd.f32 %v2535, %v2839
        %v2841 = vpop.f32.mrf.mxu0
        %2842 = vmatprep.mubr.f32.mxu0 0.0
        %2843 = vmatmul.mubr.f32.gmra.mxu0 %v1588
        %v2844 = vpop.f32.mrf.mxu0
        %v2845 = vadd.f32 %v2540, %v2844
        %v2846 = vpop.f32.mrf.mxu0
        %2847 = vmatprep.mubr.f32.mxu0 0.0
        %2848 = vmatmul.mubr.f32.gmra.mxu0 %v1590
        %v2849 = vpop.f32.mrf.mxu0
        %v2850 = vadd.f32 %v2545, %v2849
        %v2851 = vpop.f32.mrf.mxu0
        %2852 = vmatprep.mubr.f32.mxu0 0.0
        %2853 = vmatmul.mubr.f32.gmra.mxu0 %v1592
        %v2854 = vpop.f32.mrf.mxu0
        %v2855 = vadd.f32 %v2550, %v2854
        %v2856 = vpop.f32.mrf.mxu0
        %2857 = vmatprep.mubr.f32.mxu0 0.0
        %2858 = vmatmul.mubr.f32.gmra.mxu0 %v1594
        %v2859 = vpop.f32.mrf.mxu0
        %v2860 = vadd.f32 %v2555, %v2859
        %v2861 = vpop.f32.mrf.mxu0
        %2862 = vmatprep.mubr.f32.mxu0 0.0
        %2863 = vmatmul.mubr.f32.gmra.mxu0 %v1596
        %v2864 = vpop.f32.mrf.mxu0
        %v2865 = vadd.f32 %v2560, %v2864
        %v2866 = vpop.f32.mrf.mxu0
        %2867 = vmatprep.mubr.f32.mxu0 0.0
        %2868 = vmatmul.mubr.f32.gmra.mxu0 %v1598
        %v2869 = vpop.f32.mrf.mxu0
        %v2870 = vadd.f32 %v2565, %v2869
        %v2871 = vpop.f32.mrf.mxu0
        %2872 = vmatprep.mubr.f32.mxu0 0.0
        %2873 = vmatmul.mubr.f32.gmra.mxu0 %v1600
        %v2874 = vpop.f32.mrf.mxu0
        %v2875 = vadd.f32 %v2570, %v2874
        %v2876 = vpop.f32.mrf.mxu0
        %2877 = vmatprep.mubr.f32.mxu0 0.0
        %2878 = vmatmul.mubr.f32.gmra.mxu0 %v1602
        %v2879 = vpop.f32.mrf.mxu0
        %v2880 = vadd.f32 %v2575, %v2879
        %v2881 = vpop.f32.mrf.mxu0
        %2882 = vmatprep.mubr.f32.mxu0 0.0
        %2883 = vmatmul.mubr.f32.gmra.mxu0 %v1604
        %v2884 = vpop.f32.mrf.mxu0
        %v2885 = vadd.f32 %v2580, %v2884
        %v2886 = vpop.f32.mrf.mxu0
        %2887 = vmatprep.mubr.f32.mxu0 0.0
        %2888 = vmatmul.mubr.f32.gmra.mxu0 %v1606
        %v2889 = vpop.f32.mrf.mxu0
        %v2890 = vadd.f32 %v2585, %v2889
        %v2891 = vpop.f32.mrf.mxu0
        %2892 = vmatprep.mubr.f32.mxu0 0.0
        %2893 = vmatmul.mubr.f32.gmra.mxu0 %v1608
        %v2894 = vpop.f32.mrf.mxu0
        %v2895 = vadd.f32 %v2590, %v2894
        %v2896 = vpop.f32.mrf.mxu0
        %2897 = vmatprep.mubr.f32.mxu0 0.0
        %2898 = vmatmul.mubr.f32.gmra.mxu0 %v1610
        %v2899 = vpop.f32.mrf.mxu0
        %v2900 = vadd.f32 %v2595, %v2899
        %v2901 = vpop.f32.mrf.mxu0
        %2902 = vmatprep.mubr.f32.mxu0 0.0
        %2903 = vmatmul.mubr.f32.gmra.mxu0 %v1612
        %v2904 = vpop.f32.mrf.mxu0
        %v2905 = vadd.f32 %v2600, %v2904
        %v2906 = vpop.f32.mrf.mxu0
        %2907 = vmatprep.mubr.f32.mxu0 0.0
        %2908 = vmatmul.mubr.f32.gmra.mxu0 %v1614
        %v2909 = vpop.f32.mrf.mxu0
        %v2910 = vadd.f32 %v2605, %v2909
        %v2911 = vpop.f32.mrf.mxu0
        %2912 = vmatprep.mubr.f32.mxu0 0.0
        %2913 = vmatmul.mubr.f32.gmra.mxu0 %v1616
        %v2914 = vpop.f32.mrf.mxu0
        %v2915 = vadd.f32 %v2610, %v2914
        %v2916 = vpop.f32.mrf.mxu0
        %2917 = vmatprep.mubr.f32.mxu0 0.0
        %2918 = vmatmul.mubr.f32.gmra.mxu0 %v1618
        %v2919 = vpop.f32.mrf.mxu0
        %v2920 = vadd.f32 %v2615, %v2919
        %v2921 = vpop.f32.mrf.mxu0
        %2922 = vmatprep.mubr.f32.mxu0 0.0
        %2923 = vmatmul.mubr.f32.gmra.mxu0 %v1620
        %v2924 = vpop.f32.mrf.mxu0
        %v2925 = vadd.f32 %v2620, %v2924
        %v2926 = vpop.f32.mrf.mxu0
        %2927 = vmatprep.mubr.f32.mxu0 0.0
        %2928 = vmatmul.mubr.f32.gmra.mxu0 %v1622
        %v2929 = vpop.f32.mrf.mxu0
        %v2930 = vadd.f32 %v2625, %v2929
        %v2931 = vpop.f32.mrf.mxu0
        %2932 = vmatprep.mubr.f32.mxu0 0.0
        %2933 = vmatmul.mubr.f32.gmra.mxu0 %v1624
        %v2934 = vpop.f32.mrf.mxu0
        %v2935 = vadd.f32 %v2630, %v2934
        %v2936 = vpop.f32.mrf.mxu0
        %2937 = vmatprep.mubr.f32.mxu0 0.0
        %2938 = vmatmul.mubr.f32.gmra.mxu0 %v1626
        %v2939 = vpop.f32.mrf.mxu0
        %v2940 = vadd.f32 %v2635, %v2939
        %v2941 = vpop.f32.mrf.mxu0
        %2942 = vmatprep.mubr.f32.mxu0 0.0
        %2943 = vmatmul.mubr.f32.gmra.mxu0 %v1628
        %v2944 = vpop.f32.mrf.mxu0
        %v2945 = vadd.f32 %v2640, %v2944
        %v2946 = vpop.f32.mrf.mxu0
        %2947 = vmatprep.mubr.f32.mxu0 0.0
        %2948 = vmatmul.mubr.f32.gmra.mxu0 %v1630
        %v2949 = vpop.f32.mrf.mxu0
        %v2950 = vadd.f32 %v2645, %v2949
        %v2951 = vpop.f32.mrf.mxu0
        %2952 = vmatprep.mubr.f32.mxu0 0.0
        %2953 = vmatmul.mubr.f32.gmra.mxu0 %v1632
        %v2954 = vpop.f32.mrf.mxu0
        %v2955 = vadd.f32 %v2650, %v2954
        %v2956 = vpop.f32.mrf.mxu0
        %2957 = vmatprep.mubr.f32.mxu0 0.0
        %2958 = vmatmul.mubr.f32.gmra.mxu0 %v1634
        %v2959 = vpop.f32.mrf.mxu0
        %v2960 = vadd.f32 %v2655, %v2959
        %v2961 = vpop.f32.mrf.mxu0
        %2962 = vmatprep.mubr.f32.mxu0 0.0
        %2963 = vmatmul.mubr.f32.gmra.mxu0 %v1636
        %v2964 = vpop.f32.mrf.mxu0
        %v2965 = vadd.f32 %v2660, %v2964
        %v2966 = vpop.f32.mrf.mxu0
        %2967 = vmatprep.mubr.f32.mxu0 0.0
        %2968 = vmatmul.mubr.f32.gmra.mxu0 %v1638
        %v2969 = vpop.f32.mrf.mxu0
        %v2970 = vadd.f32 %v2665, %v2969
        %v2971 = vpop.f32.mrf.mxu0
        %2972 = vmatprep.mubr.f32.mxu0 0.0
        %2973 = vmatmul.mubr.f32.gmra.mxu0 %v1640
        %v2974 = vpop.f32.mrf.mxu0
        %v2975 = vadd.f32 %v2670, %v2974
        %v2976 = vpop.f32.mrf.mxu0
        %2977 = vmatprep.mubr.f32.mxu0 0.0
        %2978 = vmatmul.mubr.f32.gmra.mxu0 %v1642
        %v2979 = vpop.f32.mrf.mxu0
        %v2980 = vadd.f32 %v2675, %v2979
        %v2981 = vpop.f32.mrf.mxu0
        %2982 = vmatprep.mubr.f32.mxu0 0.0
        %2983 = vmatmul.mubr.f32.gmra.mxu0 %v1644
        %v2984 = vpop.f32.mrf.mxu0
        %v2985 = vadd.f32 %v2680, %v2984
        %v2986 = vpop.f32.mrf.mxu0
        %2987 = vmatprep.mubr.f32.mxu0 0.0
        %2988 = vmatmul.mubr.f32.gmra.mxu0 %v1646
        %v2989 = vpop.f32.mrf.mxu0
        %v2990 = vadd.f32 %v2685, %v2989
        %v2991 = vpop.f32.mrf.mxu0
        %2992 = vmatprep.mubr.f32.mxu0 0.0
        %2993 = vmatmul.mubr.f32.gmra.mxu0 %v1648
        %v2994 = vpop.f32.mrf.mxu0
        %v2995 = vadd.f32 %v2690, %v2994
        %v2996 = vpop.f32.mrf.mxu0
        %2997 = vmatprep.mubr.f32.mxu0 0.0
        %2998 = vmatmul.mubr.f32.gmra.mxu0 %v1650
        %v2999 = vpop.f32.mrf.mxu0
        %v3000 = vadd.f32 %v2695, %v2999
        %v3001 = vpop.f32.mrf.mxu0
        %3002 = vmatprep.mubr.f32.mxu0 0.0
        %3003 = vmatmul.mubr.f32.gmra.mxu0 %v1652
        %v3004 = vpop.f32.mrf.mxu0
        %v3005 = vadd.f32 %v2700, %v3004
        %v3006 = vpop.f32.mrf.mxu0
        %3007 = vmatprep.mubr.f32.mxu0 0.0
        %3008 = vmatmul.mubr.f32.gmra.mxu0 %v1654
        %v3009 = vpop.f32.mrf.mxu0
        %v3010 = vadd.f32 %v2705, %v3009
        %v3011 = vpop.f32.mrf.mxu0
        %3012 = vmatprep.mubr.f32.mxu0 0.0
        %3013 = vmatmul.mubr.f32.gmra.mxu0 %v1656
        %v3014 = vpop.f32.mrf.mxu0
        %v3015 = vadd.f32 %v2710, %v3014
        %v3016 = vpop.f32.mrf.mxu0
        %3017 = vmatprep.mubr.f32.mxu0 0.0
        %3018 = vmatmul.mubr.f32.gmra.mxu0 %v1658
        %v3019 = vpop.f32.mrf.mxu0
        %v3020 = vadd.f32 %v2715, %v3019
        %v3021 = vpop.f32.mrf.mxu0
        %3022 = vmatprep.mubr.f32.mxu0 0.0
        %3023 = vmatmul.mubr.f32.gmra.mxu0 %v1660
        %v3024 = vpop.f32.mrf.mxu0
        %v3025 = vadd.f32 %v2720, %v3024
        %v3026 = vpop.f32.mrf.mxu0
        %3027 = vmatprep.mubr.f32.mxu0 0.0
        %3028 = vmatmul.mubr.f32.gmra.mxu0 %v1662
        %v3029 = vpop.f32.mrf.mxu0
        %v3030 = vadd.f32 %v2725, %v3029
        %v3031 = vpop.f32.mrf.mxu0
        %3032 = vmatprep.mubr.f32.mxu0 0.0
        %3033 = vmatmul.mubr.f32.gmra.mxu0 %v1664
        %v3034 = vpop.f32.mrf.mxu0
        %v3035 = vadd.f32 %v2730, %v3034
        %v3036 = vpop.f32.mrf.mxu0
        %3037 = vmatprep.mubr.f32.mxu0 0.0
        %3038 = vmatmul.mubr.f32.gmra.mxu0 %v1666
        %v3039 = vpop.f32.mrf.mxu0
        %v3040 = vadd.f32 %v2735, %v3039
        %v3041 = vpop.f32.mrf.mxu0
        %3042 = vmatprep.mubr.f32.mxu0 0.0
        %3043 = vmatmul.mubr.f32.gmra.mxu0 %v1668
        %v3044 = vpop.f32.mrf.mxu0
        %v3045 = vadd.f32 %v2740, %v3044
        %v3046 = vpop.f32.mrf.mxu0
        %3047 = vmatprep.mubr.f32.mxu0 0.0
        %3048 = vmatmul.mubr.f32.gmra.mxu0 %v1670
        %v3049 = vpop.f32.mrf.mxu0
        %v3050 = vadd.f32 %v2745, %v3049
        %v3051 = vpop.f32.mrf.mxu0
        %3052 = vdwg.mxu0
        %s3053 = scalar_lea.vmem [#allocation5], 768
        %v3054 = vld [vmem:[%s3053] sm:$0xff]
        %v3055 = vld [vmem:[%s3053 + $0x8] sm:$0xff]
        %v3056 = vld [vmem:[%s3053 + $0x10] sm:$0xff]
        %v3057 = vld [vmem:[%s3053 + $0x18] sm:$0xff]
        %v3058 = vld [vmem:[%s3053 + $0x20] sm:$0xff]
        %v3059 = vld [vmem:[%s3053 + $0x28] sm:$0xff]
        %v3060 = vld [vmem:[%s3053 + $0x30] sm:$0xff]
        %v3061 = vld [vmem:[%s3053 + $0x38] sm:$0xff]
        %v3062 = vld [vmem:[%s3053 + $0x40] sm:$0xff]
        %v3063 = vld [vmem:[%s3053 + $0x48] sm:$0xff]
        %v3064 = vld [vmem:[%s3053 + $0x50] sm:$0xff]
        %v3065 = vld [vmem:[%s3053 + $0x58] sm:$0xff]
        %v3066 = vld [vmem:[%s3053 + $0x60] sm:$0xff]
        %v3067 = vld [vmem:[%s3053 + $0x68] sm:$0xff]
        %v3068 = vld [vmem:[%s3053 + $0x70] sm:$0xff]
        %v3069 = vld [vmem:[%s3053 + $0x78] sm:$0xff]
        %v3070 = vld [vmem:[%s3053 + $0x80] sm:$0xff]
        %v3071 = vld [vmem:[%s3053 + $0x88] sm:$0xff]
        %v3072 = vld [vmem:[%s3053 + $0x90] sm:$0xff]
        %v3073 = vld [vmem:[%s3053 + $0x98] sm:$0xff]
        %v3074 = vld [vmem:[%s3053 + $0xa0] sm:$0xff]
        %v3075 = vld [vmem:[%s3053 + $0xa8] sm:$0xff]
        %v3076 = vld [vmem:[%s3053 + $0xb0] sm:$0xff]
        %v3077 = vld [vmem:[%s3053 + $0xb8] sm:$0xff]
        %v3078 = vld [vmem:[%s3053 + $0xc0] sm:$0xff]
        %v3079 = vld [vmem:[%s3053 + $0xc8] sm:$0xff]
        %v3080 = vld [vmem:[%s3053 + $0xd0] sm:$0xff]
        %v3081 = vld [vmem:[%s3053 + $0xd8] sm:$0xff]
        %v3082 = vld [vmem:[%s3053 + $0xe0] sm:$0xff]
        %v3083 = vld [vmem:[%s3053 + $0xe8] sm:$0xff]
        %v3084 = vld [vmem:[%s3053 + $0xf0] sm:$0xff]
        %v3085 = vld [vmem:[%s3053 + $0xf8] sm:$0xff]
        %v3086 = vld [vmem:[%s3053 + $0x100] sm:$0xff]
        %v3087 = vld [vmem:[%s3053 + $0x108] sm:$0xff]
        %v3088 = vld [vmem:[%s3053 + $0x110] sm:$0xff]
        %v3089 = vld [vmem:[%s3053 + $0x118] sm:$0xff]
        %v3090 = vld [vmem:[%s3053 + $0x120] sm:$0xff]
        %v3091 = vld [vmem:[%s3053 + $0x128] sm:$0xff]
        %v3092 = vld [vmem:[%s3053 + $0x130] sm:$0xff]
        %v3093 = vld [vmem:[%s3053 + $0x138] sm:$0xff]
        %v3094 = vld [vmem:[%s3053 + $0x140] sm:$0xff]
        %v3095 = vld [vmem:[%s3053 + $0x148] sm:$0xff]
        %v3096 = vld [vmem:[%s3053 + $0x150] sm:$0xff]
        %v3097 = vld [vmem:[%s3053 + $0x158] sm:$0xff]
        %v3098 = vld [vmem:[%s3053 + $0x160] sm:$0xff]
        %v3099 = vld [vmem:[%s3053 + $0x168] sm:$0xff]
        %v3100 = vld [vmem:[%s3053 + $0x170] sm:$0xff]
        %v3101 = vld [vmem:[%s3053 + $0x178] sm:$0xff]
        %3102 = vmatprep.subr.mxu0 0.0
        %3103 = vmatpush1.msra.mxu0 %v3069
        %3104 = vmatprep.subr.mxu0 0.0
        %3105 = vmatpush1.msra.mxu0 %v3068
        %3106 = vmatprep.subr.mxu0 0.0
        %3107 = vmatpush1.msra.mxu0 %v3067
        %3108 = vmatprep.subr.mxu0 0.0
        %3109 = vmatpush1.msra.mxu0 %v3066
        %3110 = vmatprep.subr.mxu0 0.0
        %3111 = vmatpush1.msra.mxu0 %v3065
        %3112 = vmatprep.subr.mxu0 0.0
        %3113 = vmatpush1.msra.mxu0 %v3064
        %3114 = vmatprep.subr.mxu0 0.0
        %3115 = vmatpush1.msra.mxu0 %v3063
        %3116 = vmatprep.subr.mxu0 0.0
        %3117 = vmatpush1.msra.mxu0 %v3062
        %3118 = vmatprep.subr.mxu0 0.0
        %3119 = vmatpush1.msra.mxu0 %v3061
        %3120 = vmatprep.subr.mxu0 0.0
        %3121 = vmatpush1.msra.mxu0 %v3060
        %3122 = vmatprep.subr.mxu0 0.0
        %3123 = vmatpush1.msra.mxu0 %v3059
        %3124 = vmatprep.subr.mxu0 0.0
        %3125 = vmatpush1.msra.mxu0 %v3058
        %3126 = vmatprep.subr.mxu0 0.0
        %3127 = vmatpush1.msra.mxu0 %v3057
        %3128 = vmatprep.subr.mxu0 0.0
        %3129 = vmatpush1.msra.mxu0 %v3056
        %3130 = vmatprep.subr.mxu0 0.0
        %3131 = vmatpush1.msra.mxu0 %v3055
        %3132 = vmatprep.subr.mxu0 0.0
        %3133 = vmatpush1.msra.mxu0 %v3054
        %3134 = vmatprep.subr.mxu0 0.0
        %3135 = vmatpush2.msra.mxu0 %v3085
        %3136 = vmatprep.subr.mxu0 0.0
        %3137 = vmatpush2.msra.mxu0 %v3084
        %3138 = vmatprep.subr.mxu0 0.0
        %3139 = vmatpush2.msra.mxu0 %v3083
        %3140 = vmatprep.subr.mxu0 0.0
        %3141 = vmatpush2.msra.mxu0 %v3082
        %3142 = vmatprep.subr.mxu0 0.0
        %3143 = vmatpush2.msra.mxu0 %v3081
        %3144 = vmatprep.subr.mxu0 0.0
        %3145 = vmatpush2.msra.mxu0 %v3080
        %3146 = vmatprep.subr.mxu0 0.0
        %3147 = vmatpush2.msra.mxu0 %v3079
        %3148 = vmatprep.subr.mxu0 0.0
        %3149 = vmatpush2.msra.mxu0 %v3078
        %3150 = vmatprep.subr.mxu0 0.0
        %3151 = vmatpush2.msra.mxu0 %v3077
        %3152 = vmatprep.subr.mxu0 0.0
        %3153 = vmatpush2.msra.mxu0 %v3076
        %3154 = vmatprep.subr.mxu0 0.0
        %3155 = vmatpush2.msra.mxu0 %v3075
        %3156 = vmatprep.subr.mxu0 0.0
        %3157 = vmatpush2.msra.mxu0 %v3074
        %3158 = vmatprep.subr.mxu0 0.0
        %3159 = vmatpush2.msra.mxu0 %v3073
        %3160 = vmatprep.subr.mxu0 0.0
        %3161 = vmatpush2.msra.mxu0 %v3072
        %3162 = vmatprep.subr.mxu0 0.0
        %3163 = vmatpush2.msra.mxu0 %v3071
        %3164 = vmatprep.subr.mxu0 0.0
        %3165 = vmatpush2.msra.mxu0 %v3070
        %3166 = vmatprep.mubr.f32.mxu0 %v1308
        %3167 = vmatmul.mubr.f32.gmra.mxu0 %v1423
        %v3168 = vpop.f32.mrf.mxu0
        %v3169 = vadd.f32 0.0, %v3168
        %v3170 = vpop.f32.mrf.mxu0
        %3171 = vmatprep.mubr.f32.mxu0 %v1309
        %3172 = vmatmul.mubr.f32.gmra.mxu0 %v1425
        %v3173 = vpop.f32.mrf.mxu0
        %v3174 = vadd.f32 0.0, %v3173
        %v3175 = vpop.f32.mrf.mxu0
        %3176 = vmatprep.mubr.f32.mxu0 %v1310
        %3177 = vmatmul.mubr.f32.gmra.mxu0 %v1427
        %v3178 = vpop.f32.mrf.mxu0
        %v3179 = vadd.f32 0.0, %v3178
        %v3180 = vpop.f32.mrf.mxu0
        %3181 = vmatprep.mubr.f32.mxu0 %v1311
        %3182 = vmatmul.mubr.f32.gmra.mxu0 %v1429
        %v3183 = vpop.f32.mrf.mxu0
        %v3184 = vadd.f32 0.0, %v3183
        %v3185 = vpop.f32.mrf.mxu0
        %3186 = vmatprep.mubr.f32.mxu0 %v1312
        %3187 = vmatmul.mubr.f32.gmra.mxu0 %v1431
        %v3188 = vpop.f32.mrf.mxu0
        %v3189 = vadd.f32 0.0, %v3188
        %v3190 = vpop.f32.mrf.mxu0
        %3191 = vmatprep.mubr.f32.mxu0 %v1313
        %3192 = vmatmul.mubr.f32.gmra.mxu0 %v1433
        %v3193 = vpop.f32.mrf.mxu0
        %v3194 = vadd.f32 0.0, %v3193
        %v3195 = vpop.f32.mrf.mxu0
        %3196 = vmatprep.mubr.f32.mxu0 %v1314
        %3197 = vmatmul.mubr.f32.gmra.mxu0 %v1435
        %v3198 = vpop.f32.mrf.mxu0
        %v3199 = vadd.f32 0.0, %v3198
        %v3200 = vpop.f32.mrf.mxu0
        %3201 = vmatprep.mubr.f32.mxu0 %v1315
        %3202 = vmatmul.mubr.f32.gmra.mxu0 %v1437
        %v3203 = vpop.f32.mrf.mxu0
        %v3204 = vadd.f32 0.0, %v3203
        %v3205 = vpop.f32.mrf.mxu0
        %3206 = vmatprep.mubr.f32.mxu0 %v1316
        %3207 = vmatmul.mubr.f32.gmra.mxu0 %v1439
        %v3208 = vpop.f32.mrf.mxu0
        %v3209 = vadd.f32 0.0, %v3208
        %v3210 = vpop.f32.mrf.mxu0
        %3211 = vmatprep.mubr.f32.mxu0 %v1317
        %3212 = vmatmul.mubr.f32.gmra.mxu0 %v1441
        %v3213 = vpop.f32.mrf.mxu0
        %v3214 = vadd.f32 0.0, %v3213
        %v3215 = vpop.f32.mrf.mxu0
        %3216 = vmatprep.mubr.f32.mxu0 %v1318
        %3217 = vmatmul.mubr.f32.gmra.mxu0 %v1443
        %v3218 = vpop.f32.mrf.mxu0
        %v3219 = vadd.f32 0.0, %v3218
        %v3220 = vpop.f32.mrf.mxu0
        %3221 = vmatprep.mubr.f32.mxu0 %v1319
        %3222 = vmatmul.mubr.f32.gmra.mxu0 %v1445
        %v3223 = vpop.f32.mrf.mxu0
        %v3224 = vadd.f32 0.0, %v3223
        %v3225 = vpop.f32.mrf.mxu0
        %3226 = vmatprep.mubr.f32.mxu0 %v1320
        %3227 = vmatmul.mubr.f32.gmra.mxu0 %v1447
        %v3228 = vpop.f32.mrf.mxu0
        %v3229 = vadd.f32 0.0, %v3228
        %v3230 = vpop.f32.mrf.mxu0
        %3231 = vmatprep.mubr.f32.mxu0 %v1321
        %3232 = vmatmul.mubr.f32.gmra.mxu0 %v1449
        %v3233 = vpop.f32.mrf.mxu0
        %v3234 = vadd.f32 0.0, %v3233
        %v3235 = vpop.f32.mrf.mxu0
        %3236 = vmatprep.mubr.f32.mxu0 %v1322
        %3237 = vmatmul.mubr.f32.gmra.mxu0 %v1451
        %v3238 = vpop.f32.mrf.mxu0
        %v3239 = vadd.f32 0.0, %v3238
        %v3240 = vpop.f32.mrf.mxu0
        %3241 = vmatprep.mubr.f32.mxu0 %v1323
        %3242 = vmatmul.mubr.f32.gmra.mxu0 %v1453
        %v3243 = vpop.f32.mrf.mxu0
        %v3244 = vadd.f32 0.0, %v3243
        %v3245 = vpop.f32.mrf.mxu0
        %3246 = vmatprep.mubr.f32.mxu0 %v1324
        %3247 = vmatmul.mubr.f32.gmra.mxu0 %v1455
        %v3248 = vpop.f32.mrf.mxu0
        %v3249 = vadd.f32 0.0, %v3248
        %v3250 = vpop.f32.mrf.mxu0
        %3251 = vmatprep.mubr.f32.mxu0 %v1325
        %3252 = vmatmul.mubr.f32.gmra.mxu0 %v1457
        %v3253 = vpop.f32.mrf.mxu0
        %v3254 = vadd.f32 0.0, %v3253
        %v3255 = vpop.f32.mrf.mxu0
        %3256 = vmatprep.mubr.f32.mxu0 %v1326
        %3257 = vmatmul.mubr.f32.gmra.mxu0 %v1459
        %v3258 = vpop.f32.mrf.mxu0
        %v3259 = vadd.f32 0.0, %v3258
        %v3260 = vpop.f32.mrf.mxu0
        %3261 = vmatprep.mubr.f32.mxu0 %v1327
        %3262 = vmatmul.mubr.f32.gmra.mxu0 %v1461
        %v3263 = vpop.f32.mrf.mxu0
        %v3264 = vadd.f32 0.0, %v3263
        %v3265 = vpop.f32.mrf.mxu0
        %3266 = vmatprep.mubr.f32.mxu0 %v1328
        %3267 = vmatmul.mubr.f32.gmra.mxu0 %v1463
        %v3268 = vpop.f32.mrf.mxu0
        %v3269 = vadd.f32 0.0, %v3268
        %v3270 = vpop.f32.mrf.mxu0
        %3271 = vmatprep.mubr.f32.mxu0 %v1329
        %3272 = vmatmul.mubr.f32.gmra.mxu0 %v1465
        %v3273 = vpop.f32.mrf.mxu0
        %v3274 = vadd.f32 0.0, %v3273
        %v3275 = vpop.f32.mrf.mxu0
        %3276 = vmatprep.mubr.f32.mxu0 %v1330
        %3277 = vmatmul.mubr.f32.gmra.mxu0 %v1467
        %v3278 = vpop.f32.mrf.mxu0
        %v3279 = vadd.f32 0.0, %v3278
        %v3280 = vpop.f32.mrf.mxu0
        %3281 = vmatprep.mubr.f32.mxu0 %v1331
        %3282 = vmatmul.mubr.f32.gmra.mxu0 %v1469
        %v3283 = vpop.f32.mrf.mxu0
        %v3284 = vadd.f32 0.0, %v3283
        %v3285 = vpop.f32.mrf.mxu0
        %3286 = vmatprep.mubr.f32.mxu0 %v1332
        %3287 = vmatmul.mubr.f32.gmra.mxu0 %v1471
        %v3288 = vpop.f32.mrf.mxu0
        %v3289 = vadd.f32 0.0, %v3288
        %v3290 = vpop.f32.mrf.mxu0
        %3291 = vmatprep.mubr.f32.mxu0 %v1333
        %3292 = vmatmul.mubr.f32.gmra.mxu0 %v1473
        %v3293 = vpop.f32.mrf.mxu0
        %v3294 = vadd.f32 0.0, %v3293
        %v3295 = vpop.f32.mrf.mxu0
        %3296 = vmatprep.mubr.f32.mxu0 %v1334
        %3297 = vmatmul.mubr.f32.gmra.mxu0 %v1475
        %v3298 = vpop.f32.mrf.mxu0
        %v3299 = vadd.f32 0.0, %v3298
        %v3300 = vpop.f32.mrf.mxu0
        %3301 = vmatprep.mubr.f32.mxu0 %v1335
        %3302 = vmatmul.mubr.f32.gmra.mxu0 %v1477
        %v3303 = vpop.f32.mrf.mxu0
        %v3304 = vadd.f32 0.0, %v3303
        %v3305 = vpop.f32.mrf.mxu0
        %3306 = vmatprep.mubr.f32.mxu0 %v1336
        %3307 = vmatmul.mubr.f32.gmra.mxu0 %v1479
        %v3308 = vpop.f32.mrf.mxu0
        %v3309 = vadd.f32 0.0, %v3308
        %v3310 = vpop.f32.mrf.mxu0
        %3311 = vmatprep.mubr.f32.mxu0 %v1337
        %3312 = vmatmul.mubr.f32.gmra.mxu0 %v1481
        %v3313 = vpop.f32.mrf.mxu0
        %v3314 = vadd.f32 0.0, %v3313
        %v3315 = vpop.f32.mrf.mxu0
        %3316 = vmatprep.mubr.f32.mxu0 %v1338
        %3317 = vmatmul.mubr.f32.gmra.mxu0 %v1483
        %v3318 = vpop.f32.mrf.mxu0
        %v3319 = vadd.f32 0.0, %v3318
        %v3320 = vpop.f32.mrf.mxu0
        %3321 = vmatprep.mubr.f32.mxu0 %v1339
        %3322 = vmatmul.mubr.f32.gmra.mxu0 %v1485
        %v3323 = vpop.f32.mrf.mxu0
        %v3324 = vadd.f32 0.0, %v3323
        %v3325 = vpop.f32.mrf.mxu0
        %3326 = vmatprep.mubr.f32.mxu0 %v1340
        %3327 = vmatmul.mubr.f32.gmra.mxu0 %v1487
        %v3328 = vpop.f32.mrf.mxu0
        %v3329 = vadd.f32 0.0, %v3328
        %v3330 = vpop.f32.mrf.mxu0
        %3331 = vmatprep.mubr.f32.mxu0 %v1341
        %3332 = vmatmul.mubr.f32.gmra.mxu0 %v1489
        %v3333 = vpop.f32.mrf.mxu0
        %v3334 = vadd.f32 0.0, %v3333
        %v3335 = vpop.f32.mrf.mxu0
        %3336 = vmatprep.mubr.f32.mxu0 %v1342
        %3337 = vmatmul.mubr.f32.gmra.mxu0 %v1491
        %v3338 = vpop.f32.mrf.mxu0
        %v3339 = vadd.f32 0.0, %v3338
        %v3340 = vpop.f32.mrf.mxu0
        %3341 = vmatprep.mubr.f32.mxu0 %v1343
        %3342 = vmatmul.mubr.f32.gmra.mxu0 %v1493
        %v3343 = vpop.f32.mrf.mxu0
        %v3344 = vadd.f32 0.0, %v3343
        %v3345 = vpop.f32.mrf.mxu0
        %3346 = vmatprep.mubr.f32.mxu0 %v1344
        %3347 = vmatmul.mubr.f32.gmra.mxu0 %v1495
        %v3348 = vpop.f32.mrf.mxu0
        %v3349 = vadd.f32 0.0, %v3348
        %v3350 = vpop.f32.mrf.mxu0
        %3351 = vmatprep.mubr.f32.mxu0 %v1345
        %3352 = vmatmul.mubr.f32.gmra.mxu0 %v1497
        %v3353 = vpop.f32.mrf.mxu0
        %v3354 = vadd.f32 0.0, %v3353
        %v3355 = vpop.f32.mrf.mxu0
        %3356 = vmatprep.mubr.f32.mxu0 %v1346
        %3357 = vmatmul.mubr.f32.gmra.mxu0 %v1499
        %v3358 = vpop.f32.mrf.mxu0
        %v3359 = vadd.f32 0.0, %v3358
        %v3360 = vpop.f32.mrf.mxu0
        %3361 = vmatprep.mubr.f32.mxu0 %v1347
        %3362 = vmatmul.mubr.f32.gmra.mxu0 %v1501
        %v3363 = vpop.f32.mrf.mxu0
        %v3364 = vadd.f32 0.0, %v3363
        %v3365 = vpop.f32.mrf.mxu0
        %3366 = vmatprep.mubr.f32.mxu0 %v1348
        %3367 = vmatmul.mubr.f32.gmra.mxu0 %v1503
        %v3368 = vpop.f32.mrf.mxu0
        %v3369 = vadd.f32 0.0, %v3368
        %v3370 = vpop.f32.mrf.mxu0
        %3371 = vmatprep.mubr.f32.mxu0 %v1349
        %3372 = vmatmul.mubr.f32.gmra.mxu0 %v1505
        %v3373 = vpop.f32.mrf.mxu0
        %v3374 = vadd.f32 0.0, %v3373
        %v3375 = vpop.f32.mrf.mxu0
        %3376 = vmatprep.mubr.f32.mxu0 %v1350
        %3377 = vmatmul.mubr.f32.gmra.mxu0 %v1507
        %v3378 = vpop.f32.mrf.mxu0
        %v3379 = vadd.f32 0.0, %v3378
        %v3380 = vpop.f32.mrf.mxu0
        %3381 = vmatprep.mubr.f32.mxu0 %v1351
        %3382 = vmatmul.mubr.f32.gmra.mxu0 %v1509
        %v3383 = vpop.f32.mrf.mxu0
        %v3384 = vadd.f32 0.0, %v3383
        %v3385 = vpop.f32.mrf.mxu0
        %3386 = vmatprep.mubr.f32.mxu0 %v1352
        %3387 = vmatmul.mubr.f32.gmra.mxu0 %v1511
        %v3388 = vpop.f32.mrf.mxu0
        %v3389 = vadd.f32 0.0, %v3388
        %v3390 = vpop.f32.mrf.mxu0
        %3391 = vmatprep.mubr.f32.mxu0 %v1353
        %3392 = vmatmul.mubr.f32.gmra.mxu0 %v1513
        %v3393 = vpop.f32.mrf.mxu0
        %v3394 = vadd.f32 0.0, %v3393
        %v3395 = vpop.f32.mrf.mxu0
        %3396 = vmatprep.mubr.f32.mxu0 %v1354
        %3397 = vmatmul.mubr.f32.gmra.mxu0 %v1515
        %v3398 = vpop.f32.mrf.mxu0
        %v3399 = vadd.f32 0.0, %v3398
        %v3400 = vpop.f32.mrf.mxu0
        %3401 = vmatprep.mubr.f32.mxu0 %v1355
        %3402 = vmatmul.mubr.f32.gmra.mxu0 %v1517
        %v3403 = vpop.f32.mrf.mxu0
        %v3404 = vadd.f32 0.0, %v3403
        %v3405 = vpop.f32.mrf.mxu0
        %3406 = vdwg.mxu0
        %3407 = vmatprep.subr.mxu0 0.0
        %3408 = vmatpush1.msra.mxu0 %v3101
        %3409 = vmatprep.subr.mxu0 0.0
        %3410 = vmatpush1.msra.mxu0 %v3100
        %3411 = vmatprep.subr.mxu0 0.0
        %3412 = vmatpush1.msra.mxu0 %v3099
        %3413 = vmatprep.subr.mxu0 0.0
        %3414 = vmatpush1.msra.mxu0 %v3098
        %3415 = vmatprep.subr.mxu0 0.0
        %3416 = vmatpush1.msra.mxu0 %v3097
        %3417 = vmatprep.subr.mxu0 0.0
        %3418 = vmatpush1.msra.mxu0 %v3096
        %3419 = vmatprep.subr.mxu0 0.0
        %3420 = vmatpush1.msra.mxu0 %v3095
        %3421 = vmatprep.subr.mxu0 0.0
        %3422 = vmatpush1.msra.mxu0 %v3094
        %3423 = vmatprep.subr.mxu0 0.0
        %3424 = vmatpush1.msra.mxu0 %v3093
        %3425 = vmatprep.subr.mxu0 0.0
        %3426 = vmatpush1.msra.mxu0 %v3092
        %3427 = vmatprep.subr.mxu0 0.0
        %3428 = vmatpush1.msra.mxu0 %v3091
        %3429 = vmatprep.subr.mxu0 0.0
        %3430 = vmatpush1.msra.mxu0 %v3090
        %3431 = vmatprep.subr.mxu0 0.0
        %3432 = vmatpush1.msra.mxu0 %v3089
        %3433 = vmatprep.subr.mxu0 0.0
        %3434 = vmatpush1.msra.mxu0 %v3088
        %3435 = vmatprep.subr.mxu0 0.0
        %3436 = vmatpush1.msra.mxu0 %v3087
        %3437 = vmatprep.subr.mxu0 0.0
        %3438 = vmatpush1.msra.mxu0 %v3086
        %3439 = vmatprep.subr.mxu0 0.0
        %3440 = vmatpush2.msra.mxu0 0.0
        %3441 = vmatprep.subr.mxu0 0.0
        %3442 = vmatpush2.msra.mxu0 0.0
        %3443 = vmatprep.subr.mxu0 0.0
        %3444 = vmatpush2.msra.mxu0 0.0
        %3445 = vmatprep.subr.mxu0 0.0
        %3446 = vmatpush2.msra.mxu0 0.0
        %3447 = vmatprep.subr.mxu0 0.0
        %3448 = vmatpush2.msra.mxu0 0.0
        %3449 = vmatprep.subr.mxu0 0.0
        %3450 = vmatpush2.msra.mxu0 0.0
        %3451 = vmatprep.subr.mxu0 0.0
        %3452 = vmatpush2.msra.mxu0 0.0
        %3453 = vmatprep.subr.mxu0 0.0
        %3454 = vmatpush2.msra.mxu0 0.0
        %3455 = vmatprep.subr.mxu0 0.0
        %3456 = vmatpush2.msra.mxu0 0.0
        %3457 = vmatprep.subr.mxu0 0.0
        %3458 = vmatpush2.msra.mxu0 0.0
        %3459 = vmatprep.subr.mxu0 0.0
        %3460 = vmatpush2.msra.mxu0 0.0
        %3461 = vmatprep.subr.mxu0 0.0
        %3462 = vmatpush2.msra.mxu0 0.0
        %3463 = vmatprep.subr.mxu0 0.0
        %3464 = vmatpush2.msra.mxu0 0.0
        %3465 = vmatprep.subr.mxu0 0.0
        %3466 = vmatpush2.msra.mxu0 0.0
        %3467 = vmatprep.subr.mxu0 0.0
        %3468 = vmatpush2.msra.mxu0 0.0
        %3469 = vmatprep.subr.mxu0 0.0
        %3470 = vmatpush2.msra.mxu0 0.0
        %3471 = vmatprep.mubr.f32.mxu0 0.0
        %3472 = vmatmul.mubr.f32.gmra.mxu0 %v1588
        %v3473 = vpop.f32.mrf.mxu0
        %v3474 = vadd.f32 %v3169, %v3473
        %v3475 = vpop.f32.mrf.mxu0
        %3476 = vmatprep.mubr.f32.mxu0 0.0
        %3477 = vmatmul.mubr.f32.gmra.mxu0 %v1590
        %v3478 = vpop.f32.mrf.mxu0
        %v3479 = vadd.f32 %v3174, %v3478
        %v3480 = vpop.f32.mrf.mxu0
        %3481 = vmatprep.mubr.f32.mxu0 0.0
        %3482 = vmatmul.mubr.f32.gmra.mxu0 %v1592
        %v3483 = vpop.f32.mrf.mxu0
        %v3484 = vadd.f32 %v3179, %v3483
        %v3485 = vpop.f32.mrf.mxu0
        %3486 = vmatprep.mubr.f32.mxu0 0.0
        %3487 = vmatmul.mubr.f32.gmra.mxu0 %v1594
        %v3488 = vpop.f32.mrf.mxu0
        %v3489 = vadd.f32 %v3184, %v3488
        %v3490 = vpop.f32.mrf.mxu0
        %3491 = vmatprep.mubr.f32.mxu0 0.0
        %3492 = vmatmul.mubr.f32.gmra.mxu0 %v1596
        %v3493 = vpop.f32.mrf.mxu0
        %v3494 = vadd.f32 %v3189, %v3493
        %v3495 = vpop.f32.mrf.mxu0
        %3496 = vmatprep.mubr.f32.mxu0 0.0
        %3497 = vmatmul.mubr.f32.gmra.mxu0 %v1598
        %v3498 = vpop.f32.mrf.mxu0
        %v3499 = vadd.f32 %v3194, %v3498
        %v3500 = vpop.f32.mrf.mxu0
        %3501 = vmatprep.mubr.f32.mxu0 0.0
        %3502 = vmatmul.mubr.f32.gmra.mxu0 %v1600
        %v3503 = vpop.f32.mrf.mxu0
        %v3504 = vadd.f32 %v3199, %v3503
        %v3505 = vpop.f32.mrf.mxu0
        %3506 = vmatprep.mubr.f32.mxu0 0.0
        %3507 = vmatmul.mubr.f32.gmra.mxu0 %v1602
        %v3508 = vpop.f32.mrf.mxu0
        %v3509 = vadd.f32 %v3204, %v3508
        %v3510 = vpop.f32.mrf.mxu0
        %3511 = vmatprep.mubr.f32.mxu0 0.0
        %3512 = vmatmul.mubr.f32.gmra.mxu0 %v1604
        %v3513 = vpop.f32.mrf.mxu0
        %v3514 = vadd.f32 %v3209, %v3513
        %v3515 = vpop.f32.mrf.mxu0
        %3516 = vmatprep.mubr.f32.mxu0 0.0
        %3517 = vmatmul.mubr.f32.gmra.mxu0 %v1606
        %v3518 = vpop.f32.mrf.mxu0
        %v3519 = vadd.f32 %v3214, %v3518
        %v3520 = vpop.f32.mrf.mxu0
        %3521 = vmatprep.mubr.f32.mxu0 0.0
        %3522 = vmatmul.mubr.f32.gmra.mxu0 %v1608
        %v3523 = vpop.f32.mrf.mxu0
        %v3524 = vadd.f32 %v3219, %v3523
        %v3525 = vpop.f32.mrf.mxu0
        %3526 = vmatprep.mubr.f32.mxu0 0.0
        %3527 = vmatmul.mubr.f32.gmra.mxu0 %v1610
        %v3528 = vpop.f32.mrf.mxu0
        %v3529 = vadd.f32 %v3224, %v3528
        %v3530 = vpop.f32.mrf.mxu0
        %3531 = vmatprep.mubr.f32.mxu0 0.0
        %3532 = vmatmul.mubr.f32.gmra.mxu0 %v1612
        %v3533 = vpop.f32.mrf.mxu0
        %v3534 = vadd.f32 %v3229, %v3533
        %v3535 = vpop.f32.mrf.mxu0
        %3536 = vmatprep.mubr.f32.mxu0 0.0
        %3537 = vmatmul.mubr.f32.gmra.mxu0 %v1614
        %v3538 = vpop.f32.mrf.mxu0
        %v3539 = vadd.f32 %v3234, %v3538
        %v3540 = vpop.f32.mrf.mxu0
        %3541 = vmatprep.mubr.f32.mxu0 0.0
        %3542 = vmatmul.mubr.f32.gmra.mxu0 %v1616
        %v3543 = vpop.f32.mrf.mxu0
        %v3544 = vadd.f32 %v3239, %v3543
        %v3545 = vpop.f32.mrf.mxu0
        %3546 = vmatprep.mubr.f32.mxu0 0.0
        %3547 = vmatmul.mubr.f32.gmra.mxu0 %v1618
        %v3548 = vpop.f32.mrf.mxu0
        %v3549 = vadd.f32 %v3244, %v3548
        %v3550 = vpop.f32.mrf.mxu0
        %3551 = vmatprep.mubr.f32.mxu0 0.0
        %3552 = vmatmul.mubr.f32.gmra.mxu0 %v1620
        %v3553 = vpop.f32.mrf.mxu0
        %v3554 = vadd.f32 %v3249, %v3553
        %v3555 = vpop.f32.mrf.mxu0
        %3556 = vmatprep.mubr.f32.mxu0 0.0
        %3557 = vmatmul.mubr.f32.gmra.mxu0 %v1622
        %v3558 = vpop.f32.mrf.mxu0
        %v3559 = vadd.f32 %v3254, %v3558
        %v3560 = vpop.f32.mrf.mxu0
        %3561 = vmatprep.mubr.f32.mxu0 0.0
        %3562 = vmatmul.mubr.f32.gmra.mxu0 %v1624
        %v3563 = vpop.f32.mrf.mxu0
        %v3564 = vadd.f32 %v3259, %v3563
        %v3565 = vpop.f32.mrf.mxu0
        %3566 = vmatprep.mubr.f32.mxu0 0.0
        %3567 = vmatmul.mubr.f32.gmra.mxu0 %v1626
        %v3568 = vpop.f32.mrf.mxu0
        %v3569 = vadd.f32 %v3264, %v3568
        %v3570 = vpop.f32.mrf.mxu0
        %3571 = vmatprep.mubr.f32.mxu0 0.0
        %3572 = vmatmul.mubr.f32.gmra.mxu0 %v1628
        %v3573 = vpop.f32.mrf.mxu0
        %v3574 = vadd.f32 %v3269, %v3573
        %v3575 = vpop.f32.mrf.mxu0
        %3576 = vmatprep.mubr.f32.mxu0 0.0
        %3577 = vmatmul.mubr.f32.gmra.mxu0 %v1630
        %v3578 = vpop.f32.mrf.mxu0
        %v3579 = vadd.f32 %v3274, %v3578
        %v3580 = vpop.f32.mrf.mxu0
        %3581 = vmatprep.mubr.f32.mxu0 0.0
        %3582 = vmatmul.mubr.f32.gmra.mxu0 %v1632
        %v3583 = vpop.f32.mrf.mxu0
        %v3584 = vadd.f32 %v3279, %v3583
        %v3585 = vpop.f32.mrf.mxu0
        %3586 = vmatprep.mubr.f32.mxu0 0.0
        %3587 = vmatmul.mubr.f32.gmra.mxu0 %v1634
        %v3588 = vpop.f32.mrf.mxu0
        %v3589 = vadd.f32 %v3284, %v3588
        %v3590 = vpop.f32.mrf.mxu0
        %3591 = vmatprep.mubr.f32.mxu0 0.0
        %3592 = vmatmul.mubr.f32.gmra.mxu0 %v1636
        %v3593 = vpop.f32.mrf.mxu0
        %v3594 = vadd.f32 %v3289, %v3593
        %v3595 = vpop.f32.mrf.mxu0
        %3596 = vmatprep.mubr.f32.mxu0 0.0
        %3597 = vmatmul.mubr.f32.gmra.mxu0 %v1638
        %v3598 = vpop.f32.mrf.mxu0
        %v3599 = vadd.f32 %v3294, %v3598
        %v3600 = vpop.f32.mrf.mxu0
        %3601 = vmatprep.mubr.f32.mxu0 0.0
        %3602 = vmatmul.mubr.f32.gmra.mxu0 %v1640
        %v3603 = vpop.f32.mrf.mxu0
        %v3604 = vadd.f32 %v3299, %v3603
        %v3605 = vpop.f32.mrf.mxu0
        %3606 = vmatprep.mubr.f32.mxu0 0.0
        %3607 = vmatmul.mubr.f32.gmra.mxu0 %v1642
        %v3608 = vpop.f32.mrf.mxu0
        %v3609 = vadd.f32 %v3304, %v3608
        %v3610 = vpop.f32.mrf.mxu0
        %3611 = vmatprep.mubr.f32.mxu0 0.0
        %3612 = vmatmul.mubr.f32.gmra.mxu0 %v1644
        %v3613 = vpop.f32.mrf.mxu0
        %v3614 = vadd.f32 %v3309, %v3613
        %v3615 = vpop.f32.mrf.mxu0
        %3616 = vmatprep.mubr.f32.mxu0 0.0
        %3617 = vmatmul.mubr.f32.gmra.mxu0 %v1646
        %v3618 = vpop.f32.mrf.mxu0
        %v3619 = vadd.f32 %v3314, %v3618
        %v3620 = vpop.f32.mrf.mxu0
        %3621 = vmatprep.mubr.f32.mxu0 0.0
        %3622 = vmatmul.mubr.f32.gmra.mxu0 %v1648
        %v3623 = vpop.f32.mrf.mxu0
        %v3624 = vadd.f32 %v3319, %v3623
        %v3625 = vpop.f32.mrf.mxu0
        %3626 = vmatprep.mubr.f32.mxu0 0.0
        %3627 = vmatmul.mubr.f32.gmra.mxu0 %v1650
        %v3628 = vpop.f32.mrf.mxu0
        %v3629 = vadd.f32 %v3324, %v3628
        %v3630 = vpop.f32.mrf.mxu0
        %3631 = vmatprep.mubr.f32.mxu0 0.0
        %3632 = vmatmul.mubr.f32.gmra.mxu0 %v1652
        %v3633 = vpop.f32.mrf.mxu0
        %v3634 = vadd.f32 %v3329, %v3633
        %v3635 = vpop.f32.mrf.mxu0
        %3636 = vmatprep.mubr.f32.mxu0 0.0
        %3637 = vmatmul.mubr.f32.gmra.mxu0 %v1654
        %v3638 = vpop.f32.mrf.mxu0
        %v3639 = vadd.f32 %v3334, %v3638
        %v3640 = vpop.f32.mrf.mxu0
        %3641 = vmatprep.mubr.f32.mxu0 0.0
        %3642 = vmatmul.mubr.f32.gmra.mxu0 %v1656
        %v3643 = vpop.f32.mrf.mxu0
        %v3644 = vadd.f32 %v3339, %v3643
        %v3645 = vpop.f32.mrf.mxu0
        %3646 = vmatprep.mubr.f32.mxu0 0.0
        %3647 = vmatmul.mubr.f32.gmra.mxu0 %v1658
        %v3648 = vpop.f32.mrf.mxu0
        %v3649 = vadd.f32 %v3344, %v3648
        %v3650 = vpop.f32.mrf.mxu0
        %3651 = vmatprep.mubr.f32.mxu0 0.0
        %3652 = vmatmul.mubr.f32.gmra.mxu0 %v1660
        %v3653 = vpop.f32.mrf.mxu0
        %v3654 = vadd.f32 %v3349, %v3653
        %v3655 = vpop.f32.mrf.mxu0
        %3656 = vmatprep.mubr.f32.mxu0 0.0
        %3657 = vmatmul.mubr.f32.gmra.mxu0 %v1662
        %v3658 = vpop.f32.mrf.mxu0
        %v3659 = vadd.f32 %v3354, %v3658
        %v3660 = vpop.f32.mrf.mxu0
        %3661 = vmatprep.mubr.f32.mxu0 0.0
        %3662 = vmatmul.mubr.f32.gmra.mxu0 %v1664
        %v3663 = vpop.f32.mrf.mxu0
        %v3664 = vadd.f32 %v3359, %v3663
        %v3665 = vpop.f32.mrf.mxu0
        %3666 = vmatprep.mubr.f32.mxu0 0.0
        %3667 = vmatmul.mubr.f32.gmra.mxu0 %v1666
        %v3668 = vpop.f32.mrf.mxu0
        %v3669 = vadd.f32 %v3364, %v3668
        %v3670 = vpop.f32.mrf.mxu0
        %3671 = vmatprep.mubr.f32.mxu0 0.0
        %3672 = vmatmul.mubr.f32.gmra.mxu0 %v1668
        %v3673 = vpop.f32.mrf.mxu0
        %v3674 = vadd.f32 %v3369, %v3673
        %v3675 = vpop.f32.mrf.mxu0
        %3676 = vmatprep.mubr.f32.mxu0 0.0
        %3677 = vmatmul.mubr.f32.gmra.mxu0 %v1670
        %v3678 = vpop.f32.mrf.mxu0
        %v3679 = vadd.f32 %v3374, %v3678
        %v3680 = vpop.f32.mrf.mxu0
        %3681 = vmatprep.mubr.f32.mxu0 0.0
        %3682 = vmatmul.mubr.f32.gmra.mxu0 %v1672
        %v3683 = vpop.f32.mrf.mxu0
        %v3684 = vadd.f32 %v3379, %v3683
        %v3685 = vpop.f32.mrf.mxu0
        %3686 = vmatprep.mubr.f32.mxu0 0.0
        %3687 = vmatmul.mubr.f32.gmra.mxu0 %v1674
        %v3688 = vpop.f32.mrf.mxu0
        %v3689 = vadd.f32 %v3384, %v3688
        %v3690 = vpop.f32.mrf.mxu0
        %3691 = vmatprep.mubr.f32.mxu0 0.0
        %3692 = vmatmul.mubr.f32.gmra.mxu0 %v1676
        %v3693 = vpop.f32.mrf.mxu0
        %v3694 = vadd.f32 %v3389, %v3693
        %v3695 = vpop.f32.mrf.mxu0
        %3696 = vmatprep.mubr.f32.mxu0 0.0
        %3697 = vmatmul.mubr.f32.gmra.mxu0 %v1678
        %v3698 = vpop.f32.mrf.mxu0
        %v3699 = vadd.f32 %v3394, %v3698
        %v3700 = vpop.f32.mrf.mxu0
        %3701 = vmatprep.mubr.f32.mxu0 0.0
        %3702 = vmatmul.mubr.f32.gmra.mxu0 %v1680
        %v3703 = vpop.f32.mrf.mxu0
        %v3704 = vadd.f32 %v3399, %v3703
        %v3705 = vpop.f32.mrf.mxu0
        %3706 = vmatprep.mubr.f32.mxu0 0.0
        %3707 = vmatmul.mubr.f32.gmra.mxu0 %v1735
        %v3708 = vpop.f32.mrf.mxu0
        %v3709 = vadd.f32 %v3404, %v3708
        %v3710 = vpop.f32.mrf.mxu0
        %3711 = vdwg.mxu0
        %v3712 = vadd.f32 %v2815, %v3474
        %v3713 = vadd.f32 %v2820, %v3479
        %v3714 = vadd.f32 %v2825, %v3484
        %v3715 = vadd.f32 %v2830, %v3489
        %v3716 = vadd.f32 %v2835, %v3494
        %v3717 = vadd.f32 %v2840, %v3499
        %v3718 = vadd.f32 %v2845, %v3504
        %v3719 = vadd.f32 %v2850, %v3509
        %v3720 = vadd.f32 %v2855, %v3514
        %v3721 = vadd.f32 %v2860, %v3519
        %v3722 = vadd.f32 %v2865, %v3524
        %v3723 = vadd.f32 %v2870, %v3529
        %v3724 = vadd.f32 %v2875, %v3534
        %v3725 = vadd.f32 %v2880, %v3539
        %v3726 = vadd.f32 %v2885, %v3544
        %v3727 = vadd.f32 %v2890, %v3549
        %v3728 = vadd.f32 %v2895, %v3554
        %v3729 = vadd.f32 %v2900, %v3559
        %v3730 = vadd.f32 %v2905, %v3564
        %v3731 = vadd.f32 %v2910, %v3569
        %v3732 = vadd.f32 %v2915, %v3574
        %v3733 = vadd.f32 %v2920, %v3579
        %v3734 = vadd.f32 %v2925, %v3584
        %v3735 = vadd.f32 %v2930, %v3589
        %v3736 = vadd.f32 %v2935, %v3594
        %v3737 = vadd.f32 %v2940, %v3599
        %v3738 = vadd.f32 %v2945, %v3604
        %v3739 = vadd.f32 %v2950, %v3609
        %v3740 = vadd.f32 %v2955, %v3614
        %v3741 = vadd.f32 %v2960, %v3619
        %v3742 = vadd.f32 %v2965, %v3624
        %v3743 = vadd.f32 %v2970, %v3629
        %v3744 = vadd.f32 %v2975, %v3634
        %v3745 = vadd.f32 %v2980, %v3639
        %v3746 = vadd.f32 %v2985, %v3644
        %v3747 = vadd.f32 %v2990, %v3649
        %v3748 = vadd.f32 %v2995, %v3654
        %v3749 = vadd.f32 %v3000, %v3659
        %v3750 = vadd.f32 %v3005, %v3664
        %v3751 = vadd.f32 %v3010, %v3669
        %v3752 = vadd.f32 %v3015, %v3674
        %v3753 = vadd.f32 %v3020, %v3679
        %v3754 = vadd.f32 %v3025, %v3684
        %v3755 = vadd.f32 %v3030, %v3689
        %v3756 = vadd.f32 %v3035, %v3694
        %v3757 = vadd.f32 %v3040, %v3699
        %v3758 = vadd.f32 %v3045, %v3704
        %v3759 = vadd.f32 %v3050, %v3709
        %v3760 = vld [vmem:[%s2] sm:$0x1]
        %v3762 = vlaneseq
        %v3763 = vshrl.u32 %v3762, 7
        %v3764 = vsub.s32 0, %v3763
        %v3765 = vrot.slane %v3760, %v3764
        %v3767 = vadd.f32 %v3712, %v3765
        %v3768 = vadd.f32 %v3713, %v3765
        %v3769 = vadd.f32 %v3714, %v3765
        %v3770 = vadd.f32 %v3715, %v3765
        %v3771 = vadd.f32 %v3716, %v3765
        %v3772 = vadd.f32 %v3717, %v3765
        %v3773 = vadd.f32 %v3718, %v3765
        %v3774 = vadd.f32 %v3719, %v3765
        %v3775 = vadd.f32 %v3720, %v3765
        %v3776 = vadd.f32 %v3721, %v3765
        %v3777 = vadd.f32 %v3722, %v3765
        %v3778 = vadd.f32 %v3723, %v3765
        %v3779 = vadd.f32 %v3724, %v3765
        %v3780 = vadd.f32 %v3725, %v3765
        %v3781 = vadd.f32 %v3726, %v3765
        %v3782 = vadd.f32 %v3727, %v3765
        %v3783 = vadd.f32 %v3728, %v3765
        %v3784 = vadd.f32 %v3729, %v3765
        %v3785 = vadd.f32 %v3730, %v3765
        %v3786 = vadd.f32 %v3731, %v3765
        %v3787 = vadd.f32 %v3732, %v3765
        %v3788 = vadd.f32 %v3733, %v3765
        %v3789 = vadd.f32 %v3734, %v3765
        %v3790 = vadd.f32 %v3735, %v3765
        %v3791 = vadd.f32 %v3736, %v3765
        %v3792 = vadd.f32 %v3737, %v3765
        %v3793 = vadd.f32 %v3738, %v3765
        %v3794 = vadd.f32 %v3739, %v3765
        %v3795 = vadd.f32 %v3740, %v3765
        %v3796 = vadd.f32 %v3741, %v3765
        %v3797 = vadd.f32 %v3742, %v3765
        %v3798 = vadd.f32 %v3743, %v3765
        %v3799 = vadd.f32 %v3744, %v3765
        %v3800 = vadd.f32 %v3745, %v3765
        %v3801 = vadd.f32 %v3746, %v3765
        %v3802 = vadd.f32 %v3747, %v3765
        %v3803 = vadd.f32 %v3748, %v3765
        %v3804 = vadd.f32 %v3749, %v3765
        %v3805 = vadd.f32 %v3750, %v3765
        %v3806 = vadd.f32 %v3751, %v3765
        %v3807 = vadd.f32 %v3752, %v3765
        %v3808 = vadd.f32 %v3753, %v3765
        %v3809 = vadd.f32 %v3754, %v3765
        %v3810 = vadd.f32 %v3755, %v3765
        %v3811 = vadd.f32 %v3756, %v3765
        %v3812 = vadd.f32 %v3757, %v3765
        %v3813 = vadd.f32 %v3758, %v3765
        %v3814 = vadd.f32 %v3759, %v3765
        %vm3815 = vcmp.gt.f32.partialorder %v3767, 0.0
        %vm3816 = vcmp.gt.f32.partialorder %v3768, 0.0
        %vm3817 = vcmp.gt.f32.partialorder %v3769, 0.0
        %vm3818 = vcmp.gt.f32.partialorder %v3770, 0.0
        %vm3819 = vcmp.gt.f32.partialorder %v3771, 0.0
        %vm3820 = vcmp.gt.f32.partialorder %v3772, 0.0
        %vm3821 = vcmp.gt.f32.partialorder %v3773, 0.0
        %vm3822 = vcmp.gt.f32.partialorder %v3774, 0.0
        %vm3823 = vcmp.gt.f32.partialorder %v3775, 0.0
        %vm3824 = vcmp.gt.f32.partialorder %v3776, 0.0
        %vm3825 = vcmp.gt.f32.partialorder %v3777, 0.0
        %vm3826 = vcmp.gt.f32.partialorder %v3778, 0.0
        %vm3827 = vcmp.gt.f32.partialorder %v3779, 0.0
        %vm3828 = vcmp.gt.f32.partialorder %v3780, 0.0
        %vm3829 = vcmp.gt.f32.partialorder %v3781, 0.0
        %vm3830 = vcmp.gt.f32.partialorder %v3782, 0.0
        %vm3831 = vcmp.gt.f32.partialorder %v3783, 0.0
        %vm3832 = vcmp.gt.f32.partialorder %v3784, 0.0
        %vm3833 = vcmp.gt.f32.partialorder %v3785, 0.0
        %vm3834 = vcmp.gt.f32.partialorder %v3786, 0.0
        %vm3835 = vcmp.gt.f32.partialorder %v3787, 0.0
        %vm3836 = vcmp.gt.f32.partialorder %v3788, 0.0
        %vm3837 = vcmp.gt.f32.partialorder %v3789, 0.0
        %vm3838 = vcmp.gt.f32.partialorder %v3790, 0.0
        %vm3839 = vcmp.gt.f32.partialorder %v3791, 0.0
        %vm3840 = vcmp.gt.f32.partialorder %v3792, 0.0
        %vm3841 = vcmp.gt.f32.partialorder %v3793, 0.0
        %vm3842 = vcmp.gt.f32.partialorder %v3794, 0.0
        %vm3843 = vcmp.gt.f32.partialorder %v3795, 0.0
        %vm3844 = vcmp.gt.f32.partialorder %v3796, 0.0
        %vm3845 = vcmp.gt.f32.partialorder %v3797, 0.0
        %vm3846 = vcmp.gt.f32.partialorder %v3798, 0.0
        %vm3847 = vcmp.gt.f32.partialorder %v3799, 0.0
        %vm3848 = vcmp.gt.f32.partialorder %v3800, 0.0
        %vm3849 = vcmp.gt.f32.partialorder %v3801, 0.0
        %vm3850 = vcmp.gt.f32.partialorder %v3802, 0.0
        %vm3851 = vcmp.gt.f32.partialorder %v3803, 0.0
        %vm3852 = vcmp.gt.f32.partialorder %v3804, 0.0
        %vm3853 = vcmp.gt.f32.partialorder %v3805, 0.0
        %vm3854 = vcmp.gt.f32.partialorder %v3806, 0.0
        %vm3855 = vcmp.gt.f32.partialorder %v3807, 0.0
        %vm3856 = vcmp.gt.f32.partialorder %v3808, 0.0
        %vm3857 = vcmp.gt.f32.partialorder %v3809, 0.0
        %vm3858 = vcmp.gt.f32.partialorder %v3810, 0.0
        %vm3859 = vcmp.gt.f32.partialorder %v3811, 0.0
        %vm3860 = vcmp.gt.f32.partialorder %v3812, 0.0
        %vm3861 = vcmp.gt.f32.partialorder %v3813, 0.0
        %vm3862 = vcmp.gt.f32.partialorder %v3814, 0.0
        %v3863 = vmul.f32 %v3767, 0.2
        %v3864 = vmul.f32 %v3768, 0.2
        %v3865 = vmul.f32 %v3769, 0.2
        %v3866 = vmul.f32 %v3770, 0.2
        %v3867 = vmul.f32 %v3771, 0.2
        %v3868 = vmul.f32 %v3772, 0.2
        %v3869 = vmul.f32 %v3773, 0.2
        %v3870 = vmul.f32 %v3774, 0.2
        %v3871 = vmul.f32 %v3775, 0.2
        %v3872 = vmul.f32 %v3776, 0.2
        %v3873 = vmul.f32 %v3777, 0.2
        %v3874 = vmul.f32 %v3778, 0.2
        %v3875 = vmul.f32 %v3779, 0.2
        %v3876 = vmul.f32 %v3780, 0.2
        %v3877 = vmul.f32 %v3781, 0.2
        %v3878 = vmul.f32 %v3782, 0.2
        %v3879 = vmul.f32 %v3783, 0.2
        %v3880 = vmul.f32 %v3784, 0.2
        %v3881 = vmul.f32 %v3785, 0.2
        %v3882 = vmul.f32 %v3786, 0.2
        %v3883 = vmul.f32 %v3787, 0.2
        %v3884 = vmul.f32 %v3788, 0.2
        %v3885 = vmul.f32 %v3789, 0.2
        %v3886 = vmul.f32 %v3790, 0.2
        %v3887 = vmul.f32 %v3791, 0.2
        %v3888 = vmul.f32 %v3792, 0.2
        %v3889 = vmul.f32 %v3793, 0.2
        %v3890 = vmul.f32 %v3794, 0.2
        %v3891 = vmul.f32 %v3795, 0.2
        %v3892 = vmul.f32 %v3796, 0.2
        %v3893 = vmul.f32 %v3797, 0.2
        %v3894 = vmul.f32 %v3798, 0.2
        %v3895 = vmul.f32 %v3799, 0.2
        %v3896 = vmul.f32 %v3800, 0.2
        %v3897 = vmul.f32 %v3801, 0.2
        %v3898 = vmul.f32 %v3802, 0.2
        %v3899 = vmul.f32 %v3803, 0.2
        %v3900 = vmul.f32 %v3804, 0.2
        %v3901 = vmul.f32 %v3805, 0.2
        %v3902 = vmul.f32 %v3806, 0.2
        %v3903 = vmul.f32 %v3807, 0.2
        %v3904 = vmul.f32 %v3808, 0.2
        %v3905 = vmul.f32 %v3809, 0.2
        %v3906 = vmul.f32 %v3810, 0.2
        %v3907 = vmul.f32 %v3811, 0.2
        %v3908 = vmul.f32 %v3812, 0.2
        %v3909 = vmul.f32 %v3813, 0.2
        %v3910 = vmul.f32 %v3814, 0.2
        %v3911 = vsel %vm3815, %v3767, %v3863
        %v3912 = vsel %vm3816, %v3768, %v3864
        %v3913 = vsel %vm3817, %v3769, %v3865
        %v3914 = vsel %vm3818, %v3770, %v3866
        %v3915 = vsel %vm3819, %v3771, %v3867
        %v3916 = vsel %vm3820, %v3772, %v3868
        %v3917 = vsel %vm3821, %v3773, %v3869
        %v3918 = vsel %vm3822, %v3774, %v3870
        %v3919 = vsel %vm3823, %v3775, %v3871
        %v3920 = vsel %vm3824, %v3776, %v3872
        %v3921 = vsel %vm3825, %v3777, %v3873
        %v3922 = vsel %vm3826, %v3778, %v3874
        %v3923 = vsel %vm3827, %v3779, %v3875
        %v3924 = vsel %vm3828, %v3780, %v3876
        %v3925 = vsel %vm3829, %v3781, %v3877
        %v3926 = vsel %vm3830, %v3782, %v3878
        %v3927 = vsel %vm3831, %v3783, %v3879
        %v3928 = vsel %vm3832, %v3784, %v3880
        %v3929 = vsel %vm3833, %v3785, %v3881
        %v3930 = vsel %vm3834, %v3786, %v3882
        %v3931 = vsel %vm3835, %v3787, %v3883
        %v3932 = vsel %vm3836, %v3788, %v3884
        %v3933 = vsel %vm3837, %v3789, %v3885
        %v3934 = vsel %vm3838, %v3790, %v3886
        %v3935 = vsel %vm3839, %v3791, %v3887
        %v3936 = vsel %vm3840, %v3792, %v3888
        %v3937 = vsel %vm3841, %v3793, %v3889
        %v3938 = vsel %vm3842, %v3794, %v3890
        %v3939 = vsel %vm3843, %v3795, %v3891
        %v3940 = vsel %vm3844, %v3796, %v3892
        %v3941 = vsel %vm3845, %v3797, %v3893
        %v3942 = vsel %vm3846, %v3798, %v3894
        %v3943 = vsel %vm3847, %v3799, %v3895
        %v3944 = vsel %vm3848, %v3800, %v3896
        %v3945 = vsel %vm3849, %v3801, %v3897
        %v3946 = vsel %vm3850, %v3802, %v3898
        %v3947 = vsel %vm3851, %v3803, %v3899
        %v3948 = vsel %vm3852, %v3804, %v3900
        %v3949 = vsel %vm3853, %v3805, %v3901
        %v3950 = vsel %vm3854, %v3806, %v3902
        %v3951 = vsel %vm3855, %v3807, %v3903
        %v3952 = vsel %vm3856, %v3808, %v3904
        %v3953 = vsel %vm3857, %v3809, %v3905
        %v3954 = vsel %vm3858, %v3810, %v3906
        %v3955 = vsel %vm3859, %v3811, %v3907
        %v3956 = vsel %vm3860, %v3812, %v3908
        %v3957 = vsel %vm3861, %v3813, %v3909
        %v3958 = vsel %vm3862, %v3814, %v3910
        %v3959 = vsel %vm1254, %v3911, 0.0
        %v3960 = vsel %vm1255, %v3912, 0.0
        %v3961 = vsel %vm1256, %v3913, 0.0
        %v3962 = vsel %vm1257, %v3914, 0.0
        %v3963 = vsel %vm1258, %v3915, 0.0
        %v3964 = vsel %vm1259, %v3916, 0.0
        %v3965 = vsel %vm1260, %v3917, 0.0
        %v3966 = vsel %vm1261, %v3918, 0.0
        %v3967 = vsel %vm1262, %v3919, 0.0
        %v3968 = vsel %vm1263, %v3920, 0.0
        %v3969 = vsel %vm1264, %v3921, 0.0
        %v3970 = vsel %vm1265, %v3922, 0.0
        %v3971 = vsel %vm1266, %v3923, 0.0
        %v3972 = vsel %vm1267, %v3924, 0.0
        %v3973 = vsel %vm1268, %v3925, 0.0
        %v3974 = vsel %vm1269, %v3926, 0.0
        %v3975 = vsel %vm1270, %v3927, 0.0
        %v3976 = vsel %vm1271, %v3928, 0.0
        %v3977 = vsel %vm1272, %v3929, 0.0
        %v3978 = vsel %vm1273, %v3930, 0.0
        %v3979 = vsel %vm1274, %v3931, 0.0
        %v3980 = vsel %vm1275, %v3932, 0.0
        %v3981 = vsel %vm1276, %v3933, 0.0
        %v3982 = vsel %vm1277, %v3934, 0.0
        %v3983 = vsel %vm1278, %v3935, 0.0
        %v3984 = vsel %vm1279, %v3936, 0.0
        %v3985 = vsel %vm1280, %v3937, 0.0
        %v3986 = vsel %vm1281, %v3938, 0.0
        %v3987 = vsel %vm1282, %v3939, 0.0
        %v3988 = vsel %vm1283, %v3940, 0.0
        %v3989 = vsel %vm1284, %v3941, 0.0
        %v3990 = vsel %vm1285, %v3942, 0.0
        %v3991 = vsel %vm1286, %v3943, 0.0
        %v3992 = vsel %vm1287, %v3944, 0.0
        %v3993 = vsel %vm1288, %v3945, 0.0
        %v3994 = vsel %vm1289, %v3946, 0.0
        %v3995 = vsel %vm1290, %v3947, 0.0
        %v3996 = vsel %vm1291, %v3948, 0.0
        %v3997 = vsel %vm1292, %v3949, 0.0
        %v3998 = vsel %vm1293, %v3950, 0.0
        %v3999 = vsel %vm1294, %v3951, 0.0
        %v4000 = vsel %vm1295, %v3952, 0.0
        %v4001 = vsel %vm1296, %v3953, 0.0
        %v4002 = vsel %vm1297, %v3954, 0.0
        %v4003 = vsel %vm1298, %v3955, 0.0
        %v4004 = vsel %vm1299, %v3956, 0.0
        %v4005 = vsel %vm1300, %v3957, 0.0
        %v4006 = vsel %vm1301, %v3958, 0.0
        %v4056 = vrot.slane 0.0, 7
        %v4057 = vsel %vm1410, %v4056, %v4056
        %v4058 = vrot.slane %v3959, 7
        %v4059 = vsel %vm1410, %v4056, %v4058
        %v4060 = vrot.slane %v3960, 7
        %v4061 = vsel %vm1410, %v4058, %v4060
        %v4062 = vrot.slane %v3961, 7
        %v4063 = vsel %vm1410, %v4060, %v4062
        %v4064 = vrot.slane %v3962, 7
        %v4065 = vsel %vm1410, %v4062, %v4064
        %v4066 = vrot.slane %v3963, 7
        %v4067 = vsel %vm1410, %v4064, %v4066
        %v4068 = vrot.slane %v3964, 7
        %v4069 = vsel %vm1410, %v4066, %v4068
        %v4070 = vrot.slane %v3965, 7
        %v4071 = vsel %vm1410, %v4068, %v4070
        %v4072 = vrot.slane %v3966, 7
        %v4073 = vsel %vm1410, %v4070, %v4072
        %v4074 = vrot.slane %v3967, 7
        %v4075 = vsel %vm1410, %v4072, %v4074
        %v4076 = vrot.slane %v3968, 7
        %v4077 = vsel %vm1410, %v4074, %v4076
        %v4078 = vrot.slane %v3969, 7
        %v4079 = vsel %vm1410, %v4076, %v4078
        %v4080 = vrot.slane %v3970, 7
        %v4081 = vsel %vm1410, %v4078, %v4080
        %v4082 = vrot.slane %v3971, 7
        %v4083 = vsel %vm1410, %v4080, %v4082
        %v4084 = vrot.slane %v3972, 7
        %v4085 = vsel %vm1410, %v4082, %v4084
        %v4086 = vrot.slane %v3973, 7
        %v4087 = vsel %vm1410, %v4084, %v4086
        %v4088 = vrot.slane %v3974, 7
        %v4089 = vsel %vm1410, %v4086, %v4088
        %v4090 = vrot.slane %v3975, 7
        %v4091 = vsel %vm1410, %v4088, %v4090
        %v4092 = vrot.slane %v3976, 7
        %v4093 = vsel %vm1410, %v4090, %v4092
        %v4094 = vrot.slane %v3977, 7
        %v4095 = vsel %vm1410, %v4092, %v4094
        %v4096 = vrot.slane %v3978, 7
        %v4097 = vsel %vm1410, %v4094, %v4096
        %v4098 = vrot.slane %v3979, 7
        %v4099 = vsel %vm1410, %v4096, %v4098
        %v4100 = vrot.slane %v3980, 7
        %v4101 = vsel %vm1410, %v4098, %v4100
        %v4102 = vrot.slane %v3981, 7
        %v4103 = vsel %vm1410, %v4100, %v4102
        %v4104 = vrot.slane %v3982, 7
        %v4105 = vsel %vm1410, %v4102, %v4104
        %v4106 = vrot.slane %v3983, 7
        %v4107 = vsel %vm1410, %v4104, %v4106
        %v4108 = vrot.slane %v3984, 7
        %v4109 = vsel %vm1410, %v4106, %v4108
        %v4110 = vrot.slane %v3985, 7
        %v4111 = vsel %vm1410, %v4108, %v4110
        %v4112 = vrot.slane %v3986, 7
        %v4113 = vsel %vm1410, %v4110, %v4112
        %v4114 = vrot.slane %v3987, 7
        %v4115 = vsel %vm1410, %v4112, %v4114
        %v4116 = vrot.slane %v3988, 7
        %v4117 = vsel %vm1410, %v4114, %v4116
        %v4118 = vrot.slane %v3989, 7
        %v4119 = vsel %vm1410, %v4116, %v4118
        %v4120 = vrot.slane %v3990, 7
        %v4121 = vsel %vm1410, %v4118, %v4120
        %v4122 = vrot.slane %v3991, 7
        %v4123 = vsel %vm1410, %v4120, %v4122
        %v4124 = vrot.slane %v3992, 7
        %v4125 = vsel %vm1410, %v4122, %v4124
        %v4126 = vrot.slane %v3993, 7
        %v4127 = vsel %vm1410, %v4124, %v4126
        %v4128 = vrot.slane %v3994, 7
        %v4129 = vsel %vm1410, %v4126, %v4128
        %v4130 = vrot.slane %v3995, 7
        %v4131 = vsel %vm1410, %v4128, %v4130
        %v4132 = vrot.slane %v3996, 7
        %v4133 = vsel %vm1410, %v4130, %v4132
        %v4134 = vrot.slane %v3997, 7
        %v4135 = vsel %vm1410, %v4132, %v4134
        %v4136 = vrot.slane %v3998, 7
        %v4137 = vsel %vm1410, %v4134, %v4136
        %v4138 = vrot.slane %v3999, 7
        %v4139 = vsel %vm1410, %v4136, %v4138
        %v4140 = vrot.slane %v4000, 7
        %v4141 = vsel %vm1410, %v4138, %v4140
        %v4142 = vrot.slane %v4001, 7
        %v4143 = vsel %vm1410, %v4140, %v4142
        %v4144 = vrot.slane %v4002, 7
        %v4145 = vsel %vm1410, %v4142, %v4144
        %v4146 = vrot.slane %v4003, 7
        %v4147 = vsel %vm1410, %v4144, %v4146
        %v4148 = vrot.slane %v4004, 7
        %v4149 = vsel %vm1410, %v4146, %v4148
        %v4150 = vrot.slane %v4005, 7
        %v4151 = vsel %vm1410, %v4148, %v4150
        %v4152 = vrot.slane %v4006, 7
        %v4153 = vsel %vm1410, %v4150, %v4152
        %v4154 = vsel %vm1410, %v4152, %v4056
        %v4206 = vsel %vm1410, 0.0, %v4056
        %v4207 = vrot.slane 0.0, 1
        %v4208 = vsel %vm1573, %v4207, %v4207
        %v4209 = vrot.slane %v3959, 1
        %v4210 = vsel %vm1573, %v4207, %v4209
        %v4211 = vrot.slane %v3960, 1
        %v4212 = vsel %vm1573, %v4209, %v4211
        %v4213 = vrot.slane %v3961, 1
        %v4214 = vsel %vm1573, %v4211, %v4213
        %v4215 = vrot.slane %v3962, 1
        %v4216 = vsel %vm1573, %v4213, %v4215
        %v4217 = vrot.slane %v3963, 1
        %v4218 = vsel %vm1573, %v4215, %v4217
        %v4219 = vrot.slane %v3964, 1
        %v4220 = vsel %vm1573, %v4217, %v4219
        %v4221 = vrot.slane %v3965, 1
        %v4222 = vsel %vm1573, %v4219, %v4221
        %v4223 = vrot.slane %v3966, 1
        %v4224 = vsel %vm1573, %v4221, %v4223
        %v4225 = vrot.slane %v3967, 1
        %v4226 = vsel %vm1573, %v4223, %v4225
        %v4227 = vrot.slane %v3968, 1
        %v4228 = vsel %vm1573, %v4225, %v4227
        %v4229 = vrot.slane %v3969, 1
        %v4230 = vsel %vm1573, %v4227, %v4229
        %v4231 = vrot.slane %v3970, 1
        %v4232 = vsel %vm1573, %v4229, %v4231
        %v4233 = vrot.slane %v3971, 1
        %v4234 = vsel %vm1573, %v4231, %v4233
        %v4235 = vrot.slane %v3972, 1
        %v4236 = vsel %vm1573, %v4233, %v4235
        %v4237 = vrot.slane %v3973, 1
        %v4238 = vsel %vm1573, %v4235, %v4237
        %v4239 = vrot.slane %v3974, 1
        %v4240 = vsel %vm1573, %v4237, %v4239
        %v4241 = vrot.slane %v3975, 1
        %v4242 = vsel %vm1573, %v4239, %v4241
        %v4243 = vrot.slane %v3976, 1
        %v4244 = vsel %vm1573, %v4241, %v4243
        %v4245 = vrot.slane %v3977, 1
        %v4246 = vsel %vm1573, %v4243, %v4245
        %v4247 = vrot.slane %v3978, 1
        %v4248 = vsel %vm1573, %v4245, %v4247
        %v4249 = vrot.slane %v3979, 1
        %v4250 = vsel %vm1573, %v4247, %v4249
        %v4251 = vrot.slane %v3980, 1
        %v4252 = vsel %vm1573, %v4249, %v4251
        %v4253 = vrot.slane %v3981, 1
        %v4254 = vsel %vm1573, %v4251, %v4253
        %v4255 = vrot.slane %v3982, 1
        %v4256 = vsel %vm1573, %v4253, %v4255
        %v4257 = vrot.slane %v3983, 1
        %v4258 = vsel %vm1573, %v4255, %v4257
        %v4259 = vrot.slane %v3984, 1
        %v4260 = vsel %vm1573, %v4257, %v4259
        %v4261 = vrot.slane %v3985, 1
        %v4262 = vsel %vm1573, %v4259, %v4261
        %v4263 = vrot.slane %v3986, 1
        %v4264 = vsel %vm1573, %v4261, %v4263
        %v4265 = vrot.slane %v3987, 1
        %v4266 = vsel %vm1573, %v4263, %v4265
        %v4267 = vrot.slane %v3988, 1
        %v4268 = vsel %vm1573, %v4265, %v4267
        %v4269 = vrot.slane %v3989, 1
        %v4270 = vsel %vm1573, %v4267, %v4269
        %v4271 = vrot.slane %v3990, 1
        %v4272 = vsel %vm1573, %v4269, %v4271
        %v4273 = vrot.slane %v3991, 1
        %v4274 = vsel %vm1573, %v4271, %v4273
        %v4275 = vrot.slane %v3992, 1
        %v4276 = vsel %vm1573, %v4273, %v4275
        %v4277 = vrot.slane %v3993, 1
        %v4278 = vsel %vm1573, %v4275, %v4277
        %v4279 = vrot.slane %v3994, 1
        %v4280 = vsel %vm1573, %v4277, %v4279
        %v4281 = vrot.slane %v3995, 1
        %v4282 = vsel %vm1573, %v4279, %v4281
        %v4283 = vrot.slane %v3996, 1
        %v4284 = vsel %vm1573, %v4281, %v4283
        %v4285 = vrot.slane %v3997, 1
        %v4286 = vsel %vm1573, %v4283, %v4285
        %v4287 = vrot.slane %v3998, 1
        %v4288 = vsel %vm1573, %v4285, %v4287
        %v4289 = vrot.slane %v3999, 1
        %v4290 = vsel %vm1573, %v4287, %v4289
        %v4291 = vrot.slane %v4000, 1
        %v4292 = vsel %vm1573, %v4289, %v4291
        %v4293 = vrot.slane %v4001, 1
        %v4294 = vsel %vm1573, %v4291, %v4293
        %v4295 = vrot.slane %v4002, 1
        %v4296 = vsel %vm1573, %v4293, %v4295
        %v4297 = vrot.slane %v4003, 1
        %v4298 = vsel %vm1573, %v4295, %v4297
        %v4299 = vrot.slane %v4004, 1
        %v4300 = vsel %vm1573, %v4297, %v4299
        %v4301 = vrot.slane %v4005, 1
        %v4302 = vsel %vm1573, %v4299, %v4301
        %v4303 = vrot.slane %v4006, 1
        %v4304 = vsel %vm1573, %v4301, %v4303
        %v4305 = vsel %vm1573, %v4303, %v4207
        %v4357 = vsel %vm1573, %v4207, 0.0
        %v4358 = vld [vmem:[#allocation7] sm:$0xff]
        %v4359 = vld [vmem:[#allocation7 + $0x8] sm:$0xff]
        %v4360 = vld [vmem:[#allocation7 + $0x10] sm:$0xff]
        %v4361 = vld [vmem:[#allocation7 + $0x18] sm:$0xff]
        %v4362 = vld [vmem:[#allocation7 + $0x20] sm:$0xff]
        %v4363 = vld [vmem:[#allocation7 + $0x28] sm:$0xff]
        %v4364 = vld [vmem:[#allocation7 + $0x30] sm:$0xff]
        %v4365 = vld [vmem:[#allocation7 + $0x38] sm:$0xff]
        %v4366 = vld [vmem:[#allocation7 + $0x40] sm:$0xff]
        %v4367 = vld [vmem:[#allocation7 + $0x48] sm:$0xff]
        %v4368 = vld [vmem:[#allocation7 + $0x50] sm:$0xff]
        %v4369 = vld [vmem:[#allocation7 + $0x58] sm:$0xff]
        %v4370 = vld [vmem:[#allocation7 + $0x60] sm:$0xff]
        %v4371 = vld [vmem:[#allocation7 + $0x68] sm:$0xff]
        %v4372 = vld [vmem:[#allocation7 + $0x70] sm:$0xff]
        %v4373 = vld [vmem:[#allocation7 + $0x78] sm:$0xff]
        %v4374 = vld [vmem:[#allocation7 + $0x80] sm:$0xff]
        %v4375 = vld [vmem:[#allocation7 + $0x88] sm:$0xff]
        %v4376 = vld [vmem:[#allocation7 + $0x90] sm:$0xff]
        %v4377 = vld [vmem:[#allocation7 + $0x98] sm:$0xff]
        %v4378 = vld [vmem:[#allocation7 + $0xa0] sm:$0xff]
        %v4379 = vld [vmem:[#allocation7 + $0xa8] sm:$0xff]
        %v4380 = vld [vmem:[#allocation7 + $0xb0] sm:$0xff]
        %v4381 = vld [vmem:[#allocation7 + $0xb8] sm:$0xff]
        %v4382 = vld [vmem:[#allocation7 + $0xc0] sm:$0xff]
        %v4383 = vld [vmem:[#allocation7 + $0xc8] sm:$0xff]
        %v4384 = vld [vmem:[#allocation7 + $0xd0] sm:$0xff]
        %v4385 = vld [vmem:[#allocation7 + $0xd8] sm:$0xff]
        %v4386 = vld [vmem:[#allocation7 + $0xe0] sm:$0xff]
        %v4387 = vld [vmem:[#allocation7 + $0xe8] sm:$0xff]
        %v4388 = vld [vmem:[#allocation7 + $0xf0] sm:$0xff]
        %v4389 = vld [vmem:[#allocation7 + $0xf8] sm:$0xff]
        %v4390 = vld [vmem:[#allocation7 + $0x100] sm:$0xff]
        %v4391 = vld [vmem:[#allocation7 + $0x108] sm:$0xff]
        %v4392 = vld [vmem:[#allocation7 + $0x110] sm:$0xff]
        %v4393 = vld [vmem:[#allocation7 + $0x118] sm:$0xff]
        %v4394 = vld [vmem:[#allocation7 + $0x120] sm:$0xff]
        %v4395 = vld [vmem:[#allocation7 + $0x128] sm:$0xff]
        %v4396 = vld [vmem:[#allocation7 + $0x130] sm:$0xff]
        %v4397 = vld [vmem:[#allocation7 + $0x138] sm:$0xff]
        %v4398 = vld [vmem:[#allocation7 + $0x140] sm:$0xff]
        %v4399 = vld [vmem:[#allocation7 + $0x148] sm:$0xff]
        %v4400 = vld [vmem:[#allocation7 + $0x150] sm:$0xff]
        %v4401 = vld [vmem:[#allocation7 + $0x158] sm:$0xff]
        %v4402 = vld [vmem:[#allocation7 + $0x160] sm:$0xff]
        %v4403 = vld [vmem:[#allocation7 + $0x168] sm:$0xff]
        %v4404 = vld [vmem:[#allocation7 + $0x170] sm:$0xff]
        %v4405 = vld [vmem:[#allocation7 + $0x178] sm:$0xff]
        %s4406 = scalar_lea.vmem [#allocation7], 384
        %v4407 = vld [vmem:[%s4406] sm:$0xff]
        %v4408 = vld [vmem:[%s4406 + $0x8] sm:$0xff]
        %v4409 = vld [vmem:[%s4406 + $0x10] sm:$0xff]
        %v4410 = vld [vmem:[%s4406 + $0x18] sm:$0xff]
        %v4411 = vld [vmem:[%s4406 + $0x20] sm:$0xff]
        %v4412 = vld [vmem:[%s4406 + $0x28] sm:$0xff]
        %v4413 = vld [vmem:[%s4406 + $0x30] sm:$0xff]
        %v4414 = vld [vmem:[%s4406 + $0x38] sm:$0xff]
        %v4415 = vld [vmem:[%s4406 + $0x40] sm:$0xff]
        %v4416 = vld [vmem:[%s4406 + $0x48] sm:$0xff]
        %v4417 = vld [vmem:[%s4406 + $0x50] sm:$0xff]
        %v4418 = vld [vmem:[%s4406 + $0x58] sm:$0xff]
        %v4419 = vld [vmem:[%s4406 + $0x60] sm:$0xff]
        %v4420 = vld [vmem:[%s4406 + $0x68] sm:$0xff]
        %v4421 = vld [vmem:[%s4406 + $0x70] sm:$0xff]
        %v4422 = vld [vmem:[%s4406 + $0x78] sm:$0xff]
        %v4423 = vld [vmem:[%s4406 + $0x80] sm:$0xff]
        %v4424 = vld [vmem:[%s4406 + $0x88] sm:$0xff]
        %v4425 = vld [vmem:[%s4406 + $0x90] sm:$0xff]
        %v4426 = vld [vmem:[%s4406 + $0x98] sm:$0xff]
        %v4427 = vld [vmem:[%s4406 + $0xa0] sm:$0xff]
        %v4428 = vld [vmem:[%s4406 + $0xa8] sm:$0xff]
        %v4429 = vld [vmem:[%s4406 + $0xb0] sm:$0xff]
        %v4430 = vld [vmem:[%s4406 + $0xb8] sm:$0xff]
        %v4431 = vld [vmem:[%s4406 + $0xc0] sm:$0xff]
        %v4432 = vld [vmem:[%s4406 + $0xc8] sm:$0xff]
        %v4433 = vld [vmem:[%s4406 + $0xd0] sm:$0xff]
        %v4434 = vld [vmem:[%s4406 + $0xd8] sm:$0xff]
        %v4435 = vld [vmem:[%s4406 + $0xe0] sm:$0xff]
        %v4436 = vld [vmem:[%s4406 + $0xe8] sm:$0xff]
        %v4437 = vld [vmem:[%s4406 + $0xf0] sm:$0xff]
        %v4438 = vld [vmem:[%s4406 + $0xf8] sm:$0xff]
        %v4439 = vld [vmem:[%s4406 + $0x100] sm:$0xff]
        %v4440 = vld [vmem:[%s4406 + $0x108] sm:$0xff]
        %v4441 = vld [vmem:[%s4406 + $0x110] sm:$0xff]
        %v4442 = vld [vmem:[%s4406 + $0x118] sm:$0xff]
        %v4443 = vld [vmem:[%s4406 + $0x120] sm:$0xff]
        %v4444 = vld [vmem:[%s4406 + $0x128] sm:$0xff]
        %v4445 = vld [vmem:[%s4406 + $0x130] sm:$0xff]
        %v4446 = vld [vmem:[%s4406 + $0x138] sm:$0xff]
        %v4447 = vld [vmem:[%s4406 + $0x140] sm:$0xff]
        %v4448 = vld [vmem:[%s4406 + $0x148] sm:$0xff]
        %v4449 = vld [vmem:[%s4406 + $0x150] sm:$0xff]
        %v4450 = vld [vmem:[%s4406 + $0x158] sm:$0xff]
        %v4451 = vld [vmem:[%s4406 + $0x160] sm:$0xff]
        %v4452 = vld [vmem:[%s4406 + $0x168] sm:$0xff]
        %v4453 = vld [vmem:[%s4406 + $0x170] sm:$0xff]
        %v4454 = vld [vmem:[%s4406 + $0x178] sm:$0xff]
        %4455 = vmatprep.subr.mxu0 0.0
        %4456 = vmatpush1.msra.mxu0 %v4422
        %4457 = vmatprep.subr.mxu0 0.0
        %4458 = vmatpush1.msra.mxu0 %v4421
        %4459 = vmatprep.subr.mxu0 0.0
        %4460 = vmatpush1.msra.mxu0 %v4420
        %4461 = vmatprep.subr.mxu0 0.0
        %4462 = vmatpush1.msra.mxu0 %v4419
        %4463 = vmatprep.subr.mxu0 0.0
        %4464 = vmatpush1.msra.mxu0 %v4418
        %4465 = vmatprep.subr.mxu0 0.0
        %4466 = vmatpush1.msra.mxu0 %v4417
        %4467 = vmatprep.subr.mxu0 0.0
        %4468 = vmatpush1.msra.mxu0 %v4416
        %4469 = vmatprep.subr.mxu0 0.0
        %4470 = vmatpush1.msra.mxu0 %v4415
        %4471 = vmatprep.subr.mxu0 0.0
        %4472 = vmatpush1.msra.mxu0 %v4414
        %4473 = vmatprep.subr.mxu0 0.0
        %4474 = vmatpush1.msra.mxu0 %v4413
        %4475 = vmatprep.subr.mxu0 0.0
        %4476 = vmatpush1.msra.mxu0 %v4412
        %4477 = vmatprep.subr.mxu0 0.0
        %4478 = vmatpush1.msra.mxu0 %v4411
        %4479 = vmatprep.subr.mxu0 0.0
        %4480 = vmatpush1.msra.mxu0 %v4410
        %4481 = vmatprep.subr.mxu0 0.0
        %4482 = vmatpush1.msra.mxu0 %v4409
        %4483 = vmatprep.subr.mxu0 0.0
        %4484 = vmatpush1.msra.mxu0 %v4408
        %4485 = vmatprep.subr.mxu0 0.0
        %4486 = vmatpush1.msra.mxu0 %v4407
        %4487 = vmatprep.subr.mxu0 0.0
        %4488 = vmatpush2.msra.mxu0 %v4438
        %4489 = vmatprep.subr.mxu0 0.0
        %4490 = vmatpush2.msra.mxu0 %v4437
        %4491 = vmatprep.subr.mxu0 0.0
        %4492 = vmatpush2.msra.mxu0 %v4436
        %4493 = vmatprep.subr.mxu0 0.0
        %4494 = vmatpush2.msra.mxu0 %v4435
        %4495 = vmatprep.subr.mxu0 0.0
        %4496 = vmatpush2.msra.mxu0 %v4434
        %4497 = vmatprep.subr.mxu0 0.0
        %4498 = vmatpush2.msra.mxu0 %v4433
        %4499 = vmatprep.subr.mxu0 0.0
        %4500 = vmatpush2.msra.mxu0 %v4432
        %4501 = vmatprep.subr.mxu0 0.0
        %4502 = vmatpush2.msra.mxu0 %v4431
        %4503 = vmatprep.subr.mxu0 0.0
        %4504 = vmatpush2.msra.mxu0 %v4430
        %4505 = vmatprep.subr.mxu0 0.0
        %4506 = vmatpush2.msra.mxu0 %v4429
        %4507 = vmatprep.subr.mxu0 0.0
        %4508 = vmatpush2.msra.mxu0 %v4428
        %4509 = vmatprep.subr.mxu0 0.0
        %4510 = vmatpush2.msra.mxu0 %v4427
        %4511 = vmatprep.subr.mxu0 0.0
        %4512 = vmatpush2.msra.mxu0 %v4426
        %4513 = vmatprep.subr.mxu0 0.0
        %4514 = vmatpush2.msra.mxu0 %v4425
        %4515 = vmatprep.subr.mxu0 0.0
        %4516 = vmatpush2.msra.mxu0 %v4424
        %4517 = vmatprep.subr.mxu0 0.0
        %4518 = vmatpush2.msra.mxu0 %v4423
        %4519 = vmatprep.mubr.f32.mxu0 %v3959
        %4520 = vmatmul.mubr.f32.gmra.mxu0 %v4059
        %v4521 = vpop.f32.mrf.mxu0
        %v4522 = vadd.f32 0.0, %v4521
        %v4523 = vpop.f32.mrf.mxu0
        %4524 = vmatprep.mubr.f32.mxu0 %v3960
        %4525 = vmatmul.mubr.f32.gmra.mxu0 %v4061
        %v4526 = vpop.f32.mrf.mxu0
        %v4527 = vadd.f32 0.0, %v4526
        %v4528 = vpop.f32.mrf.mxu0
        %4529 = vmatprep.mubr.f32.mxu0 %v3961
        %4530 = vmatmul.mubr.f32.gmra.mxu0 %v4063
        %v4531 = vpop.f32.mrf.mxu0
        %v4532 = vadd.f32 0.0, %v4531
        %v4533 = vpop.f32.mrf.mxu0
        %4534 = vmatprep.mubr.f32.mxu0 %v3962
        %4535 = vmatmul.mubr.f32.gmra.mxu0 %v4065
        %v4536 = vpop.f32.mrf.mxu0
        %v4537 = vadd.f32 0.0, %v4536
        %v4538 = vpop.f32.mrf.mxu0
        %4539 = vmatprep.mubr.f32.mxu0 %v3963
        %4540 = vmatmul.mubr.f32.gmra.mxu0 %v4067
        %v4541 = vpop.f32.mrf.mxu0
        %v4542 = vadd.f32 0.0, %v4541
        %v4543 = vpop.f32.mrf.mxu0
        %4544 = vmatprep.mubr.f32.mxu0 %v3964
        %4545 = vmatmul.mubr.f32.gmra.mxu0 %v4069
        %v4546 = vpop.f32.mrf.mxu0
        %v4547 = vadd.f32 0.0, %v4546
        %v4548 = vpop.f32.mrf.mxu0
        %4549 = vmatprep.mubr.f32.mxu0 %v3965
        %4550 = vmatmul.mubr.f32.gmra.mxu0 %v4071
        %v4551 = vpop.f32.mrf.mxu0
        %v4552 = vadd.f32 0.0, %v4551
        %v4553 = vpop.f32.mrf.mxu0
        %4554 = vmatprep.mubr.f32.mxu0 %v3966
        %4555 = vmatmul.mubr.f32.gmra.mxu0 %v4073
        %v4556 = vpop.f32.mrf.mxu0
        %v4557 = vadd.f32 0.0, %v4556
        %v4558 = vpop.f32.mrf.mxu0
        %4559 = vmatprep.mubr.f32.mxu0 %v3967
        %4560 = vmatmul.mubr.f32.gmra.mxu0 %v4075
        %v4561 = vpop.f32.mrf.mxu0
        %v4562 = vadd.f32 0.0, %v4561
        %v4563 = vpop.f32.mrf.mxu0
        %4564 = vmatprep.mubr.f32.mxu0 %v3968
        %4565 = vmatmul.mubr.f32.gmra.mxu0 %v4077
        %v4566 = vpop.f32.mrf.mxu0
        %v4567 = vadd.f32 0.0, %v4566
        %v4568 = vpop.f32.mrf.mxu0
        %4569 = vmatprep.mubr.f32.mxu0 %v3969
        %4570 = vmatmul.mubr.f32.gmra.mxu0 %v4079
        %v4571 = vpop.f32.mrf.mxu0
        %v4572 = vadd.f32 0.0, %v4571
        %v4573 = vpop.f32.mrf.mxu0
        %4574 = vmatprep.mubr.f32.mxu0 %v3970
        %4575 = vmatmul.mubr.f32.gmra.mxu0 %v4081
        %v4576 = vpop.f32.mrf.mxu0
        %v4577 = vadd.f32 0.0, %v4576
        %v4578 = vpop.f32.mrf.mxu0
        %4579 = vmatprep.mubr.f32.mxu0 %v3971
        %4580 = vmatmul.mubr.f32.gmra.mxu0 %v4083
        %v4581 = vpop.f32.mrf.mxu0
        %v4582 = vadd.f32 0.0, %v4581
        %v4583 = vpop.f32.mrf.mxu0
        %4584 = vmatprep.mubr.f32.mxu0 %v3972
        %4585 = vmatmul.mubr.f32.gmra.mxu0 %v4085
        %v4586 = vpop.f32.mrf.mxu0
        %v4587 = vadd.f32 0.0, %v4586
        %v4588 = vpop.f32.mrf.mxu0
        %4589 = vmatprep.mubr.f32.mxu0 %v3973
        %4590 = vmatmul.mubr.f32.gmra.mxu0 %v4087
        %v4591 = vpop.f32.mrf.mxu0
        %v4592 = vadd.f32 0.0, %v4591
        %v4593 = vpop.f32.mrf.mxu0
        %4594 = vmatprep.mubr.f32.mxu0 %v3974
        %4595 = vmatmul.mubr.f32.gmra.mxu0 %v4089
        %v4596 = vpop.f32.mrf.mxu0
        %v4597 = vadd.f32 0.0, %v4596
        %v4598 = vpop.f32.mrf.mxu0
        %4599 = vmatprep.mubr.f32.mxu0 %v3975
        %4600 = vmatmul.mubr.f32.gmra.mxu0 %v4091
        %v4601 = vpop.f32.mrf.mxu0
        %v4602 = vadd.f32 0.0, %v4601
        %v4603 = vpop.f32.mrf.mxu0
        %4604 = vmatprep.mubr.f32.mxu0 %v3976
        %4605 = vmatmul.mubr.f32.gmra.mxu0 %v4093
        %v4606 = vpop.f32.mrf.mxu0
        %v4607 = vadd.f32 0.0, %v4606
        %v4608 = vpop.f32.mrf.mxu0
        %4609 = vmatprep.mubr.f32.mxu0 %v3977
        %4610 = vmatmul.mubr.f32.gmra.mxu0 %v4095
        %v4611 = vpop.f32.mrf.mxu0
        %v4612 = vadd.f32 0.0, %v4611
        %v4613 = vpop.f32.mrf.mxu0
        %4614 = vmatprep.mubr.f32.mxu0 %v3978
        %4615 = vmatmul.mubr.f32.gmra.mxu0 %v4097
        %v4616 = vpop.f32.mrf.mxu0
        %v4617 = vadd.f32 0.0, %v4616
        %v4618 = vpop.f32.mrf.mxu0
        %4619 = vmatprep.mubr.f32.mxu0 %v3979
        %4620 = vmatmul.mubr.f32.gmra.mxu0 %v4099
        %v4621 = vpop.f32.mrf.mxu0
        %v4622 = vadd.f32 0.0, %v4621
        %v4623 = vpop.f32.mrf.mxu0
        %4624 = vmatprep.mubr.f32.mxu0 %v3980
        %4625 = vmatmul.mubr.f32.gmra.mxu0 %v4101
        %v4626 = vpop.f32.mrf.mxu0
        %v4627 = vadd.f32 0.0, %v4626
        %v4628 = vpop.f32.mrf.mxu0
        %4629 = vmatprep.mubr.f32.mxu0 %v3981
        %4630 = vmatmul.mubr.f32.gmra.mxu0 %v4103
        %v4631 = vpop.f32.mrf.mxu0
        %v4632 = vadd.f32 0.0, %v4631
        %v4633 = vpop.f32.mrf.mxu0
        %4634 = vmatprep.mubr.f32.mxu0 %v3982
        %4635 = vmatmul.mubr.f32.gmra.mxu0 %v4105
        %v4636 = vpop.f32.mrf.mxu0
        %v4637 = vadd.f32 0.0, %v4636
        %v4638 = vpop.f32.mrf.mxu0
        %4639 = vmatprep.mubr.f32.mxu0 %v3983
        %4640 = vmatmul.mubr.f32.gmra.mxu0 %v4107
        %v4641 = vpop.f32.mrf.mxu0
        %v4642 = vadd.f32 0.0, %v4641
        %v4643 = vpop.f32.mrf.mxu0
        %4644 = vmatprep.mubr.f32.mxu0 %v3984
        %4645 = vmatmul.mubr.f32.gmra.mxu0 %v4109
        %v4646 = vpop.f32.mrf.mxu0
        %v4647 = vadd.f32 0.0, %v4646
        %v4648 = vpop.f32.mrf.mxu0
        %4649 = vmatprep.mubr.f32.mxu0 %v3985
        %4650 = vmatmul.mubr.f32.gmra.mxu0 %v4111
        %v4651 = vpop.f32.mrf.mxu0
        %v4652 = vadd.f32 0.0, %v4651
        %v4653 = vpop.f32.mrf.mxu0
        %4654 = vmatprep.mubr.f32.mxu0 %v3986
        %4655 = vmatmul.mubr.f32.gmra.mxu0 %v4113
        %v4656 = vpop.f32.mrf.mxu0
        %v4657 = vadd.f32 0.0, %v4656
        %v4658 = vpop.f32.mrf.mxu0
        %4659 = vmatprep.mubr.f32.mxu0 %v3987
        %4660 = vmatmul.mubr.f32.gmra.mxu0 %v4115
        %v4661 = vpop.f32.mrf.mxu0
        %v4662 = vadd.f32 0.0, %v4661
        %v4663 = vpop.f32.mrf.mxu0
        %4664 = vmatprep.mubr.f32.mxu0 %v3988
        %4665 = vmatmul.mubr.f32.gmra.mxu0 %v4117
        %v4666 = vpop.f32.mrf.mxu0
        %v4667 = vadd.f32 0.0, %v4666
        %v4668 = vpop.f32.mrf.mxu0
        %4669 = vmatprep.mubr.f32.mxu0 %v3989
        %4670 = vmatmul.mubr.f32.gmra.mxu0 %v4119
        %v4671 = vpop.f32.mrf.mxu0
        %v4672 = vadd.f32 0.0, %v4671
        %v4673 = vpop.f32.mrf.mxu0
        %4674 = vmatprep.mubr.f32.mxu0 %v3990
        %4675 = vmatmul.mubr.f32.gmra.mxu0 %v4121
        %v4676 = vpop.f32.mrf.mxu0
        %v4677 = vadd.f32 0.0, %v4676
        %v4678 = vpop.f32.mrf.mxu0
        %4679 = vmatprep.mubr.f32.mxu0 %v3991
        %4680 = vmatmul.mubr.f32.gmra.mxu0 %v4123
        %v4681 = vpop.f32.mrf.mxu0
        %v4682 = vadd.f32 0.0, %v4681
        %v4683 = vpop.f32.mrf.mxu0
        %4684 = vmatprep.mubr.f32.mxu0 %v3992
        %4685 = vmatmul.mubr.f32.gmra.mxu0 %v4125
        %v4686 = vpop.f32.mrf.mxu0
        %v4687 = vadd.f32 0.0, %v4686
        %v4688 = vpop.f32.mrf.mxu0
        %4689 = vmatprep.mubr.f32.mxu0 %v3993
        %4690 = vmatmul.mubr.f32.gmra.mxu0 %v4127
        %v4691 = vpop.f32.mrf.mxu0
        %v4692 = vadd.f32 0.0, %v4691
        %v4693 = vpop.f32.mrf.mxu0
        %4694 = vmatprep.mubr.f32.mxu0 %v3994
        %4695 = vmatmul.mubr.f32.gmra.mxu0 %v4129
        %v4696 = vpop.f32.mrf.mxu0
        %v4697 = vadd.f32 0.0, %v4696
        %v4698 = vpop.f32.mrf.mxu0
        %4699 = vmatprep.mubr.f32.mxu0 %v3995
        %4700 = vmatmul.mubr.f32.gmra.mxu0 %v4131
        %v4701 = vpop.f32.mrf.mxu0
        %v4702 = vadd.f32 0.0, %v4701
        %v4703 = vpop.f32.mrf.mxu0
        %4704 = vmatprep.mubr.f32.mxu0 %v3996
        %4705 = vmatmul.mubr.f32.gmra.mxu0 %v4133
        %v4706 = vpop.f32.mrf.mxu0
        %v4707 = vadd.f32 0.0, %v4706
        %v4708 = vpop.f32.mrf.mxu0
        %4709 = vmatprep.mubr.f32.mxu0 %v3997
        %4710 = vmatmul.mubr.f32.gmra.mxu0 %v4135
        %v4711 = vpop.f32.mrf.mxu0
        %v4712 = vadd.f32 0.0, %v4711
        %v4713 = vpop.f32.mrf.mxu0
        %4714 = vmatprep.mubr.f32.mxu0 %v3998
        %4715 = vmatmul.mubr.f32.gmra.mxu0 %v4137
        %v4716 = vpop.f32.mrf.mxu0
        %v4717 = vadd.f32 0.0, %v4716
        %v4718 = vpop.f32.mrf.mxu0
        %4719 = vmatprep.mubr.f32.mxu0 %v3999
        %4720 = vmatmul.mubr.f32.gmra.mxu0 %v4139
        %v4721 = vpop.f32.mrf.mxu0
        %v4722 = vadd.f32 0.0, %v4721
        %v4723 = vpop.f32.mrf.mxu0
        %4724 = vmatprep.mubr.f32.mxu0 %v4000
        %4725 = vmatmul.mubr.f32.gmra.mxu0 %v4141
        %v4726 = vpop.f32.mrf.mxu0
        %v4727 = vadd.f32 0.0, %v4726
        %v4728 = vpop.f32.mrf.mxu0
        %4729 = vmatprep.mubr.f32.mxu0 %v4001
        %4730 = vmatmul.mubr.f32.gmra.mxu0 %v4143
        %v4731 = vpop.f32.mrf.mxu0
        %v4732 = vadd.f32 0.0, %v4731
        %v4733 = vpop.f32.mrf.mxu0
        %4734 = vmatprep.mubr.f32.mxu0 %v4002
        %4735 = vmatmul.mubr.f32.gmra.mxu0 %v4145
        %v4736 = vpop.f32.mrf.mxu0
        %v4737 = vadd.f32 0.0, %v4736
        %v4738 = vpop.f32.mrf.mxu0
        %4739 = vmatprep.mubr.f32.mxu0 %v4003
        %4740 = vmatmul.mubr.f32.gmra.mxu0 %v4147
        %v4741 = vpop.f32.mrf.mxu0
        %v4742 = vadd.f32 0.0, %v4741
        %v4743 = vpop.f32.mrf.mxu0
        %4744 = vmatprep.mubr.f32.mxu0 %v4004
        %4745 = vmatmul.mubr.f32.gmra.mxu0 %v4149
        %v4746 = vpop.f32.mrf.mxu0
        %v4747 = vadd.f32 0.0, %v4746
        %v4748 = vpop.f32.mrf.mxu0
        %4749 = vmatprep.mubr.f32.mxu0 %v4005
        %4750 = vmatmul.mubr.f32.gmra.mxu0 %v4151
        %v4751 = vpop.f32.mrf.mxu0
        %v4752 = vadd.f32 0.0, %v4751
        %v4753 = vpop.f32.mrf.mxu0
        %4754 = vmatprep.mubr.f32.mxu0 %v4006
        %4755 = vmatmul.mubr.f32.gmra.mxu0 %v4153
        %v4756 = vpop.f32.mrf.mxu0
        %v4757 = vadd.f32 0.0, %v4756
        %v4758 = vpop.f32.mrf.mxu0
        %4759 = vdwg.mxu0
        %4760 = vmatprep.subr.mxu0 0.0
        %4761 = vmatpush1.msra.mxu0 %v4454
        %4762 = vmatprep.subr.mxu0 0.0
        %4763 = vmatpush1.msra.mxu0 %v4453
        %4764 = vmatprep.subr.mxu0 0.0
        %4765 = vmatpush1.msra.mxu0 %v4452
        %4766 = vmatprep.subr.mxu0 0.0
        %4767 = vmatpush1.msra.mxu0 %v4451
        %4768 = vmatprep.subr.mxu0 0.0
        %4769 = vmatpush1.msra.mxu0 %v4450
        %4770 = vmatprep.subr.mxu0 0.0
        %4771 = vmatpush1.msra.mxu0 %v4449
        %4772 = vmatprep.subr.mxu0 0.0
        %4773 = vmatpush1.msra.mxu0 %v4448
        %4774 = vmatprep.subr.mxu0 0.0
        %4775 = vmatpush1.msra.mxu0 %v4447
        %4776 = vmatprep.subr.mxu0 0.0
        %4777 = vmatpush1.msra.mxu0 %v4446
        %4778 = vmatprep.subr.mxu0 0.0
        %4779 = vmatpush1.msra.mxu0 %v4445
        %4780 = vmatprep.subr.mxu0 0.0
        %4781 = vmatpush1.msra.mxu0 %v4444
        %4782 = vmatprep.subr.mxu0 0.0
        %4783 = vmatpush1.msra.mxu0 %v4443
        %4784 = vmatprep.subr.mxu0 0.0
        %4785 = vmatpush1.msra.mxu0 %v4442
        %4786 = vmatprep.subr.mxu0 0.0
        %4787 = vmatpush1.msra.mxu0 %v4441
        %4788 = vmatprep.subr.mxu0 0.0
        %4789 = vmatpush1.msra.mxu0 %v4440
        %4790 = vmatprep.subr.mxu0 0.0
        %4791 = vmatpush1.msra.mxu0 %v4439
        %4792 = vmatprep.subr.mxu0 0.0
        %4793 = vmatpush2.msra.mxu0 0.0
        %4794 = vmatprep.subr.mxu0 0.0
        %4795 = vmatpush2.msra.mxu0 0.0
        %4796 = vmatprep.subr.mxu0 0.0
        %4797 = vmatpush2.msra.mxu0 0.0
        %4798 = vmatprep.subr.mxu0 0.0
        %4799 = vmatpush2.msra.mxu0 0.0
        %4800 = vmatprep.subr.mxu0 0.0
        %4801 = vmatpush2.msra.mxu0 0.0
        %4802 = vmatprep.subr.mxu0 0.0
        %4803 = vmatpush2.msra.mxu0 0.0
        %4804 = vmatprep.subr.mxu0 0.0
        %4805 = vmatpush2.msra.mxu0 0.0
        %4806 = vmatprep.subr.mxu0 0.0
        %4807 = vmatpush2.msra.mxu0 0.0
        %4808 = vmatprep.subr.mxu0 0.0
        %4809 = vmatpush2.msra.mxu0 0.0
        %4810 = vmatprep.subr.mxu0 0.0
        %4811 = vmatpush2.msra.mxu0 0.0
        %4812 = vmatprep.subr.mxu0 0.0
        %4813 = vmatpush2.msra.mxu0 0.0
        %4814 = vmatprep.subr.mxu0 0.0
        %4815 = vmatpush2.msra.mxu0 0.0
        %4816 = vmatprep.subr.mxu0 0.0
        %4817 = vmatpush2.msra.mxu0 0.0
        %4818 = vmatprep.subr.mxu0 0.0
        %4819 = vmatpush2.msra.mxu0 0.0
        %4820 = vmatprep.subr.mxu0 0.0
        %4821 = vmatpush2.msra.mxu0 0.0
        %4822 = vmatprep.subr.mxu0 0.0
        %4823 = vmatpush2.msra.mxu0 0.0
        %4824 = vmatprep.mubr.f32.mxu0 0.0
        %4825 = vmatmul.mubr.f32.gmra.mxu0 %v4212
        %v4826 = vpop.f32.mrf.mxu0
        %v4827 = vadd.f32 %v4522, %v4826
        %v4828 = vpop.f32.mrf.mxu0
        %4829 = vmatprep.mubr.f32.mxu0 0.0
        %4830 = vmatmul.mubr.f32.gmra.mxu0 %v4214
        %v4831 = vpop.f32.mrf.mxu0
        %v4832 = vadd.f32 %v4527, %v4831
        %v4833 = vpop.f32.mrf.mxu0
        %4834 = vmatprep.mubr.f32.mxu0 0.0
        %4835 = vmatmul.mubr.f32.gmra.mxu0 %v4216
        %v4836 = vpop.f32.mrf.mxu0
        %v4837 = vadd.f32 %v4532, %v4836
        %v4838 = vpop.f32.mrf.mxu0
        %4839 = vmatprep.mubr.f32.mxu0 0.0
        %4840 = vmatmul.mubr.f32.gmra.mxu0 %v4218
        %v4841 = vpop.f32.mrf.mxu0
        %v4842 = vadd.f32 %v4537, %v4841
        %v4843 = vpop.f32.mrf.mxu0
        %4844 = vmatprep.mubr.f32.mxu0 0.0
        %4845 = vmatmul.mubr.f32.gmra.mxu0 %v4220
        %v4846 = vpop.f32.mrf.mxu0
        %v4847 = vadd.f32 %v4542, %v4846
        %v4848 = vpop.f32.mrf.mxu0
        %4849 = vmatprep.mubr.f32.mxu0 0.0
        %4850 = vmatmul.mubr.f32.gmra.mxu0 %v4222
        %v4851 = vpop.f32.mrf.mxu0
        %v4852 = vadd.f32 %v4547, %v4851
        %v4853 = vpop.f32.mrf.mxu0
        %4854 = vmatprep.mubr.f32.mxu0 0.0
        %4855 = vmatmul.mubr.f32.gmra.mxu0 %v4224
        %v4856 = vpop.f32.mrf.mxu0
        %v4857 = vadd.f32 %v4552, %v4856
        %v4858 = vpop.f32.mrf.mxu0
        %4859 = vmatprep.mubr.f32.mxu0 0.0
        %4860 = vmatmul.mubr.f32.gmra.mxu0 %v4226
        %v4861 = vpop.f32.mrf.mxu0
        %v4862 = vadd.f32 %v4557, %v4861
        %v4863 = vpop.f32.mrf.mxu0
        %4864 = vmatprep.mubr.f32.mxu0 0.0
        %4865 = vmatmul.mubr.f32.gmra.mxu0 %v4228
        %v4866 = vpop.f32.mrf.mxu0
        %v4867 = vadd.f32 %v4562, %v4866
        %v4868 = vpop.f32.mrf.mxu0
        %4869 = vmatprep.mubr.f32.mxu0 0.0
        %4870 = vmatmul.mubr.f32.gmra.mxu0 %v4230
        %v4871 = vpop.f32.mrf.mxu0
        %v4872 = vadd.f32 %v4567, %v4871
        %v4873 = vpop.f32.mrf.mxu0
        %4874 = vmatprep.mubr.f32.mxu0 0.0
        %4875 = vmatmul.mubr.f32.gmra.mxu0 %v4232
        %v4876 = vpop.f32.mrf.mxu0
        %v4877 = vadd.f32 %v4572, %v4876
        %v4878 = vpop.f32.mrf.mxu0
        %4879 = vmatprep.mubr.f32.mxu0 0.0
        %4880 = vmatmul.mubr.f32.gmra.mxu0 %v4234
        %v4881 = vpop.f32.mrf.mxu0
        %v4882 = vadd.f32 %v4577, %v4881
        %v4883 = vpop.f32.mrf.mxu0
        %4884 = vmatprep.mubr.f32.mxu0 0.0
        %4885 = vmatmul.mubr.f32.gmra.mxu0 %v4236
        %v4886 = vpop.f32.mrf.mxu0
        %v4887 = vadd.f32 %v4582, %v4886
        %v4888 = vpop.f32.mrf.mxu0
        %4889 = vmatprep.mubr.f32.mxu0 0.0
        %4890 = vmatmul.mubr.f32.gmra.mxu0 %v4238
        %v4891 = vpop.f32.mrf.mxu0
        %v4892 = vadd.f32 %v4587, %v4891
        %v4893 = vpop.f32.mrf.mxu0
        %4894 = vmatprep.mubr.f32.mxu0 0.0
        %4895 = vmatmul.mubr.f32.gmra.mxu0 %v4240
        %v4896 = vpop.f32.mrf.mxu0
        %v4897 = vadd.f32 %v4592, %v4896
        %v4898 = vpop.f32.mrf.mxu0
        %4899 = vmatprep.mubr.f32.mxu0 0.0
        %4900 = vmatmul.mubr.f32.gmra.mxu0 %v4242
        %v4901 = vpop.f32.mrf.mxu0
        %v4902 = vadd.f32 %v4597, %v4901
        %v4903 = vpop.f32.mrf.mxu0
        %4904 = vmatprep.mubr.f32.mxu0 0.0
        %4905 = vmatmul.mubr.f32.gmra.mxu0 %v4244
        %v4906 = vpop.f32.mrf.mxu0
        %v4907 = vadd.f32 %v4602, %v4906
        %v4908 = vpop.f32.mrf.mxu0
        %4909 = vmatprep.mubr.f32.mxu0 0.0
        %4910 = vmatmul.mubr.f32.gmra.mxu0 %v4246
        %v4911 = vpop.f32.mrf.mxu0
        %v4912 = vadd.f32 %v4607, %v4911
        %v4913 = vpop.f32.mrf.mxu0
        %4914 = vmatprep.mubr.f32.mxu0 0.0
        %4915 = vmatmul.mubr.f32.gmra.mxu0 %v4248
        %v4916 = vpop.f32.mrf.mxu0
        %v4917 = vadd.f32 %v4612, %v4916
        %v4918 = vpop.f32.mrf.mxu0
        %4919 = vmatprep.mubr.f32.mxu0 0.0
        %4920 = vmatmul.mubr.f32.gmra.mxu0 %v4250
        %v4921 = vpop.f32.mrf.mxu0
        %v4922 = vadd.f32 %v4617, %v4921
        %v4923 = vpop.f32.mrf.mxu0
        %4924 = vmatprep.mubr.f32.mxu0 0.0
        %4925 = vmatmul.mubr.f32.gmra.mxu0 %v4252
        %v4926 = vpop.f32.mrf.mxu0
        %v4927 = vadd.f32 %v4622, %v4926
        %v4928 = vpop.f32.mrf.mxu0
        %4929 = vmatprep.mubr.f32.mxu0 0.0
        %4930 = vmatmul.mubr.f32.gmra.mxu0 %v4254
        %v4931 = vpop.f32.mrf.mxu0
        %v4932 = vadd.f32 %v4627, %v4931
        %v4933 = vpop.f32.mrf.mxu0
        %4934 = vmatprep.mubr.f32.mxu0 0.0
        %4935 = vmatmul.mubr.f32.gmra.mxu0 %v4256
        %v4936 = vpop.f32.mrf.mxu0
        %v4937 = vadd.f32 %v4632, %v4936
        %v4938 = vpop.f32.mrf.mxu0
        %4939 = vmatprep.mubr.f32.mxu0 0.0
        %4940 = vmatmul.mubr.f32.gmra.mxu0 %v4258
        %v4941 = vpop.f32.mrf.mxu0
        %v4942 = vadd.f32 %v4637, %v4941
        %v4943 = vpop.f32.mrf.mxu0
        %4944 = vmatprep.mubr.f32.mxu0 0.0
        %4945 = vmatmul.mubr.f32.gmra.mxu0 %v4260
        %v4946 = vpop.f32.mrf.mxu0
        %v4947 = vadd.f32 %v4642, %v4946
        %v4948 = vpop.f32.mrf.mxu0
        %4949 = vmatprep.mubr.f32.mxu0 0.0
        %4950 = vmatmul.mubr.f32.gmra.mxu0 %v4262
        %v4951 = vpop.f32.mrf.mxu0
        %v4952 = vadd.f32 %v4647, %v4951
        %v4953 = vpop.f32.mrf.mxu0
        %4954 = vmatprep.mubr.f32.mxu0 0.0
        %4955 = vmatmul.mubr.f32.gmra.mxu0 %v4264
        %v4956 = vpop.f32.mrf.mxu0
        %v4957 = vadd.f32 %v4652, %v4956
        %v4958 = vpop.f32.mrf.mxu0
        %4959 = vmatprep.mubr.f32.mxu0 0.0
        %4960 = vmatmul.mubr.f32.gmra.mxu0 %v4266
        %v4961 = vpop.f32.mrf.mxu0
        %v4962 = vadd.f32 %v4657, %v4961
        %v4963 = vpop.f32.mrf.mxu0
        %4964 = vmatprep.mubr.f32.mxu0 0.0
        %4965 = vmatmul.mubr.f32.gmra.mxu0 %v4268
        %v4966 = vpop.f32.mrf.mxu0
        %v4967 = vadd.f32 %v4662, %v4966
        %v4968 = vpop.f32.mrf.mxu0
        %4969 = vmatprep.mubr.f32.mxu0 0.0
        %4970 = vmatmul.mubr.f32.gmra.mxu0 %v4270
        %v4971 = vpop.f32.mrf.mxu0
        %v4972 = vadd.f32 %v4667, %v4971
        %v4973 = vpop.f32.mrf.mxu0
        %4974 = vmatprep.mubr.f32.mxu0 0.0
        %4975 = vmatmul.mubr.f32.gmra.mxu0 %v4272
        %v4976 = vpop.f32.mrf.mxu0
        %v4977 = vadd.f32 %v4672, %v4976
        %v4978 = vpop.f32.mrf.mxu0
        %4979 = vmatprep.mubr.f32.mxu0 0.0
        %4980 = vmatmul.mubr.f32.gmra.mxu0 %v4274
        %v4981 = vpop.f32.mrf.mxu0
        %v4982 = vadd.f32 %v4677, %v4981
        %v4983 = vpop.f32.mrf.mxu0
        %4984 = vmatprep.mubr.f32.mxu0 0.0
        %4985 = vmatmul.mubr.f32.gmra.mxu0 %v4276
        %v4986 = vpop.f32.mrf.mxu0
        %v4987 = vadd.f32 %v4682, %v4986
        %v4988 = vpop.f32.mrf.mxu0
        %4989 = vmatprep.mubr.f32.mxu0 0.0
        %4990 = vmatmul.mubr.f32.gmra.mxu0 %v4278
        %v4991 = vpop.f32.mrf.mxu0
        %v4992 = vadd.f32 %v4687, %v4991
        %v4993 = vpop.f32.mrf.mxu0
        %4994 = vmatprep.mubr.f32.mxu0 0.0
        %4995 = vmatmul.mubr.f32.gmra.mxu0 %v4280
        %v4996 = vpop.f32.mrf.mxu0
        %v4997 = vadd.f32 %v4692, %v4996
        %v4998 = vpop.f32.mrf.mxu0
        %4999 = vmatprep.mubr.f32.mxu0 0.0
        %5000 = vmatmul.mubr.f32.gmra.mxu0 %v4282
        %v5001 = vpop.f32.mrf.mxu0
        %v5002 = vadd.f32 %v4697, %v5001
        %v5003 = vpop.f32.mrf.mxu0
        %5004 = vmatprep.mubr.f32.mxu0 0.0
        %5005 = vmatmul.mubr.f32.gmra.mxu0 %v4284
        %v5006 = vpop.f32.mrf.mxu0
        %v5007 = vadd.f32 %v4702, %v5006
        %v5008 = vpop.f32.mrf.mxu0
        %5009 = vmatprep.mubr.f32.mxu0 0.0
        %5010 = vmatmul.mubr.f32.gmra.mxu0 %v4286
        %v5011 = vpop.f32.mrf.mxu0
        %v5012 = vadd.f32 %v4707, %v5011
        %v5013 = vpop.f32.mrf.mxu0
        %5014 = vmatprep.mubr.f32.mxu0 0.0
        %5015 = vmatmul.mubr.f32.gmra.mxu0 %v4288
        %v5016 = vpop.f32.mrf.mxu0
        %v5017 = vadd.f32 %v4712, %v5016
        %v5018 = vpop.f32.mrf.mxu0
        %5019 = vmatprep.mubr.f32.mxu0 0.0
        %5020 = vmatmul.mubr.f32.gmra.mxu0 %v4290
        %v5021 = vpop.f32.mrf.mxu0
        %v5022 = vadd.f32 %v4717, %v5021
        %v5023 = vpop.f32.mrf.mxu0
        %5024 = vmatprep.mubr.f32.mxu0 0.0
        %5025 = vmatmul.mubr.f32.gmra.mxu0 %v4292
        %v5026 = vpop.f32.mrf.mxu0
        %v5027 = vadd.f32 %v4722, %v5026
        %v5028 = vpop.f32.mrf.mxu0
        %5029 = vmatprep.mubr.f32.mxu0 0.0
        %5030 = vmatmul.mubr.f32.gmra.mxu0 %v4294
        %v5031 = vpop.f32.mrf.mxu0
        %v5032 = vadd.f32 %v4727, %v5031
        %v5033 = vpop.f32.mrf.mxu0
        %5034 = vmatprep.mubr.f32.mxu0 0.0
        %5035 = vmatmul.mubr.f32.gmra.mxu0 %v4296
        %v5036 = vpop.f32.mrf.mxu0
        %v5037 = vadd.f32 %v4732, %v5036
        %v5038 = vpop.f32.mrf.mxu0
        %5039 = vmatprep.mubr.f32.mxu0 0.0
        %5040 = vmatmul.mubr.f32.gmra.mxu0 %v4298
        %v5041 = vpop.f32.mrf.mxu0
        %v5042 = vadd.f32 %v4737, %v5041
        %v5043 = vpop.f32.mrf.mxu0
        %5044 = vmatprep.mubr.f32.mxu0 0.0
        %5045 = vmatmul.mubr.f32.gmra.mxu0 %v4300
        %v5046 = vpop.f32.mrf.mxu0
        %v5047 = vadd.f32 %v4742, %v5046
        %v5048 = vpop.f32.mrf.mxu0
        %5049 = vmatprep.mubr.f32.mxu0 0.0
        %5050 = vmatmul.mubr.f32.gmra.mxu0 %v4302
        %v5051 = vpop.f32.mrf.mxu0
        %v5052 = vadd.f32 %v4747, %v5051
        %v5053 = vpop.f32.mrf.mxu0
        %5054 = vmatprep.mubr.f32.mxu0 0.0
        %5055 = vmatmul.mubr.f32.gmra.mxu0 %v4304
        %v5056 = vpop.f32.mrf.mxu0
        %v5057 = vadd.f32 %v4752, %v5056
        %v5058 = vpop.f32.mrf.mxu0
        %5059 = vmatprep.mubr.f32.mxu0 0.0
        %5060 = vmatmul.mubr.f32.gmra.mxu0 %v4305
        %v5061 = vpop.f32.mrf.mxu0
        %v5062 = vadd.f32 %v4757, %v5061
        %v5063 = vpop.f32.mrf.mxu0
        %5064 = vdwg.mxu0
        %5065 = vmatprep.subr.mxu0 0.0
        %5066 = vmatpush1.msra.mxu0 %v4373
        %5067 = vmatprep.subr.mxu0 0.0
        %5068 = vmatpush1.msra.mxu0 %v4372
        %5069 = vmatprep.subr.mxu0 0.0
        %5070 = vmatpush1.msra.mxu0 %v4371
        %5071 = vmatprep.subr.mxu0 0.0
        %5072 = vmatpush1.msra.mxu0 %v4370
        %5073 = vmatprep.subr.mxu0 0.0
        %5074 = vmatpush1.msra.mxu0 %v4369
        %5075 = vmatprep.subr.mxu0 0.0
        %5076 = vmatpush1.msra.mxu0 %v4368
        %5077 = vmatprep.subr.mxu0 0.0
        %5078 = vmatpush1.msra.mxu0 %v4367
        %5079 = vmatprep.subr.mxu0 0.0
        %5080 = vmatpush1.msra.mxu0 %v4366
        %5081 = vmatprep.subr.mxu0 0.0
        %5082 = vmatpush1.msra.mxu0 %v4365
        %5083 = vmatprep.subr.mxu0 0.0
        %5084 = vmatpush1.msra.mxu0 %v4364
        %5085 = vmatprep.subr.mxu0 0.0
        %5086 = vmatpush1.msra.mxu0 %v4363
        %5087 = vmatprep.subr.mxu0 0.0
        %5088 = vmatpush1.msra.mxu0 %v4362
        %5089 = vmatprep.subr.mxu0 0.0
        %5090 = vmatpush1.msra.mxu0 %v4361
        %5091 = vmatprep.subr.mxu0 0.0
        %5092 = vmatpush1.msra.mxu0 %v4360
        %5093 = vmatprep.subr.mxu0 0.0
        %5094 = vmatpush1.msra.mxu0 %v4359
        %5095 = vmatprep.subr.mxu0 0.0
        %5096 = vmatpush1.msra.mxu0 %v4358
        %5097 = vmatprep.subr.mxu0 0.0
        %5098 = vmatpush2.msra.mxu0 %v4389
        %5099 = vmatprep.subr.mxu0 0.0
        %5100 = vmatpush2.msra.mxu0 %v4388
        %5101 = vmatprep.subr.mxu0 0.0
        %5102 = vmatpush2.msra.mxu0 %v4387
        %5103 = vmatprep.subr.mxu0 0.0
        %5104 = vmatpush2.msra.mxu0 %v4386
        %5105 = vmatprep.subr.mxu0 0.0
        %5106 = vmatpush2.msra.mxu0 %v4385
        %5107 = vmatprep.subr.mxu0 0.0
        %5108 = vmatpush2.msra.mxu0 %v4384
        %5109 = vmatprep.subr.mxu0 0.0
        %5110 = vmatpush2.msra.mxu0 %v4383
        %5111 = vmatprep.subr.mxu0 0.0
        %5112 = vmatpush2.msra.mxu0 %v4382
        %5113 = vmatprep.subr.mxu0 0.0
        %5114 = vmatpush2.msra.mxu0 %v4381
        %5115 = vmatprep.subr.mxu0 0.0
        %5116 = vmatpush2.msra.mxu0 %v4380
        %5117 = vmatprep.subr.mxu0 0.0
        %5118 = vmatpush2.msra.mxu0 %v4379
        %5119 = vmatprep.subr.mxu0 0.0
        %5120 = vmatpush2.msra.mxu0 %v4378
        %5121 = vmatprep.subr.mxu0 0.0
        %5122 = vmatpush2.msra.mxu0 %v4377
        %5123 = vmatprep.subr.mxu0 0.0
        %5124 = vmatpush2.msra.mxu0 %v4376
        %5125 = vmatprep.subr.mxu0 0.0
        %5126 = vmatpush2.msra.mxu0 %v4375
        %5127 = vmatprep.subr.mxu0 0.0
        %5128 = vmatpush2.msra.mxu0 %v4374
        %5129 = vmatprep.mubr.f32.mxu0 0.0
        %5130 = vmatmul.mubr.f32.gmra.mxu0 %v4206
        %v5131 = vpop.f32.mrf.mxu0
        %v5132 = vadd.f32 %v4827, %v5131
        %v5133 = vpop.f32.mrf.mxu0
        %5134 = vmatprep.mubr.f32.mxu0 0.0
        %5135 = vmatmul.mubr.f32.gmra.mxu0 %v4057
        %v5136 = vpop.f32.mrf.mxu0
        %v5137 = vadd.f32 %v4832, %v5136
        %v5138 = vpop.f32.mrf.mxu0
        %5139 = vmatprep.mubr.f32.mxu0 0.0
        %5140 = vmatmul.mubr.f32.gmra.mxu0 %v4057
        %v5141 = vpop.f32.mrf.mxu0
        %v5142 = vadd.f32 %v4837, %v5141
        %v5143 = vpop.f32.mrf.mxu0
        %5144 = vmatprep.mubr.f32.mxu0 %v3959
        %5145 = vmatmul.mubr.f32.gmra.mxu0 %v4059
        %v5146 = vpop.f32.mrf.mxu0
        %v5147 = vadd.f32 %v4842, %v5146
        %v5148 = vpop.f32.mrf.mxu0
        %5149 = vmatprep.mubr.f32.mxu0 %v3960
        %5150 = vmatmul.mubr.f32.gmra.mxu0 %v4061
        %v5151 = vpop.f32.mrf.mxu0
        %v5152 = vadd.f32 %v4847, %v5151
        %v5153 = vpop.f32.mrf.mxu0
        %5154 = vmatprep.mubr.f32.mxu0 %v3961
        %5155 = vmatmul.mubr.f32.gmra.mxu0 %v4063
        %v5156 = vpop.f32.mrf.mxu0
        %v5157 = vadd.f32 %v4852, %v5156
        %v5158 = vpop.f32.mrf.mxu0
        %5159 = vmatprep.mubr.f32.mxu0 %v3962
        %5160 = vmatmul.mubr.f32.gmra.mxu0 %v4065
        %v5161 = vpop.f32.mrf.mxu0
        %v5162 = vadd.f32 %v4857, %v5161
        %v5163 = vpop.f32.mrf.mxu0
        %5164 = vmatprep.mubr.f32.mxu0 %v3963
        %5165 = vmatmul.mubr.f32.gmra.mxu0 %v4067
        %v5166 = vpop.f32.mrf.mxu0
        %v5167 = vadd.f32 %v4862, %v5166
        %v5168 = vpop.f32.mrf.mxu0
        %5169 = vmatprep.mubr.f32.mxu0 %v3964
        %5170 = vmatmul.mubr.f32.gmra.mxu0 %v4069
        %v5171 = vpop.f32.mrf.mxu0
        %v5172 = vadd.f32 %v4867, %v5171
        %v5173 = vpop.f32.mrf.mxu0
        %5174 = vmatprep.mubr.f32.mxu0 %v3965
        %5175 = vmatmul.mubr.f32.gmra.mxu0 %v4071
        %v5176 = vpop.f32.mrf.mxu0
        %v5177 = vadd.f32 %v4872, %v5176
        %v5178 = vpop.f32.mrf.mxu0
        %5179 = vmatprep.mubr.f32.mxu0 %v3966
        %5180 = vmatmul.mubr.f32.gmra.mxu0 %v4073
        %v5181 = vpop.f32.mrf.mxu0
        %v5182 = vadd.f32 %v4877, %v5181
        %v5183 = vpop.f32.mrf.mxu0
        %5184 = vmatprep.mubr.f32.mxu0 %v3967
        %5185 = vmatmul.mubr.f32.gmra.mxu0 %v4075
        %v5186 = vpop.f32.mrf.mxu0
        %v5187 = vadd.f32 %v4882, %v5186
        %v5188 = vpop.f32.mrf.mxu0
        %5189 = vmatprep.mubr.f32.mxu0 %v3968
        %5190 = vmatmul.mubr.f32.gmra.mxu0 %v4077
        %v5191 = vpop.f32.mrf.mxu0
        %v5192 = vadd.f32 %v4887, %v5191
        %v5193 = vpop.f32.mrf.mxu0
        %5194 = vmatprep.mubr.f32.mxu0 %v3969
        %5195 = vmatmul.mubr.f32.gmra.mxu0 %v4079
        %v5196 = vpop.f32.mrf.mxu0
        %v5197 = vadd.f32 %v4892, %v5196
        %v5198 = vpop.f32.mrf.mxu0
        %5199 = vmatprep.mubr.f32.mxu0 %v3970
        %5200 = vmatmul.mubr.f32.gmra.mxu0 %v4081
        %v5201 = vpop.f32.mrf.mxu0
        %v5202 = vadd.f32 %v4897, %v5201
        %v5203 = vpop.f32.mrf.mxu0
        %5204 = vmatprep.mubr.f32.mxu0 %v3971
        %5205 = vmatmul.mubr.f32.gmra.mxu0 %v4083
        %v5206 = vpop.f32.mrf.mxu0
        %v5207 = vadd.f32 %v4902, %v5206
        %v5208 = vpop.f32.mrf.mxu0
        %5209 = vmatprep.mubr.f32.mxu0 %v3972
        %5210 = vmatmul.mubr.f32.gmra.mxu0 %v4085
        %v5211 = vpop.f32.mrf.mxu0
        %v5212 = vadd.f32 %v4907, %v5211
        %v5213 = vpop.f32.mrf.mxu0
        %5214 = vmatprep.mubr.f32.mxu0 %v3973
        %5215 = vmatmul.mubr.f32.gmra.mxu0 %v4087
        %v5216 = vpop.f32.mrf.mxu0
        %v5217 = vadd.f32 %v4912, %v5216
        %v5218 = vpop.f32.mrf.mxu0
        %5219 = vmatprep.mubr.f32.mxu0 %v3974
        %5220 = vmatmul.mubr.f32.gmra.mxu0 %v4089
        %v5221 = vpop.f32.mrf.mxu0
        %v5222 = vadd.f32 %v4917, %v5221
        %v5223 = vpop.f32.mrf.mxu0
        %5224 = vmatprep.mubr.f32.mxu0 %v3975
        %5225 = vmatmul.mubr.f32.gmra.mxu0 %v4091
        %v5226 = vpop.f32.mrf.mxu0
        %v5227 = vadd.f32 %v4922, %v5226
        %v5228 = vpop.f32.mrf.mxu0
        %5229 = vmatprep.mubr.f32.mxu0 %v3976
        %5230 = vmatmul.mubr.f32.gmra.mxu0 %v4093
        %v5231 = vpop.f32.mrf.mxu0
        %v5232 = vadd.f32 %v4927, %v5231
        %v5233 = vpop.f32.mrf.mxu0
        %5234 = vmatprep.mubr.f32.mxu0 %v3977
        %5235 = vmatmul.mubr.f32.gmra.mxu0 %v4095
        %v5236 = vpop.f32.mrf.mxu0
        %v5237 = vadd.f32 %v4932, %v5236
        %v5238 = vpop.f32.mrf.mxu0
        %5239 = vmatprep.mubr.f32.mxu0 %v3978
        %5240 = vmatmul.mubr.f32.gmra.mxu0 %v4097
        %v5241 = vpop.f32.mrf.mxu0
        %v5242 = vadd.f32 %v4937, %v5241
        %v5243 = vpop.f32.mrf.mxu0
        %5244 = vmatprep.mubr.f32.mxu0 %v3979
        %5245 = vmatmul.mubr.f32.gmra.mxu0 %v4099
        %v5246 = vpop.f32.mrf.mxu0
        %v5247 = vadd.f32 %v4942, %v5246
        %v5248 = vpop.f32.mrf.mxu0
        %5249 = vmatprep.mubr.f32.mxu0 %v3980
        %5250 = vmatmul.mubr.f32.gmra.mxu0 %v4101
        %v5251 = vpop.f32.mrf.mxu0
        %v5252 = vadd.f32 %v4947, %v5251
        %v5253 = vpop.f32.mrf.mxu0
        %5254 = vmatprep.mubr.f32.mxu0 %v3981
        %5255 = vmatmul.mubr.f32.gmra.mxu0 %v4103
        %v5256 = vpop.f32.mrf.mxu0
        %v5257 = vadd.f32 %v4952, %v5256
        %v5258 = vpop.f32.mrf.mxu0
        %5259 = vmatprep.mubr.f32.mxu0 %v3982
        %5260 = vmatmul.mubr.f32.gmra.mxu0 %v4105
        %v5261 = vpop.f32.mrf.mxu0
        %v5262 = vadd.f32 %v4957, %v5261
        %v5263 = vpop.f32.mrf.mxu0
        %5264 = vmatprep.mubr.f32.mxu0 %v3983
        %5265 = vmatmul.mubr.f32.gmra.mxu0 %v4107
        %v5266 = vpop.f32.mrf.mxu0
        %v5267 = vadd.f32 %v4962, %v5266
        %v5268 = vpop.f32.mrf.mxu0
        %5269 = vmatprep.mubr.f32.mxu0 %v3984
        %5270 = vmatmul.mubr.f32.gmra.mxu0 %v4109
        %v5271 = vpop.f32.mrf.mxu0
        %v5272 = vadd.f32 %v4967, %v5271
        %v5273 = vpop.f32.mrf.mxu0
        %5274 = vmatprep.mubr.f32.mxu0 %v3985
        %5275 = vmatmul.mubr.f32.gmra.mxu0 %v4111
        %v5276 = vpop.f32.mrf.mxu0
        %v5277 = vadd.f32 %v4972, %v5276
        %v5278 = vpop.f32.mrf.mxu0
        %5279 = vmatprep.mubr.f32.mxu0 %v3986
        %5280 = vmatmul.mubr.f32.gmra.mxu0 %v4113
        %v5281 = vpop.f32.mrf.mxu0
        %v5282 = vadd.f32 %v4977, %v5281
        %v5283 = vpop.f32.mrf.mxu0
        %5284 = vmatprep.mubr.f32.mxu0 %v3987
        %5285 = vmatmul.mubr.f32.gmra.mxu0 %v4115
        %v5286 = vpop.f32.mrf.mxu0
        %v5287 = vadd.f32 %v4982, %v5286
        %v5288 = vpop.f32.mrf.mxu0
        %5289 = vmatprep.mubr.f32.mxu0 %v3988
        %5290 = vmatmul.mubr.f32.gmra.mxu0 %v4117
        %v5291 = vpop.f32.mrf.mxu0
        %v5292 = vadd.f32 %v4987, %v5291
        %v5293 = vpop.f32.mrf.mxu0
        %5294 = vmatprep.mubr.f32.mxu0 %v3989
        %5295 = vmatmul.mubr.f32.gmra.mxu0 %v4119
        %v5296 = vpop.f32.mrf.mxu0
        %v5297 = vadd.f32 %v4992, %v5296
        %v5298 = vpop.f32.mrf.mxu0
        %5299 = vmatprep.mubr.f32.mxu0 %v3990
        %5300 = vmatmul.mubr.f32.gmra.mxu0 %v4121
        %v5301 = vpop.f32.mrf.mxu0
        %v5302 = vadd.f32 %v4997, %v5301
        %v5303 = vpop.f32.mrf.mxu0
        %5304 = vmatprep.mubr.f32.mxu0 %v3991
        %5305 = vmatmul.mubr.f32.gmra.mxu0 %v4123
        %v5306 = vpop.f32.mrf.mxu0
        %v5307 = vadd.f32 %v5002, %v5306
        %v5308 = vpop.f32.mrf.mxu0
        %5309 = vmatprep.mubr.f32.mxu0 %v3992
        %5310 = vmatmul.mubr.f32.gmra.mxu0 %v4125
        %v5311 = vpop.f32.mrf.mxu0
        %v5312 = vadd.f32 %v5007, %v5311
        %v5313 = vpop.f32.mrf.mxu0
        %5314 = vmatprep.mubr.f32.mxu0 %v3993
        %5315 = vmatmul.mubr.f32.gmra.mxu0 %v4127
        %v5316 = vpop.f32.mrf.mxu0
        %v5317 = vadd.f32 %v5012, %v5316
        %v5318 = vpop.f32.mrf.mxu0
        %5319 = vmatprep.mubr.f32.mxu0 %v3994
        %5320 = vmatmul.mubr.f32.gmra.mxu0 %v4129
        %v5321 = vpop.f32.mrf.mxu0
        %v5322 = vadd.f32 %v5017, %v5321
        %v5323 = vpop.f32.mrf.mxu0
        %5324 = vmatprep.mubr.f32.mxu0 %v3995
        %5325 = vmatmul.mubr.f32.gmra.mxu0 %v4131
        %v5326 = vpop.f32.mrf.mxu0
        %v5327 = vadd.f32 %v5022, %v5326
        %v5328 = vpop.f32.mrf.mxu0
        %5329 = vmatprep.mubr.f32.mxu0 %v3996
        %5330 = vmatmul.mubr.f32.gmra.mxu0 %v4133
        %v5331 = vpop.f32.mrf.mxu0
        %v5332 = vadd.f32 %v5027, %v5331
        %v5333 = vpop.f32.mrf.mxu0
        %5334 = vmatprep.mubr.f32.mxu0 %v3997
        %5335 = vmatmul.mubr.f32.gmra.mxu0 %v4135
        %v5336 = vpop.f32.mrf.mxu0
        %v5337 = vadd.f32 %v5032, %v5336
        %v5338 = vpop.f32.mrf.mxu0
        %5339 = vmatprep.mubr.f32.mxu0 %v3998
        %5340 = vmatmul.mubr.f32.gmra.mxu0 %v4137
        %v5341 = vpop.f32.mrf.mxu0
        %v5342 = vadd.f32 %v5037, %v5341
        %v5343 = vpop.f32.mrf.mxu0
        %5344 = vmatprep.mubr.f32.mxu0 %v3999
        %5345 = vmatmul.mubr.f32.gmra.mxu0 %v4139
        %v5346 = vpop.f32.mrf.mxu0
        %v5347 = vadd.f32 %v5042, %v5346
        %v5348 = vpop.f32.mrf.mxu0
        %5349 = vmatprep.mubr.f32.mxu0 %v4000
        %5350 = vmatmul.mubr.f32.gmra.mxu0 %v4141
        %v5351 = vpop.f32.mrf.mxu0
        %v5352 = vadd.f32 %v5047, %v5351
        %v5353 = vpop.f32.mrf.mxu0
        %5354 = vmatprep.mubr.f32.mxu0 %v4001
        %5355 = vmatmul.mubr.f32.gmra.mxu0 %v4143
        %v5356 = vpop.f32.mrf.mxu0
        %v5357 = vadd.f32 %v5052, %v5356
        %v5358 = vpop.f32.mrf.mxu0
        %5359 = vmatprep.mubr.f32.mxu0 %v4002
        %5360 = vmatmul.mubr.f32.gmra.mxu0 %v4145
        %v5361 = vpop.f32.mrf.mxu0
        %v5362 = vadd.f32 %v5057, %v5361
        %v5363 = vpop.f32.mrf.mxu0
        %5364 = vmatprep.mubr.f32.mxu0 %v4003
        %5365 = vmatmul.mubr.f32.gmra.mxu0 %v4147
        %v5366 = vpop.f32.mrf.mxu0
        %v5367 = vadd.f32 %v5062, %v5366
        %v5368 = vpop.f32.mrf.mxu0
        %5369 = vdwg.mxu0
        %5370 = vmatprep.subr.mxu0 0.0
        %5371 = vmatpush1.msra.mxu0 %v4405
        %5372 = vmatprep.subr.mxu0 0.0
        %5373 = vmatpush1.msra.mxu0 %v4404
        %5374 = vmatprep.subr.mxu0 0.0
        %5375 = vmatpush1.msra.mxu0 %v4403
        %5376 = vmatprep.subr.mxu0 0.0
        %5377 = vmatpush1.msra.mxu0 %v4402
        %5378 = vmatprep.subr.mxu0 0.0
        %5379 = vmatpush1.msra.mxu0 %v4401
        %5380 = vmatprep.subr.mxu0 0.0
        %5381 = vmatpush1.msra.mxu0 %v4400
        %5382 = vmatprep.subr.mxu0 0.0
        %5383 = vmatpush1.msra.mxu0 %v4399
        %5384 = vmatprep.subr.mxu0 0.0
        %5385 = vmatpush1.msra.mxu0 %v4398
        %5386 = vmatprep.subr.mxu0 0.0
        %5387 = vmatpush1.msra.mxu0 %v4397
        %5388 = vmatprep.subr.mxu0 0.0
        %5389 = vmatpush1.msra.mxu0 %v4396
        %5390 = vmatprep.subr.mxu0 0.0
        %5391 = vmatpush1.msra.mxu0 %v4395
        %5392 = vmatprep.subr.mxu0 0.0
        %5393 = vmatpush1.msra.mxu0 %v4394
        %5394 = vmatprep.subr.mxu0 0.0
        %5395 = vmatpush1.msra.mxu0 %v4393
        %5396 = vmatprep.subr.mxu0 0.0
        %5397 = vmatpush1.msra.mxu0 %v4392
        %5398 = vmatprep.subr.mxu0 0.0
        %5399 = vmatpush1.msra.mxu0 %v4391
        %5400 = vmatprep.subr.mxu0 0.0
        %5401 = vmatpush1.msra.mxu0 %v4390
        %5402 = vmatprep.subr.mxu0 0.0
        %5403 = vmatpush2.msra.mxu0 0.0
        %5404 = vmatprep.subr.mxu0 0.0
        %5405 = vmatpush2.msra.mxu0 0.0
        %5406 = vmatprep.subr.mxu0 0.0
        %5407 = vmatpush2.msra.mxu0 0.0
        %5408 = vmatprep.subr.mxu0 0.0
        %5409 = vmatpush2.msra.mxu0 0.0
        %5410 = vmatprep.subr.mxu0 0.0
        %5411 = vmatpush2.msra.mxu0 0.0
        %5412 = vmatprep.subr.mxu0 0.0
        %5413 = vmatpush2.msra.mxu0 0.0
        %5414 = vmatprep.subr.mxu0 0.0
        %5415 = vmatpush2.msra.mxu0 0.0
        %5416 = vmatprep.subr.mxu0 0.0
        %5417 = vmatpush2.msra.mxu0 0.0
        %5418 = vmatprep.subr.mxu0 0.0
        %5419 = vmatpush2.msra.mxu0 0.0
        %5420 = vmatprep.subr.mxu0 0.0
        %5421 = vmatpush2.msra.mxu0 0.0
        %5422 = vmatprep.subr.mxu0 0.0
        %5423 = vmatpush2.msra.mxu0 0.0
        %5424 = vmatprep.subr.mxu0 0.0
        %5425 = vmatpush2.msra.mxu0 0.0
        %5426 = vmatprep.subr.mxu0 0.0
        %5427 = vmatpush2.msra.mxu0 0.0
        %5428 = vmatprep.subr.mxu0 0.0
        %5429 = vmatpush2.msra.mxu0 0.0
        %5430 = vmatprep.subr.mxu0 0.0
        %5431 = vmatpush2.msra.mxu0 0.0
        %5432 = vmatprep.subr.mxu0 0.0
        %5433 = vmatpush2.msra.mxu0 0.0
        %5434 = vmatprep.mubr.f32.mxu0 0.0
        %5435 = vmatmul.mubr.f32.gmra.mxu0 %v4208
        %v5436 = vpop.f32.mrf.mxu0
        %v5437 = vadd.f32 %v5132, %v5436
        %v5438 = vpop.f32.mrf.mxu0
        %5439 = vmatprep.mubr.f32.mxu0 0.0
        %5440 = vmatmul.mubr.f32.gmra.mxu0 %v4208
        %v5441 = vpop.f32.mrf.mxu0
        %v5442 = vadd.f32 %v5137, %v5441
        %v5443 = vpop.f32.mrf.mxu0
        %5444 = vmatprep.mubr.f32.mxu0 0.0
        %5445 = vmatmul.mubr.f32.gmra.mxu0 %v4210
        %v5446 = vpop.f32.mrf.mxu0
        %v5447 = vadd.f32 %v5142, %v5446
        %v5448 = vpop.f32.mrf.mxu0
        %5449 = vmatprep.mubr.f32.mxu0 0.0
        %5450 = vmatmul.mubr.f32.gmra.mxu0 %v4212
        %v5451 = vpop.f32.mrf.mxu0
        %v5452 = vadd.f32 %v5147, %v5451
        %v5453 = vpop.f32.mrf.mxu0
        %5454 = vmatprep.mubr.f32.mxu0 0.0
        %5455 = vmatmul.mubr.f32.gmra.mxu0 %v4214
        %v5456 = vpop.f32.mrf.mxu0
        %v5457 = vadd.f32 %v5152, %v5456
        %v5458 = vpop.f32.mrf.mxu0
        %5459 = vmatprep.mubr.f32.mxu0 0.0
        %5460 = vmatmul.mubr.f32.gmra.mxu0 %v4216
        %v5461 = vpop.f32.mrf.mxu0
        %v5462 = vadd.f32 %v5157, %v5461
        %v5463 = vpop.f32.mrf.mxu0
        %5464 = vmatprep.mubr.f32.mxu0 0.0
        %5465 = vmatmul.mubr.f32.gmra.mxu0 %v4218
        %v5466 = vpop.f32.mrf.mxu0
        %v5467 = vadd.f32 %v5162, %v5466
        %v5468 = vpop.f32.mrf.mxu0
        %5469 = vmatprep.mubr.f32.mxu0 0.0
        %5470 = vmatmul.mubr.f32.gmra.mxu0 %v4220
        %v5471 = vpop.f32.mrf.mxu0
        %v5472 = vadd.f32 %v5167, %v5471
        %v5473 = vpop.f32.mrf.mxu0
        %5474 = vmatprep.mubr.f32.mxu0 0.0
        %5475 = vmatmul.mubr.f32.gmra.mxu0 %v4222
        %v5476 = vpop.f32.mrf.mxu0
        %v5477 = vadd.f32 %v5172, %v5476
        %v5478 = vpop.f32.mrf.mxu0
        %5479 = vmatprep.mubr.f32.mxu0 0.0
        %5480 = vmatmul.mubr.f32.gmra.mxu0 %v4224
        %v5481 = vpop.f32.mrf.mxu0
        %v5482 = vadd.f32 %v5177, %v5481
        %v5483 = vpop.f32.mrf.mxu0
        %5484 = vmatprep.mubr.f32.mxu0 0.0
        %5485 = vmatmul.mubr.f32.gmra.mxu0 %v4226
        %v5486 = vpop.f32.mrf.mxu0
        %v5487 = vadd.f32 %v5182, %v5486
        %v5488 = vpop.f32.mrf.mxu0
        %5489 = vmatprep.mubr.f32.mxu0 0.0
        %5490 = vmatmul.mubr.f32.gmra.mxu0 %v4228
        %v5491 = vpop.f32.mrf.mxu0
        %v5492 = vadd.f32 %v5187, %v5491
        %v5493 = vpop.f32.mrf.mxu0
        %5494 = vmatprep.mubr.f32.mxu0 0.0
        %5495 = vmatmul.mubr.f32.gmra.mxu0 %v4230
        %v5496 = vpop.f32.mrf.mxu0
        %v5497 = vadd.f32 %v5192, %v5496
        %v5498 = vpop.f32.mrf.mxu0
        %5499 = vmatprep.mubr.f32.mxu0 0.0
        %5500 = vmatmul.mubr.f32.gmra.mxu0 %v4232
        %v5501 = vpop.f32.mrf.mxu0
        %v5502 = vadd.f32 %v5197, %v5501
        %v5503 = vpop.f32.mrf.mxu0
        %5504 = vmatprep.mubr.f32.mxu0 0.0
        %5505 = vmatmul.mubr.f32.gmra.mxu0 %v4234
        %v5506 = vpop.f32.mrf.mxu0
        %v5507 = vadd.f32 %v5202, %v5506
        %v5508 = vpop.f32.mrf.mxu0
        %5509 = vmatprep.mubr.f32.mxu0 0.0
        %5510 = vmatmul.mubr.f32.gmra.mxu0 %v4236
        %v5511 = vpop.f32.mrf.mxu0
        %v5512 = vadd.f32 %v5207, %v5511
        %v5513 = vpop.f32.mrf.mxu0
        %5514 = vmatprep.mubr.f32.mxu0 0.0
        %5515 = vmatmul.mubr.f32.gmra.mxu0 %v4238
        %v5516 = vpop.f32.mrf.mxu0
        %v5517 = vadd.f32 %v5212, %v5516
        %v5518 = vpop.f32.mrf.mxu0
        %5519 = vmatprep.mubr.f32.mxu0 0.0
        %5520 = vmatmul.mubr.f32.gmra.mxu0 %v4240
        %v5521 = vpop.f32.mrf.mxu0
        %v5522 = vadd.f32 %v5217, %v5521
        %v5523 = vpop.f32.mrf.mxu0
        %5524 = vmatprep.mubr.f32.mxu0 0.0
        %5525 = vmatmul.mubr.f32.gmra.mxu0 %v4242
        %v5526 = vpop.f32.mrf.mxu0
        %v5527 = vadd.f32 %v5222, %v5526
        %v5528 = vpop.f32.mrf.mxu0
        %5529 = vmatprep.mubr.f32.mxu0 0.0
        %5530 = vmatmul.mubr.f32.gmra.mxu0 %v4244
        %v5531 = vpop.f32.mrf.mxu0
        %v5532 = vadd.f32 %v5227, %v5531
        %v5533 = vpop.f32.mrf.mxu0
        %5534 = vmatprep.mubr.f32.mxu0 0.0
        %5535 = vmatmul.mubr.f32.gmra.mxu0 %v4246
        %v5536 = vpop.f32.mrf.mxu0
        %v5537 = vadd.f32 %v5232, %v5536
        %v5538 = vpop.f32.mrf.mxu0
        %5539 = vmatprep.mubr.f32.mxu0 0.0
        %5540 = vmatmul.mubr.f32.gmra.mxu0 %v4248
        %v5541 = vpop.f32.mrf.mxu0
        %v5542 = vadd.f32 %v5237, %v5541
        %v5543 = vpop.f32.mrf.mxu0
        %5544 = vmatprep.mubr.f32.mxu0 0.0
        %5545 = vmatmul.mubr.f32.gmra.mxu0 %v4250
        %v5546 = vpop.f32.mrf.mxu0
        %v5547 = vadd.f32 %v5242, %v5546
        %v5548 = vpop.f32.mrf.mxu0
        %5549 = vmatprep.mubr.f32.mxu0 0.0
        %5550 = vmatmul.mubr.f32.gmra.mxu0 %v4252
        %v5551 = vpop.f32.mrf.mxu0
        %v5552 = vadd.f32 %v5247, %v5551
        %v5553 = vpop.f32.mrf.mxu0
        %5554 = vmatprep.mubr.f32.mxu0 0.0
        %5555 = vmatmul.mubr.f32.gmra.mxu0 %v4254
        %v5556 = vpop.f32.mrf.mxu0
        %v5557 = vadd.f32 %v5252, %v5556
        %v5558 = vpop.f32.mrf.mxu0
        %5559 = vmatprep.mubr.f32.mxu0 0.0
        %5560 = vmatmul.mubr.f32.gmra.mxu0 %v4256
        %v5561 = vpop.f32.mrf.mxu0
        %v5562 = vadd.f32 %v5257, %v5561
        %v5563 = vpop.f32.mrf.mxu0
        %5564 = vmatprep.mubr.f32.mxu0 0.0
        %5565 = vmatmul.mubr.f32.gmra.mxu0 %v4258
        %v5566 = vpop.f32.mrf.mxu0
        %v5567 = vadd.f32 %v5262, %v5566
        %v5568 = vpop.f32.mrf.mxu0
        %5569 = vmatprep.mubr.f32.mxu0 0.0
        %5570 = vmatmul.mubr.f32.gmra.mxu0 %v4260
        %v5571 = vpop.f32.mrf.mxu0
        %v5572 = vadd.f32 %v5267, %v5571
        %v5573 = vpop.f32.mrf.mxu0
        %5574 = vmatprep.mubr.f32.mxu0 0.0
        %5575 = vmatmul.mubr.f32.gmra.mxu0 %v4262
        %v5576 = vpop.f32.mrf.mxu0
        %v5577 = vadd.f32 %v5272, %v5576
        %v5578 = vpop.f32.mrf.mxu0
        %5579 = vmatprep.mubr.f32.mxu0 0.0
        %5580 = vmatmul.mubr.f32.gmra.mxu0 %v4264
        %v5581 = vpop.f32.mrf.mxu0
        %v5582 = vadd.f32 %v5277, %v5581
        %v5583 = vpop.f32.mrf.mxu0
        %5584 = vmatprep.mubr.f32.mxu0 0.0
        %5585 = vmatmul.mubr.f32.gmra.mxu0 %v4266
        %v5586 = vpop.f32.mrf.mxu0
        %v5587 = vadd.f32 %v5282, %v5586
        %v5588 = vpop.f32.mrf.mxu0
        %5589 = vmatprep.mubr.f32.mxu0 0.0
        %5590 = vmatmul.mubr.f32.gmra.mxu0 %v4268
        %v5591 = vpop.f32.mrf.mxu0
        %v5592 = vadd.f32 %v5287, %v5591
        %v5593 = vpop.f32.mrf.mxu0
        %5594 = vmatprep.mubr.f32.mxu0 0.0
        %5595 = vmatmul.mubr.f32.gmra.mxu0 %v4270
        %v5596 = vpop.f32.mrf.mxu0
        %v5597 = vadd.f32 %v5292, %v5596
        %v5598 = vpop.f32.mrf.mxu0
        %5599 = vmatprep.mubr.f32.mxu0 0.0
        %5600 = vmatmul.mubr.f32.gmra.mxu0 %v4272
        %v5601 = vpop.f32.mrf.mxu0
        %v5602 = vadd.f32 %v5297, %v5601
        %v5603 = vpop.f32.mrf.mxu0
        %5604 = vmatprep.mubr.f32.mxu0 0.0
        %5605 = vmatmul.mubr.f32.gmra.mxu0 %v4274
        %v5606 = vpop.f32.mrf.mxu0
        %v5607 = vadd.f32 %v5302, %v5606
        %v5608 = vpop.f32.mrf.mxu0
        %5609 = vmatprep.mubr.f32.mxu0 0.0
        %5610 = vmatmul.mubr.f32.gmra.mxu0 %v4276
        %v5611 = vpop.f32.mrf.mxu0
        %v5612 = vadd.f32 %v5307, %v5611
        %v5613 = vpop.f32.mrf.mxu0
        %5614 = vmatprep.mubr.f32.mxu0 0.0
        %5615 = vmatmul.mubr.f32.gmra.mxu0 %v4278
        %v5616 = vpop.f32.mrf.mxu0
        %v5617 = vadd.f32 %v5312, %v5616
        %v5618 = vpop.f32.mrf.mxu0
        %5619 = vmatprep.mubr.f32.mxu0 0.0
        %5620 = vmatmul.mubr.f32.gmra.mxu0 %v4280
        %v5621 = vpop.f32.mrf.mxu0
        %v5622 = vadd.f32 %v5317, %v5621
        %v5623 = vpop.f32.mrf.mxu0
        %5624 = vmatprep.mubr.f32.mxu0 0.0
        %5625 = vmatmul.mubr.f32.gmra.mxu0 %v4282
        %v5626 = vpop.f32.mrf.mxu0
        %v5627 = vadd.f32 %v5322, %v5626
        %v5628 = vpop.f32.mrf.mxu0
        %5629 = vmatprep.mubr.f32.mxu0 0.0
        %5630 = vmatmul.mubr.f32.gmra.mxu0 %v4284
        %v5631 = vpop.f32.mrf.mxu0
        %v5632 = vadd.f32 %v5327, %v5631
        %v5633 = vpop.f32.mrf.mxu0
        %5634 = vmatprep.mubr.f32.mxu0 0.0
        %5635 = vmatmul.mubr.f32.gmra.mxu0 %v4286
        %v5636 = vpop.f32.mrf.mxu0
        %v5637 = vadd.f32 %v5332, %v5636
        %v5638 = vpop.f32.mrf.mxu0
        %5639 = vmatprep.mubr.f32.mxu0 0.0
        %5640 = vmatmul.mubr.f32.gmra.mxu0 %v4288
        %v5641 = vpop.f32.mrf.mxu0
        %v5642 = vadd.f32 %v5337, %v5641
        %v5643 = vpop.f32.mrf.mxu0
        %5644 = vmatprep.mubr.f32.mxu0 0.0
        %5645 = vmatmul.mubr.f32.gmra.mxu0 %v4290
        %v5646 = vpop.f32.mrf.mxu0
        %v5647 = vadd.f32 %v5342, %v5646
        %v5648 = vpop.f32.mrf.mxu0
        %5649 = vmatprep.mubr.f32.mxu0 0.0
        %5650 = vmatmul.mubr.f32.gmra.mxu0 %v4292
        %v5651 = vpop.f32.mrf.mxu0
        %v5652 = vadd.f32 %v5347, %v5651
        %v5653 = vpop.f32.mrf.mxu0
        %5654 = vmatprep.mubr.f32.mxu0 0.0
        %5655 = vmatmul.mubr.f32.gmra.mxu0 %v4294
        %v5656 = vpop.f32.mrf.mxu0
        %v5657 = vadd.f32 %v5352, %v5656
        %v5658 = vpop.f32.mrf.mxu0
        %5659 = vmatprep.mubr.f32.mxu0 0.0
        %5660 = vmatmul.mubr.f32.gmra.mxu0 %v4296
        %v5661 = vpop.f32.mrf.mxu0
        %v5662 = vadd.f32 %v5357, %v5661
        %v5663 = vpop.f32.mrf.mxu0
        %5664 = vmatprep.mubr.f32.mxu0 0.0
        %5665 = vmatmul.mubr.f32.gmra.mxu0 %v4298
        %v5666 = vpop.f32.mrf.mxu0
        %v5667 = vadd.f32 %v5362, %v5666
        %v5668 = vpop.f32.mrf.mxu0
        %5669 = vmatprep.mubr.f32.mxu0 0.0
        %5670 = vmatmul.mubr.f32.gmra.mxu0 %v4300
        %v5671 = vpop.f32.mrf.mxu0
        %v5672 = vadd.f32 %v5367, %v5671
        %v5673 = vpop.f32.mrf.mxu0
        %5674 = vdwg.mxu0
        %s5675 = scalar_lea.vmem [#allocation7], 768
        %v5676 = vld [vmem:[%s5675] sm:$0xff]
        %v5677 = vld [vmem:[%s5675 + $0x8] sm:$0xff]
        %v5678 = vld [vmem:[%s5675 + $0x10] sm:$0xff]
        %v5679 = vld [vmem:[%s5675 + $0x18] sm:$0xff]
        %v5680 = vld [vmem:[%s5675 + $0x20] sm:$0xff]
        %v5681 = vld [vmem:[%s5675 + $0x28] sm:$0xff]
        %v5682 = vld [vmem:[%s5675 + $0x30] sm:$0xff]
        %v5683 = vld [vmem:[%s5675 + $0x38] sm:$0xff]
        %v5684 = vld [vmem:[%s5675 + $0x40] sm:$0xff]
        %v5685 = vld [vmem:[%s5675 + $0x48] sm:$0xff]
        %v5686 = vld [vmem:[%s5675 + $0x50] sm:$0xff]
        %v5687 = vld [vmem:[%s5675 + $0x58] sm:$0xff]
        %v5688 = vld [vmem:[%s5675 + $0x60] sm:$0xff]
        %v5689 = vld [vmem:[%s5675 + $0x68] sm:$0xff]
        %v5690 = vld [vmem:[%s5675 + $0x70] sm:$0xff]
        %v5691 = vld [vmem:[%s5675 + $0x78] sm:$0xff]
        %v5692 = vld [vmem:[%s5675 + $0x80] sm:$0xff]
        %v5693 = vld [vmem:[%s5675 + $0x88] sm:$0xff]
        %v5694 = vld [vmem:[%s5675 + $0x90] sm:$0xff]
        %v5695 = vld [vmem:[%s5675 + $0x98] sm:$0xff]
        %v5696 = vld [vmem:[%s5675 + $0xa0] sm:$0xff]
        %v5697 = vld [vmem:[%s5675 + $0xa8] sm:$0xff]
        %v5698 = vld [vmem:[%s5675 + $0xb0] sm:$0xff]
        %v5699 = vld [vmem:[%s5675 + $0xb8] sm:$0xff]
        %v5700 = vld [vmem:[%s5675 + $0xc0] sm:$0xff]
        %v5701 = vld [vmem:[%s5675 + $0xc8] sm:$0xff]
        %v5702 = vld [vmem:[%s5675 + $0xd0] sm:$0xff]
        %v5703 = vld [vmem:[%s5675 + $0xd8] sm:$0xff]
        %v5704 = vld [vmem:[%s5675 + $0xe0] sm:$0xff]
        %v5705 = vld [vmem:[%s5675 + $0xe8] sm:$0xff]
        %v5706 = vld [vmem:[%s5675 + $0xf0] sm:$0xff]
        %v5707 = vld [vmem:[%s5675 + $0xf8] sm:$0xff]
        %v5708 = vld [vmem:[%s5675 + $0x100] sm:$0xff]
        %v5709 = vld [vmem:[%s5675 + $0x108] sm:$0xff]
        %v5710 = vld [vmem:[%s5675 + $0x110] sm:$0xff]
        %v5711 = vld [vmem:[%s5675 + $0x118] sm:$0xff]
        %v5712 = vld [vmem:[%s5675 + $0x120] sm:$0xff]
        %v5713 = vld [vmem:[%s5675 + $0x128] sm:$0xff]
        %v5714 = vld [vmem:[%s5675 + $0x130] sm:$0xff]
        %v5715 = vld [vmem:[%s5675 + $0x138] sm:$0xff]
        %v5716 = vld [vmem:[%s5675 + $0x140] sm:$0xff]
        %v5717 = vld [vmem:[%s5675 + $0x148] sm:$0xff]
        %v5718 = vld [vmem:[%s5675 + $0x150] sm:$0xff]
        %v5719 = vld [vmem:[%s5675 + $0x158] sm:$0xff]
        %v5720 = vld [vmem:[%s5675 + $0x160] sm:$0xff]
        %v5721 = vld [vmem:[%s5675 + $0x168] sm:$0xff]
        %v5722 = vld [vmem:[%s5675 + $0x170] sm:$0xff]
        %v5723 = vld [vmem:[%s5675 + $0x178] sm:$0xff]
        %5724 = vmatprep.subr.mxu0 0.0
        %5725 = vmatpush1.msra.mxu0 %v5691
        %5726 = vmatprep.subr.mxu0 0.0
        %5727 = vmatpush1.msra.mxu0 %v5690
        %5728 = vmatprep.subr.mxu0 0.0
        %5729 = vmatpush1.msra.mxu0 %v5689
        %5730 = vmatprep.subr.mxu0 0.0
        %5731 = vmatpush1.msra.mxu0 %v5688
        %5732 = vmatprep.subr.mxu0 0.0
        %5733 = vmatpush1.msra.mxu0 %v5687
        %5734 = vmatprep.subr.mxu0 0.0
        %5735 = vmatpush1.msra.mxu0 %v5686
        %5736 = vmatprep.subr.mxu0 0.0
        %5737 = vmatpush1.msra.mxu0 %v5685
        %5738 = vmatprep.subr.mxu0 0.0
        %5739 = vmatpush1.msra.mxu0 %v5684
        %5740 = vmatprep.subr.mxu0 0.0
        %5741 = vmatpush1.msra.mxu0 %v5683
        %5742 = vmatprep.subr.mxu0 0.0
        %5743 = vmatpush1.msra.mxu0 %v5682
        %5744 = vmatprep.subr.mxu0 0.0
        %5745 = vmatpush1.msra.mxu0 %v5681
        %5746 = vmatprep.subr.mxu0 0.0
        %5747 = vmatpush1.msra.mxu0 %v5680
        %5748 = vmatprep.subr.mxu0 0.0
        %5749 = vmatpush1.msra.mxu0 %v5679
        %5750 = vmatprep.subr.mxu0 0.0
        %5751 = vmatpush1.msra.mxu0 %v5678
        %5752 = vmatprep.subr.mxu0 0.0
        %5753 = vmatpush1.msra.mxu0 %v5677
        %5754 = vmatprep.subr.mxu0 0.0
        %5755 = vmatpush1.msra.mxu0 %v5676
        %5756 = vmatprep.subr.mxu0 0.0
        %5757 = vmatpush2.msra.mxu0 %v5707
        %5758 = vmatprep.subr.mxu0 0.0
        %5759 = vmatpush2.msra.mxu0 %v5706
        %5760 = vmatprep.subr.mxu0 0.0
        %5761 = vmatpush2.msra.mxu0 %v5705
        %5762 = vmatprep.subr.mxu0 0.0
        %5763 = vmatpush2.msra.mxu0 %v5704
        %5764 = vmatprep.subr.mxu0 0.0
        %5765 = vmatpush2.msra.mxu0 %v5703
        %5766 = vmatprep.subr.mxu0 0.0
        %5767 = vmatpush2.msra.mxu0 %v5702
        %5768 = vmatprep.subr.mxu0 0.0
        %5769 = vmatpush2.msra.mxu0 %v5701
        %5770 = vmatprep.subr.mxu0 0.0
        %5771 = vmatpush2.msra.mxu0 %v5700
        %5772 = vmatprep.subr.mxu0 0.0
        %5773 = vmatpush2.msra.mxu0 %v5699
        %5774 = vmatprep.subr.mxu0 0.0
        %5775 = vmatpush2.msra.mxu0 %v5698
        %5776 = vmatprep.subr.mxu0 0.0
        %5777 = vmatpush2.msra.mxu0 %v5697
        %5778 = vmatprep.subr.mxu0 0.0
        %5779 = vmatpush2.msra.mxu0 %v5696
        %5780 = vmatprep.subr.mxu0 0.0
        %5781 = vmatpush2.msra.mxu0 %v5695
        %5782 = vmatprep.subr.mxu0 0.0
        %5783 = vmatpush2.msra.mxu0 %v5694
        %5784 = vmatprep.subr.mxu0 0.0
        %5785 = vmatpush2.msra.mxu0 %v5693
        %5786 = vmatprep.subr.mxu0 0.0
        %5787 = vmatpush2.msra.mxu0 %v5692
        %5788 = vmatprep.mubr.f32.mxu0 %v3962
        %5789 = vmatmul.mubr.f32.gmra.mxu0 %v4065
        %v5790 = vpop.f32.mrf.mxu0
        %v5791 = vadd.f32 0.0, %v5790
        %v5792 = vpop.f32.mrf.mxu0
        %5793 = vmatprep.mubr.f32.mxu0 %v3963
        %5794 = vmatmul.mubr.f32.gmra.mxu0 %v4067
        %v5795 = vpop.f32.mrf.mxu0
        %v5796 = vadd.f32 0.0, %v5795
        %v5797 = vpop.f32.mrf.mxu0
        %5798 = vmatprep.mubr.f32.mxu0 %v3964
        %5799 = vmatmul.mubr.f32.gmra.mxu0 %v4069
        %v5800 = vpop.f32.mrf.mxu0
        %v5801 = vadd.f32 0.0, %v5800
        %v5802 = vpop.f32.mrf.mxu0
        %5803 = vmatprep.mubr.f32.mxu0 %v3965
        %5804 = vmatmul.mubr.f32.gmra.mxu0 %v4071
        %v5805 = vpop.f32.mrf.mxu0
        %v5806 = vadd.f32 0.0, %v5805
        %v5807 = vpop.f32.mrf.mxu0
        %5808 = vmatprep.mubr.f32.mxu0 %v3966
        %5809 = vmatmul.mubr.f32.gmra.mxu0 %v4073
        %v5810 = vpop.f32.mrf.mxu0
        %v5811 = vadd.f32 0.0, %v5810
        %v5812 = vpop.f32.mrf.mxu0
        %5813 = vmatprep.mubr.f32.mxu0 %v3967
        %5814 = vmatmul.mubr.f32.gmra.mxu0 %v4075
        %v5815 = vpop.f32.mrf.mxu0
        %v5816 = vadd.f32 0.0, %v5815
        %v5817 = vpop.f32.mrf.mxu0
        %5818 = vmatprep.mubr.f32.mxu0 %v3968
        %5819 = vmatmul.mubr.f32.gmra.mxu0 %v4077
        %v5820 = vpop.f32.mrf.mxu0
        %v5821 = vadd.f32 0.0, %v5820
        %v5822 = vpop.f32.mrf.mxu0
        %5823 = vmatprep.mubr.f32.mxu0 %v3969
        %5824 = vmatmul.mubr.f32.gmra.mxu0 %v4079
        %v5825 = vpop.f32.mrf.mxu0
        %v5826 = vadd.f32 0.0, %v5825
        %v5827 = vpop.f32.mrf.mxu0
        %5828 = vmatprep.mubr.f32.mxu0 %v3970
        %5829 = vmatmul.mubr.f32.gmra.mxu0 %v4081
        %v5830 = vpop.f32.mrf.mxu0
        %v5831 = vadd.f32 0.0, %v5830
        %v5832 = vpop.f32.mrf.mxu0
        %5833 = vmatprep.mubr.f32.mxu0 %v3971
        %5834 = vmatmul.mubr.f32.gmra.mxu0 %v4083
        %v5835 = vpop.f32.mrf.mxu0
        %v5836 = vadd.f32 0.0, %v5835
        %v5837 = vpop.f32.mrf.mxu0
        %5838 = vmatprep.mubr.f32.mxu0 %v3972
        %5839 = vmatmul.mubr.f32.gmra.mxu0 %v4085
        %v5840 = vpop.f32.mrf.mxu0
        %v5841 = vadd.f32 0.0, %v5840
        %v5842 = vpop.f32.mrf.mxu0
        %5843 = vmatprep.mubr.f32.mxu0 %v3973
        %5844 = vmatmul.mubr.f32.gmra.mxu0 %v4087
        %v5845 = vpop.f32.mrf.mxu0
        %v5846 = vadd.f32 0.0, %v5845
        %v5847 = vpop.f32.mrf.mxu0
        %5848 = vmatprep.mubr.f32.mxu0 %v3974
        %5849 = vmatmul.mubr.f32.gmra.mxu0 %v4089
        %v5850 = vpop.f32.mrf.mxu0
        %v5851 = vadd.f32 0.0, %v5850
        %v5852 = vpop.f32.mrf.mxu0
        %5853 = vmatprep.mubr.f32.mxu0 %v3975
        %5854 = vmatmul.mubr.f32.gmra.mxu0 %v4091
        %v5855 = vpop.f32.mrf.mxu0
        %v5856 = vadd.f32 0.0, %v5855
        %v5857 = vpop.f32.mrf.mxu0
        %5858 = vmatprep.mubr.f32.mxu0 %v3976
        %5859 = vmatmul.mubr.f32.gmra.mxu0 %v4093
        %v5860 = vpop.f32.mrf.mxu0
        %v5861 = vadd.f32 0.0, %v5860
        %v5862 = vpop.f32.mrf.mxu0
        %5863 = vmatprep.mubr.f32.mxu0 %v3977
        %5864 = vmatmul.mubr.f32.gmra.mxu0 %v4095
        %v5865 = vpop.f32.mrf.mxu0
        %v5866 = vadd.f32 0.0, %v5865
        %v5867 = vpop.f32.mrf.mxu0
        %5868 = vmatprep.mubr.f32.mxu0 %v3978
        %5869 = vmatmul.mubr.f32.gmra.mxu0 %v4097
        %v5870 = vpop.f32.mrf.mxu0
        %v5871 = vadd.f32 0.0, %v5870
        %v5872 = vpop.f32.mrf.mxu0
        %5873 = vmatprep.mubr.f32.mxu0 %v3979
        %5874 = vmatmul.mubr.f32.gmra.mxu0 %v4099
        %v5875 = vpop.f32.mrf.mxu0
        %v5876 = vadd.f32 0.0, %v5875
        %v5877 = vpop.f32.mrf.mxu0
        %5878 = vmatprep.mubr.f32.mxu0 %v3980
        %5879 = vmatmul.mubr.f32.gmra.mxu0 %v4101
        %v5880 = vpop.f32.mrf.mxu0
        %v5881 = vadd.f32 0.0, %v5880
        %v5882 = vpop.f32.mrf.mxu0
        %5883 = vmatprep.mubr.f32.mxu0 %v3981
        %5884 = vmatmul.mubr.f32.gmra.mxu0 %v4103
        %v5885 = vpop.f32.mrf.mxu0
        %v5886 = vadd.f32 0.0, %v5885
        %v5887 = vpop.f32.mrf.mxu0
        %5888 = vmatprep.mubr.f32.mxu0 %v3982
        %5889 = vmatmul.mubr.f32.gmra.mxu0 %v4105
        %v5890 = vpop.f32.mrf.mxu0
        %v5891 = vadd.f32 0.0, %v5890
        %v5892 = vpop.f32.mrf.mxu0
        %5893 = vmatprep.mubr.f32.mxu0 %v3983
        %5894 = vmatmul.mubr.f32.gmra.mxu0 %v4107
        %v5895 = vpop.f32.mrf.mxu0
        %v5896 = vadd.f32 0.0, %v5895
        %v5897 = vpop.f32.mrf.mxu0
        %5898 = vmatprep.mubr.f32.mxu0 %v3984
        %5899 = vmatmul.mubr.f32.gmra.mxu0 %v4109
        %v5900 = vpop.f32.mrf.mxu0
        %v5901 = vadd.f32 0.0, %v5900
        %v5902 = vpop.f32.mrf.mxu0
        %5903 = vmatprep.mubr.f32.mxu0 %v3985
        %5904 = vmatmul.mubr.f32.gmra.mxu0 %v4111
        %v5905 = vpop.f32.mrf.mxu0
        %v5906 = vadd.f32 0.0, %v5905
        %v5907 = vpop.f32.mrf.mxu0
        %5908 = vmatprep.mubr.f32.mxu0 %v3986
        %5909 = vmatmul.mubr.f32.gmra.mxu0 %v4113
        %v5910 = vpop.f32.mrf.mxu0
        %v5911 = vadd.f32 0.0, %v5910
        %v5912 = vpop.f32.mrf.mxu0
        %5913 = vmatprep.mubr.f32.mxu0 %v3987
        %5914 = vmatmul.mubr.f32.gmra.mxu0 %v4115
        %v5915 = vpop.f32.mrf.mxu0
        %v5916 = vadd.f32 0.0, %v5915
        %v5917 = vpop.f32.mrf.mxu0
        %5918 = vmatprep.mubr.f32.mxu0 %v3988
        %5919 = vmatmul.mubr.f32.gmra.mxu0 %v4117
        %v5920 = vpop.f32.mrf.mxu0
        %v5921 = vadd.f32 0.0, %v5920
        %v5922 = vpop.f32.mrf.mxu0
        %5923 = vmatprep.mubr.f32.mxu0 %v3989
        %5924 = vmatmul.mubr.f32.gmra.mxu0 %v4119
        %v5925 = vpop.f32.mrf.mxu0
        %v5926 = vadd.f32 0.0, %v5925
        %v5927 = vpop.f32.mrf.mxu0
        %5928 = vmatprep.mubr.f32.mxu0 %v3990
        %5929 = vmatmul.mubr.f32.gmra.mxu0 %v4121
        %v5930 = vpop.f32.mrf.mxu0
        %v5931 = vadd.f32 0.0, %v5930
        %v5932 = vpop.f32.mrf.mxu0
        %5933 = vmatprep.mubr.f32.mxu0 %v3991
        %5934 = vmatmul.mubr.f32.gmra.mxu0 %v4123
        %v5935 = vpop.f32.mrf.mxu0
        %v5936 = vadd.f32 0.0, %v5935
        %v5937 = vpop.f32.mrf.mxu0
        %5938 = vmatprep.mubr.f32.mxu0 %v3992
        %5939 = vmatmul.mubr.f32.gmra.mxu0 %v4125
        %v5940 = vpop.f32.mrf.mxu0
        %v5941 = vadd.f32 0.0, %v5940
        %v5942 = vpop.f32.mrf.mxu0
        %5943 = vmatprep.mubr.f32.mxu0 %v3993
        %5944 = vmatmul.mubr.f32.gmra.mxu0 %v4127
        %v5945 = vpop.f32.mrf.mxu0
        %v5946 = vadd.f32 0.0, %v5945
        %v5947 = vpop.f32.mrf.mxu0
        %5948 = vmatprep.mubr.f32.mxu0 %v3994
        %5949 = vmatmul.mubr.f32.gmra.mxu0 %v4129
        %v5950 = vpop.f32.mrf.mxu0
        %v5951 = vadd.f32 0.0, %v5950
        %v5952 = vpop.f32.mrf.mxu0
        %5953 = vmatprep.mubr.f32.mxu0 %v3995
        %5954 = vmatmul.mubr.f32.gmra.mxu0 %v4131
        %v5955 = vpop.f32.mrf.mxu0
        %v5956 = vadd.f32 0.0, %v5955
        %v5957 = vpop.f32.mrf.mxu0
        %5958 = vmatprep.mubr.f32.mxu0 %v3996
        %5959 = vmatmul.mubr.f32.gmra.mxu0 %v4133
        %v5960 = vpop.f32.mrf.mxu0
        %v5961 = vadd.f32 0.0, %v5960
        %v5962 = vpop.f32.mrf.mxu0
        %5963 = vmatprep.mubr.f32.mxu0 %v3997
        %5964 = vmatmul.mubr.f32.gmra.mxu0 %v4135
        %v5965 = vpop.f32.mrf.mxu0
        %v5966 = vadd.f32 0.0, %v5965
        %v5967 = vpop.f32.mrf.mxu0
        %5968 = vmatprep.mubr.f32.mxu0 %v3998
        %5969 = vmatmul.mubr.f32.gmra.mxu0 %v4137
        %v5970 = vpop.f32.mrf.mxu0
        %v5971 = vadd.f32 0.0, %v5970
        %v5972 = vpop.f32.mrf.mxu0
        %5973 = vmatprep.mubr.f32.mxu0 %v3999
        %5974 = vmatmul.mubr.f32.gmra.mxu0 %v4139
        %v5975 = vpop.f32.mrf.mxu0
        %v5976 = vadd.f32 0.0, %v5975
        %v5977 = vpop.f32.mrf.mxu0
        %5978 = vmatprep.mubr.f32.mxu0 %v4000
        %5979 = vmatmul.mubr.f32.gmra.mxu0 %v4141
        %v5980 = vpop.f32.mrf.mxu0
        %v5981 = vadd.f32 0.0, %v5980
        %v5982 = vpop.f32.mrf.mxu0
        %5983 = vmatprep.mubr.f32.mxu0 %v4001
        %5984 = vmatmul.mubr.f32.gmra.mxu0 %v4143
        %v5985 = vpop.f32.mrf.mxu0
        %v5986 = vadd.f32 0.0, %v5985
        %v5987 = vpop.f32.mrf.mxu0
        %5988 = vmatprep.mubr.f32.mxu0 %v4002
        %5989 = vmatmul.mubr.f32.gmra.mxu0 %v4145
        %v5990 = vpop.f32.mrf.mxu0
        %v5991 = vadd.f32 0.0, %v5990
        %v5992 = vpop.f32.mrf.mxu0
        %5993 = vmatprep.mubr.f32.mxu0 %v4003
        %5994 = vmatmul.mubr.f32.gmra.mxu0 %v4147
        %v5995 = vpop.f32.mrf.mxu0
        %v5996 = vadd.f32 0.0, %v5995
        %v5997 = vpop.f32.mrf.mxu0
        %5998 = vmatprep.mubr.f32.mxu0 %v4004
        %5999 = vmatmul.mubr.f32.gmra.mxu0 %v4149
        %v6000 = vpop.f32.mrf.mxu0
        %v6001 = vadd.f32 0.0, %v6000
        %v6002 = vpop.f32.mrf.mxu0
        %6003 = vmatprep.mubr.f32.mxu0 %v4005
        %6004 = vmatmul.mubr.f32.gmra.mxu0 %v4151
        %v6005 = vpop.f32.mrf.mxu0
        %v6006 = vadd.f32 0.0, %v6005
        %v6007 = vpop.f32.mrf.mxu0
        %6008 = vmatprep.mubr.f32.mxu0 %v4006
        %6009 = vmatmul.mubr.f32.gmra.mxu0 %v4153
        %v6010 = vpop.f32.mrf.mxu0
        %v6011 = vadd.f32 0.0, %v6010
        %v6012 = vpop.f32.mrf.mxu0
        %6013 = vmatprep.mubr.f32.mxu0 0.0
        %6014 = vmatmul.mubr.f32.gmra.mxu0 %v4154
        %v6015 = vpop.f32.mrf.mxu0
        %v6016 = vadd.f32 0.0, %v6015
        %v6017 = vpop.f32.mrf.mxu0
        %6018 = vmatprep.mubr.f32.mxu0 0.0
        %6019 = vmatmul.mubr.f32.gmra.mxu0 %v4057
        %v6020 = vpop.f32.mrf.mxu0
        %v6021 = vadd.f32 0.0, %v6020
        %v6022 = vpop.f32.mrf.mxu0
        %6023 = vmatprep.mubr.f32.mxu0 0.0
        %6024 = vmatmul.mubr.f32.gmra.mxu0 %v4057
        %v6025 = vpop.f32.mrf.mxu0
        %v6026 = vadd.f32 0.0, %v6025
        %v6027 = vpop.f32.mrf.mxu0
        %6028 = vdwg.mxu0
        %6029 = vmatprep.subr.mxu0 0.0
        %6030 = vmatpush1.msra.mxu0 %v5723
        %6031 = vmatprep.subr.mxu0 0.0
        %6032 = vmatpush1.msra.mxu0 %v5722
        %6033 = vmatprep.subr.mxu0 0.0
        %6034 = vmatpush1.msra.mxu0 %v5721
        %6035 = vmatprep.subr.mxu0 0.0
        %6036 = vmatpush1.msra.mxu0 %v5720
        %6037 = vmatprep.subr.mxu0 0.0
        %6038 = vmatpush1.msra.mxu0 %v5719
        %6039 = vmatprep.subr.mxu0 0.0
        %6040 = vmatpush1.msra.mxu0 %v5718
        %6041 = vmatprep.subr.mxu0 0.0
        %6042 = vmatpush1.msra.mxu0 %v5717
        %6043 = vmatprep.subr.mxu0 0.0
        %6044 = vmatpush1.msra.mxu0 %v5716
        %6045 = vmatprep.subr.mxu0 0.0
        %6046 = vmatpush1.msra.mxu0 %v5715
        %6047 = vmatprep.subr.mxu0 0.0
        %6048 = vmatpush1.msra.mxu0 %v5714
        %6049 = vmatprep.subr.mxu0 0.0
        %6050 = vmatpush1.msra.mxu0 %v5713
        %6051 = vmatprep.subr.mxu0 0.0
        %6052 = vmatpush1.msra.mxu0 %v5712
        %6053 = vmatprep.subr.mxu0 0.0
        %6054 = vmatpush1.msra.mxu0 %v5711
        %6055 = vmatprep.subr.mxu0 0.0
        %6056 = vmatpush1.msra.mxu0 %v5710
        %6057 = vmatprep.subr.mxu0 0.0
        %6058 = vmatpush1.msra.mxu0 %v5709
        %6059 = vmatprep.subr.mxu0 0.0
        %6060 = vmatpush1.msra.mxu0 %v5708
        %6061 = vmatprep.subr.mxu0 0.0
        %6062 = vmatpush2.msra.mxu0 0.0
        %6063 = vmatprep.subr.mxu0 0.0
        %6064 = vmatpush2.msra.mxu0 0.0
        %6065 = vmatprep.subr.mxu0 0.0
        %6066 = vmatpush2.msra.mxu0 0.0
        %6067 = vmatprep.subr.mxu0 0.0
        %6068 = vmatpush2.msra.mxu0 0.0
        %6069 = vmatprep.subr.mxu0 0.0
        %6070 = vmatpush2.msra.mxu0 0.0
        %6071 = vmatprep.subr.mxu0 0.0
        %6072 = vmatpush2.msra.mxu0 0.0
        %6073 = vmatprep.subr.mxu0 0.0
        %6074 = vmatpush2.msra.mxu0 0.0
        %6075 = vmatprep.subr.mxu0 0.0
        %6076 = vmatpush2.msra.mxu0 0.0
        %6077 = vmatprep.subr.mxu0 0.0
        %6078 = vmatpush2.msra.mxu0 0.0
        %6079 = vmatprep.subr.mxu0 0.0
        %6080 = vmatpush2.msra.mxu0 0.0
        %6081 = vmatprep.subr.mxu0 0.0
        %6082 = vmatpush2.msra.mxu0 0.0
        %6083 = vmatprep.subr.mxu0 0.0
        %6084 = vmatpush2.msra.mxu0 0.0
        %6085 = vmatprep.subr.mxu0 0.0
        %6086 = vmatpush2.msra.mxu0 0.0
        %6087 = vmatprep.subr.mxu0 0.0
        %6088 = vmatpush2.msra.mxu0 0.0
        %6089 = vmatprep.subr.mxu0 0.0
        %6090 = vmatpush2.msra.mxu0 0.0
        %6091 = vmatprep.subr.mxu0 0.0
        %6092 = vmatpush2.msra.mxu0 0.0
        %6093 = vmatprep.mubr.f32.mxu0 0.0
        %6094 = vmatmul.mubr.f32.gmra.mxu0 %v4218
        %v6095 = vpop.f32.mrf.mxu0
        %v6096 = vadd.f32 %v5791, %v6095
        %v6097 = vpop.f32.mrf.mxu0
        %6098 = vmatprep.mubr.f32.mxu0 0.0
        %6099 = vmatmul.mubr.f32.gmra.mxu0 %v4220
        %v6100 = vpop.f32.mrf.mxu0
        %v6101 = vadd.f32 %v5796, %v6100
        %v6102 = vpop.f32.mrf.mxu0
        %6103 = vmatprep.mubr.f32.mxu0 0.0
        %6104 = vmatmul.mubr.f32.gmra.mxu0 %v4222
        %v6105 = vpop.f32.mrf.mxu0
        %v6106 = vadd.f32 %v5801, %v6105
        %v6107 = vpop.f32.mrf.mxu0
        %6108 = vmatprep.mubr.f32.mxu0 0.0
        %6109 = vmatmul.mubr.f32.gmra.mxu0 %v4224
        %v6110 = vpop.f32.mrf.mxu0
        %v6111 = vadd.f32 %v5806, %v6110
        %v6112 = vpop.f32.mrf.mxu0
        %6113 = vmatprep.mubr.f32.mxu0 0.0
        %6114 = vmatmul.mubr.f32.gmra.mxu0 %v4226
        %v6115 = vpop.f32.mrf.mxu0
        %v6116 = vadd.f32 %v5811, %v6115
        %v6117 = vpop.f32.mrf.mxu0
        %6118 = vmatprep.mubr.f32.mxu0 0.0
        %6119 = vmatmul.mubr.f32.gmra.mxu0 %v4228
        %v6120 = vpop.f32.mrf.mxu0
        %v6121 = vadd.f32 %v5816, %v6120
        %v6122 = vpop.f32.mrf.mxu0
        %6123 = vmatprep.mubr.f32.mxu0 0.0
        %6124 = vmatmul.mubr.f32.gmra.mxu0 %v4230
        %v6125 = vpop.f32.mrf.mxu0
        %v6126 = vadd.f32 %v5821, %v6125
        %v6127 = vpop.f32.mrf.mxu0
        %6128 = vmatprep.mubr.f32.mxu0 0.0
        %6129 = vmatmul.mubr.f32.gmra.mxu0 %v4232
        %v6130 = vpop.f32.mrf.mxu0
        %v6131 = vadd.f32 %v5826, %v6130
        %v6132 = vpop.f32.mrf.mxu0
        %6133 = vmatprep.mubr.f32.mxu0 0.0
        %6134 = vmatmul.mubr.f32.gmra.mxu0 %v4234
        %v6135 = vpop.f32.mrf.mxu0
        %v6136 = vadd.f32 %v5831, %v6135
        %v6137 = vpop.f32.mrf.mxu0
        %6138 = vmatprep.mubr.f32.mxu0 0.0
        %6139 = vmatmul.mubr.f32.gmra.mxu0 %v4236
        %v6140 = vpop.f32.mrf.mxu0
        %v6141 = vadd.f32 %v5836, %v6140
        %v6142 = vpop.f32.mrf.mxu0
        %6143 = vmatprep.mubr.f32.mxu0 0.0
        %6144 = vmatmul.mubr.f32.gmra.mxu0 %v4238
        %v6145 = vpop.f32.mrf.mxu0
        %v6146 = vadd.f32 %v5841, %v6145
        %v6147 = vpop.f32.mrf.mxu0
        %6148 = vmatprep.mubr.f32.mxu0 0.0
        %6149 = vmatmul.mubr.f32.gmra.mxu0 %v4240
        %v6150 = vpop.f32.mrf.mxu0
        %v6151 = vadd.f32 %v5846, %v6150
        %v6152 = vpop.f32.mrf.mxu0
        %6153 = vmatprep.mubr.f32.mxu0 0.0
        %6154 = vmatmul.mubr.f32.gmra.mxu0 %v4242
        %v6155 = vpop.f32.mrf.mxu0
        %v6156 = vadd.f32 %v5851, %v6155
        %v6157 = vpop.f32.mrf.mxu0
        %6158 = vmatprep.mubr.f32.mxu0 0.0
        %6159 = vmatmul.mubr.f32.gmra.mxu0 %v4244
        %v6160 = vpop.f32.mrf.mxu0
        %v6161 = vadd.f32 %v5856, %v6160
        %v6162 = vpop.f32.mrf.mxu0
        %6163 = vmatprep.mubr.f32.mxu0 0.0
        %6164 = vmatmul.mubr.f32.gmra.mxu0 %v4246
        %v6165 = vpop.f32.mrf.mxu0
        %v6166 = vadd.f32 %v5861, %v6165
        %v6167 = vpop.f32.mrf.mxu0
        %6168 = vmatprep.mubr.f32.mxu0 0.0
        %6169 = vmatmul.mubr.f32.gmra.mxu0 %v4248
        %v6170 = vpop.f32.mrf.mxu0
        %v6171 = vadd.f32 %v5866, %v6170
        %v6172 = vpop.f32.mrf.mxu0
        %6173 = vmatprep.mubr.f32.mxu0 0.0
        %6174 = vmatmul.mubr.f32.gmra.mxu0 %v4250
        %v6175 = vpop.f32.mrf.mxu0
        %v6176 = vadd.f32 %v5871, %v6175
        %v6177 = vpop.f32.mrf.mxu0
        %6178 = vmatprep.mubr.f32.mxu0 0.0
        %6179 = vmatmul.mubr.f32.gmra.mxu0 %v4252
        %v6180 = vpop.f32.mrf.mxu0
        %v6181 = vadd.f32 %v5876, %v6180
        %v6182 = vpop.f32.mrf.mxu0
        %6183 = vmatprep.mubr.f32.mxu0 0.0
        %6184 = vmatmul.mubr.f32.gmra.mxu0 %v4254
        %v6185 = vpop.f32.mrf.mxu0
        %v6186 = vadd.f32 %v5881, %v6185
        %v6187 = vpop.f32.mrf.mxu0
        %6188 = vmatprep.mubr.f32.mxu0 0.0
        %6189 = vmatmul.mubr.f32.gmra.mxu0 %v4256
        %v6190 = vpop.f32.mrf.mxu0
        %v6191 = vadd.f32 %v5886, %v6190
        %v6192 = vpop.f32.mrf.mxu0
        %6193 = vmatprep.mubr.f32.mxu0 0.0
        %6194 = vmatmul.mubr.f32.gmra.mxu0 %v4258
        %v6195 = vpop.f32.mrf.mxu0
        %v6196 = vadd.f32 %v5891, %v6195
        %v6197 = vpop.f32.mrf.mxu0
        %6198 = vmatprep.mubr.f32.mxu0 0.0
        %6199 = vmatmul.mubr.f32.gmra.mxu0 %v4260
        %v6200 = vpop.f32.mrf.mxu0
        %v6201 = vadd.f32 %v5896, %v6200
        %v6202 = vpop.f32.mrf.mxu0
        %6203 = vmatprep.mubr.f32.mxu0 0.0
        %6204 = vmatmul.mubr.f32.gmra.mxu0 %v4262
        %v6205 = vpop.f32.mrf.mxu0
        %v6206 = vadd.f32 %v5901, %v6205
        %v6207 = vpop.f32.mrf.mxu0
        %6208 = vmatprep.mubr.f32.mxu0 0.0
        %6209 = vmatmul.mubr.f32.gmra.mxu0 %v4264
        %v6210 = vpop.f32.mrf.mxu0
        %v6211 = vadd.f32 %v5906, %v6210
        %v6212 = vpop.f32.mrf.mxu0
        %6213 = vmatprep.mubr.f32.mxu0 0.0
        %6214 = vmatmul.mubr.f32.gmra.mxu0 %v4266
        %v6215 = vpop.f32.mrf.mxu0
        %v6216 = vadd.f32 %v5911, %v6215
        %v6217 = vpop.f32.mrf.mxu0
        %6218 = vmatprep.mubr.f32.mxu0 0.0
        %6219 = vmatmul.mubr.f32.gmra.mxu0 %v4268
        %v6220 = vpop.f32.mrf.mxu0
        %v6221 = vadd.f32 %v5916, %v6220
        %v6222 = vpop.f32.mrf.mxu0
        %6223 = vmatprep.mubr.f32.mxu0 0.0
        %6224 = vmatmul.mubr.f32.gmra.mxu0 %v4270
        %v6225 = vpop.f32.mrf.mxu0
        %v6226 = vadd.f32 %v5921, %v6225
        %v6227 = vpop.f32.mrf.mxu0
        %6228 = vmatprep.mubr.f32.mxu0 0.0
        %6229 = vmatmul.mubr.f32.gmra.mxu0 %v4272
        %v6230 = vpop.f32.mrf.mxu0
        %v6231 = vadd.f32 %v5926, %v6230
        %v6232 = vpop.f32.mrf.mxu0
        %6233 = vmatprep.mubr.f32.mxu0 0.0
        %6234 = vmatmul.mubr.f32.gmra.mxu0 %v4274
        %v6235 = vpop.f32.mrf.mxu0
        %v6236 = vadd.f32 %v5931, %v6235
        %v6237 = vpop.f32.mrf.mxu0
        %6238 = vmatprep.mubr.f32.mxu0 0.0
        %6239 = vmatmul.mubr.f32.gmra.mxu0 %v4276
        %v6240 = vpop.f32.mrf.mxu0
        %v6241 = vadd.f32 %v5936, %v6240
        %v6242 = vpop.f32.mrf.mxu0
        %6243 = vmatprep.mubr.f32.mxu0 0.0
        %6244 = vmatmul.mubr.f32.gmra.mxu0 %v4278
        %v6245 = vpop.f32.mrf.mxu0
        %v6246 = vadd.f32 %v5941, %v6245
        %v6247 = vpop.f32.mrf.mxu0
        %6248 = vmatprep.mubr.f32.mxu0 0.0
        %6249 = vmatmul.mubr.f32.gmra.mxu0 %v4280
        %v6250 = vpop.f32.mrf.mxu0
        %v6251 = vadd.f32 %v5946, %v6250
        %v6252 = vpop.f32.mrf.mxu0
        %6253 = vmatprep.mubr.f32.mxu0 0.0
        %6254 = vmatmul.mubr.f32.gmra.mxu0 %v4282
        %v6255 = vpop.f32.mrf.mxu0
        %v6256 = vadd.f32 %v5951, %v6255
        %v6257 = vpop.f32.mrf.mxu0
        %6258 = vmatprep.mubr.f32.mxu0 0.0
        %6259 = vmatmul.mubr.f32.gmra.mxu0 %v4284
        %v6260 = vpop.f32.mrf.mxu0
        %v6261 = vadd.f32 %v5956, %v6260
        %v6262 = vpop.f32.mrf.mxu0
        %6263 = vmatprep.mubr.f32.mxu0 0.0
        %6264 = vmatmul.mubr.f32.gmra.mxu0 %v4286
        %v6265 = vpop.f32.mrf.mxu0
        %v6266 = vadd.f32 %v5961, %v6265
        %v6267 = vpop.f32.mrf.mxu0
        %6268 = vmatprep.mubr.f32.mxu0 0.0
        %6269 = vmatmul.mubr.f32.gmra.mxu0 %v4288
        %v6270 = vpop.f32.mrf.mxu0
        %v6271 = vadd.f32 %v5966, %v6270
        %v6272 = vpop.f32.mrf.mxu0
        %6273 = vmatprep.mubr.f32.mxu0 0.0
        %6274 = vmatmul.mubr.f32.gmra.mxu0 %v4290
        %v6275 = vpop.f32.mrf.mxu0
        %v6276 = vadd.f32 %v5971, %v6275
        %v6277 = vpop.f32.mrf.mxu0
        %6278 = vmatprep.mubr.f32.mxu0 0.0
        %6279 = vmatmul.mubr.f32.gmra.mxu0 %v4292
        %v6280 = vpop.f32.mrf.mxu0
        %v6281 = vadd.f32 %v5976, %v6280
        %v6282 = vpop.f32.mrf.mxu0
        %6283 = vmatprep.mubr.f32.mxu0 0.0
        %6284 = vmatmul.mubr.f32.gmra.mxu0 %v4294
        %v6285 = vpop.f32.mrf.mxu0
        %v6286 = vadd.f32 %v5981, %v6285
        %v6287 = vpop.f32.mrf.mxu0
        %6288 = vmatprep.mubr.f32.mxu0 0.0
        %6289 = vmatmul.mubr.f32.gmra.mxu0 %v4296
        %v6290 = vpop.f32.mrf.mxu0
        %v6291 = vadd.f32 %v5986, %v6290
        %v6292 = vpop.f32.mrf.mxu0
        %6293 = vmatprep.mubr.f32.mxu0 0.0
        %6294 = vmatmul.mubr.f32.gmra.mxu0 %v4298
        %v6295 = vpop.f32.mrf.mxu0
        %v6296 = vadd.f32 %v5991, %v6295
        %v6297 = vpop.f32.mrf.mxu0
        %6298 = vmatprep.mubr.f32.mxu0 0.0
        %6299 = vmatmul.mubr.f32.gmra.mxu0 %v4300
        %v6300 = vpop.f32.mrf.mxu0
        %v6301 = vadd.f32 %v5996, %v6300
        %v6302 = vpop.f32.mrf.mxu0
        %6303 = vmatprep.mubr.f32.mxu0 0.0
        %6304 = vmatmul.mubr.f32.gmra.mxu0 %v4302
        %v6305 = vpop.f32.mrf.mxu0
        %v6306 = vadd.f32 %v6001, %v6305
        %v6307 = vpop.f32.mrf.mxu0
        %6308 = vmatprep.mubr.f32.mxu0 0.0
        %6309 = vmatmul.mubr.f32.gmra.mxu0 %v4304
        %v6310 = vpop.f32.mrf.mxu0
        %v6311 = vadd.f32 %v6006, %v6310
        %v6312 = vpop.f32.mrf.mxu0
        %6313 = vmatprep.mubr.f32.mxu0 0.0
        %6314 = vmatmul.mubr.f32.gmra.mxu0 %v4305
        %v6315 = vpop.f32.mrf.mxu0
        %v6316 = vadd.f32 %v6011, %v6315
        %v6317 = vpop.f32.mrf.mxu0
        %6318 = vmatprep.mubr.f32.mxu0 0.0
        %6319 = vmatmul.mubr.f32.gmra.mxu0 %v4208
        %v6320 = vpop.f32.mrf.mxu0
        %v6321 = vadd.f32 %v6016, %v6320
        %v6322 = vpop.f32.mrf.mxu0
        %6323 = vmatprep.mubr.f32.mxu0 0.0
        %6324 = vmatmul.mubr.f32.gmra.mxu0 %v4208
        %v6325 = vpop.f32.mrf.mxu0
        %v6326 = vadd.f32 %v6021, %v6325
        %v6327 = vpop.f32.mrf.mxu0
        %6328 = vmatprep.mubr.f32.mxu0 0.0
        %6329 = vmatmul.mubr.f32.gmra.mxu0 %v4357
        %v6330 = vpop.f32.mrf.mxu0
        %v6331 = vadd.f32 %v6026, %v6330
        %v6332 = vpop.f32.mrf.mxu0
        %6333 = vdwg.mxu0
        %v6334 = vadd.f32 %v5437, %v6096
        %v6335 = vadd.f32 %v5442, %v6101
        %v6336 = vadd.f32 %v5447, %v6106
        %v6337 = vadd.f32 %v5452, %v6111
        %v6338 = vadd.f32 %v5457, %v6116
        %v6339 = vadd.f32 %v5462, %v6121
        %v6340 = vadd.f32 %v5467, %v6126
        %v6341 = vadd.f32 %v5472, %v6131
        %v6342 = vadd.f32 %v5477, %v6136
        %v6343 = vadd.f32 %v5482, %v6141
        %v6344 = vadd.f32 %v5487, %v6146
        %v6345 = vadd.f32 %v5492, %v6151
        %v6346 = vadd.f32 %v5497, %v6156
        %v6347 = vadd.f32 %v5502, %v6161
        %v6348 = vadd.f32 %v5507, %v6166
        %v6349 = vadd.f32 %v5512, %v6171
        %v6350 = vadd.f32 %v5517, %v6176
        %v6351 = vadd.f32 %v5522, %v6181
        %v6352 = vadd.f32 %v5527, %v6186
        %v6353 = vadd.f32 %v5532, %v6191
        %v6354 = vadd.f32 %v5537, %v6196
        %v6355 = vadd.f32 %v5542, %v6201
        %v6356 = vadd.f32 %v5547, %v6206
        %v6357 = vadd.f32 %v5552, %v6211
        %v6358 = vadd.f32 %v5557, %v6216
        %v6359 = vadd.f32 %v5562, %v6221
        %v6360 = vadd.f32 %v5567, %v6226
        %v6361 = vadd.f32 %v5572, %v6231
        %v6362 = vadd.f32 %v5577, %v6236
        %v6363 = vadd.f32 %v5582, %v6241
        %v6364 = vadd.f32 %v5587, %v6246
        %v6365 = vadd.f32 %v5592, %v6251
        %v6366 = vadd.f32 %v5597, %v6256
        %v6367 = vadd.f32 %v5602, %v6261
        %v6368 = vadd.f32 %v5607, %v6266
        %v6369 = vadd.f32 %v5612, %v6271
        %v6370 = vadd.f32 %v5617, %v6276
        %v6371 = vadd.f32 %v5622, %v6281
        %v6372 = vadd.f32 %v5627, %v6286
        %v6373 = vadd.f32 %v5632, %v6291
        %v6374 = vadd.f32 %v5637, %v6296
        %v6375 = vadd.f32 %v5642, %v6301
        %v6376 = vadd.f32 %v5647, %v6306
        %v6377 = vadd.f32 %v5652, %v6311
        %v6378 = vadd.f32 %v5657, %v6316
        %v6379 = vadd.f32 %v5662, %v6321
        %v6380 = vadd.f32 %v5667, %v6326
        %v6381 = vadd.f32 %v5672, %v6331
        %v6382 = vld [vmem:[%s4] sm:$0x1]
        %v6384 = vlaneseq
        %v6385 = vshrl.u32 %v6384, 7
        %v6386 = vsub.s32 0, %v6385
        %v6387 = vrot.slane %v6382, %v6386
        %v6389 = vadd.f32 %v6334, %v6387
        %v6390 = vadd.f32 %v6335, %v6387
        %v6391 = vadd.f32 %v6336, %v6387
        %v6392 = vadd.f32 %v6337, %v6387
        %v6393 = vadd.f32 %v6338, %v6387
        %v6394 = vadd.f32 %v6339, %v6387
        %v6395 = vadd.f32 %v6340, %v6387
        %v6396 = vadd.f32 %v6341, %v6387
        %v6397 = vadd.f32 %v6342, %v6387
        %v6398 = vadd.f32 %v6343, %v6387
        %v6399 = vadd.f32 %v6344, %v6387
        %v6400 = vadd.f32 %v6345, %v6387
        %v6401 = vadd.f32 %v6346, %v6387
        %v6402 = vadd.f32 %v6347, %v6387
        %v6403 = vadd.f32 %v6348, %v6387
        %v6404 = vadd.f32 %v6349, %v6387
        %v6405 = vadd.f32 %v6350, %v6387
        %v6406 = vadd.f32 %v6351, %v6387
        %v6407 = vadd.f32 %v6352, %v6387
        %v6408 = vadd.f32 %v6353, %v6387
        %v6409 = vadd.f32 %v6354, %v6387
        %v6410 = vadd.f32 %v6355, %v6387
        %v6411 = vadd.f32 %v6356, %v6387
        %v6412 = vadd.f32 %v6357, %v6387
        %v6413 = vadd.f32 %v6358, %v6387
        %v6414 = vadd.f32 %v6359, %v6387
        %v6415 = vadd.f32 %v6360, %v6387
        %v6416 = vadd.f32 %v6361, %v6387
        %v6417 = vadd.f32 %v6362, %v6387
        %v6418 = vadd.f32 %v6363, %v6387
        %v6419 = vadd.f32 %v6364, %v6387
        %v6420 = vadd.f32 %v6365, %v6387
        %v6421 = vadd.f32 %v6366, %v6387
        %v6422 = vadd.f32 %v6367, %v6387
        %v6423 = vadd.f32 %v6368, %v6387
        %v6424 = vadd.f32 %v6369, %v6387
        %v6425 = vadd.f32 %v6370, %v6387
        %v6426 = vadd.f32 %v6371, %v6387
        %v6427 = vadd.f32 %v6372, %v6387
        %v6428 = vadd.f32 %v6373, %v6387
        %v6429 = vadd.f32 %v6374, %v6387
        %v6430 = vadd.f32 %v6375, %v6387
        %v6431 = vadd.f32 %v6376, %v6387
        %v6432 = vadd.f32 %v6377, %v6387
        %v6433 = vadd.f32 %v6378, %v6387
        %v6434 = vadd.f32 %v6379, %v6387
        %v6435 = vadd.f32 %v6380, %v6387
        %v6436 = vadd.f32 %v6381, %v6387
        %vm6437 = vcmp.gt.f32.partialorder %v6389, 0.0
        %vm6438 = vcmp.gt.f32.partialorder %v6390, 0.0
        %vm6439 = vcmp.gt.f32.partialorder %v6391, 0.0
        %vm6440 = vcmp.gt.f32.partialorder %v6392, 0.0
        %vm6441 = vcmp.gt.f32.partialorder %v6393, 0.0
        %vm6442 = vcmp.gt.f32.partialorder %v6394, 0.0
        %vm6443 = vcmp.gt.f32.partialorder %v6395, 0.0
        %vm6444 = vcmp.gt.f32.partialorder %v6396, 0.0
        %vm6445 = vcmp.gt.f32.partialorder %v6397, 0.0
        %vm6446 = vcmp.gt.f32.partialorder %v6398, 0.0
        %vm6447 = vcmp.gt.f32.partialorder %v6399, 0.0
        %vm6448 = vcmp.gt.f32.partialorder %v6400, 0.0
        %vm6449 = vcmp.gt.f32.partialorder %v6401, 0.0
        %vm6450 = vcmp.gt.f32.partialorder %v6402, 0.0
        %vm6451 = vcmp.gt.f32.partialorder %v6403, 0.0
        %vm6452 = vcmp.gt.f32.partialorder %v6404, 0.0
        %vm6453 = vcmp.gt.f32.partialorder %v6405, 0.0
        %vm6454 = vcmp.gt.f32.partialorder %v6406, 0.0
        %vm6455 = vcmp.gt.f32.partialorder %v6407, 0.0
        %vm6456 = vcmp.gt.f32.partialorder %v6408, 0.0
        %vm6457 = vcmp.gt.f32.partialorder %v6409, 0.0
        %vm6458 = vcmp.gt.f32.partialorder %v6410, 0.0
        %vm6459 = vcmp.gt.f32.partialorder %v6411, 0.0
        %vm6460 = vcmp.gt.f32.partialorder %v6412, 0.0
        %vm6461 = vcmp.gt.f32.partialorder %v6413, 0.0
        %vm6462 = vcmp.gt.f32.partialorder %v6414, 0.0
        %vm6463 = vcmp.gt.f32.partialorder %v6415, 0.0
        %vm6464 = vcmp.gt.f32.partialorder %v6416, 0.0
        %vm6465 = vcmp.gt.f32.partialorder %v6417, 0.0
        %vm6466 = vcmp.gt.f32.partialorder %v6418, 0.0
        %vm6467 = vcmp.gt.f32.partialorder %v6419, 0.0
        %vm6468 = vcmp.gt.f32.partialorder %v6420, 0.0
        %vm6469 = vcmp.gt.f32.partialorder %v6421, 0.0
        %vm6470 = vcmp.gt.f32.partialorder %v6422, 0.0
        %vm6471 = vcmp.gt.f32.partialorder %v6423, 0.0
        %vm6472 = vcmp.gt.f32.partialorder %v6424, 0.0
        %vm6473 = vcmp.gt.f32.partialorder %v6425, 0.0
        %vm6474 = vcmp.gt.f32.partialorder %v6426, 0.0
        %vm6475 = vcmp.gt.f32.partialorder %v6427, 0.0
        %vm6476 = vcmp.gt.f32.partialorder %v6428, 0.0
        %vm6477 = vcmp.gt.f32.partialorder %v6429, 0.0
        %vm6478 = vcmp.gt.f32.partialorder %v6430, 0.0
        %vm6479 = vcmp.gt.f32.partialorder %v6431, 0.0
        %vm6480 = vcmp.gt.f32.partialorder %v6432, 0.0
        %vm6481 = vcmp.gt.f32.partialorder %v6433, 0.0
        %vm6482 = vcmp.gt.f32.partialorder %v6434, 0.0
        %vm6483 = vcmp.gt.f32.partialorder %v6435, 0.0
        %vm6484 = vcmp.gt.f32.partialorder %v6436, 0.0
        %v6485 = vmul.f32 %v6389, 0.2
        %v6486 = vmul.f32 %v6390, 0.2
        %v6487 = vmul.f32 %v6391, 0.2
        %v6488 = vmul.f32 %v6392, 0.2
        %v6489 = vmul.f32 %v6393, 0.2
        %v6490 = vmul.f32 %v6394, 0.2
        %v6491 = vmul.f32 %v6395, 0.2
        %v6492 = vmul.f32 %v6396, 0.2
        %v6493 = vmul.f32 %v6397, 0.2
        %v6494 = vmul.f32 %v6398, 0.2
        %v6495 = vmul.f32 %v6399, 0.2
        %v6496 = vmul.f32 %v6400, 0.2
        %v6497 = vmul.f32 %v6401, 0.2
        %v6498 = vmul.f32 %v6402, 0.2
        %v6499 = vmul.f32 %v6403, 0.2
        %v6500 = vmul.f32 %v6404, 0.2
        %v6501 = vmul.f32 %v6405, 0.2
        %v6502 = vmul.f32 %v6406, 0.2
        %v6503 = vmul.f32 %v6407, 0.2
        %v6504 = vmul.f32 %v6408, 0.2
        %v6505 = vmul.f32 %v6409, 0.2
        %v6506 = vmul.f32 %v6410, 0.2
        %v6507 = vmul.f32 %v6411, 0.2
        %v6508 = vmul.f32 %v6412, 0.2
        %v6509 = vmul.f32 %v6413, 0.2
        %v6510 = vmul.f32 %v6414, 0.2
        %v6511 = vmul.f32 %v6415, 0.2
        %v6512 = vmul.f32 %v6416, 0.2
        %v6513 = vmul.f32 %v6417, 0.2
        %v6514 = vmul.f32 %v6418, 0.2
        %v6515 = vmul.f32 %v6419, 0.2
        %v6516 = vmul.f32 %v6420, 0.2
        %v6517 = vmul.f32 %v6421, 0.2
        %v6518 = vmul.f32 %v6422, 0.2
        %v6519 = vmul.f32 %v6423, 0.2
        %v6520 = vmul.f32 %v6424, 0.2
        %v6521 = vmul.f32 %v6425, 0.2
        %v6522 = vmul.f32 %v6426, 0.2
        %v6523 = vmul.f32 %v6427, 0.2
        %v6524 = vmul.f32 %v6428, 0.2
        %v6525 = vmul.f32 %v6429, 0.2
        %v6526 = vmul.f32 %v6430, 0.2
        %v6527 = vmul.f32 %v6431, 0.2
        %v6528 = vmul.f32 %v6432, 0.2
        %v6529 = vmul.f32 %v6433, 0.2
        %v6530 = vmul.f32 %v6434, 0.2
        %v6531 = vmul.f32 %v6435, 0.2
        %v6532 = vmul.f32 %v6436, 0.2
        %v6533 = vsel %vm6437, %v6389, %v6485
        %v6534 = vsel %vm6438, %v6390, %v6486
        %v6535 = vsel %vm6439, %v6391, %v6487
        %v6536 = vsel %vm6440, %v6392, %v6488
        %v6537 = vsel %vm6441, %v6393, %v6489
        %v6538 = vsel %vm6442, %v6394, %v6490
        %v6539 = vsel %vm6443, %v6395, %v6491
        %v6540 = vsel %vm6444, %v6396, %v6492
        %v6541 = vsel %vm6445, %v6397, %v6493
        %v6542 = vsel %vm6446, %v6398, %v6494
        %v6543 = vsel %vm6447, %v6399, %v6495
        %v6544 = vsel %vm6448, %v6400, %v6496
        %v6545 = vsel %vm6449, %v6401, %v6497
        %v6546 = vsel %vm6450, %v6402, %v6498
        %v6547 = vsel %vm6451, %v6403, %v6499
        %v6548 = vsel %vm6452, %v6404, %v6500
        %v6549 = vsel %vm6453, %v6405, %v6501
        %v6550 = vsel %vm6454, %v6406, %v6502
        %v6551 = vsel %vm6455, %v6407, %v6503
        %v6552 = vsel %vm6456, %v6408, %v6504
        %v6553 = vsel %vm6457, %v6409, %v6505
        %v6554 = vsel %vm6458, %v6410, %v6506
        %v6555 = vsel %vm6459, %v6411, %v6507
        %v6556 = vsel %vm6460, %v6412, %v6508
        %v6557 = vsel %vm6461, %v6413, %v6509
        %v6558 = vsel %vm6462, %v6414, %v6510
        %v6559 = vsel %vm6463, %v6415, %v6511
        %v6560 = vsel %vm6464, %v6416, %v6512
        %v6561 = vsel %vm6465, %v6417, %v6513
        %v6562 = vsel %vm6466, %v6418, %v6514
        %v6563 = vsel %vm6467, %v6419, %v6515
        %v6564 = vsel %vm6468, %v6420, %v6516
        %v6565 = vsel %vm6469, %v6421, %v6517
        %v6566 = vsel %vm6470, %v6422, %v6518
        %v6567 = vsel %vm6471, %v6423, %v6519
        %v6568 = vsel %vm6472, %v6424, %v6520
        %v6569 = vsel %vm6473, %v6425, %v6521
        %v6570 = vsel %vm6474, %v6426, %v6522
        %v6571 = vsel %vm6475, %v6427, %v6523
        %v6572 = vsel %vm6476, %v6428, %v6524
        %v6573 = vsel %vm6477, %v6429, %v6525
        %v6574 = vsel %vm6478, %v6430, %v6526
        %v6575 = vsel %vm6479, %v6431, %v6527
        %v6576 = vsel %vm6480, %v6432, %v6528
        %v6577 = vsel %vm6481, %v6433, %v6529
        %v6578 = vsel %vm6482, %v6434, %v6530
        %v6579 = vsel %vm6483, %v6435, %v6531
        %v6580 = vsel %vm6484, %v6436, %v6532
        %v6581 = vsel %vm1254, %v6533, 0.0
        %v6582 = vsel %vm1255, %v6534, 0.0
        %v6583 = vsel %vm1256, %v6535, 0.0
        %v6584 = vsel %vm1257, %v6536, 0.0
        %v6585 = vsel %vm1258, %v6537, 0.0
        %v6586 = vsel %vm1259, %v6538, 0.0
        %v6587 = vsel %vm1260, %v6539, 0.0
        %v6588 = vsel %vm1261, %v6540, 0.0
        %v6589 = vsel %vm1262, %v6541, 0.0
        %v6590 = vsel %vm1263, %v6542, 0.0
        %v6591 = vsel %vm1264, %v6543, 0.0
        %v6592 = vsel %vm1265, %v6544, 0.0
        %v6593 = vsel %vm1266, %v6545, 0.0
        %v6594 = vsel %vm1267, %v6546, 0.0
        %v6595 = vsel %vm1268, %v6547, 0.0
        %v6596 = vsel %vm1269, %v6548, 0.0
        %v6597 = vsel %vm1270, %v6549, 0.0
        %v6598 = vsel %vm1271, %v6550, 0.0
        %v6599 = vsel %vm1272, %v6551, 0.0
        %v6600 = vsel %vm1273, %v6552, 0.0
        %v6601 = vsel %vm1274, %v6553, 0.0
        %v6602 = vsel %vm1275, %v6554, 0.0
        %v6603 = vsel %vm1276, %v6555, 0.0
        %v6604 = vsel %vm1277, %v6556, 0.0
        %v6605 = vsel %vm1278, %v6557, 0.0
        %v6606 = vsel %vm1279, %v6558, 0.0
        %v6607 = vsel %vm1280, %v6559, 0.0
        %v6608 = vsel %vm1281, %v6560, 0.0
        %v6609 = vsel %vm1282, %v6561, 0.0
        %v6610 = vsel %vm1283, %v6562, 0.0
        %v6611 = vsel %vm1284, %v6563, 0.0
        %v6612 = vsel %vm1285, %v6564, 0.0
        %v6613 = vsel %vm1286, %v6565, 0.0
        %v6614 = vsel %vm1287, %v6566, 0.0
        %v6615 = vsel %vm1288, %v6567, 0.0
        %v6616 = vsel %vm1289, %v6568, 0.0
        %v6617 = vsel %vm1290, %v6569, 0.0
        %v6618 = vsel %vm1291, %v6570, 0.0
        %v6619 = vsel %vm1292, %v6571, 0.0
        %v6620 = vsel %vm1293, %v6572, 0.0
        %v6621 = vsel %vm1294, %v6573, 0.0
        %v6622 = vsel %vm1295, %v6574, 0.0
        %v6623 = vsel %vm1296, %v6575, 0.0
        %v6624 = vsel %vm1297, %v6576, 0.0
        %v6625 = vsel %vm1298, %v6577, 0.0
        %v6626 = vsel %vm1299, %v6578, 0.0
        %v6627 = vsel %vm1300, %v6579, 0.0
        %v6628 = vsel %vm1301, %v6580, 0.0
        %v6677 = vrot.slane %v6581, 7
        %v6678 = vsel %vm1410, %v4056, %v6677
        %v6679 = vrot.slane %v6582, 7
        %v6680 = vsel %vm1410, %v6677, %v6679
        %v6681 = vrot.slane %v6583, 7
        %v6682 = vsel %vm1410, %v6679, %v6681
        %v6683 = vrot.slane %v6584, 7
        %v6684 = vsel %vm1410, %v6681, %v6683
        %v6685 = vrot.slane %v6585, 7
        %v6686 = vsel %vm1410, %v6683, %v6685
        %v6687 = vrot.slane %v6586, 7
        %v6688 = vsel %vm1410, %v6685, %v6687
        %v6689 = vrot.slane %v6587, 7
        %v6690 = vsel %vm1410, %v6687, %v6689
        %v6691 = vrot.slane %v6588, 7
        %v6692 = vsel %vm1410, %v6689, %v6691
        %v6693 = vrot.slane %v6589, 7
        %v6694 = vsel %vm1410, %v6691, %v6693
        %v6695 = vrot.slane %v6590, 7
        %v6696 = vsel %vm1410, %v6693, %v6695
        %v6697 = vrot.slane %v6591, 7
        %v6698 = vsel %vm1410, %v6695, %v6697
        %v6699 = vrot.slane %v6592, 7
        %v6700 = vsel %vm1410, %v6697, %v6699
        %v6701 = vrot.slane %v6593, 7
        %v6702 = vsel %vm1410, %v6699, %v6701
        %v6703 = vrot.slane %v6594, 7
        %v6704 = vsel %vm1410, %v6701, %v6703
        %v6705 = vrot.slane %v6595, 7
        %v6706 = vsel %vm1410, %v6703, %v6705
        %v6707 = vrot.slane %v6596, 7
        %v6708 = vsel %vm1410, %v6705, %v6707
        %v6709 = vrot.slane %v6597, 7
        %v6710 = vsel %vm1410, %v6707, %v6709
        %v6711 = vrot.slane %v6598, 7
        %v6712 = vsel %vm1410, %v6709, %v6711
        %v6713 = vrot.slane %v6599, 7
        %v6714 = vsel %vm1410, %v6711, %v6713
        %v6715 = vrot.slane %v6600, 7
        %v6716 = vsel %vm1410, %v6713, %v6715
        %v6717 = vrot.slane %v6601, 7
        %v6718 = vsel %vm1410, %v6715, %v6717
        %v6719 = vrot.slane %v6602, 7
        %v6720 = vsel %vm1410, %v6717, %v6719
        %v6721 = vrot.slane %v6603, 7
        %v6722 = vsel %vm1410, %v6719, %v6721
        %v6723 = vrot.slane %v6604, 7
        %v6724 = vsel %vm1410, %v6721, %v6723
        %v6725 = vrot.slane %v6605, 7
        %v6726 = vsel %vm1410, %v6723, %v6725
        %v6727 = vrot.slane %v6606, 7
        %v6728 = vsel %vm1410, %v6725, %v6727
        %v6729 = vrot.slane %v6607, 7
        %v6730 = vsel %vm1410, %v6727, %v6729
        %v6731 = vrot.slane %v6608, 7
        %v6732 = vsel %vm1410, %v6729, %v6731
        %v6733 = vrot.slane %v6609, 7
        %v6734 = vsel %vm1410, %v6731, %v6733
        %v6735 = vrot.slane %v6610, 7
        %v6736 = vsel %vm1410, %v6733, %v6735
        %v6737 = vrot.slane %v6611, 7
        %v6738 = vsel %vm1410, %v6735, %v6737
        %v6739 = vrot.slane %v6612, 7
        %v6740 = vsel %vm1410, %v6737, %v6739
        %v6741 = vrot.slane %v6613, 7
        %v6742 = vsel %vm1410, %v6739, %v6741
        %v6743 = vrot.slane %v6614, 7
        %v6744 = vsel %vm1410, %v6741, %v6743
        %v6745 = vrot.slane %v6615, 7
        %v6746 = vsel %vm1410, %v6743, %v6745
        %v6747 = vrot.slane %v6616, 7
        %v6748 = vsel %vm1410, %v6745, %v6747
        %v6749 = vrot.slane %v6617, 7
        %v6750 = vsel %vm1410, %v6747, %v6749
        %v6751 = vrot.slane %v6618, 7
        %v6752 = vsel %vm1410, %v6749, %v6751
        %v6753 = vrot.slane %v6619, 7
        %v6754 = vsel %vm1410, %v6751, %v6753
        %v6755 = vrot.slane %v6620, 7
        %v6756 = vsel %vm1410, %v6753, %v6755
        %v6757 = vrot.slane %v6621, 7
        %v6758 = vsel %vm1410, %v6755, %v6757
        %v6759 = vrot.slane %v6622, 7
        %v6760 = vsel %vm1410, %v6757, %v6759
        %v6761 = vrot.slane %v6623, 7
        %v6762 = vsel %vm1410, %v6759, %v6761
        %v6763 = vrot.slane %v6624, 7
        %v6764 = vsel %vm1410, %v6761, %v6763
        %v6765 = vrot.slane %v6625, 7
        %v6766 = vsel %vm1410, %v6763, %v6765
        %v6767 = vrot.slane %v6626, 7
        %v6768 = vsel %vm1410, %v6765, %v6767
        %v6769 = vrot.slane %v6627, 7
        %v6770 = vsel %vm1410, %v6767, %v6769
        %v6771 = vrot.slane %v6628, 7
        %v6772 = vsel %vm1410, %v6769, %v6771
        %v6773 = vsel %vm1410, %v6771, %v4056
        %v6823 = vrot.slane %v6581, 1
        %v6824 = vsel %vm1573, %v4207, %v6823
        %v6825 = vrot.slane %v6582, 1
        %v6826 = vsel %vm1573, %v6823, %v6825
        %v6827 = vrot.slane %v6583, 1
        %v6828 = vsel %vm1573, %v6825, %v6827
        %v6829 = vrot.slane %v6584, 1
        %v6830 = vsel %vm1573, %v6827, %v6829
        %v6831 = vrot.slane %v6585, 1
        %v6832 = vsel %vm1573, %v6829, %v6831
        %v6833 = vrot.slane %v6586, 1
        %v6834 = vsel %vm1573, %v6831, %v6833
        %v6835 = vrot.slane %v6587, 1
        %v6836 = vsel %vm1573, %v6833, %v6835
        %v6837 = vrot.slane %v6588, 1
        %v6838 = vsel %vm1573, %v6835, %v6837
        %v6839 = vrot.slane %v6589, 1
        %v6840 = vsel %vm1573, %v6837, %v6839
        %v6841 = vrot.slane %v6590, 1
        %v6842 = vsel %vm1573, %v6839, %v6841
        %v6843 = vrot.slane %v6591, 1
        %v6844 = vsel %vm1573, %v6841, %v6843
        %v6845 = vrot.slane %v6592, 1
        %v6846 = vsel %vm1573, %v6843, %v6845
        %v6847 = vrot.slane %v6593, 1
        %v6848 = vsel %vm1573, %v6845, %v6847
        %v6849 = vrot.slane %v6594, 1
        %v6850 = vsel %vm1573, %v6847, %v6849
        %v6851 = vrot.slane %v6595, 1
        %v6852 = vsel %vm1573, %v6849, %v6851
        %v6853 = vrot.slane %v6596, 1
        %v6854 = vsel %vm1573, %v6851, %v6853
        %v6855 = vrot.slane %v6597, 1
        %v6856 = vsel %vm1573, %v6853, %v6855
        %v6857 = vrot.slane %v6598, 1
        %v6858 = vsel %vm1573, %v6855, %v6857
        %v6859 = vrot.slane %v6599, 1
        %v6860 = vsel %vm1573, %v6857, %v6859
        %v6861 = vrot.slane %v6600, 1
        %v6862 = vsel %vm1573, %v6859, %v6861
        %v6863 = vrot.slane %v6601, 1
        %v6864 = vsel %vm1573, %v6861, %v6863
        %v6865 = vrot.slane %v6602, 1
        %v6866 = vsel %vm1573, %v6863, %v6865
        %v6867 = vrot.slane %v6603, 1
        %v6868 = vsel %vm1573, %v6865, %v6867
        %v6869 = vrot.slane %v6604, 1
        %v6870 = vsel %vm1573, %v6867, %v6869
        %v6871 = vrot.slane %v6605, 1
        %v6872 = vsel %vm1573, %v6869, %v6871
        %v6873 = vrot.slane %v6606, 1
        %v6874 = vsel %vm1573, %v6871, %v6873
        %v6875 = vrot.slane %v6607, 1
        %v6876 = vsel %vm1573, %v6873, %v6875
        %v6877 = vrot.slane %v6608, 1
        %v6878 = vsel %vm1573, %v6875, %v6877
        %v6879 = vrot.slane %v6609, 1
        %v6880 = vsel %vm1573, %v6877, %v6879
        %v6881 = vrot.slane %v6610, 1
        %v6882 = vsel %vm1573, %v6879, %v6881
        %v6883 = vrot.slane %v6611, 1
        %v6884 = vsel %vm1573, %v6881, %v6883
        %v6885 = vrot.slane %v6612, 1
        %v6886 = vsel %vm1573, %v6883, %v6885
        %v6887 = vrot.slane %v6613, 1
        %v6888 = vsel %vm1573, %v6885, %v6887
        %v6889 = vrot.slane %v6614, 1
        %v6890 = vsel %vm1573, %v6887, %v6889
        %v6891 = vrot.slane %v6615, 1
        %v6892 = vsel %vm1573, %v6889, %v6891
        %v6893 = vrot.slane %v6616, 1
        %v6894 = vsel %vm1573, %v6891, %v6893
        %v6895 = vrot.slane %v6617, 1
        %v6896 = vsel %vm1573, %v6893, %v6895
        %v6897 = vrot.slane %v6618, 1
        %v6898 = vsel %vm1573, %v6895, %v6897
        %v6899 = vrot.slane %v6619, 1
        %v6900 = vsel %vm1573, %v6897, %v6899
        %v6901 = vrot.slane %v6620, 1
        %v6902 = vsel %vm1573, %v6899, %v6901
        %v6903 = vrot.slane %v6621, 1
        %v6904 = vsel %vm1573, %v6901, %v6903
        %v6905 = vrot.slane %v6622, 1
        %v6906 = vsel %vm1573, %v6903, %v6905
        %v6907 = vrot.slane %v6623, 1
        %v6908 = vsel %vm1573, %v6905, %v6907
        %v6909 = vrot.slane %v6624, 1
        %v6910 = vsel %vm1573, %v6907, %v6909
        %v6911 = vrot.slane %v6625, 1
        %v6912 = vsel %vm1573, %v6909, %v6911
        %v6913 = vrot.slane %v6626, 1
        %v6914 = vsel %vm1573, %v6911, %v6913
        %v6915 = vrot.slane %v6627, 1
        %v6916 = vsel %vm1573, %v6913, %v6915
        %v6917 = vrot.slane %v6628, 1
        %v6918 = vsel %vm1573, %v6915, %v6917
        %v6919 = vsel %vm1573, %v6917, %v4207
        %v6969 = vld [vmem:[#allocation8] sm:$0xff]
        %v6970 = vld [vmem:[#allocation8 + $0x8] sm:$0xff]
        %v6971 = vld [vmem:[#allocation8 + $0x10] sm:$0xff]
        %v6972 = vld [vmem:[#allocation8 + $0x18] sm:$0xff]
        %v6973 = vld [vmem:[#allocation8 + $0x20] sm:$0xff]
        %v6974 = vld [vmem:[#allocation8 + $0x28] sm:$0xff]
        %v6975 = vld [vmem:[#allocation8 + $0x30] sm:$0xff]
        %v6976 = vld [vmem:[#allocation8 + $0x38] sm:$0xff]
        %v6977 = vld [vmem:[#allocation8 + $0x40] sm:$0xff]
        %v6978 = vld [vmem:[#allocation8 + $0x48] sm:$0xff]
        %v6979 = vld [vmem:[#allocation8 + $0x50] sm:$0xff]
        %v6980 = vld [vmem:[#allocation8 + $0x58] sm:$0xff]
        %v6981 = vld [vmem:[#allocation8 + $0x60] sm:$0xff]
        %v6982 = vld [vmem:[#allocation8 + $0x68] sm:$0xff]
        %v6983 = vld [vmem:[#allocation8 + $0x70] sm:$0xff]
        %v6984 = vld [vmem:[#allocation8 + $0x78] sm:$0xff]
        %v6985 = vld [vmem:[#allocation8 + $0x80] sm:$0xff]
        %v6986 = vld [vmem:[#allocation8 + $0x88] sm:$0xff]
        %v6987 = vld [vmem:[#allocation8 + $0x90] sm:$0xff]
        %v6988 = vld [vmem:[#allocation8 + $0x98] sm:$0xff]
        %v6989 = vld [vmem:[#allocation8 + $0xa0] sm:$0xff]
        %v6990 = vld [vmem:[#allocation8 + $0xa8] sm:$0xff]
        %v6991 = vld [vmem:[#allocation8 + $0xb0] sm:$0xff]
        %v6992 = vld [vmem:[#allocation8 + $0xb8] sm:$0xff]
        %v6993 = vld [vmem:[#allocation8 + $0xc0] sm:$0xff]
        %v6994 = vld [vmem:[#allocation8 + $0xc8] sm:$0xff]
        %v6995 = vld [vmem:[#allocation8 + $0xd0] sm:$0xff]
        %v6996 = vld [vmem:[#allocation8 + $0xd8] sm:$0xff]
        %v6997 = vld [vmem:[#allocation8 + $0xe0] sm:$0xff]
        %v6998 = vld [vmem:[#allocation8 + $0xe8] sm:$0xff]
        %v6999 = vld [vmem:[#allocation8 + $0xf0] sm:$0xff]
        %v7000 = vld [vmem:[#allocation8 + $0xf8] sm:$0xff]
        %v7001 = vld [vmem:[#allocation8 + $0x100] sm:$0xff]
        %v7002 = vld [vmem:[#allocation8 + $0x108] sm:$0xff]
        %v7003 = vld [vmem:[#allocation8 + $0x110] sm:$0xff]
        %v7004 = vld [vmem:[#allocation8 + $0x118] sm:$0xff]
        %v7005 = vld [vmem:[#allocation8 + $0x120] sm:$0xff]
        %v7006 = vld [vmem:[#allocation8 + $0x128] sm:$0xff]
        %v7007 = vld [vmem:[#allocation8 + $0x130] sm:$0xff]
        %v7008 = vld [vmem:[#allocation8 + $0x138] sm:$0xff]
        %v7009 = vld [vmem:[#allocation8 + $0x140] sm:$0xff]
        %v7010 = vld [vmem:[#allocation8 + $0x148] sm:$0xff]
        %v7011 = vld [vmem:[#allocation8 + $0x150] sm:$0xff]
        %v7012 = vld [vmem:[#allocation8 + $0x158] sm:$0xff]
        %v7013 = vld [vmem:[#allocation8 + $0x160] sm:$0xff]
        %v7014 = vld [vmem:[#allocation8 + $0x168] sm:$0xff]
        %v7015 = vld [vmem:[#allocation8 + $0x170] sm:$0xff]
        %v7016 = vld [vmem:[#allocation8 + $0x178] sm:$0xff]
        %s7017 = scalar_lea.vmem [#allocation8], 384
        %v7018 = vld [vmem:[%s7017] sm:$0xff]
        %v7019 = vld [vmem:[%s7017 + $0x8] sm:$0xff]
        %v7020 = vld [vmem:[%s7017 + $0x10] sm:$0xff]
        %v7021 = vld [vmem:[%s7017 + $0x18] sm:$0xff]
        %v7022 = vld [vmem:[%s7017 + $0x20] sm:$0xff]
        %v7023 = vld [vmem:[%s7017 + $0x28] sm:$0xff]
        %v7024 = vld [vmem:[%s7017 + $0x30] sm:$0xff]
        %v7025 = vld [vmem:[%s7017 + $0x38] sm:$0xff]
        %v7026 = vld [vmem:[%s7017 + $0x40] sm:$0xff]
        %v7027 = vld [vmem:[%s7017 + $0x48] sm:$0xff]
        %v7028 = vld [vmem:[%s7017 + $0x50] sm:$0xff]
        %v7029 = vld [vmem:[%s7017 + $0x58] sm:$0xff]
        %v7030 = vld [vmem:[%s7017 + $0x60] sm:$0xff]
        %v7031 = vld [vmem:[%s7017 + $0x68] sm:$0xff]
        %v7032 = vld [vmem:[%s7017 + $0x70] sm:$0xff]
        %v7033 = vld [vmem:[%s7017 + $0x78] sm:$0xff]
        %v7034 = vld [vmem:[%s7017 + $0x80] sm:$0xff]
        %v7035 = vld [vmem:[%s7017 + $0x88] sm:$0xff]
        %v7036 = vld [vmem:[%s7017 + $0x90] sm:$0xff]
        %v7037 = vld [vmem:[%s7017 + $0x98] sm:$0xff]
        %v7038 = vld [vmem:[%s7017 + $0xa0] sm:$0xff]
        %v7039 = vld [vmem:[%s7017 + $0xa8] sm:$0xff]
        %v7040 = vld [vmem:[%s7017 + $0xb0] sm:$0xff]
        %v7041 = vld [vmem:[%s7017 + $0xb8] sm:$0xff]
        %v7042 = vld [vmem:[%s7017 + $0xc0] sm:$0xff]
        %v7043 = vld [vmem:[%s7017 + $0xc8] sm:$0xff]
        %v7044 = vld [vmem:[%s7017 + $0xd0] sm:$0xff]
        %v7045 = vld [vmem:[%s7017 + $0xd8] sm:$0xff]
        %v7046 = vld [vmem:[%s7017 + $0xe0] sm:$0xff]
        %v7047 = vld [vmem:[%s7017 + $0xe8] sm:$0xff]
        %v7048 = vld [vmem:[%s7017 + $0xf0] sm:$0xff]
        %v7049 = vld [vmem:[%s7017 + $0xf8] sm:$0xff]
        %v7050 = vld [vmem:[%s7017 + $0x100] sm:$0xff]
        %v7051 = vld [vmem:[%s7017 + $0x108] sm:$0xff]
        %v7052 = vld [vmem:[%s7017 + $0x110] sm:$0xff]
        %v7053 = vld [vmem:[%s7017 + $0x118] sm:$0xff]
        %v7054 = vld [vmem:[%s7017 + $0x120] sm:$0xff]
        %v7055 = vld [vmem:[%s7017 + $0x128] sm:$0xff]
        %v7056 = vld [vmem:[%s7017 + $0x130] sm:$0xff]
        %v7057 = vld [vmem:[%s7017 + $0x138] sm:$0xff]
        %v7058 = vld [vmem:[%s7017 + $0x140] sm:$0xff]
        %v7059 = vld [vmem:[%s7017 + $0x148] sm:$0xff]
        %v7060 = vld [vmem:[%s7017 + $0x150] sm:$0xff]
        %v7061 = vld [vmem:[%s7017 + $0x158] sm:$0xff]
        %v7062 = vld [vmem:[%s7017 + $0x160] sm:$0xff]
        %v7063 = vld [vmem:[%s7017 + $0x168] sm:$0xff]
        %v7064 = vld [vmem:[%s7017 + $0x170] sm:$0xff]
        %v7065 = vld [vmem:[%s7017 + $0x178] sm:$0xff]
        %7066 = vmatprep.subr.mxu0 0.0
        %7067 = vmatpush1.msra.mxu0 %v7033
        %7068 = vmatprep.subr.mxu0 0.0
        %7069 = vmatpush1.msra.mxu0 %v7032
        %7070 = vmatprep.subr.mxu0 0.0
        %7071 = vmatpush1.msra.mxu0 %v7031
        %7072 = vmatprep.subr.mxu0 0.0
        %7073 = vmatpush1.msra.mxu0 %v7030
        %7074 = vmatprep.subr.mxu0 0.0
        %7075 = vmatpush1.msra.mxu0 %v7029
        %7076 = vmatprep.subr.mxu0 0.0
        %7077 = vmatpush1.msra.mxu0 %v7028
        %7078 = vmatprep.subr.mxu0 0.0
        %7079 = vmatpush1.msra.mxu0 %v7027
        %7080 = vmatprep.subr.mxu0 0.0
        %7081 = vmatpush1.msra.mxu0 %v7026
        %7082 = vmatprep.subr.mxu0 0.0
        %7083 = vmatpush1.msra.mxu0 %v7025
        %7084 = vmatprep.subr.mxu0 0.0
        %7085 = vmatpush1.msra.mxu0 %v7024
        %7086 = vmatprep.subr.mxu0 0.0
        %7087 = vmatpush1.msra.mxu0 %v7023
        %7088 = vmatprep.subr.mxu0 0.0
        %7089 = vmatpush1.msra.mxu0 %v7022
        %7090 = vmatprep.subr.mxu0 0.0
        %7091 = vmatpush1.msra.mxu0 %v7021
        %7092 = vmatprep.subr.mxu0 0.0
        %7093 = vmatpush1.msra.mxu0 %v7020
        %7094 = vmatprep.subr.mxu0 0.0
        %7095 = vmatpush1.msra.mxu0 %v7019
        %7096 = vmatprep.subr.mxu0 0.0
        %7097 = vmatpush1.msra.mxu0 %v7018
        %7098 = vmatprep.subr.mxu0 0.0
        %7099 = vmatpush2.msra.mxu0 %v7049
        %7100 = vmatprep.subr.mxu0 0.0
        %7101 = vmatpush2.msra.mxu0 %v7048
        %7102 = vmatprep.subr.mxu0 0.0
        %7103 = vmatpush2.msra.mxu0 %v7047
        %7104 = vmatprep.subr.mxu0 0.0
        %7105 = vmatpush2.msra.mxu0 %v7046
        %7106 = vmatprep.subr.mxu0 0.0
        %7107 = vmatpush2.msra.mxu0 %v7045
        %7108 = vmatprep.subr.mxu0 0.0
        %7109 = vmatpush2.msra.mxu0 %v7044
        %7110 = vmatprep.subr.mxu0 0.0
        %7111 = vmatpush2.msra.mxu0 %v7043
        %7112 = vmatprep.subr.mxu0 0.0
        %7113 = vmatpush2.msra.mxu0 %v7042
        %7114 = vmatprep.subr.mxu0 0.0
        %7115 = vmatpush2.msra.mxu0 %v7041
        %7116 = vmatprep.subr.mxu0 0.0
        %7117 = vmatpush2.msra.mxu0 %v7040
        %7118 = vmatprep.subr.mxu0 0.0
        %7119 = vmatpush2.msra.mxu0 %v7039
        %7120 = vmatprep.subr.mxu0 0.0
        %7121 = vmatpush2.msra.mxu0 %v7038
        %7122 = vmatprep.subr.mxu0 0.0
        %7123 = vmatpush2.msra.mxu0 %v7037
        %7124 = vmatprep.subr.mxu0 0.0
        %7125 = vmatpush2.msra.mxu0 %v7036
        %7126 = vmatprep.subr.mxu0 0.0
        %7127 = vmatpush2.msra.mxu0 %v7035
        %7128 = vmatprep.subr.mxu0 0.0
        %7129 = vmatpush2.msra.mxu0 %v7034
        %7130 = vmatprep.mubr.f32.mxu0 %v6581
        %7131 = vmatmul.mubr.f32.gmra.mxu0 %v6678
        %v7132 = vpop.f32.mrf.mxu0
        %v7133 = vadd.f32 0.0, %v7132
        %v7134 = vpop.f32.mrf.mxu0
        %7135 = vmatprep.mubr.f32.mxu0 %v6582
        %7136 = vmatmul.mubr.f32.gmra.mxu0 %v6680
        %v7137 = vpop.f32.mrf.mxu0
        %v7138 = vadd.f32 0.0, %v7137
        %v7139 = vpop.f32.mrf.mxu0
        %7140 = vmatprep.mubr.f32.mxu0 %v6583
        %7141 = vmatmul.mubr.f32.gmra.mxu0 %v6682
        %v7142 = vpop.f32.mrf.mxu0
        %v7143 = vadd.f32 0.0, %v7142
        %v7144 = vpop.f32.mrf.mxu0
        %7145 = vmatprep.mubr.f32.mxu0 %v6584
        %7146 = vmatmul.mubr.f32.gmra.mxu0 %v6684
        %v7147 = vpop.f32.mrf.mxu0
        %v7148 = vadd.f32 0.0, %v7147
        %v7149 = vpop.f32.mrf.mxu0
        %7150 = vmatprep.mubr.f32.mxu0 %v6585
        %7151 = vmatmul.mubr.f32.gmra.mxu0 %v6686
        %v7152 = vpop.f32.mrf.mxu0
        %v7153 = vadd.f32 0.0, %v7152
        %v7154 = vpop.f32.mrf.mxu0
        %7155 = vmatprep.mubr.f32.mxu0 %v6586
        %7156 = vmatmul.mubr.f32.gmra.mxu0 %v6688
        %v7157 = vpop.f32.mrf.mxu0
        %v7158 = vadd.f32 0.0, %v7157
        %v7159 = vpop.f32.mrf.mxu0
        %7160 = vmatprep.mubr.f32.mxu0 %v6587
        %7161 = vmatmul.mubr.f32.gmra.mxu0 %v6690
        %v7162 = vpop.f32.mrf.mxu0
        %v7163 = vadd.f32 0.0, %v7162
        %v7164 = vpop.f32.mrf.mxu0
        %7165 = vmatprep.mubr.f32.mxu0 %v6588
        %7166 = vmatmul.mubr.f32.gmra.mxu0 %v6692
        %v7167 = vpop.f32.mrf.mxu0
        %v7168 = vadd.f32 0.0, %v7167
        %v7169 = vpop.f32.mrf.mxu0
        %7170 = vmatprep.mubr.f32.mxu0 %v6589
        %7171 = vmatmul.mubr.f32.gmra.mxu0 %v6694
        %v7172 = vpop.f32.mrf.mxu0
        %v7173 = vadd.f32 0.0, %v7172
        %v7174 = vpop.f32.mrf.mxu0
        %7175 = vmatprep.mubr.f32.mxu0 %v6590
        %7176 = vmatmul.mubr.f32.gmra.mxu0 %v6696
        %v7177 = vpop.f32.mrf.mxu0
        %v7178 = vadd.f32 0.0, %v7177
        %v7179 = vpop.f32.mrf.mxu0
        %7180 = vmatprep.mubr.f32.mxu0 %v6591
        %7181 = vmatmul.mubr.f32.gmra.mxu0 %v6698
        %v7182 = vpop.f32.mrf.mxu0
        %v7183 = vadd.f32 0.0, %v7182
        %v7184 = vpop.f32.mrf.mxu0
        %7185 = vmatprep.mubr.f32.mxu0 %v6592
        %7186 = vmatmul.mubr.f32.gmra.mxu0 %v6700
        %v7187 = vpop.f32.mrf.mxu0
        %v7188 = vadd.f32 0.0, %v7187
        %v7189 = vpop.f32.mrf.mxu0
        %7190 = vmatprep.mubr.f32.mxu0 %v6593
        %7191 = vmatmul.mubr.f32.gmra.mxu0 %v6702
        %v7192 = vpop.f32.mrf.mxu0
        %v7193 = vadd.f32 0.0, %v7192
        %v7194 = vpop.f32.mrf.mxu0
        %7195 = vmatprep.mubr.f32.mxu0 %v6594
        %7196 = vmatmul.mubr.f32.gmra.mxu0 %v6704
        %v7197 = vpop.f32.mrf.mxu0
        %v7198 = vadd.f32 0.0, %v7197
        %v7199 = vpop.f32.mrf.mxu0
        %7200 = vmatprep.mubr.f32.mxu0 %v6595
        %7201 = vmatmul.mubr.f32.gmra.mxu0 %v6706
        %v7202 = vpop.f32.mrf.mxu0
        %v7203 = vadd.f32 0.0, %v7202
        %v7204 = vpop.f32.mrf.mxu0
        %7205 = vmatprep.mubr.f32.mxu0 %v6596
        %7206 = vmatmul.mubr.f32.gmra.mxu0 %v6708
        %v7207 = vpop.f32.mrf.mxu0
        %v7208 = vadd.f32 0.0, %v7207
        %v7209 = vpop.f32.mrf.mxu0
        %7210 = vmatprep.mubr.f32.mxu0 %v6597
        %7211 = vmatmul.mubr.f32.gmra.mxu0 %v6710
        %v7212 = vpop.f32.mrf.mxu0
        %v7213 = vadd.f32 0.0, %v7212
        %v7214 = vpop.f32.mrf.mxu0
        %7215 = vmatprep.mubr.f32.mxu0 %v6598
        %7216 = vmatmul.mubr.f32.gmra.mxu0 %v6712
        %v7217 = vpop.f32.mrf.mxu0
        %v7218 = vadd.f32 0.0, %v7217
        %v7219 = vpop.f32.mrf.mxu0
        %7220 = vmatprep.mubr.f32.mxu0 %v6599
        %7221 = vmatmul.mubr.f32.gmra.mxu0 %v6714
        %v7222 = vpop.f32.mrf.mxu0
        %v7223 = vadd.f32 0.0, %v7222
        %v7224 = vpop.f32.mrf.mxu0
        %7225 = vmatprep.mubr.f32.mxu0 %v6600
        %7226 = vmatmul.mubr.f32.gmra.mxu0 %v6716
        %v7227 = vpop.f32.mrf.mxu0
        %v7228 = vadd.f32 0.0, %v7227
        %v7229 = vpop.f32.mrf.mxu0
        %7230 = vmatprep.mubr.f32.mxu0 %v6601
        %7231 = vmatmul.mubr.f32.gmra.mxu0 %v6718
        %v7232 = vpop.f32.mrf.mxu0
        %v7233 = vadd.f32 0.0, %v7232
        %v7234 = vpop.f32.mrf.mxu0
        %7235 = vmatprep.mubr.f32.mxu0 %v6602
        %7236 = vmatmul.mubr.f32.gmra.mxu0 %v6720
        %v7237 = vpop.f32.mrf.mxu0
        %v7238 = vadd.f32 0.0, %v7237
        %v7239 = vpop.f32.mrf.mxu0
        %7240 = vmatprep.mubr.f32.mxu0 %v6603
        %7241 = vmatmul.mubr.f32.gmra.mxu0 %v6722
        %v7242 = vpop.f32.mrf.mxu0
        %v7243 = vadd.f32 0.0, %v7242
        %v7244 = vpop.f32.mrf.mxu0
        %7245 = vmatprep.mubr.f32.mxu0 %v6604
        %7246 = vmatmul.mubr.f32.gmra.mxu0 %v6724
        %v7247 = vpop.f32.mrf.mxu0
        %v7248 = vadd.f32 0.0, %v7247
        %v7249 = vpop.f32.mrf.mxu0
        %7250 = vmatprep.mubr.f32.mxu0 %v6605
        %7251 = vmatmul.mubr.f32.gmra.mxu0 %v6726
        %v7252 = vpop.f32.mrf.mxu0
        %v7253 = vadd.f32 0.0, %v7252
        %v7254 = vpop.f32.mrf.mxu0
        %7255 = vmatprep.mubr.f32.mxu0 %v6606
        %7256 = vmatmul.mubr.f32.gmra.mxu0 %v6728
        %v7257 = vpop.f32.mrf.mxu0
        %v7258 = vadd.f32 0.0, %v7257
        %v7259 = vpop.f32.mrf.mxu0
        %7260 = vmatprep.mubr.f32.mxu0 %v6607
        %7261 = vmatmul.mubr.f32.gmra.mxu0 %v6730
        %v7262 = vpop.f32.mrf.mxu0
        %v7263 = vadd.f32 0.0, %v7262
        %v7264 = vpop.f32.mrf.mxu0
        %7265 = vmatprep.mubr.f32.mxu0 %v6608
        %7266 = vmatmul.mubr.f32.gmra.mxu0 %v6732
        %v7267 = vpop.f32.mrf.mxu0
        %v7268 = vadd.f32 0.0, %v7267
        %v7269 = vpop.f32.mrf.mxu0
        %7270 = vmatprep.mubr.f32.mxu0 %v6609
        %7271 = vmatmul.mubr.f32.gmra.mxu0 %v6734
        %v7272 = vpop.f32.mrf.mxu0
        %v7273 = vadd.f32 0.0, %v7272
        %v7274 = vpop.f32.mrf.mxu0
        %7275 = vmatprep.mubr.f32.mxu0 %v6610
        %7276 = vmatmul.mubr.f32.gmra.mxu0 %v6736
        %v7277 = vpop.f32.mrf.mxu0
        %v7278 = vadd.f32 0.0, %v7277
        %v7279 = vpop.f32.mrf.mxu0
        %7280 = vmatprep.mubr.f32.mxu0 %v6611
        %7281 = vmatmul.mubr.f32.gmra.mxu0 %v6738
        %v7282 = vpop.f32.mrf.mxu0
        %v7283 = vadd.f32 0.0, %v7282
        %v7284 = vpop.f32.mrf.mxu0
        %7285 = vmatprep.mubr.f32.mxu0 %v6612
        %7286 = vmatmul.mubr.f32.gmra.mxu0 %v6740
        %v7287 = vpop.f32.mrf.mxu0
        %v7288 = vadd.f32 0.0, %v7287
        %v7289 = vpop.f32.mrf.mxu0
        %7290 = vmatprep.mubr.f32.mxu0 %v6613
        %7291 = vmatmul.mubr.f32.gmra.mxu0 %v6742
        %v7292 = vpop.f32.mrf.mxu0
        %v7293 = vadd.f32 0.0, %v7292
        %v7294 = vpop.f32.mrf.mxu0
        %7295 = vmatprep.mubr.f32.mxu0 %v6614
        %7296 = vmatmul.mubr.f32.gmra.mxu0 %v6744
        %v7297 = vpop.f32.mrf.mxu0
        %v7298 = vadd.f32 0.0, %v7297
        %v7299 = vpop.f32.mrf.mxu0
        %7300 = vmatprep.mubr.f32.mxu0 %v6615
        %7301 = vmatmul.mubr.f32.gmra.mxu0 %v6746
        %v7302 = vpop.f32.mrf.mxu0
        %v7303 = vadd.f32 0.0, %v7302
        %v7304 = vpop.f32.mrf.mxu0
        %7305 = vmatprep.mubr.f32.mxu0 %v6616
        %7306 = vmatmul.mubr.f32.gmra.mxu0 %v6748
        %v7307 = vpop.f32.mrf.mxu0
        %v7308 = vadd.f32 0.0, %v7307
        %v7309 = vpop.f32.mrf.mxu0
        %7310 = vmatprep.mubr.f32.mxu0 %v6617
        %7311 = vmatmul.mubr.f32.gmra.mxu0 %v6750
        %v7312 = vpop.f32.mrf.mxu0
        %v7313 = vadd.f32 0.0, %v7312
        %v7314 = vpop.f32.mrf.mxu0
        %7315 = vmatprep.mubr.f32.mxu0 %v6618
        %7316 = vmatmul.mubr.f32.gmra.mxu0 %v6752
        %v7317 = vpop.f32.mrf.mxu0
        %v7318 = vadd.f32 0.0, %v7317
        %v7319 = vpop.f32.mrf.mxu0
        %7320 = vmatprep.mubr.f32.mxu0 %v6619
        %7321 = vmatmul.mubr.f32.gmra.mxu0 %v6754
        %v7322 = vpop.f32.mrf.mxu0
        %v7323 = vadd.f32 0.0, %v7322
        %v7324 = vpop.f32.mrf.mxu0
        %7325 = vmatprep.mubr.f32.mxu0 %v6620
        %7326 = vmatmul.mubr.f32.gmra.mxu0 %v6756
        %v7327 = vpop.f32.mrf.mxu0
        %v7328 = vadd.f32 0.0, %v7327
        %v7329 = vpop.f32.mrf.mxu0
        %7330 = vmatprep.mubr.f32.mxu0 %v6621
        %7331 = vmatmul.mubr.f32.gmra.mxu0 %v6758
        %v7332 = vpop.f32.mrf.mxu0
        %v7333 = vadd.f32 0.0, %v7332
        %v7334 = vpop.f32.mrf.mxu0
        %7335 = vmatprep.mubr.f32.mxu0 %v6622
        %7336 = vmatmul.mubr.f32.gmra.mxu0 %v6760
        %v7337 = vpop.f32.mrf.mxu0
        %v7338 = vadd.f32 0.0, %v7337
        %v7339 = vpop.f32.mrf.mxu0
        %7340 = vmatprep.mubr.f32.mxu0 %v6623
        %7341 = vmatmul.mubr.f32.gmra.mxu0 %v6762
        %v7342 = vpop.f32.mrf.mxu0
        %v7343 = vadd.f32 0.0, %v7342
        %v7344 = vpop.f32.mrf.mxu0
        %7345 = vmatprep.mubr.f32.mxu0 %v6624
        %7346 = vmatmul.mubr.f32.gmra.mxu0 %v6764
        %v7347 = vpop.f32.mrf.mxu0
        %v7348 = vadd.f32 0.0, %v7347
        %v7349 = vpop.f32.mrf.mxu0
        %7350 = vmatprep.mubr.f32.mxu0 %v6625
        %7351 = vmatmul.mubr.f32.gmra.mxu0 %v6766
        %v7352 = vpop.f32.mrf.mxu0
        %v7353 = vadd.f32 0.0, %v7352
        %v7354 = vpop.f32.mrf.mxu0
        %7355 = vmatprep.mubr.f32.mxu0 %v6626
        %7356 = vmatmul.mubr.f32.gmra.mxu0 %v6768
        %v7357 = vpop.f32.mrf.mxu0
        %v7358 = vadd.f32 0.0, %v7357
        %v7359 = vpop.f32.mrf.mxu0
        %7360 = vmatprep.mubr.f32.mxu0 %v6627
        %7361 = vmatmul.mubr.f32.gmra.mxu0 %v6770
        %v7362 = vpop.f32.mrf.mxu0
        %v7363 = vadd.f32 0.0, %v7362
        %v7364 = vpop.f32.mrf.mxu0
        %7365 = vmatprep.mubr.f32.mxu0 %v6628
        %7366 = vmatmul.mubr.f32.gmra.mxu0 %v6772
        %v7367 = vpop.f32.mrf.mxu0
        %v7368 = vadd.f32 0.0, %v7367
        %v7369 = vpop.f32.mrf.mxu0
        %7370 = vdwg.mxu0
        %7371 = vmatprep.subr.mxu0 0.0
        %7372 = vmatpush1.msra.mxu0 %v7065
        %7373 = vmatprep.subr.mxu0 0.0
        %7374 = vmatpush1.msra.mxu0 %v7064
        %7375 = vmatprep.subr.mxu0 0.0
        %7376 = vmatpush1.msra.mxu0 %v7063
        %7377 = vmatprep.subr.mxu0 0.0
        %7378 = vmatpush1.msra.mxu0 %v7062
        %7379 = vmatprep.subr.mxu0 0.0
        %7380 = vmatpush1.msra.mxu0 %v7061
        %7381 = vmatprep.subr.mxu0 0.0
        %7382 = vmatpush1.msra.mxu0 %v7060
        %7383 = vmatprep.subr.mxu0 0.0
        %7384 = vmatpush1.msra.mxu0 %v7059
        %7385 = vmatprep.subr.mxu0 0.0
        %7386 = vmatpush1.msra.mxu0 %v7058
        %7387 = vmatprep.subr.mxu0 0.0
        %7388 = vmatpush1.msra.mxu0 %v7057
        %7389 = vmatprep.subr.mxu0 0.0
        %7390 = vmatpush1.msra.mxu0 %v7056
        %7391 = vmatprep.subr.mxu0 0.0
        %7392 = vmatpush1.msra.mxu0 %v7055
        %7393 = vmatprep.subr.mxu0 0.0
        %7394 = vmatpush1.msra.mxu0 %v7054
        %7395 = vmatprep.subr.mxu0 0.0
        %7396 = vmatpush1.msra.mxu0 %v7053
        %7397 = vmatprep.subr.mxu0 0.0
        %7398 = vmatpush1.msra.mxu0 %v7052
        %7399 = vmatprep.subr.mxu0 0.0
        %7400 = vmatpush1.msra.mxu0 %v7051
        %7401 = vmatprep.subr.mxu0 0.0
        %7402 = vmatpush1.msra.mxu0 %v7050
        %7403 = vmatprep.subr.mxu0 0.0
        %7404 = vmatpush2.msra.mxu0 0.0
        %7405 = vmatprep.subr.mxu0 0.0
        %7406 = vmatpush2.msra.mxu0 0.0
        %7407 = vmatprep.subr.mxu0 0.0
        %7408 = vmatpush2.msra.mxu0 0.0
        %7409 = vmatprep.subr.mxu0 0.0
        %7410 = vmatpush2.msra.mxu0 0.0
        %7411 = vmatprep.subr.mxu0 0.0
        %7412 = vmatpush2.msra.mxu0 0.0
        %7413 = vmatprep.subr.mxu0 0.0
        %7414 = vmatpush2.msra.mxu0 0.0
        %7415 = vmatprep.subr.mxu0 0.0
        %7416 = vmatpush2.msra.mxu0 0.0
        %7417 = vmatprep.subr.mxu0 0.0
        %7418 = vmatpush2.msra.mxu0 0.0
        %7419 = vmatprep.subr.mxu0 0.0
        %7420 = vmatpush2.msra.mxu0 0.0
        %7421 = vmatprep.subr.mxu0 0.0
        %7422 = vmatpush2.msra.mxu0 0.0
        %7423 = vmatprep.subr.mxu0 0.0
        %7424 = vmatpush2.msra.mxu0 0.0
        %7425 = vmatprep.subr.mxu0 0.0
        %7426 = vmatpush2.msra.mxu0 0.0
        %7427 = vmatprep.subr.mxu0 0.0
        %7428 = vmatpush2.msra.mxu0 0.0
        %7429 = vmatprep.subr.mxu0 0.0
        %7430 = vmatpush2.msra.mxu0 0.0
        %7431 = vmatprep.subr.mxu0 0.0
        %7432 = vmatpush2.msra.mxu0 0.0
        %7433 = vmatprep.subr.mxu0 0.0
        %7434 = vmatpush2.msra.mxu0 0.0
        %7435 = vmatprep.mubr.f32.mxu0 0.0
        %7436 = vmatmul.mubr.f32.gmra.mxu0 %v6826
        %v7437 = vpop.f32.mrf.mxu0
        %v7438 = vadd.f32 %v7133, %v7437
        %v7439 = vpop.f32.mrf.mxu0
        %7440 = vmatprep.mubr.f32.mxu0 0.0
        %7441 = vmatmul.mubr.f32.gmra.mxu0 %v6828
        %v7442 = vpop.f32.mrf.mxu0
        %v7443 = vadd.f32 %v7138, %v7442
        %v7444 = vpop.f32.mrf.mxu0
        %7445 = vmatprep.mubr.f32.mxu0 0.0
        %7446 = vmatmul.mubr.f32.gmra.mxu0 %v6830
        %v7447 = vpop.f32.mrf.mxu0
        %v7448 = vadd.f32 %v7143, %v7447
        %v7449 = vpop.f32.mrf.mxu0
        %7450 = vmatprep.mubr.f32.mxu0 0.0
        %7451 = vmatmul.mubr.f32.gmra.mxu0 %v6832
        %v7452 = vpop.f32.mrf.mxu0
        %v7453 = vadd.f32 %v7148, %v7452
        %v7454 = vpop.f32.mrf.mxu0
        %7455 = vmatprep.mubr.f32.mxu0 0.0
        %7456 = vmatmul.mubr.f32.gmra.mxu0 %v6834
        %v7457 = vpop.f32.mrf.mxu0
        %v7458 = vadd.f32 %v7153, %v7457
        %v7459 = vpop.f32.mrf.mxu0
        %7460 = vmatprep.mubr.f32.mxu0 0.0
        %7461 = vmatmul.mubr.f32.gmra.mxu0 %v6836
        %v7462 = vpop.f32.mrf.mxu0
        %v7463 = vadd.f32 %v7158, %v7462
        %v7464 = vpop.f32.mrf.mxu0
        %7465 = vmatprep.mubr.f32.mxu0 0.0
        %7466 = vmatmul.mubr.f32.gmra.mxu0 %v6838
        %v7467 = vpop.f32.mrf.mxu0
        %v7468 = vadd.f32 %v7163, %v7467
        %v7469 = vpop.f32.mrf.mxu0
        %7470 = vmatprep.mubr.f32.mxu0 0.0
        %7471 = vmatmul.mubr.f32.gmra.mxu0 %v6840
        %v7472 = vpop.f32.mrf.mxu0
        %v7473 = vadd.f32 %v7168, %v7472
        %v7474 = vpop.f32.mrf.mxu0
        %7475 = vmatprep.mubr.f32.mxu0 0.0
        %7476 = vmatmul.mubr.f32.gmra.mxu0 %v6842
        %v7477 = vpop.f32.mrf.mxu0
        %v7478 = vadd.f32 %v7173, %v7477
        %v7479 = vpop.f32.mrf.mxu0
        %7480 = vmatprep.mubr.f32.mxu0 0.0
        %7481 = vmatmul.mubr.f32.gmra.mxu0 %v6844
        %v7482 = vpop.f32.mrf.mxu0
        %v7483 = vadd.f32 %v7178, %v7482
        %v7484 = vpop.f32.mrf.mxu0
        %7485 = vmatprep.mubr.f32.mxu0 0.0
        %7486 = vmatmul.mubr.f32.gmra.mxu0 %v6846
        %v7487 = vpop.f32.mrf.mxu0
        %v7488 = vadd.f32 %v7183, %v7487
        %v7489 = vpop.f32.mrf.mxu0
        %7490 = vmatprep.mubr.f32.mxu0 0.0
        %7491 = vmatmul.mubr.f32.gmra.mxu0 %v6848
        %v7492 = vpop.f32.mrf.mxu0
        %v7493 = vadd.f32 %v7188, %v7492
        %v7494 = vpop.f32.mrf.mxu0
        %7495 = vmatprep.mubr.f32.mxu0 0.0
        %7496 = vmatmul.mubr.f32.gmra.mxu0 %v6850
        %v7497 = vpop.f32.mrf.mxu0
        %v7498 = vadd.f32 %v7193, %v7497
        %v7499 = vpop.f32.mrf.mxu0
        %7500 = vmatprep.mubr.f32.mxu0 0.0
        %7501 = vmatmul.mubr.f32.gmra.mxu0 %v6852
        %v7502 = vpop.f32.mrf.mxu0
        %v7503 = vadd.f32 %v7198, %v7502
        %v7504 = vpop.f32.mrf.mxu0
        %7505 = vmatprep.mubr.f32.mxu0 0.0
        %7506 = vmatmul.mubr.f32.gmra.mxu0 %v6854
        %v7507 = vpop.f32.mrf.mxu0
        %v7508 = vadd.f32 %v7203, %v7507
        %v7509 = vpop.f32.mrf.mxu0
        %7510 = vmatprep.mubr.f32.mxu0 0.0
        %7511 = vmatmul.mubr.f32.gmra.mxu0 %v6856
        %v7512 = vpop.f32.mrf.mxu0
        %v7513 = vadd.f32 %v7208, %v7512
        %v7514 = vpop.f32.mrf.mxu0
        %7515 = vmatprep.mubr.f32.mxu0 0.0
        %7516 = vmatmul.mubr.f32.gmra.mxu0 %v6858
        %v7517 = vpop.f32.mrf.mxu0
        %v7518 = vadd.f32 %v7213, %v7517
        %v7519 = vpop.f32.mrf.mxu0
        %7520 = vmatprep.mubr.f32.mxu0 0.0
        %7521 = vmatmul.mubr.f32.gmra.mxu0 %v6860
        %v7522 = vpop.f32.mrf.mxu0
        %v7523 = vadd.f32 %v7218, %v7522
        %v7524 = vpop.f32.mrf.mxu0
        %7525 = vmatprep.mubr.f32.mxu0 0.0
        %7526 = vmatmul.mubr.f32.gmra.mxu0 %v6862
        %v7527 = vpop.f32.mrf.mxu0
        %v7528 = vadd.f32 %v7223, %v7527
        %v7529 = vpop.f32.mrf.mxu0
        %7530 = vmatprep.mubr.f32.mxu0 0.0
        %7531 = vmatmul.mubr.f32.gmra.mxu0 %v6864
        %v7532 = vpop.f32.mrf.mxu0
        %v7533 = vadd.f32 %v7228, %v7532
        %v7534 = vpop.f32.mrf.mxu0
        %7535 = vmatprep.mubr.f32.mxu0 0.0
        %7536 = vmatmul.mubr.f32.gmra.mxu0 %v6866
        %v7537 = vpop.f32.mrf.mxu0
        %v7538 = vadd.f32 %v7233, %v7537
        %v7539 = vpop.f32.mrf.mxu0
        %7540 = vmatprep.mubr.f32.mxu0 0.0
        %7541 = vmatmul.mubr.f32.gmra.mxu0 %v6868
        %v7542 = vpop.f32.mrf.mxu0
        %v7543 = vadd.f32 %v7238, %v7542
        %v7544 = vpop.f32.mrf.mxu0
        %7545 = vmatprep.mubr.f32.mxu0 0.0
        %7546 = vmatmul.mubr.f32.gmra.mxu0 %v6870
        %v7547 = vpop.f32.mrf.mxu0
        %v7548 = vadd.f32 %v7243, %v7547
        %v7549 = vpop.f32.mrf.mxu0
        %7550 = vmatprep.mubr.f32.mxu0 0.0
        %7551 = vmatmul.mubr.f32.gmra.mxu0 %v6872
        %v7552 = vpop.f32.mrf.mxu0
        %v7553 = vadd.f32 %v7248, %v7552
        %v7554 = vpop.f32.mrf.mxu0
        %7555 = vmatprep.mubr.f32.mxu0 0.0
        %7556 = vmatmul.mubr.f32.gmra.mxu0 %v6874
        %v7557 = vpop.f32.mrf.mxu0
        %v7558 = vadd.f32 %v7253, %v7557
        %v7559 = vpop.f32.mrf.mxu0
        %7560 = vmatprep.mubr.f32.mxu0 0.0
        %7561 = vmatmul.mubr.f32.gmra.mxu0 %v6876
        %v7562 = vpop.f32.mrf.mxu0
        %v7563 = vadd.f32 %v7258, %v7562
        %v7564 = vpop.f32.mrf.mxu0
        %7565 = vmatprep.mubr.f32.mxu0 0.0
        %7566 = vmatmul.mubr.f32.gmra.mxu0 %v6878
        %v7567 = vpop.f32.mrf.mxu0
        %v7568 = vadd.f32 %v7263, %v7567
        %v7569 = vpop.f32.mrf.mxu0
        %7570 = vmatprep.mubr.f32.mxu0 0.0
        %7571 = vmatmul.mubr.f32.gmra.mxu0 %v6880
        %v7572 = vpop.f32.mrf.mxu0
        %v7573 = vadd.f32 %v7268, %v7572
        %v7574 = vpop.f32.mrf.mxu0
        %7575 = vmatprep.mubr.f32.mxu0 0.0
        %7576 = vmatmul.mubr.f32.gmra.mxu0 %v6882
        %v7577 = vpop.f32.mrf.mxu0
        %v7578 = vadd.f32 %v7273, %v7577
        %v7579 = vpop.f32.mrf.mxu0
        %7580 = vmatprep.mubr.f32.mxu0 0.0
        %7581 = vmatmul.mubr.f32.gmra.mxu0 %v6884
        %v7582 = vpop.f32.mrf.mxu0
        %v7583 = vadd.f32 %v7278, %v7582
        %v7584 = vpop.f32.mrf.mxu0
        %7585 = vmatprep.mubr.f32.mxu0 0.0
        %7586 = vmatmul.mubr.f32.gmra.mxu0 %v6886
        %v7587 = vpop.f32.mrf.mxu0
        %v7588 = vadd.f32 %v7283, %v7587
        %v7589 = vpop.f32.mrf.mxu0
        %7590 = vmatprep.mubr.f32.mxu0 0.0
        %7591 = vmatmul.mubr.f32.gmra.mxu0 %v6888
        %v7592 = vpop.f32.mrf.mxu0
        %v7593 = vadd.f32 %v7288, %v7592
        %v7594 = vpop.f32.mrf.mxu0
        %7595 = vmatprep.mubr.f32.mxu0 0.0
        %7596 = vmatmul.mubr.f32.gmra.mxu0 %v6890
        %v7597 = vpop.f32.mrf.mxu0
        %v7598 = vadd.f32 %v7293, %v7597
        %v7599 = vpop.f32.mrf.mxu0
        %7600 = vmatprep.mubr.f32.mxu0 0.0
        %7601 = vmatmul.mubr.f32.gmra.mxu0 %v6892
        %v7602 = vpop.f32.mrf.mxu0
        %v7603 = vadd.f32 %v7298, %v7602
        %v7604 = vpop.f32.mrf.mxu0
        %7605 = vmatprep.mubr.f32.mxu0 0.0
        %7606 = vmatmul.mubr.f32.gmra.mxu0 %v6894
        %v7607 = vpop.f32.mrf.mxu0
        %v7608 = vadd.f32 %v7303, %v7607
        %v7609 = vpop.f32.mrf.mxu0
        %7610 = vmatprep.mubr.f32.mxu0 0.0
        %7611 = vmatmul.mubr.f32.gmra.mxu0 %v6896
        %v7612 = vpop.f32.mrf.mxu0
        %v7613 = vadd.f32 %v7308, %v7612
        %v7614 = vpop.f32.mrf.mxu0
        %7615 = vmatprep.mubr.f32.mxu0 0.0
        %7616 = vmatmul.mubr.f32.gmra.mxu0 %v6898
        %v7617 = vpop.f32.mrf.mxu0
        %v7618 = vadd.f32 %v7313, %v7617
        %v7619 = vpop.f32.mrf.mxu0
        %7620 = vmatprep.mubr.f32.mxu0 0.0
        %7621 = vmatmul.mubr.f32.gmra.mxu0 %v6900
        %v7622 = vpop.f32.mrf.mxu0
        %v7623 = vadd.f32 %v7318, %v7622
        %v7624 = vpop.f32.mrf.mxu0
        %7625 = vmatprep.mubr.f32.mxu0 0.0
        %7626 = vmatmul.mubr.f32.gmra.mxu0 %v6902
        %v7627 = vpop.f32.mrf.mxu0
        %v7628 = vadd.f32 %v7323, %v7627
        %v7629 = vpop.f32.mrf.mxu0
        %7630 = vmatprep.mubr.f32.mxu0 0.0
        %7631 = vmatmul.mubr.f32.gmra.mxu0 %v6904
        %v7632 = vpop.f32.mrf.mxu0
        %v7633 = vadd.f32 %v7328, %v7632
        %v7634 = vpop.f32.mrf.mxu0
        %7635 = vmatprep.mubr.f32.mxu0 0.0
        %7636 = vmatmul.mubr.f32.gmra.mxu0 %v6906
        %v7637 = vpop.f32.mrf.mxu0
        %v7638 = vadd.f32 %v7333, %v7637
        %v7639 = vpop.f32.mrf.mxu0
        %7640 = vmatprep.mubr.f32.mxu0 0.0
        %7641 = vmatmul.mubr.f32.gmra.mxu0 %v6908
        %v7642 = vpop.f32.mrf.mxu0
        %v7643 = vadd.f32 %v7338, %v7642
        %v7644 = vpop.f32.mrf.mxu0
        %7645 = vmatprep.mubr.f32.mxu0 0.0
        %7646 = vmatmul.mubr.f32.gmra.mxu0 %v6910
        %v7647 = vpop.f32.mrf.mxu0
        %v7648 = vadd.f32 %v7343, %v7647
        %v7649 = vpop.f32.mrf.mxu0
        %7650 = vmatprep.mubr.f32.mxu0 0.0
        %7651 = vmatmul.mubr.f32.gmra.mxu0 %v6912
        %v7652 = vpop.f32.mrf.mxu0
        %v7653 = vadd.f32 %v7348, %v7652
        %v7654 = vpop.f32.mrf.mxu0
        %7655 = vmatprep.mubr.f32.mxu0 0.0
        %7656 = vmatmul.mubr.f32.gmra.mxu0 %v6914
        %v7657 = vpop.f32.mrf.mxu0
        %v7658 = vadd.f32 %v7353, %v7657
        %v7659 = vpop.f32.mrf.mxu0
        %7660 = vmatprep.mubr.f32.mxu0 0.0
        %7661 = vmatmul.mubr.f32.gmra.mxu0 %v6916
        %v7662 = vpop.f32.mrf.mxu0
        %v7663 = vadd.f32 %v7358, %v7662
        %v7664 = vpop.f32.mrf.mxu0
        %7665 = vmatprep.mubr.f32.mxu0 0.0
        %7666 = vmatmul.mubr.f32.gmra.mxu0 %v6918
        %v7667 = vpop.f32.mrf.mxu0
        %v7668 = vadd.f32 %v7363, %v7667
        %v7669 = vpop.f32.mrf.mxu0
        %7670 = vmatprep.mubr.f32.mxu0 0.0
        %7671 = vmatmul.mubr.f32.gmra.mxu0 %v6919
        %v7672 = vpop.f32.mrf.mxu0
        %v7673 = vadd.f32 %v7368, %v7672
        %v7674 = vpop.f32.mrf.mxu0
        %7675 = vdwg.mxu0
        %7676 = vmatprep.subr.mxu0 0.0
        %7677 = vmatpush1.msra.mxu0 %v6984
        %7678 = vmatprep.subr.mxu0 0.0
        %7679 = vmatpush1.msra.mxu0 %v6983
        %7680 = vmatprep.subr.mxu0 0.0
        %7681 = vmatpush1.msra.mxu0 %v6982
        %7682 = vmatprep.subr.mxu0 0.0
        %7683 = vmatpush1.msra.mxu0 %v6981
        %7684 = vmatprep.subr.mxu0 0.0
        %7685 = vmatpush1.msra.mxu0 %v6980
        %7686 = vmatprep.subr.mxu0 0.0
        %7687 = vmatpush1.msra.mxu0 %v6979
        %7688 = vmatprep.subr.mxu0 0.0
        %7689 = vmatpush1.msra.mxu0 %v6978
        %7690 = vmatprep.subr.mxu0 0.0
        %7691 = vmatpush1.msra.mxu0 %v6977
        %7692 = vmatprep.subr.mxu0 0.0
        %7693 = vmatpush1.msra.mxu0 %v6976
        %7694 = vmatprep.subr.mxu0 0.0
        %7695 = vmatpush1.msra.mxu0 %v6975
        %7696 = vmatprep.subr.mxu0 0.0
        %7697 = vmatpush1.msra.mxu0 %v6974
        %7698 = vmatprep.subr.mxu0 0.0
        %7699 = vmatpush1.msra.mxu0 %v6973
        %7700 = vmatprep.subr.mxu0 0.0
        %7701 = vmatpush1.msra.mxu0 %v6972
        %7702 = vmatprep.subr.mxu0 0.0
        %7703 = vmatpush1.msra.mxu0 %v6971
        %7704 = vmatprep.subr.mxu0 0.0
        %7705 = vmatpush1.msra.mxu0 %v6970
        %7706 = vmatprep.subr.mxu0 0.0
        %7707 = vmatpush1.msra.mxu0 %v6969
        %7708 = vmatprep.subr.mxu0 0.0
        %7709 = vmatpush2.msra.mxu0 %v7000
        %7710 = vmatprep.subr.mxu0 0.0
        %7711 = vmatpush2.msra.mxu0 %v6999
        %7712 = vmatprep.subr.mxu0 0.0
        %7713 = vmatpush2.msra.mxu0 %v6998
        %7714 = vmatprep.subr.mxu0 0.0
        %7715 = vmatpush2.msra.mxu0 %v6997
        %7716 = vmatprep.subr.mxu0 0.0
        %7717 = vmatpush2.msra.mxu0 %v6996
        %7718 = vmatprep.subr.mxu0 0.0
        %7719 = vmatpush2.msra.mxu0 %v6995
        %7720 = vmatprep.subr.mxu0 0.0
        %7721 = vmatpush2.msra.mxu0 %v6994
        %7722 = vmatprep.subr.mxu0 0.0
        %7723 = vmatpush2.msra.mxu0 %v6993
        %7724 = vmatprep.subr.mxu0 0.0
        %7725 = vmatpush2.msra.mxu0 %v6992
        %7726 = vmatprep.subr.mxu0 0.0
        %7727 = vmatpush2.msra.mxu0 %v6991
        %7728 = vmatprep.subr.mxu0 0.0
        %7729 = vmatpush2.msra.mxu0 %v6990
        %7730 = vmatprep.subr.mxu0 0.0
        %7731 = vmatpush2.msra.mxu0 %v6989
        %7732 = vmatprep.subr.mxu0 0.0
        %7733 = vmatpush2.msra.mxu0 %v6988
        %7734 = vmatprep.subr.mxu0 0.0
        %7735 = vmatpush2.msra.mxu0 %v6987
        %7736 = vmatprep.subr.mxu0 0.0
        %7737 = vmatpush2.msra.mxu0 %v6986
        %7738 = vmatprep.subr.mxu0 0.0
        %7739 = vmatpush2.msra.mxu0 %v6985
        %7740 = vmatprep.mubr.f32.mxu0 0.0
        %7741 = vmatmul.mubr.f32.gmra.mxu0 %v4206
        %v7742 = vpop.f32.mrf.mxu0
        %v7743 = vadd.f32 %v7438, %v7742
        %v7744 = vpop.f32.mrf.mxu0
        %7745 = vmatprep.mubr.f32.mxu0 0.0
        %7746 = vmatmul.mubr.f32.gmra.mxu0 %v4057
        %v7747 = vpop.f32.mrf.mxu0
        %v7748 = vadd.f32 %v7443, %v7747
        %v7749 = vpop.f32.mrf.mxu0
        %7750 = vmatprep.mubr.f32.mxu0 0.0
        %7751 = vmatmul.mubr.f32.gmra.mxu0 %v4057
        %v7752 = vpop.f32.mrf.mxu0
        %v7753 = vadd.f32 %v7448, %v7752
        %v7754 = vpop.f32.mrf.mxu0
        %7755 = vmatprep.mubr.f32.mxu0 %v6581
        %7756 = vmatmul.mubr.f32.gmra.mxu0 %v6678
        %v7757 = vpop.f32.mrf.mxu0
        %v7758 = vadd.f32 %v7453, %v7757
        %v7759 = vpop.f32.mrf.mxu0
        %7760 = vmatprep.mubr.f32.mxu0 %v6582
        %7761 = vmatmul.mubr.f32.gmra.mxu0 %v6680
        %v7762 = vpop.f32.mrf.mxu0
        %v7763 = vadd.f32 %v7458, %v7762
        %v7764 = vpop.f32.mrf.mxu0
        %7765 = vmatprep.mubr.f32.mxu0 %v6583
        %7766 = vmatmul.mubr.f32.gmra.mxu0 %v6682
        %v7767 = vpop.f32.mrf.mxu0
        %v7768 = vadd.f32 %v7463, %v7767
        %v7769 = vpop.f32.mrf.mxu0
        %7770 = vmatprep.mubr.f32.mxu0 %v6584
        %7771 = vmatmul.mubr.f32.gmra.mxu0 %v6684
        %v7772 = vpop.f32.mrf.mxu0
        %v7773 = vadd.f32 %v7468, %v7772
        %v7774 = vpop.f32.mrf.mxu0
        %7775 = vmatprep.mubr.f32.mxu0 %v6585
        %7776 = vmatmul.mubr.f32.gmra.mxu0 %v6686
        %v7777 = vpop.f32.mrf.mxu0
        %v7778 = vadd.f32 %v7473, %v7777
        %v7779 = vpop.f32.mrf.mxu0
        %7780 = vmatprep.mubr.f32.mxu0 %v6586
        %7781 = vmatmul.mubr.f32.gmra.mxu0 %v6688
        %v7782 = vpop.f32.mrf.mxu0
        %v7783 = vadd.f32 %v7478, %v7782
        %v7784 = vpop.f32.mrf.mxu0
        %7785 = vmatprep.mubr.f32.mxu0 %v6587
        %7786 = vmatmul.mubr.f32.gmra.mxu0 %v6690
        %v7787 = vpop.f32.mrf.mxu0
        %v7788 = vadd.f32 %v7483, %v7787
        %v7789 = vpop.f32.mrf.mxu0
        %7790 = vmatprep.mubr.f32.mxu0 %v6588
        %7791 = vmatmul.mubr.f32.gmra.mxu0 %v6692
        %v7792 = vpop.f32.mrf.mxu0
        %v7793 = vadd.f32 %v7488, %v7792
        %v7794 = vpop.f32.mrf.mxu0
        %7795 = vmatprep.mubr.f32.mxu0 %v6589
        %7796 = vmatmul.mubr.f32.gmra.mxu0 %v6694
        %v7797 = vpop.f32.mrf.mxu0
        %v7798 = vadd.f32 %v7493, %v7797
        %v7799 = vpop.f32.mrf.mxu0
        %7800 = vmatprep.mubr.f32.mxu0 %v6590
        %7801 = vmatmul.mubr.f32.gmra.mxu0 %v6696
        %v7802 = vpop.f32.mrf.mxu0
        %v7803 = vadd.f32 %v7498, %v7802
        %v7804 = vpop.f32.mrf.mxu0
        %7805 = vmatprep.mubr.f32.mxu0 %v6591
        %7806 = vmatmul.mubr.f32.gmra.mxu0 %v6698
        %v7807 = vpop.f32.mrf.mxu0
        %v7808 = vadd.f32 %v7503, %v7807
        %v7809 = vpop.f32.mrf.mxu0
        %7810 = vmatprep.mubr.f32.mxu0 %v6592
        %7811 = vmatmul.mubr.f32.gmra.mxu0 %v6700
        %v7812 = vpop.f32.mrf.mxu0
        %v7813 = vadd.f32 %v7508, %v7812
        %v7814 = vpop.f32.mrf.mxu0
        %7815 = vmatprep.mubr.f32.mxu0 %v6593
        %7816 = vmatmul.mubr.f32.gmra.mxu0 %v6702
        %v7817 = vpop.f32.mrf.mxu0
        %v7818 = vadd.f32 %v7513, %v7817
        %v7819 = vpop.f32.mrf.mxu0
        %7820 = vmatprep.mubr.f32.mxu0 %v6594
        %7821 = vmatmul.mubr.f32.gmra.mxu0 %v6704
        %v7822 = vpop.f32.mrf.mxu0
        %v7823 = vadd.f32 %v7518, %v7822
        %v7824 = vpop.f32.mrf.mxu0
        %7825 = vmatprep.mubr.f32.mxu0 %v6595
        %7826 = vmatmul.mubr.f32.gmra.mxu0 %v6706
        %v7827 = vpop.f32.mrf.mxu0
        %v7828 = vadd.f32 %v7523, %v7827
        %v7829 = vpop.f32.mrf.mxu0
        %7830 = vmatprep.mubr.f32.mxu0 %v6596
        %7831 = vmatmul.mubr.f32.gmra.mxu0 %v6708
        %v7832 = vpop.f32.mrf.mxu0
        %v7833 = vadd.f32 %v7528, %v7832
        %v7834 = vpop.f32.mrf.mxu0
        %7835 = vmatprep.mubr.f32.mxu0 %v6597
        %7836 = vmatmul.mubr.f32.gmra.mxu0 %v6710
        %v7837 = vpop.f32.mrf.mxu0
        %v7838 = vadd.f32 %v7533, %v7837
        %v7839 = vpop.f32.mrf.mxu0
        %7840 = vmatprep.mubr.f32.mxu0 %v6598
        %7841 = vmatmul.mubr.f32.gmra.mxu0 %v6712
        %v7842 = vpop.f32.mrf.mxu0
        %v7843 = vadd.f32 %v7538, %v7842
        %v7844 = vpop.f32.mrf.mxu0
        %7845 = vmatprep.mubr.f32.mxu0 %v6599
        %7846 = vmatmul.mubr.f32.gmra.mxu0 %v6714
        %v7847 = vpop.f32.mrf.mxu0
        %v7848 = vadd.f32 %v7543, %v7847
        %v7849 = vpop.f32.mrf.mxu0
        %7850 = vmatprep.mubr.f32.mxu0 %v6600
        %7851 = vmatmul.mubr.f32.gmra.mxu0 %v6716
        %v7852 = vpop.f32.mrf.mxu0
        %v7853 = vadd.f32 %v7548, %v7852
        %v7854 = vpop.f32.mrf.mxu0
        %7855 = vmatprep.mubr.f32.mxu0 %v6601
        %7856 = vmatmul.mubr.f32.gmra.mxu0 %v6718
        %v7857 = vpop.f32.mrf.mxu0
        %v7858 = vadd.f32 %v7553, %v7857
        %v7859 = vpop.f32.mrf.mxu0
        %7860 = vmatprep.mubr.f32.mxu0 %v6602
        %7861 = vmatmul.mubr.f32.gmra.mxu0 %v6720
        %v7862 = vpop.f32.mrf.mxu0
        %v7863 = vadd.f32 %v7558, %v7862
        %v7864 = vpop.f32.mrf.mxu0
        %7865 = vmatprep.mubr.f32.mxu0 %v6603
        %7866 = vmatmul.mubr.f32.gmra.mxu0 %v6722
        %v7867 = vpop.f32.mrf.mxu0
        %v7868 = vadd.f32 %v7563, %v7867
        %v7869 = vpop.f32.mrf.mxu0
        %7870 = vmatprep.mubr.f32.mxu0 %v6604
        %7871 = vmatmul.mubr.f32.gmra.mxu0 %v6724
        %v7872 = vpop.f32.mrf.mxu0
        %v7873 = vadd.f32 %v7568, %v7872
        %v7874 = vpop.f32.mrf.mxu0
        %7875 = vmatprep.mubr.f32.mxu0 %v6605
        %7876 = vmatmul.mubr.f32.gmra.mxu0 %v6726
        %v7877 = vpop.f32.mrf.mxu0
        %v7878 = vadd.f32 %v7573, %v7877
        %v7879 = vpop.f32.mrf.mxu0
        %7880 = vmatprep.mubr.f32.mxu0 %v6606
        %7881 = vmatmul.mubr.f32.gmra.mxu0 %v6728
        %v7882 = vpop.f32.mrf.mxu0
        %v7883 = vadd.f32 %v7578, %v7882
        %v7884 = vpop.f32.mrf.mxu0
        %7885 = vmatprep.mubr.f32.mxu0 %v6607
        %7886 = vmatmul.mubr.f32.gmra.mxu0 %v6730
        %v7887 = vpop.f32.mrf.mxu0
        %v7888 = vadd.f32 %v7583, %v7887
        %v7889 = vpop.f32.mrf.mxu0
        %7890 = vmatprep.mubr.f32.mxu0 %v6608
        %7891 = vmatmul.mubr.f32.gmra.mxu0 %v6732
        %v7892 = vpop.f32.mrf.mxu0
        %v7893 = vadd.f32 %v7588, %v7892
        %v7894 = vpop.f32.mrf.mxu0
        %7895 = vmatprep.mubr.f32.mxu0 %v6609
        %7896 = vmatmul.mubr.f32.gmra.mxu0 %v6734
        %v7897 = vpop.f32.mrf.mxu0
        %v7898 = vadd.f32 %v7593, %v7897
        %v7899 = vpop.f32.mrf.mxu0
        %7900 = vmatprep.mubr.f32.mxu0 %v6610
        %7901 = vmatmul.mubr.f32.gmra.mxu0 %v6736
        %v7902 = vpop.f32.mrf.mxu0
        %v7903 = vadd.f32 %v7598, %v7902
        %v7904 = vpop.f32.mrf.mxu0
        %7905 = vmatprep.mubr.f32.mxu0 %v6611
        %7906 = vmatmul.mubr.f32.gmra.mxu0 %v6738
        %v7907 = vpop.f32.mrf.mxu0
        %v7908 = vadd.f32 %v7603, %v7907
        %v7909 = vpop.f32.mrf.mxu0
        %7910 = vmatprep.mubr.f32.mxu0 %v6612
        %7911 = vmatmul.mubr.f32.gmra.mxu0 %v6740
        %v7912 = vpop.f32.mrf.mxu0
        %v7913 = vadd.f32 %v7608, %v7912
        %v7914 = vpop.f32.mrf.mxu0
        %7915 = vmatprep.mubr.f32.mxu0 %v6613
        %7916 = vmatmul.mubr.f32.gmra.mxu0 %v6742
        %v7917 = vpop.f32.mrf.mxu0
        %v7918 = vadd.f32 %v7613, %v7917
        %v7919 = vpop.f32.mrf.mxu0
        %7920 = vmatprep.mubr.f32.mxu0 %v6614
        %7921 = vmatmul.mubr.f32.gmra.mxu0 %v6744
        %v7922 = vpop.f32.mrf.mxu0
        %v7923 = vadd.f32 %v7618, %v7922
        %v7924 = vpop.f32.mrf.mxu0
        %7925 = vmatprep.mubr.f32.mxu0 %v6615
        %7926 = vmatmul.mubr.f32.gmra.mxu0 %v6746
        %v7927 = vpop.f32.mrf.mxu0
        %v7928 = vadd.f32 %v7623, %v7927
        %v7929 = vpop.f32.mrf.mxu0
        %7930 = vmatprep.mubr.f32.mxu0 %v6616
        %7931 = vmatmul.mubr.f32.gmra.mxu0 %v6748
        %v7932 = vpop.f32.mrf.mxu0
        %v7933 = vadd.f32 %v7628, %v7932
        %v7934 = vpop.f32.mrf.mxu0
        %7935 = vmatprep.mubr.f32.mxu0 %v6617
        %7936 = vmatmul.mubr.f32.gmra.mxu0 %v6750
        %v7937 = vpop.f32.mrf.mxu0
        %v7938 = vadd.f32 %v7633, %v7937
        %v7939 = vpop.f32.mrf.mxu0
        %7940 = vmatprep.mubr.f32.mxu0 %v6618
        %7941 = vmatmul.mubr.f32.gmra.mxu0 %v6752
        %v7942 = vpop.f32.mrf.mxu0
        %v7943 = vadd.f32 %v7638, %v7942
        %v7944 = vpop.f32.mrf.mxu0
        %7945 = vmatprep.mubr.f32.mxu0 %v6619
        %7946 = vmatmul.mubr.f32.gmra.mxu0 %v6754
        %v7947 = vpop.f32.mrf.mxu0
        %v7948 = vadd.f32 %v7643, %v7947
        %v7949 = vpop.f32.mrf.mxu0
        %7950 = vmatprep.mubr.f32.mxu0 %v6620
        %7951 = vmatmul.mubr.f32.gmra.mxu0 %v6756
        %v7952 = vpop.f32.mrf.mxu0
        %v7953 = vadd.f32 %v7648, %v7952
        %v7954 = vpop.f32.mrf.mxu0
        %7955 = vmatprep.mubr.f32.mxu0 %v6621
        %7956 = vmatmul.mubr.f32.gmra.mxu0 %v6758
        %v7957 = vpop.f32.mrf.mxu0
        %v7958 = vadd.f32 %v7653, %v7957
        %v7959 = vpop.f32.mrf.mxu0
        %7960 = vmatprep.mubr.f32.mxu0 %v6622
        %7961 = vmatmul.mubr.f32.gmra.mxu0 %v6760
        %v7962 = vpop.f32.mrf.mxu0
        %v7963 = vadd.f32 %v7658, %v7962
        %v7964 = vpop.f32.mrf.mxu0
        %7965 = vmatprep.mubr.f32.mxu0 %v6623
        %7966 = vmatmul.mubr.f32.gmra.mxu0 %v6762
        %v7967 = vpop.f32.mrf.mxu0
        %v7968 = vadd.f32 %v7663, %v7967
        %v7969 = vpop.f32.mrf.mxu0
        %7970 = vmatprep.mubr.f32.mxu0 %v6624
        %7971 = vmatmul.mubr.f32.gmra.mxu0 %v6764
        %v7972 = vpop.f32.mrf.mxu0
        %v7973 = vadd.f32 %v7668, %v7972
        %v7974 = vpop.f32.mrf.mxu0
        %7975 = vmatprep.mubr.f32.mxu0 %v6625
        %7976 = vmatmul.mubr.f32.gmra.mxu0 %v6766
        %v7977 = vpop.f32.mrf.mxu0
        %v7978 = vadd.f32 %v7673, %v7977
        %v7979 = vpop.f32.mrf.mxu0
        %7980 = vdwg.mxu0
        %7981 = vmatprep.subr.mxu0 0.0
        %7982 = vmatpush1.msra.mxu0 %v7016
        %7983 = vmatprep.subr.mxu0 0.0
        %7984 = vmatpush1.msra.mxu0 %v7015
        %7985 = vmatprep.subr.mxu0 0.0
        %7986 = vmatpush1.msra.mxu0 %v7014
        %7987 = vmatprep.subr.mxu0 0.0
        %7988 = vmatpush1.msra.mxu0 %v7013
        %7989 = vmatprep.subr.mxu0 0.0
        %7990 = vmatpush1.msra.mxu0 %v7012
        %7991 = vmatprep.subr.mxu0 0.0
        %7992 = vmatpush1.msra.mxu0 %v7011
        %7993 = vmatprep.subr.mxu0 0.0
        %7994 = vmatpush1.msra.mxu0 %v7010
        %7995 = vmatprep.subr.mxu0 0.0
        %7996 = vmatpush1.msra.mxu0 %v7009
        %7997 = vmatprep.subr.mxu0 0.0
        %7998 = vmatpush1.msra.mxu0 %v7008
        %7999 = vmatprep.subr.mxu0 0.0
        %8000 = vmatpush1.msra.mxu0 %v7007
        %8001 = vmatprep.subr.mxu0 0.0
        %8002 = vmatpush1.msra.mxu0 %v7006
        %8003 = vmatprep.subr.mxu0 0.0
        %8004 = vmatpush1.msra.mxu0 %v7005
        %8005 = vmatprep.subr.mxu0 0.0
        %8006 = vmatpush1.msra.mxu0 %v7004
        %8007 = vmatprep.subr.mxu0 0.0
        %8008 = vmatpush1.msra.mxu0 %v7003
        %8009 = vmatprep.subr.mxu0 0.0
        %8010 = vmatpush1.msra.mxu0 %v7002
        %8011 = vmatprep.subr.mxu0 0.0
        %8012 = vmatpush1.msra.mxu0 %v7001
        %8013 = vmatprep.subr.mxu0 0.0
        %8014 = vmatpush2.msra.mxu0 0.0
        %8015 = vmatprep.subr.mxu0 0.0
        %8016 = vmatpush2.msra.mxu0 0.0
        %8017 = vmatprep.subr.mxu0 0.0
        %8018 = vmatpush2.msra.mxu0 0.0
        %8019 = vmatprep.subr.mxu0 0.0
        %8020 = vmatpush2.msra.mxu0 0.0
        %8021 = vmatprep.subr.mxu0 0.0
        %8022 = vmatpush2.msra.mxu0 0.0
        %8023 = vmatprep.subr.mxu0 0.0
        %8024 = vmatpush2.msra.mxu0 0.0
        %8025 = vmatprep.subr.mxu0 0.0
        %8026 = vmatpush2.msra.mxu0 0.0
        %8027 = vmatprep.subr.mxu0 0.0
        %8028 = vmatpush2.msra.mxu0 0.0
        %8029 = vmatprep.subr.mxu0 0.0
        %8030 = vmatpush2.msra.mxu0 0.0
        %8031 = vmatprep.subr.mxu0 0.0
        %8032 = vmatpush2.msra.mxu0 0.0
        %8033 = vmatprep.subr.mxu0 0.0
        %8034 = vmatpush2.msra.mxu0 0.0
        %8035 = vmatprep.subr.mxu0 0.0
        %8036 = vmatpush2.msra.mxu0 0.0
        %8037 = vmatprep.subr.mxu0 0.0
        %8038 = vmatpush2.msra.mxu0 0.0
        %8039 = vmatprep.subr.mxu0 0.0
        %8040 = vmatpush2.msra.mxu0 0.0
        %8041 = vmatprep.subr.mxu0 0.0
        %8042 = vmatpush2.msra.mxu0 0.0
        %8043 = vmatprep.subr.mxu0 0.0
        %8044 = vmatpush2.msra.mxu0 0.0
        %8045 = vmatprep.mubr.f32.mxu0 0.0
        %8046 = vmatmul.mubr.f32.gmra.mxu0 %v4208
        %v8047 = vpop.f32.mrf.mxu0
        %v8048 = vadd.f32 %v7743, %v8047
        %v8049 = vpop.f32.mrf.mxu0
        %8050 = vmatprep.mubr.f32.mxu0 0.0
        %8051 = vmatmul.mubr.f32.gmra.mxu0 %v4208
        %v8052 = vpop.f32.mrf.mxu0
        %v8053 = vadd.f32 %v7748, %v8052
        %v8054 = vpop.f32.mrf.mxu0
        %8055 = vmatprep.mubr.f32.mxu0 0.0
        %8056 = vmatmul.mubr.f32.gmra.mxu0 %v6824
        %v8057 = vpop.f32.mrf.mxu0
        %v8058 = vadd.f32 %v7753, %v8057
        %v8059 = vpop.f32.mrf.mxu0
        %8060 = vmatprep.mubr.f32.mxu0 0.0
        %8061 = vmatmul.mubr.f32.gmra.mxu0 %v6826
        %v8062 = vpop.f32.mrf.mxu0
        %v8063 = vadd.f32 %v7758, %v8062
        %v8064 = vpop.f32.mrf.mxu0
        %8065 = vmatprep.mubr.f32.mxu0 0.0
        %8066 = vmatmul.mubr.f32.gmra.mxu0 %v6828
        %v8067 = vpop.f32.mrf.mxu0
        %v8068 = vadd.f32 %v7763, %v8067
        %v8069 = vpop.f32.mrf.mxu0
        %8070 = vmatprep.mubr.f32.mxu0 0.0
        %8071 = vmatmul.mubr.f32.gmra.mxu0 %v6830
        %v8072 = vpop.f32.mrf.mxu0
        %v8073 = vadd.f32 %v7768, %v8072
        %v8074 = vpop.f32.mrf.mxu0
        %8075 = vmatprep.mubr.f32.mxu0 0.0
        %8076 = vmatmul.mubr.f32.gmra.mxu0 %v6832
        %v8077 = vpop.f32.mrf.mxu0
        %v8078 = vadd.f32 %v7773, %v8077
        %v8079 = vpop.f32.mrf.mxu0
        %8080 = vmatprep.mubr.f32.mxu0 0.0
        %8081 = vmatmul.mubr.f32.gmra.mxu0 %v6834
        %v8082 = vpop.f32.mrf.mxu0
        %v8083 = vadd.f32 %v7778, %v8082
        %v8084 = vpop.f32.mrf.mxu0
        %8085 = vmatprep.mubr.f32.mxu0 0.0
        %8086 = vmatmul.mubr.f32.gmra.mxu0 %v6836
        %v8087 = vpop.f32.mrf.mxu0
        %v8088 = vadd.f32 %v7783, %v8087
        %v8089 = vpop.f32.mrf.mxu0
        %8090 = vmatprep.mubr.f32.mxu0 0.0
        %8091 = vmatmul.mubr.f32.gmra.mxu0 %v6838
        %v8092 = vpop.f32.mrf.mxu0
        %v8093 = vadd.f32 %v7788, %v8092
        %v8094 = vpop.f32.mrf.mxu0
        %8095 = vmatprep.mubr.f32.mxu0 0.0
        %8096 = vmatmul.mubr.f32.gmra.mxu0 %v6840
        %v8097 = vpop.f32.mrf.mxu0
        %v8098 = vadd.f32 %v7793, %v8097
        %v8099 = vpop.f32.mrf.mxu0
        %8100 = vmatprep.mubr.f32.mxu0 0.0
        %8101 = vmatmul.mubr.f32.gmra.mxu0 %v6842
        %v8102 = vpop.f32.mrf.mxu0
        %v8103 = vadd.f32 %v7798, %v8102
        %v8104 = vpop.f32.mrf.mxu0
        %8105 = vmatprep.mubr.f32.mxu0 0.0
        %8106 = vmatmul.mubr.f32.gmra.mxu0 %v6844
        %v8107 = vpop.f32.mrf.mxu0
        %v8108 = vadd.f32 %v7803, %v8107
        %v8109 = vpop.f32.mrf.mxu0
        %8110 = vmatprep.mubr.f32.mxu0 0.0
        %8111 = vmatmul.mubr.f32.gmra.mxu0 %v6846
        %v8112 = vpop.f32.mrf.mxu0
        %v8113 = vadd.f32 %v7808, %v8112
        %v8114 = vpop.f32.mrf.mxu0
        %8115 = vmatprep.mubr.f32.mxu0 0.0
        %8116 = vmatmul.mubr.f32.gmra.mxu0 %v6848
        %v8117 = vpop.f32.mrf.mxu0
        %v8118 = vadd.f32 %v7813, %v8117
        %v8119 = vpop.f32.mrf.mxu0
        %8120 = vmatprep.mubr.f32.mxu0 0.0
        %8121 = vmatmul.mubr.f32.gmra.mxu0 %v6850
        %v8122 = vpop.f32.mrf.mxu0
        %v8123 = vadd.f32 %v7818, %v8122
        %v8124 = vpop.f32.mrf.mxu0
        %8125 = vmatprep.mubr.f32.mxu0 0.0
        %8126 = vmatmul.mubr.f32.gmra.mxu0 %v6852
        %v8127 = vpop.f32.mrf.mxu0
        %v8128 = vadd.f32 %v7823, %v8127
        %v8129 = vpop.f32.mrf.mxu0
        %8130 = vmatprep.mubr.f32.mxu0 0.0
        %8131 = vmatmul.mubr.f32.gmra.mxu0 %v6854
        %v8132 = vpop.f32.mrf.mxu0
        %v8133 = vadd.f32 %v7828, %v8132
        %v8134 = vpop.f32.mrf.mxu0
        %8135 = vmatprep.mubr.f32.mxu0 0.0
        %8136 = vmatmul.mubr.f32.gmra.mxu0 %v6856
        %v8137 = vpop.f32.mrf.mxu0
        %v8138 = vadd.f32 %v7833, %v8137
        %v8139 = vpop.f32.mrf.mxu0
        %8140 = vmatprep.mubr.f32.mxu0 0.0
        %8141 = vmatmul.mubr.f32.gmra.mxu0 %v6858
        %v8142 = vpop.f32.mrf.mxu0
        %v8143 = vadd.f32 %v7838, %v8142
        %v8144 = vpop.f32.mrf.mxu0
        %8145 = vmatprep.mubr.f32.mxu0 0.0
        %8146 = vmatmul.mubr.f32.gmra.mxu0 %v6860
        %v8147 = vpop.f32.mrf.mxu0
        %v8148 = vadd.f32 %v7843, %v8147
        %v8149 = vpop.f32.mrf.mxu0
        %8150 = vmatprep.mubr.f32.mxu0 0.0
        %8151 = vmatmul.mubr.f32.gmra.mxu0 %v6862
        %v8152 = vpop.f32.mrf.mxu0
        %v8153 = vadd.f32 %v7848, %v8152
        %v8154 = vpop.f32.mrf.mxu0
        %8155 = vmatprep.mubr.f32.mxu0 0.0
        %8156 = vmatmul.mubr.f32.gmra.mxu0 %v6864
        %v8157 = vpop.f32.mrf.mxu0
        %v8158 = vadd.f32 %v7853, %v8157
        %v8159 = vpop.f32.mrf.mxu0
        %8160 = vmatprep.mubr.f32.mxu0 0.0
        %8161 = vmatmul.mubr.f32.gmra.mxu0 %v6866
        %v8162 = vpop.f32.mrf.mxu0
        %v8163 = vadd.f32 %v7858, %v8162
        %v8164 = vpop.f32.mrf.mxu0
        %8165 = vmatprep.mubr.f32.mxu0 0.0
        %8166 = vmatmul.mubr.f32.gmra.mxu0 %v6868
        %v8167 = vpop.f32.mrf.mxu0
        %v8168 = vadd.f32 %v7863, %v8167
        %v8169 = vpop.f32.mrf.mxu0
        %8170 = vmatprep.mubr.f32.mxu0 0.0
        %8171 = vmatmul.mubr.f32.gmra.mxu0 %v6870
        %v8172 = vpop.f32.mrf.mxu0
        %v8173 = vadd.f32 %v7868, %v8172
        %v8174 = vpop.f32.mrf.mxu0
        %8175 = vmatprep.mubr.f32.mxu0 0.0
        %8176 = vmatmul.mubr.f32.gmra.mxu0 %v6872
        %v8177 = vpop.f32.mrf.mxu0
        %v8178 = vadd.f32 %v7873, %v8177
        %v8179 = vpop.f32.mrf.mxu0
        %8180 = vmatprep.mubr.f32.mxu0 0.0
        %8181 = vmatmul.mubr.f32.gmra.mxu0 %v6874
        %v8182 = vpop.f32.mrf.mxu0
        %v8183 = vadd.f32 %v7878, %v8182
        %v8184 = vpop.f32.mrf.mxu0
        %8185 = vmatprep.mubr.f32.mxu0 0.0
        %8186 = vmatmul.mubr.f32.gmra.mxu0 %v6876
        %v8187 = vpop.f32.mrf.mxu0
        %v8188 = vadd.f32 %v7883, %v8187
        %v8189 = vpop.f32.mrf.mxu0
        %8190 = vmatprep.mubr.f32.mxu0 0.0
        %8191 = vmatmul.mubr.f32.gmra.mxu0 %v6878
        %v8192 = vpop.f32.mrf.mxu0
        %v8193 = vadd.f32 %v7888, %v8192
        %v8194 = vpop.f32.mrf.mxu0
        %8195 = vmatprep.mubr.f32.mxu0 0.0
        %8196 = vmatmul.mubr.f32.gmra.mxu0 %v6880
        %v8197 = vpop.f32.mrf.mxu0
        %v8198 = vadd.f32 %v7893, %v8197
        %v8199 = vpop.f32.mrf.mxu0
        %8200 = vmatprep.mubr.f32.mxu0 0.0
        %8201 = vmatmul.mubr.f32.gmra.mxu0 %v6882
        %v8202 = vpop.f32.mrf.mxu0
        %v8203 = vadd.f32 %v7898, %v8202
        %v8204 = vpop.f32.mrf.mxu0
        %8205 = vmatprep.mubr.f32.mxu0 0.0
        %8206 = vmatmul.mubr.f32.gmra.mxu0 %v6884
        %v8207 = vpop.f32.mrf.mxu0
        %v8208 = vadd.f32 %v7903, %v8207
        %v8209 = vpop.f32.mrf.mxu0
        %8210 = vmatprep.mubr.f32.mxu0 0.0
        %8211 = vmatmul.mubr.f32.gmra.mxu0 %v6886
        %v8212 = vpop.f32.mrf.mxu0
        %v8213 = vadd.f32 %v7908, %v8212
        %v8214 = vpop.f32.mrf.mxu0
        %8215 = vmatprep.mubr.f32.mxu0 0.0
        %8216 = vmatmul.mubr.f32.gmra.mxu0 %v6888
        %v8217 = vpop.f32.mrf.mxu0
        %v8218 = vadd.f32 %v7913, %v8217
        %v8219 = vpop.f32.mrf.mxu0
        %8220 = vmatprep.mubr.f32.mxu0 0.0
        %8221 = vmatmul.mubr.f32.gmra.mxu0 %v6890
        %v8222 = vpop.f32.mrf.mxu0
        %v8223 = vadd.f32 %v7918, %v8222
        %v8224 = vpop.f32.mrf.mxu0
        %8225 = vmatprep.mubr.f32.mxu0 0.0
        %8226 = vmatmul.mubr.f32.gmra.mxu0 %v6892
        %v8227 = vpop.f32.mrf.mxu0
        %v8228 = vadd.f32 %v7923, %v8227
        %v8229 = vpop.f32.mrf.mxu0
        %8230 = vmatprep.mubr.f32.mxu0 0.0
        %8231 = vmatmul.mubr.f32.gmra.mxu0 %v6894
        %v8232 = vpop.f32.mrf.mxu0
        %v8233 = vadd.f32 %v7928, %v8232
        %v8234 = vpop.f32.mrf.mxu0
        %8235 = vmatprep.mubr.f32.mxu0 0.0
        %8236 = vmatmul.mubr.f32.gmra.mxu0 %v6896
        %v8237 = vpop.f32.mrf.mxu0
        %v8238 = vadd.f32 %v7933, %v8237
        %v8239 = vpop.f32.mrf.mxu0
        %8240 = vmatprep.mubr.f32.mxu0 0.0
        %8241 = vmatmul.mubr.f32.gmra.mxu0 %v6898
        %v8242 = vpop.f32.mrf.mxu0
        %v8243 = vadd.f32 %v7938, %v8242
        %v8244 = vpop.f32.mrf.mxu0
        %8245 = vmatprep.mubr.f32.mxu0 0.0
        %8246 = vmatmul.mubr.f32.gmra.mxu0 %v6900
        %v8247 = vpop.f32.mrf.mxu0
        %v8248 = vadd.f32 %v7943, %v8247
        %v8249 = vpop.f32.mrf.mxu0
        %8250 = vmatprep.mubr.f32.mxu0 0.0
        %8251 = vmatmul.mubr.f32.gmra.mxu0 %v6902
        %v8252 = vpop.f32.mrf.mxu0
        %v8253 = vadd.f32 %v7948, %v8252
        %v8254 = vpop.f32.mrf.mxu0
        %8255 = vmatprep.mubr.f32.mxu0 0.0
        %8256 = vmatmul.mubr.f32.gmra.mxu0 %v6904
        %v8257 = vpop.f32.mrf.mxu0
        %v8258 = vadd.f32 %v7953, %v8257
        %v8259 = vpop.f32.mrf.mxu0
        %8260 = vmatprep.mubr.f32.mxu0 0.0
        %8261 = vmatmul.mubr.f32.gmra.mxu0 %v6906
        %v8262 = vpop.f32.mrf.mxu0
        %v8263 = vadd.f32 %v7958, %v8262
        %v8264 = vpop.f32.mrf.mxu0
        %8265 = vmatprep.mubr.f32.mxu0 0.0
        %8266 = vmatmul.mubr.f32.gmra.mxu0 %v6908
        %v8267 = vpop.f32.mrf.mxu0
        %v8268 = vadd.f32 %v7963, %v8267
        %v8269 = vpop.f32.mrf.mxu0
        %8270 = vmatprep.mubr.f32.mxu0 0.0
        %8271 = vmatmul.mubr.f32.gmra.mxu0 %v6910
        %v8272 = vpop.f32.mrf.mxu0
        %v8273 = vadd.f32 %v7968, %v8272
        %v8274 = vpop.f32.mrf.mxu0
        %8275 = vmatprep.mubr.f32.mxu0 0.0
        %8276 = vmatmul.mubr.f32.gmra.mxu0 %v6912
        %v8277 = vpop.f32.mrf.mxu0
        %v8278 = vadd.f32 %v7973, %v8277
        %v8279 = vpop.f32.mrf.mxu0
        %8280 = vmatprep.mubr.f32.mxu0 0.0
        %8281 = vmatmul.mubr.f32.gmra.mxu0 %v6914
        %v8282 = vpop.f32.mrf.mxu0
        %v8283 = vadd.f32 %v7978, %v8282
        %v8284 = vpop.f32.mrf.mxu0
        %8285 = vdwg.mxu0
        %s8286 = scalar_lea.vmem [#allocation8], 768
        %v8287 = vld [vmem:[%s8286] sm:$0xff]
        %v8288 = vld [vmem:[%s8286 + $0x8] sm:$0xff]
        %v8289 = vld [vmem:[%s8286 + $0x10] sm:$0xff]
        %v8290 = vld [vmem:[%s8286 + $0x18] sm:$0xff]
        %v8291 = vld [vmem:[%s8286 + $0x20] sm:$0xff]
        %v8292 = vld [vmem:[%s8286 + $0x28] sm:$0xff]
        %v8293 = vld [vmem:[%s8286 + $0x30] sm:$0xff]
        %v8294 = vld [vmem:[%s8286 + $0x38] sm:$0xff]
        %v8295 = vld [vmem:[%s8286 + $0x40] sm:$0xff]
        %v8296 = vld [vmem:[%s8286 + $0x48] sm:$0xff]
        %v8297 = vld [vmem:[%s8286 + $0x50] sm:$0xff]
        %v8298 = vld [vmem:[%s8286 + $0x58] sm:$0xff]
        %v8299 = vld [vmem:[%s8286 + $0x60] sm:$0xff]
        %v8300 = vld [vmem:[%s8286 + $0x68] sm:$0xff]
        %v8301 = vld [vmem:[%s8286 + $0x70] sm:$0xff]
        %v8302 = vld [vmem:[%s8286 + $0x78] sm:$0xff]
        %v8303 = vld [vmem:[%s8286 + $0x80] sm:$0xff]
        %v8304 = vld [vmem:[%s8286 + $0x88] sm:$0xff]
        %v8305 = vld [vmem:[%s8286 + $0x90] sm:$0xff]
        %v8306 = vld [vmem:[%s8286 + $0x98] sm:$0xff]
        %v8307 = vld [vmem:[%s8286 + $0xa0] sm:$0xff]
        %v8308 = vld [vmem:[%s8286 + $0xa8] sm:$0xff]
        %v8309 = vld [vmem:[%s8286 + $0xb0] sm:$0xff]
        %v8310 = vld [vmem:[%s8286 + $0xb8] sm:$0xff]
        %v8311 = vld [vmem:[%s8286 + $0xc0] sm:$0xff]
        %v8312 = vld [vmem:[%s8286 + $0xc8] sm:$0xff]
        %v8313 = vld [vmem:[%s8286 + $0xd0] sm:$0xff]
        %v8314 = vld [vmem:[%s8286 + $0xd8] sm:$0xff]
        %v8315 = vld [vmem:[%s8286 + $0xe0] sm:$0xff]
        %v8316 = vld [vmem:[%s8286 + $0xe8] sm:$0xff]
        %v8317 = vld [vmem:[%s8286 + $0xf0] sm:$0xff]
        %v8318 = vld [vmem:[%s8286 + $0xf8] sm:$0xff]
        %v8319 = vld [vmem:[%s8286 + $0x100] sm:$0xff]
        %v8320 = vld [vmem:[%s8286 + $0x108] sm:$0xff]
        %v8321 = vld [vmem:[%s8286 + $0x110] sm:$0xff]
        %v8322 = vld [vmem:[%s8286 + $0x118] sm:$0xff]
        %v8323 = vld [vmem:[%s8286 + $0x120] sm:$0xff]
        %v8324 = vld [vmem:[%s8286 + $0x128] sm:$0xff]
        %v8325 = vld [vmem:[%s8286 + $0x130] sm:$0xff]
        %v8326 = vld [vmem:[%s8286 + $0x138] sm:$0xff]
        %v8327 = vld [vmem:[%s8286 + $0x140] sm:$0xff]
        %v8328 = vld [vmem:[%s8286 + $0x148] sm:$0xff]
        %v8329 = vld [vmem:[%s8286 + $0x150] sm:$0xff]
        %v8330 = vld [vmem:[%s8286 + $0x158] sm:$0xff]
        %v8331 = vld [vmem:[%s8286 + $0x160] sm:$0xff]
        %v8332 = vld [vmem:[%s8286 + $0x168] sm:$0xff]
        %v8333 = vld [vmem:[%s8286 + $0x170] sm:$0xff]
        %v8334 = vld [vmem:[%s8286 + $0x178] sm:$0xff]
        %8335 = vmatprep.subr.mxu0 0.0
        %8336 = vmatpush1.msra.mxu0 %v8302
        %8337 = vmatprep.subr.mxu0 0.0
        %8338 = vmatpush1.msra.mxu0 %v8301
        %8339 = vmatprep.subr.mxu0 0.0
        %8340 = vmatpush1.msra.mxu0 %v8300
        %8341 = vmatprep.subr.mxu0 0.0
        %8342 = vmatpush1.msra.mxu0 %v8299
        %8343 = vmatprep.subr.mxu0 0.0
        %8344 = vmatpush1.msra.mxu0 %v8298
        %8345 = vmatprep.subr.mxu0 0.0
        %8346 = vmatpush1.msra.mxu0 %v8297
        %8347 = vmatprep.subr.mxu0 0.0
        %8348 = vmatpush1.msra.mxu0 %v8296
        %8349 = vmatprep.subr.mxu0 0.0
        %8350 = vmatpush1.msra.mxu0 %v8295
        %8351 = vmatprep.subr.mxu0 0.0
        %8352 = vmatpush1.msra.mxu0 %v8294
        %8353 = vmatprep.subr.mxu0 0.0
        %8354 = vmatpush1.msra.mxu0 %v8293
        %8355 = vmatprep.subr.mxu0 0.0
        %8356 = vmatpush1.msra.mxu0 %v8292
        %8357 = vmatprep.subr.mxu0 0.0
        %8358 = vmatpush1.msra.mxu0 %v8291
        %8359 = vmatprep.subr.mxu0 0.0
        %8360 = vmatpush1.msra.mxu0 %v8290
        %8361 = vmatprep.subr.mxu0 0.0
        %8362 = vmatpush1.msra.mxu0 %v8289
        %8363 = vmatprep.subr.mxu0 0.0
        %8364 = vmatpush1.msra.mxu0 %v8288
        %8365 = vmatprep.subr.mxu0 0.0
        %8366 = vmatpush1.msra.mxu0 %v8287
        %8367 = vmatprep.subr.mxu0 0.0
        %8368 = vmatpush2.msra.mxu0 %v8318
        %8369 = vmatprep.subr.mxu0 0.0
        %8370 = vmatpush2.msra.mxu0 %v8317
        %8371 = vmatprep.subr.mxu0 0.0
        %8372 = vmatpush2.msra.mxu0 %v8316
        %8373 = vmatprep.subr.mxu0 0.0
        %8374 = vmatpush2.msra.mxu0 %v8315
        %8375 = vmatprep.subr.mxu0 0.0
        %8376 = vmatpush2.msra.mxu0 %v8314
        %8377 = vmatprep.subr.mxu0 0.0
        %8378 = vmatpush2.msra.mxu0 %v8313
        %8379 = vmatprep.subr.mxu0 0.0
        %8380 = vmatpush2.msra.mxu0 %v8312
        %8381 = vmatprep.subr.mxu0 0.0
        %8382 = vmatpush2.msra.mxu0 %v8311
        %8383 = vmatprep.subr.mxu0 0.0
        %8384 = vmatpush2.msra.mxu0 %v8310
        %8385 = vmatprep.subr.mxu0 0.0
        %8386 = vmatpush2.msra.mxu0 %v8309
        %8387 = vmatprep.subr.mxu0 0.0
        %8388 = vmatpush2.msra.mxu0 %v8308
        %8389 = vmatprep.subr.mxu0 0.0
        %8390 = vmatpush2.msra.mxu0 %v8307
        %8391 = vmatprep.subr.mxu0 0.0
        %8392 = vmatpush2.msra.mxu0 %v8306
        %8393 = vmatprep.subr.mxu0 0.0
        %8394 = vmatpush2.msra.mxu0 %v8305
        %8395 = vmatprep.subr.mxu0 0.0
        %8396 = vmatpush2.msra.mxu0 %v8304
        %8397 = vmatprep.subr.mxu0 0.0
        %8398 = vmatpush2.msra.mxu0 %v8303
        %8399 = vmatprep.mubr.f32.mxu0 %v6584
        %8400 = vmatmul.mubr.f32.gmra.mxu0 %v6684
        %v8401 = vpop.f32.mrf.mxu0
        %v8402 = vadd.f32 0.0, %v8401
        %v8403 = vpop.f32.mrf.mxu0
        %8404 = vmatprep.mubr.f32.mxu0 %v6585
        %8405 = vmatmul.mubr.f32.gmra.mxu0 %v6686
        %v8406 = vpop.f32.mrf.mxu0
        %v8407 = vadd.f32 0.0, %v8406
        %v8408 = vpop.f32.mrf.mxu0
        %8409 = vmatprep.mubr.f32.mxu0 %v6586
        %8410 = vmatmul.mubr.f32.gmra.mxu0 %v6688
        %v8411 = vpop.f32.mrf.mxu0
        %v8412 = vadd.f32 0.0, %v8411
        %v8413 = vpop.f32.mrf.mxu0
        %8414 = vmatprep.mubr.f32.mxu0 %v6587
        %8415 = vmatmul.mubr.f32.gmra.mxu0 %v6690
        %v8416 = vpop.f32.mrf.mxu0
        %v8417 = vadd.f32 0.0, %v8416
        %v8418 = vpop.f32.mrf.mxu0
        %8419 = vmatprep.mubr.f32.mxu0 %v6588
        %8420 = vmatmul.mubr.f32.gmra.mxu0 %v6692
        %v8421 = vpop.f32.mrf.mxu0
        %v8422 = vadd.f32 0.0, %v8421
        %v8423 = vpop.f32.mrf.mxu0
        %8424 = vmatprep.mubr.f32.mxu0 %v6589
        %8425 = vmatmul.mubr.f32.gmra.mxu0 %v6694
        %v8426 = vpop.f32.mrf.mxu0
        %v8427 = vadd.f32 0.0, %v8426
        %v8428 = vpop.f32.mrf.mxu0
        %8429 = vmatprep.mubr.f32.mxu0 %v6590
        %8430 = vmatmul.mubr.f32.gmra.mxu0 %v6696
        %v8431 = vpop.f32.mrf.mxu0
        %v8432 = vadd.f32 0.0, %v8431
        %v8433 = vpop.f32.mrf.mxu0
        %8434 = vmatprep.mubr.f32.mxu0 %v6591
        %8435 = vmatmul.mubr.f32.gmra.mxu0 %v6698
        %v8436 = vpop.f32.mrf.mxu0
        %v8437 = vadd.f32 0.0, %v8436
        %v8438 = vpop.f32.mrf.mxu0
        %8439 = vmatprep.mubr.f32.mxu0 %v6592
        %8440 = vmatmul.mubr.f32.gmra.mxu0 %v6700
        %v8441 = vpop.f32.mrf.mxu0
        %v8442 = vadd.f32 0.0, %v8441
        %v8443 = vpop.f32.mrf.mxu0
        %8444 = vmatprep.mubr.f32.mxu0 %v6593
        %8445 = vmatmul.mubr.f32.gmra.mxu0 %v6702
        %v8446 = vpop.f32.mrf.mxu0
        %v8447 = vadd.f32 0.0, %v8446
        %v8448 = vpop.f32.mrf.mxu0
        %8449 = vmatprep.mubr.f32.mxu0 %v6594
        %8450 = vmatmul.mubr.f32.gmra.mxu0 %v6704
        %v8451 = vpop.f32.mrf.mxu0
        %v8452 = vadd.f32 0.0, %v8451
        %v8453 = vpop.f32.mrf.mxu0
        %8454 = vmatprep.mubr.f32.mxu0 %v6595
        %8455 = vmatmul.mubr.f32.gmra.mxu0 %v6706
        %v8456 = vpop.f32.mrf.mxu0
        %v8457 = vadd.f32 0.0, %v8456
        %v8458 = vpop.f32.mrf.mxu0
        %8459 = vmatprep.mubr.f32.mxu0 %v6596
        %8460 = vmatmul.mubr.f32.gmra.mxu0 %v6708
        %v8461 = vpop.f32.mrf.mxu0
        %v8462 = vadd.f32 0.0, %v8461
        %v8463 = vpop.f32.mrf.mxu0
        %8464 = vmatprep.mubr.f32.mxu0 %v6597
        %8465 = vmatmul.mubr.f32.gmra.mxu0 %v6710
        %v8466 = vpop.f32.mrf.mxu0
        %v8467 = vadd.f32 0.0, %v8466
        %v8468 = vpop.f32.mrf.mxu0
        %8469 = vmatprep.mubr.f32.mxu0 %v6598
        %8470 = vmatmul.mubr.f32.gmra.mxu0 %v6712
        %v8471 = vpop.f32.mrf.mxu0
        %v8472 = vadd.f32 0.0, %v8471
        %v8473 = vpop.f32.mrf.mxu0
        %8474 = vmatprep.mubr.f32.mxu0 %v6599
        %8475 = vmatmul.mubr.f32.gmra.mxu0 %v6714
        %v8476 = vpop.f32.mrf.mxu0
        %v8477 = vadd.f32 0.0, %v8476
        %v8478 = vpop.f32.mrf.mxu0
        %8479 = vmatprep.mubr.f32.mxu0 %v6600
        %8480 = vmatmul.mubr.f32.gmra.mxu0 %v6716
        %v8481 = vpop.f32.mrf.mxu0
        %v8482 = vadd.f32 0.0, %v8481
        %v8483 = vpop.f32.mrf.mxu0
        %8484 = vmatprep.mubr.f32.mxu0 %v6601
        %8485 = vmatmul.mubr.f32.gmra.mxu0 %v6718
        %v8486 = vpop.f32.mrf.mxu0
        %v8487 = vadd.f32 0.0, %v8486
        %v8488 = vpop.f32.mrf.mxu0
        %8489 = vmatprep.mubr.f32.mxu0 %v6602
        %8490 = vmatmul.mubr.f32.gmra.mxu0 %v6720
        %v8491 = vpop.f32.mrf.mxu0
        %v8492 = vadd.f32 0.0, %v8491
        %v8493 = vpop.f32.mrf.mxu0
        %8494 = vmatprep.mubr.f32.mxu0 %v6603
        %8495 = vmatmul.mubr.f32.gmra.mxu0 %v6722
        %v8496 = vpop.f32.mrf.mxu0
        %v8497 = vadd.f32 0.0, %v8496
        %v8498 = vpop.f32.mrf.mxu0
        %8499 = vmatprep.mubr.f32.mxu0 %v6604
        %8500 = vmatmul.mubr.f32.gmra.mxu0 %v6724
        %v8501 = vpop.f32.mrf.mxu0
        %v8502 = vadd.f32 0.0, %v8501
        %v8503 = vpop.f32.mrf.mxu0
        %8504 = vmatprep.mubr.f32.mxu0 %v6605
        %8505 = vmatmul.mubr.f32.gmra.mxu0 %v6726
        %v8506 = vpop.f32.mrf.mxu0
        %v8507 = vadd.f32 0.0, %v8506
        %v8508 = vpop.f32.mrf.mxu0
        %8509 = vmatprep.mubr.f32.mxu0 %v6606
        %8510 = vmatmul.mubr.f32.gmra.mxu0 %v6728
        %v8511 = vpop.f32.mrf.mxu0
        %v8512 = vadd.f32 0.0, %v8511
        %v8513 = vpop.f32.mrf.mxu0
        %8514 = vmatprep.mubr.f32.mxu0 %v6607
        %8515 = vmatmul.mubr.f32.gmra.mxu0 %v6730
        %v8516 = vpop.f32.mrf.mxu0
        %v8517 = vadd.f32 0.0, %v8516
        %v8518 = vpop.f32.mrf.mxu0
        %8519 = vmatprep.mubr.f32.mxu0 %v6608
        %8520 = vmatmul.mubr.f32.gmra.mxu0 %v6732
        %v8521 = vpop.f32.mrf.mxu0
        %v8522 = vadd.f32 0.0, %v8521
        %v8523 = vpop.f32.mrf.mxu0
        %8524 = vmatprep.mubr.f32.mxu0 %v6609
        %8525 = vmatmul.mubr.f32.gmra.mxu0 %v6734
        %v8526 = vpop.f32.mrf.mxu0
        %v8527 = vadd.f32 0.0, %v8526
        %v8528 = vpop.f32.mrf.mxu0
        %8529 = vmatprep.mubr.f32.mxu0 %v6610
        %8530 = vmatmul.mubr.f32.gmra.mxu0 %v6736
        %v8531 = vpop.f32.mrf.mxu0
        %v8532 = vadd.f32 0.0, %v8531
        %v8533 = vpop.f32.mrf.mxu0
        %8534 = vmatprep.mubr.f32.mxu0 %v6611
        %8535 = vmatmul.mubr.f32.gmra.mxu0 %v6738
        %v8536 = vpop.f32.mrf.mxu0
        %v8537 = vadd.f32 0.0, %v8536
        %v8538 = vpop.f32.mrf.mxu0
        %8539 = vmatprep.mubr.f32.mxu0 %v6612
        %8540 = vmatmul.mubr.f32.gmra.mxu0 %v6740
        %v8541 = vpop.f32.mrf.mxu0
        %v8542 = vadd.f32 0.0, %v8541
        %v8543 = vpop.f32.mrf.mxu0
        %8544 = vmatprep.mubr.f32.mxu0 %v6613
        %8545 = vmatmul.mubr.f32.gmra.mxu0 %v6742
        %v8546 = vpop.f32.mrf.mxu0
        %v8547 = vadd.f32 0.0, %v8546
        %v8548 = vpop.f32.mrf.mxu0
        %8549 = vmatprep.mubr.f32.mxu0 %v6614
        %8550 = vmatmul.mubr.f32.gmra.mxu0 %v6744
        %v8551 = vpop.f32.mrf.mxu0
        %v8552 = vadd.f32 0.0, %v8551
        %v8553 = vpop.f32.mrf.mxu0
        %8554 = vmatprep.mubr.f32.mxu0 %v6615
        %8555 = vmatmul.mubr.f32.gmra.mxu0 %v6746
        %v8556 = vpop.f32.mrf.mxu0
        %v8557 = vadd.f32 0.0, %v8556
        %v8558 = vpop.f32.mrf.mxu0
        %8559 = vmatprep.mubr.f32.mxu0 %v6616
        %8560 = vmatmul.mubr.f32.gmra.mxu0 %v6748
        %v8561 = vpop.f32.mrf.mxu0
        %v8562 = vadd.f32 0.0, %v8561
        %v8563 = vpop.f32.mrf.mxu0
        %8564 = vmatprep.mubr.f32.mxu0 %v6617
        %8565 = vmatmul.mubr.f32.gmra.mxu0 %v6750
        %v8566 = vpop.f32.mrf.mxu0
        %v8567 = vadd.f32 0.0, %v8566
        %v8568 = vpop.f32.mrf.mxu0
        %8569 = vmatprep.mubr.f32.mxu0 %v6618
        %8570 = vmatmul.mubr.f32.gmra.mxu0 %v6752
        %v8571 = vpop.f32.mrf.mxu0
        %v8572 = vadd.f32 0.0, %v8571
        %v8573 = vpop.f32.mrf.mxu0
        %8574 = vmatprep.mubr.f32.mxu0 %v6619
        %8575 = vmatmul.mubr.f32.gmra.mxu0 %v6754
        %v8576 = vpop.f32.mrf.mxu0
        %v8577 = vadd.f32 0.0, %v8576
        %v8578 = vpop.f32.mrf.mxu0
        %8579 = vmatprep.mubr.f32.mxu0 %v6620
        %8580 = vmatmul.mubr.f32.gmra.mxu0 %v6756
        %v8581 = vpop.f32.mrf.mxu0
        %v8582 = vadd.f32 0.0, %v8581
        %v8583 = vpop.f32.mrf.mxu0
        %8584 = vmatprep.mubr.f32.mxu0 %v6621
        %8585 = vmatmul.mubr.f32.gmra.mxu0 %v6758
        %v8586 = vpop.f32.mrf.mxu0
        %v8587 = vadd.f32 0.0, %v8586
        %v8588 = vpop.f32.mrf.mxu0
        %8589 = vmatprep.mubr.f32.mxu0 %v6622
        %8590 = vmatmul.mubr.f32.gmra.mxu0 %v6760
        %v8591 = vpop.f32.mrf.mxu0
        %v8592 = vadd.f32 0.0, %v8591
        %v8593 = vpop.f32.mrf.mxu0
        %8594 = vmatprep.mubr.f32.mxu0 %v6623
        %8595 = vmatmul.mubr.f32.gmra.mxu0 %v6762
        %v8596 = vpop.f32.mrf.mxu0
        %v8597 = vadd.f32 0.0, %v8596
        %v8598 = vpop.f32.mrf.mxu0
        %8599 = vmatprep.mubr.f32.mxu0 %v6624
        %8600 = vmatmul.mubr.f32.gmra.mxu0 %v6764
        %v8601 = vpop.f32.mrf.mxu0
        %v8602 = vadd.f32 0.0, %v8601
        %v8603 = vpop.f32.mrf.mxu0
        %8604 = vmatprep.mubr.f32.mxu0 %v6625
        %8605 = vmatmul.mubr.f32.gmra.mxu0 %v6766
        %v8606 = vpop.f32.mrf.mxu0
        %v8607 = vadd.f32 0.0, %v8606
        %v8608 = vpop.f32.mrf.mxu0
        %8609 = vmatprep.mubr.f32.mxu0 %v6626
        %8610 = vmatmul.mubr.f32.gmra.mxu0 %v6768
        %v8611 = vpop.f32.mrf.mxu0
        %v8612 = vadd.f32 0.0, %v8611
        %v8613 = vpop.f32.mrf.mxu0
        %8614 = vmatprep.mubr.f32.mxu0 %v6627
        %8615 = vmatmul.mubr.f32.gmra.mxu0 %v6770
        %v8616 = vpop.f32.mrf.mxu0
        %v8617 = vadd.f32 0.0, %v8616
        %v8618 = vpop.f32.mrf.mxu0
        %8619 = vmatprep.mubr.f32.mxu0 %v6628
        %8620 = vmatmul.mubr.f32.gmra.mxu0 %v6772
        %v8621 = vpop.f32.mrf.mxu0
        %v8622 = vadd.f32 0.0, %v8621
        %v8623 = vpop.f32.mrf.mxu0
        %8624 = vmatprep.mubr.f32.mxu0 0.0
        %8625 = vmatmul.mubr.f32.gmra.mxu0 %v6773
        %v8626 = vpop.f32.mrf.mxu0
        %v8627 = vadd.f32 0.0, %v8626
        %v8628 = vpop.f32.mrf.mxu0
        %8629 = vmatprep.mubr.f32.mxu0 0.0
        %8630 = vmatmul.mubr.f32.gmra.mxu0 %v4057
        %v8631 = vpop.f32.mrf.mxu0
        %v8632 = vadd.f32 0.0, %v8631
        %v8633 = vpop.f32.mrf.mxu0
        %8634 = vmatprep.mubr.f32.mxu0 0.0
        %8635 = vmatmul.mubr.f32.gmra.mxu0 %v4057
        %v8636 = vpop.f32.mrf.mxu0
        %v8637 = vadd.f32 0.0, %v8636
        %v8638 = vpop.f32.mrf.mxu0
        %8639 = vdwg.mxu0
        %8640 = vmatprep.subr.mxu0 0.0
        %8641 = vmatpush1.msra.mxu0 %v8334
        %8642 = vmatprep.subr.mxu0 0.0
        %8643 = vmatpush1.msra.mxu0 %v8333
        %8644 = vmatprep.subr.mxu0 0.0
        %8645 = vmatpush1.msra.mxu0 %v8332
        %8646 = vmatprep.subr.mxu0 0.0
        %8647 = vmatpush1.msra.mxu0 %v8331
        %8648 = vmatprep.subr.mxu0 0.0
        %8649 = vmatpush1.msra.mxu0 %v8330
        %8650 = vmatprep.subr.mxu0 0.0
        %8651 = vmatpush1.msra.mxu0 %v8329
        %8652 = vmatprep.subr.mxu0 0.0
        %8653 = vmatpush1.msra.mxu0 %v8328
        %8654 = vmatprep.subr.mxu0 0.0
        %8655 = vmatpush1.msra.mxu0 %v8327
        %8656 = vmatprep.subr.mxu0 0.0
        %8657 = vmatpush1.msra.mxu0 %v8326
        %8658 = vmatprep.subr.mxu0 0.0
        %8659 = vmatpush1.msra.mxu0 %v8325
        %8660 = vmatprep.subr.mxu0 0.0
        %8661 = vmatpush1.msra.mxu0 %v8324
        %8662 = vmatprep.subr.mxu0 0.0
        %8663 = vmatpush1.msra.mxu0 %v8323
        %8664 = vmatprep.subr.mxu0 0.0
        %8665 = vmatpush1.msra.mxu0 %v8322
        %8666 = vmatprep.subr.mxu0 0.0
        %8667 = vmatpush1.msra.mxu0 %v8321
        %8668 = vmatprep.subr.mxu0 0.0
        %8669 = vmatpush1.msra.mxu0 %v8320
        %8670 = vmatprep.subr.mxu0 0.0
        %8671 = vmatpush1.msra.mxu0 %v8319
        %8672 = vmatprep.subr.mxu0 0.0
        %8673 = vmatpush2.msra.mxu0 0.0
        %8674 = vmatprep.subr.mxu0 0.0
        %8675 = vmatpush2.msra.mxu0 0.0
        %8676 = vmatprep.subr.mxu0 0.0
        %8677 = vmatpush2.msra.mxu0 0.0
        %8678 = vmatprep.subr.mxu0 0.0
        %8679 = vmatpush2.msra.mxu0 0.0
        %8680 = vmatprep.subr.mxu0 0.0
        %8681 = vmatpush2.msra.mxu0 0.0
        %8682 = vmatprep.subr.mxu0 0.0
        %8683 = vmatpush2.msra.mxu0 0.0
        %8684 = vmatprep.subr.mxu0 0.0
        %8685 = vmatpush2.msra.mxu0 0.0
        %8686 = vmatprep.subr.mxu0 0.0
        %8687 = vmatpush2.msra.mxu0 0.0
        %8688 = vmatprep.subr.mxu0 0.0
        %8689 = vmatpush2.msra.mxu0 0.0
        %8690 = vmatprep.subr.mxu0 0.0
        %8691 = vmatpush2.msra.mxu0 0.0
        %8692 = vmatprep.subr.mxu0 0.0
        %8693 = vmatpush2.msra.mxu0 0.0
        %8694 = vmatprep.subr.mxu0 0.0
        %8695 = vmatpush2.msra.mxu0 0.0
        %8696 = vmatprep.subr.mxu0 0.0
        %8697 = vmatpush2.msra.mxu0 0.0
        %8698 = vmatprep.subr.mxu0 0.0
        %8699 = vmatpush2.msra.mxu0 0.0
        %8700 = vmatprep.subr.mxu0 0.0
        %8701 = vmatpush2.msra.mxu0 0.0
        %8702 = vmatprep.subr.mxu0 0.0
        %8703 = vmatpush2.msra.mxu0 0.0
        %8704 = vmatprep.mubr.f32.mxu0 0.0
        %8705 = vmatmul.mubr.f32.gmra.mxu0 %v6832
        %v8706 = vpop.f32.mrf.mxu0
        %v8707 = vadd.f32 %v8402, %v8706
        %v8708 = vpop.f32.mrf.mxu0
        %8709 = vmatprep.mubr.f32.mxu0 0.0
        %8710 = vmatmul.mubr.f32.gmra.mxu0 %v6834
        %v8711 = vpop.f32.mrf.mxu0
        %v8712 = vadd.f32 %v8407, %v8711
        %v8713 = vpop.f32.mrf.mxu0
        %8714 = vmatprep.mubr.f32.mxu0 0.0
        %8715 = vmatmul.mubr.f32.gmra.mxu0 %v6836
        %v8716 = vpop.f32.mrf.mxu0
        %v8717 = vadd.f32 %v8412, %v8716
        %v8718 = vpop.f32.mrf.mxu0
        %8719 = vmatprep.mubr.f32.mxu0 0.0
        %8720 = vmatmul.mubr.f32.gmra.mxu0 %v6838
        %v8721 = vpop.f32.mrf.mxu0
        %v8722 = vadd.f32 %v8417, %v8721
        %v8723 = vpop.f32.mrf.mxu0
        %8724 = vmatprep.mubr.f32.mxu0 0.0
        %8725 = vmatmul.mubr.f32.gmra.mxu0 %v6840
        %v8726 = vpop.f32.mrf.mxu0
        %v8727 = vadd.f32 %v8422, %v8726
        %v8728 = vpop.f32.mrf.mxu0
        %8729 = vmatprep.mubr.f32.mxu0 0.0
        %8730 = vmatmul.mubr.f32.gmra.mxu0 %v6842
        %v8731 = vpop.f32.mrf.mxu0
        %v8732 = vadd.f32 %v8427, %v8731
        %v8733 = vpop.f32.mrf.mxu0
        %8734 = vmatprep.mubr.f32.mxu0 0.0
        %8735 = vmatmul.mubr.f32.gmra.mxu0 %v6844
        %v8736 = vpop.f32.mrf.mxu0
        %v8737 = vadd.f32 %v8432, %v8736
        %v8738 = vpop.f32.mrf.mxu0
        %8739 = vmatprep.mubr.f32.mxu0 0.0
        %8740 = vmatmul.mubr.f32.gmra.mxu0 %v6846
        %v8741 = vpop.f32.mrf.mxu0
        %v8742 = vadd.f32 %v8437, %v8741
        %v8743 = vpop.f32.mrf.mxu0
        %8744 = vmatprep.mubr.f32.mxu0 0.0
        %8745 = vmatmul.mubr.f32.gmra.mxu0 %v6848
        %v8746 = vpop.f32.mrf.mxu0
        %v8747 = vadd.f32 %v8442, %v8746
        %v8748 = vpop.f32.mrf.mxu0
        %8749 = vmatprep.mubr.f32.mxu0 0.0
        %8750 = vmatmul.mubr.f32.gmra.mxu0 %v6850
        %v8751 = vpop.f32.mrf.mxu0
        %v8752 = vadd.f32 %v8447, %v8751
        %v8753 = vpop.f32.mrf.mxu0
        %8754 = vmatprep.mubr.f32.mxu0 0.0
        %8755 = vmatmul.mubr.f32.gmra.mxu0 %v6852
        %v8756 = vpop.f32.mrf.mxu0
        %v8757 = vadd.f32 %v8452, %v8756
        %v8758 = vpop.f32.mrf.mxu0
        %8759 = vmatprep.mubr.f32.mxu0 0.0
        %8760 = vmatmul.mubr.f32.gmra.mxu0 %v6854
        %v8761 = vpop.f32.mrf.mxu0
        %v8762 = vadd.f32 %v8457, %v8761
        %v8763 = vpop.f32.mrf.mxu0
        %8764 = vmatprep.mubr.f32.mxu0 0.0
        %8765 = vmatmul.mubr.f32.gmra.mxu0 %v6856
        %v8766 = vpop.f32.mrf.mxu0
        %v8767 = vadd.f32 %v8462, %v8766
        %v8768 = vpop.f32.mrf.mxu0
        %8769 = vmatprep.mubr.f32.mxu0 0.0
        %8770 = vmatmul.mubr.f32.gmra.mxu0 %v6858
        %v8771 = vpop.f32.mrf.mxu0
        %v8772 = vadd.f32 %v8467, %v8771
        %v8773 = vpop.f32.mrf.mxu0
        %8774 = vmatprep.mubr.f32.mxu0 0.0
        %8775 = vmatmul.mubr.f32.gmra.mxu0 %v6860
        %v8776 = vpop.f32.mrf.mxu0
        %v8777 = vadd.f32 %v8472, %v8776
        %v8778 = vpop.f32.mrf.mxu0
        %8779 = vmatprep.mubr.f32.mxu0 0.0
        %8780 = vmatmul.mubr.f32.gmra.mxu0 %v6862
        %v8781 = vpop.f32.mrf.mxu0
        %v8782 = vadd.f32 %v8477, %v8781
        %v8783 = vpop.f32.mrf.mxu0
        %8784 = vmatprep.mubr.f32.mxu0 0.0
        %8785 = vmatmul.mubr.f32.gmra.mxu0 %v6864
        %v8786 = vpop.f32.mrf.mxu0
        %v8787 = vadd.f32 %v8482, %v8786
        %v8788 = vpop.f32.mrf.mxu0
        %8789 = vmatprep.mubr.f32.mxu0 0.0
        %8790 = vmatmul.mubr.f32.gmra.mxu0 %v6866
        %v8791 = vpop.f32.mrf.mxu0
        %v8792 = vadd.f32 %v8487, %v8791
        %v8793 = vpop.f32.mrf.mxu0
        %8794 = vmatprep.mubr.f32.mxu0 0.0
        %8795 = vmatmul.mubr.f32.gmra.mxu0 %v6868
        %v8796 = vpop.f32.mrf.mxu0
        %v8797 = vadd.f32 %v8492, %v8796
        %v8798 = vpop.f32.mrf.mxu0
        %8799 = vmatprep.mubr.f32.mxu0 0.0
        %8800 = vmatmul.mubr.f32.gmra.mxu0 %v6870
        %v8801 = vpop.f32.mrf.mxu0
        %v8802 = vadd.f32 %v8497, %v8801
        %v8803 = vpop.f32.mrf.mxu0
        %8804 = vmatprep.mubr.f32.mxu0 0.0
        %8805 = vmatmul.mubr.f32.gmra.mxu0 %v6872
        %v8806 = vpop.f32.mrf.mxu0
        %v8807 = vadd.f32 %v8502, %v8806
        %v8808 = vpop.f32.mrf.mxu0
        %8809 = vmatprep.mubr.f32.mxu0 0.0
        %8810 = vmatmul.mubr.f32.gmra.mxu0 %v6874
        %v8811 = vpop.f32.mrf.mxu0
        %v8812 = vadd.f32 %v8507, %v8811
        %v8813 = vpop.f32.mrf.mxu0
        %8814 = vmatprep.mubr.f32.mxu0 0.0
        %8815 = vmatmul.mubr.f32.gmra.mxu0 %v6876
        %v8816 = vpop.f32.mrf.mxu0
        %v8817 = vadd.f32 %v8512, %v8816
        %v8818 = vpop.f32.mrf.mxu0
        %8819 = vmatprep.mubr.f32.mxu0 0.0
        %8820 = vmatmul.mubr.f32.gmra.mxu0 %v6878
        %v8821 = vpop.f32.mrf.mxu0
        %v8822 = vadd.f32 %v8517, %v8821
        %v8823 = vpop.f32.mrf.mxu0
        %8824 = vmatprep.mubr.f32.mxu0 0.0
        %8825 = vmatmul.mubr.f32.gmra.mxu0 %v6880
        %v8826 = vpop.f32.mrf.mxu0
        %v8827 = vadd.f32 %v8522, %v8826
        %v8828 = vpop.f32.mrf.mxu0
        %8829 = vmatprep.mubr.f32.mxu0 0.0
        %8830 = vmatmul.mubr.f32.gmra.mxu0 %v6882
        %v8831 = vpop.f32.mrf.mxu0
        %v8832 = vadd.f32 %v8527, %v8831
        %v8833 = vpop.f32.mrf.mxu0
        %8834 = vmatprep.mubr.f32.mxu0 0.0
        %8835 = vmatmul.mubr.f32.gmra.mxu0 %v6884
        %v8836 = vpop.f32.mrf.mxu0
        %v8837 = vadd.f32 %v8532, %v8836
        %v8838 = vpop.f32.mrf.mxu0
        %8839 = vmatprep.mubr.f32.mxu0 0.0
        %8840 = vmatmul.mubr.f32.gmra.mxu0 %v6886
        %v8841 = vpop.f32.mrf.mxu0
        %v8842 = vadd.f32 %v8537, %v8841
        %v8843 = vpop.f32.mrf.mxu0
        %8844 = vmatprep.mubr.f32.mxu0 0.0
        %8845 = vmatmul.mubr.f32.gmra.mxu0 %v6888
        %v8846 = vpop.f32.mrf.mxu0
        %v8847 = vadd.f32 %v8542, %v8846
        %v8848 = vpop.f32.mrf.mxu0
        %8849 = vmatprep.mubr.f32.mxu0 0.0
        %8850 = vmatmul.mubr.f32.gmra.mxu0 %v6890
        %v8851 = vpop.f32.mrf.mxu0
        %v8852 = vadd.f32 %v8547, %v8851
        %v8853 = vpop.f32.mrf.mxu0
        %8854 = vmatprep.mubr.f32.mxu0 0.0
        %8855 = vmatmul.mubr.f32.gmra.mxu0 %v6892
        %v8856 = vpop.f32.mrf.mxu0
        %v8857 = vadd.f32 %v8552, %v8856
        %v8858 = vpop.f32.mrf.mxu0
        %8859 = vmatprep.mubr.f32.mxu0 0.0
        %8860 = vmatmul.mubr.f32.gmra.mxu0 %v6894
        %v8861 = vpop.f32.mrf.mxu0
        %v8862 = vadd.f32 %v8557, %v8861
        %v8863 = vpop.f32.mrf.mxu0
        %8864 = vmatprep.mubr.f32.mxu0 0.0
        %8865 = vmatmul.mubr.f32.gmra.mxu0 %v6896
        %v8866 = vpop.f32.mrf.mxu0
        %v8867 = vadd.f32 %v8562, %v8866
        %v8868 = vpop.f32.mrf.mxu0
        %8869 = vmatprep.mubr.f32.mxu0 0.0
        %8870 = vmatmul.mubr.f32.gmra.mxu0 %v6898
        %v8871 = vpop.f32.mrf.mxu0
        %v8872 = vadd.f32 %v8567, %v8871
        %v8873 = vpop.f32.mrf.mxu0
        %8874 = vmatprep.mubr.f32.mxu0 0.0
        %8875 = vmatmul.mubr.f32.gmra.mxu0 %v6900
        %v8876 = vpop.f32.mrf.mxu0
        %v8877 = vadd.f32 %v8572, %v8876
        %v8878 = vpop.f32.mrf.mxu0
        %8879 = vmatprep.mubr.f32.mxu0 0.0
        %8880 = vmatmul.mubr.f32.gmra.mxu0 %v6902
        %v8881 = vpop.f32.mrf.mxu0
        %v8882 = vadd.f32 %v8577, %v8881
        %v8883 = vpop.f32.mrf.mxu0
        %8884 = vmatprep.mubr.f32.mxu0 0.0
        %8885 = vmatmul.mubr.f32.gmra.mxu0 %v6904
        %v8886 = vpop.f32.mrf.mxu0
        %v8887 = vadd.f32 %v8582, %v8886
        %v8888 = vpop.f32.mrf.mxu0
        %8889 = vmatprep.mubr.f32.mxu0 0.0
        %8890 = vmatmul.mubr.f32.gmra.mxu0 %v6906
        %v8891 = vpop.f32.mrf.mxu0
        %v8892 = vadd.f32 %v8587, %v8891
        %v8893 = vpop.f32.mrf.mxu0
        %8894 = vmatprep.mubr.f32.mxu0 0.0
        %8895 = vmatmul.mubr.f32.gmra.mxu0 %v6908
        %v8896 = vpop.f32.mrf.mxu0
        %v8897 = vadd.f32 %v8592, %v8896
        %v8898 = vpop.f32.mrf.mxu0
        %8899 = vmatprep.mubr.f32.mxu0 0.0
        %8900 = vmatmul.mubr.f32.gmra.mxu0 %v6910
        %v8901 = vpop.f32.mrf.mxu0
        %v8902 = vadd.f32 %v8597, %v8901
        %v8903 = vpop.f32.mrf.mxu0
        %8904 = vmatprep.mubr.f32.mxu0 0.0
        %8905 = vmatmul.mubr.f32.gmra.mxu0 %v6912
        %v8906 = vpop.f32.mrf.mxu0
        %v8907 = vadd.f32 %v8602, %v8906
        %v8908 = vpop.f32.mrf.mxu0
        %8909 = vmatprep.mubr.f32.mxu0 0.0
        %8910 = vmatmul.mubr.f32.gmra.mxu0 %v6914
        %v8911 = vpop.f32.mrf.mxu0
        %v8912 = vadd.f32 %v8607, %v8911
        %v8913 = vpop.f32.mrf.mxu0
        %8914 = vmatprep.mubr.f32.mxu0 0.0
        %8915 = vmatmul.mubr.f32.gmra.mxu0 %v6916
        %v8916 = vpop.f32.mrf.mxu0
        %v8917 = vadd.f32 %v8612, %v8916
        %v8918 = vpop.f32.mrf.mxu0
        %8919 = vmatprep.mubr.f32.mxu0 0.0
        %8920 = vmatmul.mubr.f32.gmra.mxu0 %v6918
        %v8921 = vpop.f32.mrf.mxu0
        %v8922 = vadd.f32 %v8617, %v8921
        %v8923 = vpop.f32.mrf.mxu0
        %8924 = vmatprep.mubr.f32.mxu0 0.0
        %8925 = vmatmul.mubr.f32.gmra.mxu0 %v6919
        %v8926 = vpop.f32.mrf.mxu0
        %v8927 = vadd.f32 %v8622, %v8926
        %v8928 = vpop.f32.mrf.mxu0
        %8929 = vmatprep.mubr.f32.mxu0 0.0
        %8930 = vmatmul.mubr.f32.gmra.mxu0 %v4208
        %v8931 = vpop.f32.mrf.mxu0
        %v8932 = vadd.f32 %v8627, %v8931
        %v8933 = vpop.f32.mrf.mxu0
        %8934 = vmatprep.mubr.f32.mxu0 0.0
        %8935 = vmatmul.mubr.f32.gmra.mxu0 %v4208
        %v8936 = vpop.f32.mrf.mxu0
        %v8937 = vadd.f32 %v8632, %v8936
        %v8938 = vpop.f32.mrf.mxu0
        %8939 = vmatprep.mubr.f32.mxu0 0.0
        %8940 = vmatmul.mubr.f32.gmra.mxu0 %v4357
        %v8941 = vpop.f32.mrf.mxu0
        %v8942 = vadd.f32 %v8637, %v8941
        %v8943 = vpop.f32.mrf.mxu0
        %8944 = vdwg.mxu0
        %v8945 = vadd.f32 %v8048, %v8707
        %v8946 = vadd.f32 %v8053, %v8712
        %v8947 = vadd.f32 %v8058, %v8717
        %v8948 = vadd.f32 %v8063, %v8722
        %v8949 = vadd.f32 %v8068, %v8727
        %v8950 = vadd.f32 %v8073, %v8732
        %v8951 = vadd.f32 %v8078, %v8737
        %v8952 = vadd.f32 %v8083, %v8742
        %v8953 = vadd.f32 %v8088, %v8747
        %v8954 = vadd.f32 %v8093, %v8752
        %v8955 = vadd.f32 %v8098, %v8757
        %v8956 = vadd.f32 %v8103, %v8762
        %v8957 = vadd.f32 %v8108, %v8767
        %v8958 = vadd.f32 %v8113, %v8772
        %v8959 = vadd.f32 %v8118, %v8777
        %v8960 = vadd.f32 %v8123, %v8782
        %v8961 = vadd.f32 %v8128, %v8787
        %v8962 = vadd.f32 %v8133, %v8792
        %v8963 = vadd.f32 %v8138, %v8797
        %v8964 = vadd.f32 %v8143, %v8802
        %v8965 = vadd.f32 %v8148, %v8807
        %v8966 = vadd.f32 %v8153, %v8812
        %v8967 = vadd.f32 %v8158, %v8817
        %v8968 = vadd.f32 %v8163, %v8822
        %v8969 = vadd.f32 %v8168, %v8827
        %v8970 = vadd.f32 %v8173, %v8832
        %v8971 = vadd.f32 %v8178, %v8837
        %v8972 = vadd.f32 %v8183, %v8842
        %v8973 = vadd.f32 %v8188, %v8847
        %v8974 = vadd.f32 %v8193, %v8852
        %v8975 = vadd.f32 %v8198, %v8857
        %v8976 = vadd.f32 %v8203, %v8862
        %v8977 = vadd.f32 %v8208, %v8867
        %v8978 = vadd.f32 %v8213, %v8872
        %v8979 = vadd.f32 %v8218, %v8877
        %v8980 = vadd.f32 %v8223, %v8882
        %v8981 = vadd.f32 %v8228, %v8887
        %v8982 = vadd.f32 %v8233, %v8892
        %v8983 = vadd.f32 %v8238, %v8897
        %v8984 = vadd.f32 %v8243, %v8902
        %v8985 = vadd.f32 %v8248, %v8907
        %v8986 = vadd.f32 %v8253, %v8912
        %v8987 = vadd.f32 %v8258, %v8917
        %v8988 = vadd.f32 %v8263, %v8922
        %v8989 = vadd.f32 %v8268, %v8927
        %v8990 = vadd.f32 %v8273, %v8932
        %v8991 = vadd.f32 %v8278, %v8937
        %v8992 = vadd.f32 %v8283, %v8942
        %v8993 = vld [vmem:[%s6] sm:$0x1]
        %v8995 = vlaneseq
        %v8996 = vshrl.u32 %v8995, 7
        %v8997 = vsub.s32 0, %v8996
        %v8998 = vrot.slane %v8993, %v8997
        %v9000 = vadd.f32 %v8945, %v8998
        %v9001 = vadd.f32 %v8946, %v8998
        %v9002 = vadd.f32 %v8947, %v8998
        %v9003 = vadd.f32 %v8948, %v8998
        %v9004 = vadd.f32 %v8949, %v8998
        %v9005 = vadd.f32 %v8950, %v8998
        %v9006 = vadd.f32 %v8951, %v8998
        %v9007 = vadd.f32 %v8952, %v8998
        %v9008 = vadd.f32 %v8953, %v8998
        %v9009 = vadd.f32 %v8954, %v8998
        %v9010 = vadd.f32 %v8955, %v8998
        %v9011 = vadd.f32 %v8956, %v8998
        %v9012 = vadd.f32 %v8957, %v8998
        %v9013 = vadd.f32 %v8958, %v8998
        %v9014 = vadd.f32 %v8959, %v8998
        %v9015 = vadd.f32 %v8960, %v8998
        %v9016 = vadd.f32 %v8961, %v8998
        %v9017 = vadd.f32 %v8962, %v8998
        %v9018 = vadd.f32 %v8963, %v8998
        %v9019 = vadd.f32 %v8964, %v8998
        %v9020 = vadd.f32 %v8965, %v8998
        %v9021 = vadd.f32 %v8966, %v8998
        %v9022 = vadd.f32 %v8967, %v8998
        %v9023 = vadd.f32 %v8968, %v8998
        %v9024 = vadd.f32 %v8969, %v8998
        %v9025 = vadd.f32 %v8970, %v8998
        %v9026 = vadd.f32 %v8971, %v8998
        %v9027 = vadd.f32 %v8972, %v8998
        %v9028 = vadd.f32 %v8973, %v8998
        %v9029 = vadd.f32 %v8974, %v8998
        %v9030 = vadd.f32 %v8975, %v8998
        %v9031 = vadd.f32 %v8976, %v8998
        %v9032 = vadd.f32 %v8977, %v8998
        %v9033 = vadd.f32 %v8978, %v8998
        %v9034 = vadd.f32 %v8979, %v8998
        %v9035 = vadd.f32 %v8980, %v8998
        %v9036 = vadd.f32 %v8981, %v8998
        %v9037 = vadd.f32 %v8982, %v8998
        %v9038 = vadd.f32 %v8983, %v8998
        %v9039 = vadd.f32 %v8984, %v8998
        %v9040 = vadd.f32 %v8985, %v8998
        %v9041 = vadd.f32 %v8986, %v8998
        %v9042 = vadd.f32 %v8987, %v8998
        %v9043 = vadd.f32 %v8988, %v8998
        %v9044 = vadd.f32 %v8989, %v8998
        %v9045 = vadd.f32 %v8990, %v8998
        %v9046 = vadd.f32 %v8991, %v8998
        %v9047 = vadd.f32 %v8992, %v8998
        %v9048 = vadd.f32 %v9000, %v1305
        %v9049 = vadd.f32 %v9001, %v1306
        %v9050 = vadd.f32 %v9002, %v1307
        %v9051 = vadd.f32 %v9003, %v1308
        %v9052 = vadd.f32 %v9004, %v1309
        %v9053 = vadd.f32 %v9005, %v1310
        %v9054 = vadd.f32 %v9006, %v1311
        %v9055 = vadd.f32 %v9007, %v1312
        %v9056 = vadd.f32 %v9008, %v1313
        %v9057 = vadd.f32 %v9009, %v1314
        %v9058 = vadd.f32 %v9010, %v1315
        %v9059 = vadd.f32 %v9011, %v1316
        %v9060 = vadd.f32 %v9012, %v1317
        %v9061 = vadd.f32 %v9013, %v1318
        %v9062 = vadd.f32 %v9014, %v1319
        %v9063 = vadd.f32 %v9015, %v1320
        %v9064 = vadd.f32 %v9016, %v1321
        %v9065 = vadd.f32 %v9017, %v1322
        %v9066 = vadd.f32 %v9018, %v1323
        %v9067 = vadd.f32 %v9019, %v1324
        %v9068 = vadd.f32 %v9020, %v1325
        %v9069 = vadd.f32 %v9021, %v1326
        %v9070 = vadd.f32 %v9022, %v1327
        %v9071 = vadd.f32 %v9023, %v1328
        %v9072 = vadd.f32 %v9024, %v1329
        %v9073 = vadd.f32 %v9025, %v1330
        %v9074 = vadd.f32 %v9026, %v1331
        %v9075 = vadd.f32 %v9027, %v1332
        %v9076 = vadd.f32 %v9028, %v1333
        %v9077 = vadd.f32 %v9029, %v1334
        %v9078 = vadd.f32 %v9030, %v1335
        %v9079 = vadd.f32 %v9031, %v1336
        %v9080 = vadd.f32 %v9032, %v1337
        %v9081 = vadd.f32 %v9033, %v1338
        %v9082 = vadd.f32 %v9034, %v1339
        %v9083 = vadd.f32 %v9035, %v1340
        %v9084 = vadd.f32 %v9036, %v1341
        %v9085 = vadd.f32 %v9037, %v1342
        %v9086 = vadd.f32 %v9038, %v1343
        %v9087 = vadd.f32 %v9039, %v1344
        %v9088 = vadd.f32 %v9040, %v1345
        %v9089 = vadd.f32 %v9041, %v1346
        %v9090 = vadd.f32 %v9042, %v1347
        %v9091 = vadd.f32 %v9043, %v1348
        %v9092 = vadd.f32 %v9044, %v1349
        %v9093 = vadd.f32 %v9045, %v1350
        %v9094 = vadd.f32 %v9046, %v1351
        %v9095 = vadd.f32 %v9047, %v1352
        %9096 = vst [vmem:[%s340] sm:$0xff] %v9048
        %9097 = vst [vmem:[%s340 + $0x8] sm:$0xff] %v9049
        %9098 = vst [vmem:[%s340 + $0x10] sm:$0xff] %v9050
        %9099 = vst [vmem:[%s340 + $0x18] sm:$0xff] %v9051
        %9100 = vst [vmem:[%s340 + $0x20] sm:$0xff] %v9052
        %9101 = vst [vmem:[%s340 + $0x28] sm:$0xff] %v9053
        %9102 = vst [vmem:[%s340 + $0x30] sm:$0xff] %v9054
        %9103 = vst [vmem:[%s340 + $0x38] sm:$0xff] %v9055
        %9104 = vst [vmem:[%s340 + $0x40] sm:$0xff] %v9056
        %9105 = vst [vmem:[%s340 + $0x48] sm:$0xff] %v9057
        %9106 = vst [vmem:[%s340 + $0x50] sm:$0xff] %v9058
        %9107 = vst [vmem:[%s340 + $0x58] sm:$0xff] %v9059
        %9108 = vst [vmem:[%s340 + $0x60] sm:$0xff] %v9060
        %9109 = vst [vmem:[%s340 + $0x68] sm:$0xff] %v9061
        %9110 = vst [vmem:[%s340 + $0x70] sm:$0xff] %v9062
        %9111 = vst [vmem:[%s340 + $0x78] sm:$0xff] %v9063
        %9112 = vst [vmem:[%s340 + $0x80] sm:$0xff] %v9064
        %9113 = vst [vmem:[%s340 + $0x88] sm:$0xff] %v9065
        %9114 = vst [vmem:[%s340 + $0x90] sm:$0xff] %v9066
        %9115 = vst [vmem:[%s340 + $0x98] sm:$0xff] %v9067
        %9116 = vst [vmem:[%s340 + $0xa0] sm:$0xff] %v9068
        %9117 = vst [vmem:[%s340 + $0xa8] sm:$0xff] %v9069
        %9118 = vst [vmem:[%s340 + $0xb0] sm:$0xff] %v9070
        %9119 = vst [vmem:[%s340 + $0xb8] sm:$0xff] %v9071
        %9120 = vst [vmem:[%s340 + $0xc0] sm:$0xff] %v9072
        %9121 = vst [vmem:[%s340 + $0xc8] sm:$0xff] %v9073
        %9122 = vst [vmem:[%s340 + $0xd0] sm:$0xff] %v9074
        %9123 = vst [vmem:[%s340 + $0xd8] sm:$0xff] %v9075
        %9124 = vst [vmem:[%s340 + $0xe0] sm:$0xff] %v9076
        %9125 = vst [vmem:[%s340 + $0xe8] sm:$0xff] %v9077
        %9126 = vst [vmem:[%s340 + $0xf0] sm:$0xff] %v9078
        %9127 = vst [vmem:[%s340 + $0xf8] sm:$0xff] %v9079
        %9128 = vst [vmem:[%s340 + $0x100] sm:$0xff] %v9080
        %9129 = vst [vmem:[%s340 + $0x108] sm:$0xff] %v9081
        %9130 = vst [vmem:[%s340 + $0x110] sm:$0xff] %v9082
        %9131 = vst [vmem:[%s340 + $0x118] sm:$0xff] %v9083
        %9132 = vst [vmem:[%s340 + $0x120] sm:$0xff] %v9084
        %9133 = vst [vmem:[%s340 + $0x128] sm:$0xff] %v9085
        %9134 = vst [vmem:[%s340 + $0x130] sm:$0xff] %v9086
        %9135 = vst [vmem:[%s340 + $0x138] sm:$0xff] %v9087
        %9136 = vst [vmem:[%s340 + $0x140] sm:$0xff] %v9088
        %9137 = vst [vmem:[%s340 + $0x148] sm:$0xff] %v9089
        %9138 = vst [vmem:[%s340 + $0x150] sm:$0xff] %v9090
        %9139 = vst [vmem:[%s340 + $0x158] sm:$0xff] %v9091
        %9140 = vst [vmem:[%s340 + $0x160] sm:$0xff] %v9092
        %9141 = vst [vmem:[%s340 + $0x168] sm:$0xff] %v9093
        %9142 = vst [vmem:[%s340 + $0x170] sm:$0xff] %v9094
        %9143 = vst [vmem:[%s340 + $0x178] sm:$0xff] %v9095
        %s9144 = sand.u32 %s186, 1
        %s9145 = scalar_lea.sflag [#allocation4], %s9144
        %s9146 = sand.u32 %s186, 1
        %s9147 = smul.addr %s9146, 384
        %s9148 = scalar_lea.vmem [#allocation10], %s9147
        // Predicated region
        $region65: #{tpu_custom_call.1} parent=47 // pred_check
          %p9149 = pneg %p196
        $region66: #{tpu_custom_call.1} parent=47 // pred_check_branch
          %9151 = sbr.rel (%p9149) target = $region68
        $region67: #{tpu_custom_call.1} parent=47 // pred_region
          %s9153 = ssub.s32 6144, 6144
          %9154 = vsyncadd %s9145, %s9153
          %s9155 = smul.addr %s26, 48
          %s9156 = smul.addr %s9155, 128
          %s9157 = scalar_lea.hbm %s7, %s9156
          %s9158 = sshll.u32 %s9148, 4
          %s9159 = int_to_ptr.vmem [resolvable:$true] %s9158
          %9164 = dma.vmem_to_hbm [thread:$0]  %s9159, 6144, %s9157, %s9145, 128, 128, 8
        $region68: #{tpu_custom_call.1} parent=47 // pred_fallthru
          _
      $region48: #{tpu_custom_call.1} parent=5 // pred_fallthru
        _
      %p9165 = scmp.le.s32.totalorder 2, %s21
      // Predicated region
      $region69: #{tpu_custom_call.1} parent=5 // pred_check
        %p9166 = pneg %p9165
      $region70: #{tpu_custom_call.1} parent=5 // pred_check_branch
        %9168 = sbr.rel (%p9166) target = $region72
      $region71: #{tpu_custom_call.1} parent=5 // pred_region
        %s9169 = ssub.s32 %s21, 2
        // Predicated region
        $region73: #{tpu_custom_call.1} parent=71 // pred_check
          %p9170 = pneg %p202
        $region74: #{tpu_custom_call.1} parent=71 // pred_check_branch
          %9172 = sbr.rel (%p9170) target = $region76
        $region75: #{tpu_custom_call.1} parent=71 // pred_region
          %s9173 = sand.u32 %s187, 1
          %s9174 = scalar_lea.sflag [#allocation4], %s9173
          %s9175 = sand.u32 %s187, 1
          %s9176 = smul.addr %s9175, 384
          %s9177 = scalar_lea.vmem [#allocation10], %s9176
          %9178 = dma.done %s9174, 6144
        $region76: #{tpu_custom_call.1} parent=71 // pred_fallthru
          _
      $region72: #{tpu_custom_call.1} parent=5 // pred_fallthru
        _
    $region6: #{tpu_custom_call.1} parent=1 // loop_footer
      %s25 = sadd.s32 1, %s21
    $region7: #{tpu_custom_call.1} parent=1 // loop_footer_branch
      %20 = sbr.rel target = $region3
    $region8: #{tpu_custom_call.1} parent=1 // loop_exit
      _
    %9179 = vsyncpa [#allocation3], 1
    %s9180 = scalar_lea.sflag [#allocation3], 1
    %9181 = vsyncpa %s9180, 1
    %9182 = vsyncpa [#allocation6], 1
    %9183 = vsyncpa [#allocation9], 1
    %9184 = vsyncpa [#allocation4], 1
    %s9185 = scalar_lea.sflag [#allocation4], 1
    %9186 = vsyncpa %s9185, 1

</llo_original>
